<compile_context>
chip_gen: v5e
topology: v5e:2x2
jax: 0.10.0
libtpu: 0.0.40
codegen_flags: <defaults>
</compile_context>

<pallas_src>
import math

import jax
import jax.numpy as jnp
from jax.experimental import pallas as pl
from jax.experimental.pallas import tpu as pltpu

EPS = 1e-5          # PyTorch BatchNorm2d default eps
CPAD = 128          # lane-dense channel padding (vreg lane width) -> unmasked stores
STEM_CIN_PAD = 8    # pad the 3-channel image to 8 so the stem GEMM K (=9*8) is aligned


def make_divisible(v, divisible_by=8, min_value=None):
    if min_value is None:
        min_value = divisible_by
    new_v = max(min_value, int(v + divisible_by / 2) // divisible_by * divisible_by)
    if new_v < 0.9 * v:
        new_v += divisible_by
    return new_v


# ------------- Pallas fused GEMM: X@W + bias (+skip) (+Xs@Wp), ReLU, bf16 out -------------

def _make_kernel(relu, has_skip, has_proj):
    def finish(acc, o_ref):
        if relu:
            acc = jnp.maximum(acc, 0.0)
        o_ref[...] = acc.astype(o_ref.dtype)

    if has_proj:
        def kernel(x_ref, w_ref, b_ref, x2_ref, w2_ref, o_ref):
            acc = jnp.dot(x_ref[...], w_ref[...], preferred_element_type=jnp.float32)
            acc = acc + jnp.dot(x2_ref[...], w2_ref[...], preferred_element_type=jnp.float32)
            acc = acc + b_ref[...]
            finish(acc, o_ref)
    elif has_skip:
        def kernel(x_ref, w_ref, b_ref, s_ref, o_ref):
            acc = jnp.dot(x_ref[...], w_ref[...], preferred_element_type=jnp.float32)
            acc = acc + b_ref[...] + s_ref[...].astype(jnp.float32)
            finish(acc, o_ref)
    else:
        def kernel(x_ref, w_ref, b_ref, o_ref):
            acc = jnp.dot(x_ref[...], w_ref[...], preferred_element_type=jnp.float32)
            acc = acc + b_ref[...]
            finish(acc, o_ref)
    return kernel


def _pick_tm(M):
    """Row tile: full block for small M, else split so the grid has >=2 parallel
    steps (both v7x TensorCores get work) and tiles stay VMEM-friendly."""
    if M <= 256:
        return M
    for tm in (256, 128, 64, 32, 16, 8):
        if M % tm == 0:
            return tm
    return M  # TODO(synk): ragged-M tail handling (never hit by this config)


def _tile_bytes(shape, itemsize):
    # VMEM tiles pad sublanes to 8 and lanes to 128
    r = ((shape[0] + 7) // 8) * 8
    c = ((shape[1] + 127) // 128) * 128
    return r * c * itemsize


def fused_gemm(x, w, bias, *, relu=True, skip=None, x2=None, w2=None,
               out_dtype=jnp.bfloat16):
    """out[M, N] = act(x @ w + bias [+ skip] [+ x2 @ w2]); bf16 operands, f32 accumulation."""
    M, K = x.shape
    K_w, N = w.shape
    assert K == K_w
    has_skip = skip is not None
    has_proj = x2 is not None
    assert not (has_skip and has_proj)

    tm = _pick_tm(M)
    grid = (M // tm,)
    bias = bias.reshape(1, N)

    in_specs = [
        pl.BlockSpec((tm, K), lambda i: (i, 0)),
        pl.BlockSpec((K, N), lambda i: (0, 0)),
        pl.BlockSpec((1, N), lambda i: (0, 0)),
    ]
    args = [x, w, bias]
    if has_skip:
        in_specs.append(pl.BlockSpec((tm, N), lambda i: (i, 0)))
        args.append(skip)
    if has_proj:
        K2 = x2.shape[1]
        in_specs.append(pl.BlockSpec((tm, K2), lambda i: (i, 0)))
        in_specs.append(pl.BlockSpec((K2, N), lambda i: (0, 0)))
        args += [x2, w2]

    # VMEM guard (v7x: 64 MiB physical / 32 MiB default scoped): size the limit from
    # the actual (sublane/lane-padded) tiles with double-buffering headroom.
    est = sum(_tile_bytes(s.block_shape, a.dtype.itemsize) for s, a in zip(in_specs, args))
    est += _tile_bytes((tm, N), jnp.dtype(out_dtype).itemsize)
    vmem_limit = int(min(64 * 1024 * 1024, max(8 * 1024 * 1024, 4 * est)))

    return pl.pallas_call(
        _make_kernel(relu, has_skip, has_proj),
        out_shape=jax.ShapeDtypeStruct((M, N), out_dtype),
        grid=grid,
        in_specs=in_specs,
        out_specs=pl.BlockSpec((tm, N), lambda i: (i, 0)),
        compiler_params=pltpu.CompilerParams(
            dimension_semantics=("parallel",),
            vmem_limit_bytes=vmem_limit),
    )(*args)


# ------------------------------ conv lowering glue (plain JAX) ------------------------------

def _im2col(x, kh, kw, stride, padding):
    """x: (N, H, W, C) bf16 -> (N*Ho*Wo, kh*kw*C) bf16; tap-major, channel-minor.
    Kept in bf16 to halve HBM traffic of the materialized patches.
    TODO(synk): for large feature maps this should become an in-kernel 9-tap K-reduction
    (shifted BlockSpecs / strided loads) instead of a materialized im2col."""
    if padding > 0:
        x = jnp.pad(x, ((0, 0), (padding, padding), (padding, padding), (0, 0)))
    n, hp, wp, c = x.shape
    ho = (hp - kh) // stride + 1
    wo = (wp - kw) // stride + 1
    cols = []
    for ki in range(kh):
        for kj in range(kw):
            cols.append(x[:, ki:ki + (ho - 1) * stride + 1:stride,
                            kj:kj + (wo - 1) * stride + 1:stride, :])
    patches = jnp.concatenate(cols, axis=-1)
    return patches.reshape(n * ho * wo, kh * kw * c), ho, wo


# -------------------------- parameter construction + BN/group folding --------------------------

def _raw_conv_bn(key, cout, cin_g, kh, kw):
    """Random conv weight + BatchNorm stats, as the PyTorch module would hold them."""
    k1, k2, k3, k4, k5 = jax.random.split(key, 5)
    fan_in = cin_g * kh * kw
    w = jax.random.normal(k1, (cout, cin_g, kh, kw), jnp.float32) / math.sqrt(fan_in)
    gamma = 1.0 + 0.1 * jax.random.normal(k2, (cout,), jnp.float32)
    beta = 0.1 * jax.random.normal(k3, (cout,), jnp.float32)
    mean = 0.1 * jax.random.normal(k4, (cout,), jnp.float32)
    var = 1.0 + 0.1 * jax.random.uniform(k5, (cout,), jnp.float32)
    scale = gamma / jnp.sqrt(var + EPS)          # folded inference BatchNorm
    bias = beta - mean * scale
    return w, scale, bias


def _fold_weight(w, scale, groups, cin_pad, cout_pad):
    """PyTorch (Cout, Cin/groups, kh, kw) conv weight + BN scale -> GEMM weight
    (kh*kw*cin_pad, cout_pad) bf16.  Grouped convs become a block-diagonal matrix
    (one fused GEMM, no per-group launches); padded rows/cols are zero so channel
    padding never leaks into real channels."""
    cout, cin_g, kh, kw = w.shape
    cout_g = cout // groups
    w = w * scale[:, None, None, None]                      # fold BN scale into the weight
    wd = jnp.zeros((kh * kw, cin_pad, cout_pad), jnp.float32)
    for gi in range(groups):
        blk = w[gi * cout_g:(gi + 1) * cout_g]              # (cout_g, cin_g, kh, kw)
        blk = jnp.transpose(blk, (2, 3, 1, 0)).reshape(kh * kw, cin_g, cout_g)
        wd = wd.at[:, gi * cin_g:(gi + 1) * cin_g, gi * cout_g:(gi + 1) * cout_g].set(blk)
    return wd.reshape(kh * kw * cin_pad, cout_pad).astype(jnp.bfloat16)


def _pad_bias(b, cout_pad):
    return jnp.zeros((cout_pad,), jnp.float32).at[:b.shape[0]].set(b)


def build_regnet_params(key, d, w, g, num_classes=10, b=1):
    keys = iter(jax.random.split(key, 64))
    params = {}

    stem_c = 32
    ws, ss, bs = _raw_conv_bn(next(keys), stem_c, 3, 3, 3)   # Conv2d(3, 32, 3, s=2, p=1)
    params["stem_w"] = _fold_weight(ws, ss, 1, STEM_CIN_PAD, CPAD)
    params["stem_b"] = _pad_bias(bs, CPAD)

    blocks = []
    block_cfg = []
    in_c = stem_c
    for si in range(4):
        out_c = w[si]
        for bi in range(d[si]):
            stride = 2 if bi == 0 else 1
            width = make_divisible(out_c * b)
            groups = width // g
            w1, s1, b1 = _raw_conv_bn(next(keys), width, in_c, 1, 1)
            w2, s2, b2 = _raw_conv_bn(next(keys), width, width // groups, 3, 3)
            w3, s3, b3 = _raw_conv_bn(next(keys), out_c, width, 1, 1)
            has_proj = (in_c != out_c or stride != 1)
            blk = {
                "w1": _fold_weight(w1, s1, 1, CPAD, CPAD), "b1": _pad_bias(b1, CPAD),
                "w2": _fold_weight(w2, s2, groups, CPAD, CPAD), "b2": _pad_bias(b2, CPAD),
                "w3": _fold_weight(w3, s3, 1, CPAD, CPAD),
            }
            bias3 = _pad_bias(b3, CPAD)
            if has_proj:
                wp, sp, bp = _raw_conv_bn(next(keys), out_c, in_c, 1, 1)
                blk["wp"] = _fold_weight(wp, sp, 1, CPAD, CPAD)
                bias3 = bias3 + _pad_bias(bp, CPAD)       # both BN biases share one epilogue
            blk["b3"] = bias3
            blocks.append(blk)
            block_cfg.append((stride, has_proj))
            in_c = out_c
    params["blocks"] = blocks

    k1, k2 = jax.random.split(next(keys))
    params["head_w"] = jax.random.normal(k1, (num_classes, w[3]), jnp.float32) / math.sqrt(w[3])
    params["head_b"] = 0.1 * jax.random.normal(k2, (num_classes,), jnp.float32)

    cfg = (tuple(block_cfg), w[3])                          # static (hashable) metadata
    return params, cfg


# ------------------------------------------- forward -------------------------------------------

def regnet_forward(params, x_nchw, cfg):
    block_cfg, c_final = cfg
    n = x_nchw.shape[0]

    # NCHW -> NHWC, bf16 activations end-to-end (MXU-friendly, halves HBM traffic)
    x = jnp.transpose(x_nchw, (0, 2, 3, 1)).astype(jnp.bfloat16)
    x = jnp.pad(x, ((0, 0), (0, 0), (0, 0), (0, STEM_CIN_PAD - x.shape[-1])))

    # Stem: Conv 3x3 s2 p1 + BN + ReLU  (one fused GEMM)
    patches, ho, wo = _im2col(x, 3, 3, 2, 1)
    x = fused_gemm(patches, params["stem_w"], params["stem_b"], relu=True)
    x = x.reshape(n, ho, wo, CPAD)

    for blk, (stride, has_proj) in zip(params["blocks"], block_cfg):
        hh, ww = x.shape[1], x.shape[2]
        # conv1 1x1 + BN + ReLU
        y = fused_gemm(x.reshape(n * hh * ww, CPAD), blk["w1"], blk["b1"], relu=True)
        y = y.reshape(n, hh, ww, CPAD)
        # conv2 3x3 grouped (groups folded into a block-diagonal weight) + BN + ReLU
        patches, ho, wo = _im2col(y, 3, 3, stride, 1)
        y = fused_gemm(patches, blk["w2"], blk["b2"], relu=True)
        # TODO(synk): SE branch (se=True) not implemented; this config uses se=False -> nn.Identity
        # conv3 1x1 + BN, residual (identity, or 1x1-stride projection conv + BN), final ReLU:
        # the whole stage epilogue is a single kernel (projection GEMM fused in).
        if has_proj:
            xs = x[:, ::stride, ::stride, :].reshape(n * ho * wo, CPAD)
            x = fused_gemm(y, blk["w3"], blk["b3"], relu=True, x2=xs, w2=blk["wp"])
        else:
            x = fused_gemm(y, blk["w3"], blk["b3"], relu=True,
                           skip=x.reshape(n * ho * wo, CPAD))
        x = x.reshape(n, ho, wo, CPAD)

    # Head: AdaptiveAvgPool2d(1) + Flatten + Linear — a 2x64x10 GEMM is pure launch
    # overhead, so it stays in plain jnp (f32).
    pooled = jnp.mean(x.astype(jnp.float32), axis=(1, 2))[:, :c_final]
    return pooled @ params["head_w"].T + params["head_b"]


if __name__ == "__main__":
    key = jax.random.PRNGKey(0)
    kp, kx = jax.random.split(key)

    # Small RegNet config: d, w, g, b=1, se=False, out_strides=None (classification path)
    d = [1, 1, 1, 1]
    w = [8, 16, 32, 64]
    g = 8
    num_classes = 10

    params, cfg = build_regnet_params(kp, d, w, g, num_classes=num_classes, b=1)
    x = jax.random.normal(kx, (2, 3, 32, 32), jnp.float32)   # NCHW, matches PyTorch input

    fwd = jax.jit(regnet_forward, static_argnums=2)
    out = jax.block_until_ready(fwd(params, x, cfg))
    assert out.shape == (2, num_classes), out.shape
    assert bool(jnp.all(jnp.isfinite(out)))
    print("KERNEL_OK")
</pallas_src>

<mosaic_0001>
module attributes {stable_mosaic.version = 11 : i64} {
  func.func @kernel(%arg0: i32, %arg1: memref<256x128xbf16, #tpu.memory_space<vmem>>, %arg2: memref<128x128xbf16, #tpu.memory_space<vmem>>, %arg3: memref<1x128xf32, #tpu.memory_space<vmem>>, %arg4: memref<256x128xbf16, #tpu.memory_space<vmem>>) attributes {dimension_semantics = [#tpu.dimension_semantics<parallel>], iteration_bounds = array<i64: 2>, scalar_prefetch = 0 : i64, scratch_operands = 0 : i64, tpu.core_type = #tpu.core_type<tc>, window_params = [{transform_indices = @transform_0, window_bounds = array<i64: 256, 128>}, {pipeline_mode = #tpu.pipeline_mode<synchronous>, transform_indices = @transform_1, window_bounds = array<i64: 128, 128>}, {pipeline_mode = #tpu.pipeline_mode<synchronous>, transform_indices = @transform_2, window_bounds = array<i64: 1, 128>}, {transform_indices = @transform_3, window_bounds = array<i64: 256, 128>}]} {
    %c0 = arith.constant 0 : index
    %c0_0 = arith.constant 0 : index
    %0 = vector.load %arg1[%c0, %c0_0] : memref<256x128xbf16, #tpu.memory_space<vmem>>, vector<256x128xbf16>
    %c0_1 = arith.constant 0 : index
    %c0_2 = arith.constant 0 : index
    %1 = vector.load %arg2[%c0_1, %c0_2] : memref<128x128xbf16, #tpu.memory_space<vmem>>, vector<128x128xbf16>
    %cst = arith.constant dense<0.000000e+00> : vector<256x128xf32>
    %2 = tpu.matmul %0, %1, %cst {dimension_numbers = #tpu.dot_dimension_numbers<[1], [0], [0], [1], [0, 0, 1, 1], [], []>} : vector<256x128xbf16>, vector<128x128xbf16>, vector<256x128xf32> -> vector<256x128xf32>
    %c0_3 = arith.constant 0 : index
    %c0_4 = arith.constant 0 : index
    %3 = vector.load %arg3[%c0_3, %c0_4] : memref<1x128xf32, #tpu.memory_space<vmem>>, vector<1x128xf32>
    %4 = vector.broadcast %3 : vector<1x128xf32> to vector<256x128xf32>
    %5 = arith.addf %2, %4 : vector<256x128xf32>
    %cst_5 = arith.constant 0.000000e+00 : f32
    %6 = vector.broadcast %cst_5 : f32 to vector<256x128xf32>
    %7 = arith.maximumf %5, %6 : vector<256x128xf32>
    %8 = arith.truncf %7 : vector<256x128xf32> to vector<256x128xbf16>
    %c0_6 = arith.constant 0 : index
    %c0_7 = arith.constant 0 : index
    %9 = vector.load %arg4[%c0_6, %c0_7] : memref<256x128xbf16, #tpu.memory_space<vmem>>, vector<256x128xbf16>
    tpu.vector_store %arg4[%c0_6, %c0_7], %8 {strides = array<i32>} : memref<256x128xbf16, #tpu.memory_space<vmem>>, vector<256x128xbf16>,
    return
  }
  func.func @transform_0(%arg0: i32) -> (i32, i32) {
    %c0_i32 = arith.constant 0 : i32
    %c0_i32_0 = arith.constant 0 : i32
    return %arg0, %c0_i32 : i32, i32
  }
  func.func @transform_1(%arg0: i32) -> (i32, i32) {
    %c0_i32 = arith.constant 0 : i32
    %c0_i32_0 = arith.constant 0 : i32
    %c0_i32_1 = arith.constant 0 : i32
    return %c0_i32, %c0_i32_0 : i32, i32
  }
  func.func @transform_2(%arg0: i32) -> (i32, i32) {
    %c0_i32 = arith.constant 0 : i32
    %c0_i32_0 = arith.constant 0 : i32
    %c0_i32_1 = arith.constant 0 : i32
    return %c0_i32, %c0_i32_0 : i32, i32
  }
  func.func @transform_3(%arg0: i32) -> (i32, i32) {
    %c0_i32 = arith.constant 0 : i32
    %c0_i32_0 = arith.constant 0 : i32
    return %arg0, %c0_i32 : i32, i32
  }
}

module attributes {stable_mosaic.version = 11 : i64} {
  func.func @kernel(%arg0: i32, %arg1: memref<256x72xbf16, #tpu.memory_space<vmem>>, %arg2: memref<72x128xbf16, #tpu.memory_space<vmem>>, %arg3: memref<1x128xf32, #tpu.memory_space<vmem>>, %arg4: memref<256x128xbf16, #tpu.memory_space<vmem>>) attributes {dimension_semantics = [#tpu.dimension_semantics<parallel>], iteration_bounds = array<i64: 2>, scalar_prefetch = 0 : i64, scratch_operands = 0 : i64, tpu.core_type = #tpu.core_type<tc>, window_params = [{transform_indices = @transform_0, window_bounds = array<i64: 256, 72>}, {pipeline_mode = #tpu.pipeline_mode<synchronous>, transform_indices = @transform_1, window_bounds = array<i64: 72, 128>}, {pipeline_mode = #tpu.pipeline_mode<synchronous>, transform_indices = @transform_2, window_bounds = array<i64: 1, 128>}, {transform_indices = @transform_3, window_bounds = array<i64: 256, 128>}]} {
    %c0 = arith.constant 0 : index
    %c0_0 = arith.constant 0 : index
    %0 = vector.load %arg1[%c0, %c0_0] : memref<256x72xbf16, #tpu.memory_space<vmem>>, vector<256x72xbf16>
    %c0_1 = arith.constant 0 : index
    %c0_2 = arith.constant 0 : index
    %1 = vector.load %arg2[%c0_1, %c0_2] : memref<72x128xbf16, #tpu.memory_space<vmem>>, vector<72x128xbf16>
    %cst = arith.constant dense<0.000000e+00> : vector<256x128xf32>
    %2 = tpu.matmul %0, %1, %cst {dimension_numbers = #tpu.dot_dimension_numbers<[1], [0], [0], [1], [0, 0, 1, 1], [], []>} : vector<256x72xbf16>, vector<72x128xbf16>, vector<256x128xf32> -> vector<256x128xf32>
    %c0_3 = arith.constant 0 : index
    %c0_4 = arith.constant 0 : index
    %3 = vector.load %arg3[%c0_3, %c0_4] : memref<1x128xf32, #tpu.memory_space<vmem>>, vector<1x128xf32>
    %4 = vector.broadcast %3 : vector<1x128xf32> to vector<256x128xf32>
    %5 = arith.addf %2, %4 : vector<256x128xf32>
    %cst_5 = arith.constant 0.000000e+00 : f32
    %6 = vector.broadcast %cst_5 : f32 to vector<256x128xf32>
    %7 = arith.maximumf %5, %6 : vector<256x128xf32>
    %8 = arith.truncf %7 : vector<256x128xf32> to vector<256x128xbf16>
    %c0_6 = arith.constant 0 : index
    %c0_7 = arith.constant 0 : index
    %9 = vector.load %arg4[%c0_6, %c0_7] : memref<256x128xbf16, #tpu.memory_space<vmem>>, vector<256x128xbf16>
    tpu.vector_store %arg4[%c0_6, %c0_7], %8 {strides = array<i32>} : memref<256x128xbf16, #tpu.memory_space<vmem>>, vector<256x128xbf16>,
    return
  }
  func.func @transform_0(%arg0: i32) -> (i32, i32) {
    %c0_i32 = arith.constant 0 : i32
    %c0_i32_0 = arith.constant 0 : i32
    return %arg0, %c0_i32 : i32, i32
  }
  func.func @transform_1(%arg0: i32) -> (i32, i32) {
    %c0_i32 = arith.constant 0 : i32
    %c0_i32_0 = arith.constant 0 : i32
    %c0_i32_1 = arith.constant 0 : i32
    return %c0_i32, %c0_i32_0 : i32, i32
  }
  func.func @transform_2(%arg0: i32) -> (i32, i32) {
    %c0_i32 = arith.constant 0 : i32
    %c0_i32_0 = arith.constant 0 : i32
    %c0_i32_1 = arith.constant 0 : i32
    return %c0_i32, %c0_i32_0 : i32, i32
  }
  func.func @transform_3(%arg0: i32) -> (i32, i32) {
    %c0_i32 = arith.constant 0 : i32
    %c0_i32_0 = arith.constant 0 : i32
    return %arg0, %c0_i32 : i32, i32
  }
}

module attributes {stable_mosaic.version = 11 : i64} {
  func.func @kernel(%arg0: i32, %arg1: memref<128x1152xbf16, #tpu.memory_space<vmem>>, %arg2: memref<1152x128xbf16, #tpu.memory_space<vmem>>, %arg3: memref<1x128xf32, #tpu.memory_space<vmem>>, %arg4: memref<128x128xbf16, #tpu.memory_space<vmem>>) attributes {dimension_semantics = [#tpu.dimension_semantics<parallel>], iteration_bounds = array<i64: 1>, scalar_prefetch = 0 : i64, scratch_operands = 0 : i64, tpu.core_type = #tpu.core_type<tc>, window_params = [{transform_indices = @transform_0, window_bounds = array<i64: 128, 1152>}, {pipeline_mode = #tpu.pipeline_mode<synchronous>, transform_indices = @transform_1, window_bounds = array<i64: 1152, 128>}, {pipeline_mode = #tpu.pipeline_mode<synchronous>, transform_indices = @transform_2, window_bounds = array<i64: 1, 128>}, {transform_indices = @transform_3, window_bounds = array<i64: 128, 128>}]} {
    %c0 = arith.constant 0 : index
    %c0_0 = arith.constant 0 : index
    %0 = vector.load %arg1[%c0, %c0_0] : memref<128x1152xbf16, #tpu.memory_space<vmem>>, vector<128x1152xbf16>
    %c0_1 = arith.constant 0 : index
    %c0_2 = arith.constant 0 : index
    %1 = vector.load %arg2[%c0_1, %c0_2] : memref<1152x128xbf16, #tpu.memory_space<vmem>>, vector<1152x128xbf16>
    %cst = arith.constant dense<0.000000e+00> : vector<128x128xf32>
    %2 = tpu.matmul %0, %1, %cst {dimension_numbers = #tpu.dot_dimension_numbers<[1], [0], [0], [1], [0, 0, 1, 1], [], []>} : vector<128x1152xbf16>, vector<1152x128xbf16>, vector<128x128xf32> -> vector<128x128xf32>
    %c0_3 = arith.constant 0 : index
    %c0_4 = arith.constant 0 : index
    %3 = vector.load %arg3[%c0_3, %c0_4] : memref<1x128xf32, #tpu.memory_space<vmem>>, vector<1x128xf32>
    %4 = vector.broadcast %3 : vector<1x128xf32> to vector<128x128xf32>
    %5 = arith.addf %2, %4 : vector<128x128xf32>
    %cst_5 = arith.constant 0.000000e+00 : f32
    %6 = vector.broadcast %cst_5 : f32 to vector<128x128xf32>
    %7 = arith.maximumf %5, %6 : vector<128x128xf32>
    %8 = arith.truncf %7 : vector<128x128xf32> to vector<128x128xbf16>
    %c0_6 = arith.constant 0 : index
    %c0_7 = arith.constant 0 : index
    %9 = vector.load %arg4[%c0_6, %c0_7] : memref<128x128xbf16, #tpu.memory_space<vmem>>, vector<128x128xbf16>
    tpu.vector_store %arg4[%c0_6, %c0_7], %8 {strides = array<i32>} : memref<128x128xbf16, #tpu.memory_space<vmem>>, vector<128x128xbf16>,
    return
  }
  func.func @transform_0(%arg0: i32) -> (i32, i32) {
    %c0_i32 = arith.constant 0 : i32
    %c0_i32_0 = arith.constant 0 : i32
    return %arg0, %c0_i32 : i32, i32
  }
  func.func @transform_1(%arg0: i32) -> (i32, i32) {
    %c0_i32 = arith.constant 0 : i32
    %c0_i32_0 = arith.constant 0 : i32
    %c0_i32_1 = arith.constant 0 : i32
    return %c0_i32, %c0_i32_0 : i32, i32
  }
  func.func @transform_2(%arg0: i32) -> (i32, i32) {
    %c0_i32 = arith.constant 0 : i32
    %c0_i32_0 = arith.constant 0 : i32
    %c0_i32_1 = arith.constant 0 : i32
    return %c0_i32, %c0_i32_0 : i32, i32
  }
  func.func @transform_3(%arg0: i32) -> (i32, i32) {
    %c0_i32 = arith.constant 0 : i32
    %c0_i32_0 = arith.constant 0 : i32
    return %arg0, %c0_i32 : i32, i32
  }
}

module attributes {stable_mosaic.version = 11 : i64} {
  func.func @kernel(%arg0: i32, %arg1: memref<128x128xbf16, #tpu.memory_space<vmem>>, %arg2: memref<128x128xbf16, #tpu.memory_space<vmem>>, %arg3: memref<1x128xf32, #tpu.memory_space<vmem>>, %arg4: memref<128x128xbf16, #tpu.memory_space<vmem>>) attributes {dimension_semantics = [#tpu.dimension_semantics<parallel>], iteration_bounds = array<i64: 1>, scalar_prefetch = 0 : i64, scratch_operands = 0 : i64, tpu.core_type = #tpu.core_type<tc>, window_params = [{transform_indices = @transform_0, window_bounds = array<i64: 128, 128>}, {pipeline_mode = #tpu.pipeline_mode<synchronous>, transform_indices = @transform_1, window_bounds = array<i64: 128, 128>}, {pipeline_mode = #tpu.pipeline_mode<synchronous>, transform_indices = @transform_2, window_bounds = array<i64: 1, 128>}, {transform_indices = @transform_3, window_bounds = array<i64: 128, 128>}]} {
    %c0 = arith.constant 0 : index
    %c0_0 = arith.constant 0 : index
    %0 = vector.load %arg1[%c0, %c0_0] : memref<128x128xbf16, #tpu.memory_space<vmem>>, vector<128x128xbf16>
    %c0_1 = arith.constant 0 : index
    %c0_2 = arith.constant 0 : index
    %1 = vector.load %arg2[%c0_1, %c0_2] : memref<128x128xbf16, #tpu.memory_space<vmem>>, vector<128x128xbf16>
    %cst = arith.constant dense<0.000000e+00> : vector<128x128xf32>
    %2 = tpu.matmul %0, %1, %cst {dimension_numbers = #tpu.dot_dimension_numbers<[1], [0], [0], [1], [0, 0, 1, 1], [], []>} : vector<128x128xbf16>, vector<128x128xbf16>, vector<128x128xf32> -> vector<128x128xf32>
    %c0_3 = arith.constant 0 : index
    %c0_4 = arith.constant 0 : index
    %3 = vector.load %arg3[%c0_3, %c0_4] : memref<1x128xf32, #tpu.memory_space<vmem>>, vector<1x128xf32>
    %4 = vector.broadcast %3 : vector<1x128xf32> to vector<128x128xf32>
    %5 = arith.addf %2, %4 : vector<128x128xf32>
    %cst_5 = arith.constant 0.000000e+00 : f32
    %6 = vector.broadcast %cst_5 : f32 to vector<128x128xf32>
    %7 = arith.maximumf %5, %6 : vector<128x128xf32>
    %8 = arith.truncf %7 : vector<128x128xf32> to vector<128x128xbf16>
    %c0_6 = arith.constant 0 : index
    %c0_7 = arith.constant 0 : index
    %9 = vector.load %arg4[%c0_6, %c0_7] : memref<128x128xbf16, #tpu.memory_space<vmem>>, vector<128x128xbf16>
    tpu.vector_store %arg4[%c0_6, %c0_7], %8 {strides = array<i32>} : memref<128x128xbf16, #tpu.memory_space<vmem>>, vector<128x128xbf16>,
    return
  }
  func.func @transform_0(%arg0: i32) -> (i32, i32) {
    %c0_i32 = arith.constant 0 : i32
    %c0_i32_0 = arith.constant 0 : i32
    return %arg0, %c0_i32 : i32, i32
  }
  func.func @transform_1(%arg0: i32) -> (i32, i32) {
    %c0_i32 = arith.constant 0 : i32
    %c0_i32_0 = arith.constant 0 : i32
    %c0_i32_1 = arith.constant 0 : i32
    return %c0_i32, %c0_i32_0 : i32, i32
  }
  func.func @transform_2(%arg0: i32) -> (i32, i32) {
    %c0_i32 = arith.constant 0 : i32
    %c0_i32_0 = arith.constant 0 : i32
    %c0_i32_1 = arith.constant 0 : i32
    return %c0_i32, %c0_i32_0 : i32, i32
  }
  func.func @transform_3(%arg0: i32) -> (i32, i32) {
    %c0_i32 = arith.constant 0 : i32
    %c0_i32_0 = arith.constant 0 : i32
    return %arg0, %c0_i32 : i32, i32
  }
}

module attributes {stable_mosaic.version = 11 : i64} {
  func.func @kernel(%arg0: i32, %arg1: memref<128x128xbf16, #tpu.memory_space<vmem>>, %arg2: memref<128x128xbf16, #tpu.memory_space<vmem>>, %arg3: memref<1x128xf32, #tpu.memory_space<vmem>>, %arg4: memref<128x128xbf16, #tpu.memory_space<vmem>>, %arg5: memref<128x128xbf16, #tpu.memory_space<vmem>>, %arg6: memref<128x128xbf16, #tpu.memory_space<vmem>>) attributes {dimension_semantics = [#tpu.dimension_semantics<parallel>], iteration_bounds = array<i64: 1>, scalar_prefetch = 0 : i64, scratch_operands = 0 : i64, tpu.core_type = #tpu.core_type<tc>, window_params = [{transform_indices = @transform_0, window_bounds = array<i64: 128, 128>}, {pipeline_mode = #tpu.pipeline_mode<synchronous>, transform_indices = @transform_1, window_bounds = array<i64: 128, 128>}, {pipeline_mode = #tpu.pipeline_mode<synchronous>, transform_indices = @transform_2, window_bounds = array<i64: 1, 128>}, {transform_indices = @transform_3, window_bounds = array<i64: 128, 128>}, {pipeline_mode = #tpu.pipeline_mode<synchronous>, transform_indices = @transform_4, window_bounds = array<i64: 128, 128>}, {transform_indices = @transform_5, window_bounds = array<i64: 128, 128>}]} {
    %c0 = arith.constant 0 : index
    %c0_0 = arith.constant 0 : index
    %0 = vector.load %arg1[%c0, %c0_0] : memref<128x128xbf16, #tpu.memory_space<vmem>>, vector<128x128xbf16>
    %c0_1 = arith.constant 0 : index
    %c0_2 = arith.constant 0 : index
    %1 = vector.load %arg2[%c0_1, %c0_2] : memref<128x128xbf16, #tpu.memory_space<vmem>>, vector<128x128xbf16>
    %cst = arith.constant dense<0.000000e+00> : vector<128x128xf32>
    %2 = tpu.matmul %0, %1, %cst {dimension_numbers = #tpu.dot_dimension_numbers<[1], [0], [0], [1], [0, 0, 1, 1], [], []>} : vector<128x128xbf16>, vector<128x128xbf16>, vector<128x128xf32> -> vector<128x128xf32>
    %c0_3 = arith.constant 0 : index
    %c0_4 = arith.constant 0 : index
    %3 = vector.load %arg4[%c0_3, %c0_4] : memref<128x128xbf16, #tpu.memory_space<vmem>>, vector<128x128xbf16>
    %c0_5 = arith.constant 0 : index
    %c0_6 = arith.constant 0 : index
    %4 = vector.load %arg5[%c0_5, %c0_6] : memref<128x128xbf16, #tpu.memory_space<vmem>>, vector<128x128xbf16>
    %cst_7 = arith.constant dense<0.000000e+00> : vector<128x128xf32>
    %5 = tpu.matmul %3, %4, %cst_7 {dimension_numbers = #tpu.dot_dimension_numbers<[1], [0], [0], [1], [0, 0, 1, 1], [], []>} : vector<128x128xbf16>, vector<128x128xbf16>, vector<128x128xf32> -> vector<128x128xf32>
    %6 = arith.addf %2, %5 : vector<128x128xf32>
    %c0_8 = arith.constant 0 : index
    %c0_9 = arith.constant 0 : index
    %7 = vector.load %arg3[%c0_8, %c0_9] : memref<1x128xf32, #tpu.memory_space<vmem>>, vector<1x128xf32>
    %8 = vector.broadcast %7 : vector<1x128xf32> to vector<128x128xf32>
    %9 = arith.addf %6, %8 : vector<128x128xf32>
    %cst_10 = arith.constant 0.000000e+00 : f32
    %10 = vector.broadcast %cst_10 : f32 to vector<128x128xf32>
    %11 = arith.maximumf %9, %10 : vector<128x128xf32>
    %12 = arith.truncf %11 : vector<128x128xf32> to vector<128x128xbf16>
    %c0_11 = arith.constant 0 : index
    %c0_12 = arith.constant 0 : index
    %13 = vector.load %arg6[%c0_11, %c0_12] : memref<128x128xbf16, #tpu.memory_space<vmem>>, vector<128x128xbf16>
    tpu.vector_store %arg6[%c0_11, %c0_12], %12 {strides = array<i32>} : memref<128x128xbf16, #tpu.memory_space<vmem>>, vector<128x128xbf16>,
    return
  }
  func.func @transform_0(%arg0: i32) -> (i32, i32) {
    %c0_i32 = arith.constant 0 : i32
    %c0_i32_0 = arith.constant 0 : i32
    return %arg0, %c0_i32 : i32, i32
  }
  func.func @transform_1(%arg0: i32) -> (i32, i32) {
    %c0_i32 = arith.constant 0 : i32
    %c0_i32_0 = arith.constant 0 : i32
    %c0_i32_1 = arith.constant 0 : i32
    return %c0_i32, %c0_i32_0 : i32, i32
  }
  func.func @transform_2(%arg0: i32) -> (i32, i32) {
    %c0_i32 = arith.constant 0 : i32
    %c0_i32_0 = arith.constant 0 : i32
    %c0_i32_1 = arith.constant 0 : i32
    return %c0_i32, %c0_i32_0 : i32, i32
  }
  func.func @transform_3(%arg0: i32) -> (i32, i32) {
    %c0_i32 = arith.constant 0 : i32
    %c0_i32_0 = arith.constant 0 : i32
    return %arg0, %c0_i32 : i32, i32
  }
  func.func @transform_4(%arg0: i32) -> (i32, i32) {
    %c0_i32 = arith.constant 0 : i32
    %c0_i32_0 = arith.constant 0 : i32
    %c0_i32_1 = arith.constant 0 : i32
    return %c0_i32, %c0_i32_0 : i32, i32
  }
  func.func @transform_5(%arg0: i32) -> (i32, i32) {
    %c0_i32 = arith.constant 0 : i32
    %c0_i32_0 = arith.constant 0 : i32
    return %arg0, %c0_i32 : i32, i32
  }
}

module attributes {stable_mosaic.version = 11 : i64} {
  func.func @kernel(%arg0: i32, %arg1: memref<32x1152xbf16, #tpu.memory_space<vmem>>, %arg2: memref<1152x128xbf16, #tpu.memory_space<vmem>>, %arg3: memref<1x128xf32, #tpu.memory_space<vmem>>, %arg4: memref<32x128xbf16, #tpu.memory_space<vmem>>) attributes {dimension_semantics = [#tpu.dimension_semantics<parallel>], iteration_bounds = array<i64: 1>, scalar_prefetch = 0 : i64, scratch_operands = 0 : i64, tpu.core_type = #tpu.core_type<tc>, window_params = [{transform_indices = @transform_0, window_bounds = array<i64: 32, 1152>}, {pipeline_mode = #tpu.pipeline_mode<synchronous>, transform_indices = @transform_1, window_bounds = array<i64: 1152, 128>}, {pipeline_mode = #tpu.pipeline_mode<synchronous>, transform_indices = @transform_2, window_bounds = array<i64: 1, 128>}, {transform_indices = @transform_3, window_bounds = array<i64: 32, 128>}]} {
    %c0 = arith.constant 0 : index
    %c0_0 = arith.constant 0 : index
    %0 = vector.load %arg1[%c0, %c0_0] : memref<32x1152xbf16, #tpu.memory_space<vmem>>, vector<32x1152xbf16>
    %c0_1 = arith.constant 0 : index
    %c0_2 = arith.constant 0 : index
    %1 = vector.load %arg2[%c0_1, %c0_2] : memref<1152x128xbf16, #tpu.memory_space<vmem>>, vector<1152x128xbf16>
    %cst = arith.constant dense<0.000000e+00> : vector<32x128xf32>
    %2 = tpu.matmul %0, %1, %cst {dimension_numbers = #tpu.dot_dimension_numbers<[1], [0], [0], [1], [0, 0, 1, 1], [], []>} : vector<32x1152xbf16>, vector<1152x128xbf16>, vector<32x128xf32> -> vector<32x128xf32>
    %c0_3 = arith.constant 0 : index
    %c0_4 = arith.constant 0 : index
    %3 = vector.load %arg3[%c0_3, %c0_4] : memref<1x128xf32, #tpu.memory_space<vmem>>, vector<1x128xf32>
    %4 = vector.broadcast %3 : vector<1x128xf32> to vector<32x128xf32>
    %5 = arith.addf %2, %4 : vector<32x128xf32>
    %cst_5 = arith.constant 0.000000e+00 : f32
    %6 = vector.broadcast %cst_5 : f32 to vector<32x128xf32>
    %7 = arith.maximumf %5, %6 : vector<32x128xf32>
    %8 = arith.truncf %7 : vector<32x128xf32> to vector<32x128xbf16>
    %c0_6 = arith.constant 0 : index
    %c0_7 = arith.constant 0 : index
    %9 = vector.load %arg4[%c0_6, %c0_7] : memref<32x128xbf16, #tpu.memory_space<vmem>>, vector<32x128xbf16>
    tpu.vector_store %arg4[%c0_6, %c0_7], %8 {strides = array<i32>} : memref<32x128xbf16, #tpu.memory_space<vmem>>, vector<32x128xbf16>,
    return
  }
  func.func @transform_0(%arg0: i32) -> (i32, i32) {
    %c0_i32 = arith.constant 0 : i32
    %c0_i32_0 = arith.constant 0 : i32
    return %arg0, %c0_i32 : i32, i32
  }
  func.func @transform_1(%arg0: i32) -> (i32, i32) {
    %c0_i32 = arith.constant 0 : i32
    %c0_i32_0 = arith.constant 0 : i32
    %c0_i32_1 = arith.constant 0 : i32
    return %c0_i32, %c0_i32_0 : i32, i32
  }
  func.func @transform_2(%arg0: i32) -> (i32, i32) {
    %c0_i32 = arith.constant 0 : i32
    %c0_i32_0 = arith.constant 0 : i32
    %c0_i32_1 = arith.constant 0 : i32
    return %c0_i32, %c0_i32_0 : i32, i32
  }
  func.func @transform_3(%arg0: i32) -> (i32, i32) {
    %c0_i32 = arith.constant 0 : i32
    %c0_i32_0 = arith.constant 0 : i32
    return %arg0, %c0_i32 : i32, i32
  }
}

module attributes {stable_mosaic.version = 11 : i64} {
  func.func @kernel(%arg0: i32, %arg1: memref<32x128xbf16, #tpu.memory_space<vmem>>, %arg2: memref<128x128xbf16, #tpu.memory_space<vmem>>, %arg3: memref<1x128xf32, #tpu.memory_space<vmem>>, %arg4: memref<32x128xbf16, #tpu.memory_space<vmem>>, %arg5: memref<128x128xbf16, #tpu.memory_space<vmem>>, %arg6: memref<32x128xbf16, #tpu.memory_space<vmem>>) attributes {dimension_semantics = [#tpu.dimension_semantics<parallel>], iteration_bounds = array<i64: 1>, scalar_prefetch = 0 : i64, scratch_operands = 0 : i64, tpu.core_type = #tpu.core_type<tc>, window_params = [{transform_indices = @transform_0, window_bounds = array<i64: 32, 128>}, {pipeline_mode = #tpu.pipeline_mode<synchronous>, transform_indices = @transform_1, window_bounds = array<i64: 128, 128>}, {pipeline_mode = #tpu.pipeline_mode<synchronous>, transform_indices = @transform_2, window_bounds = array<i64: 1, 128>}, {transform_indices = @transform_3, window_bounds = array<i64: 32, 128>}, {pipeline_mode = #tpu.pipeline_mode<synchronous>, transform_indices = @transform_4, window_bounds = array<i64: 128, 128>}, {transform_indices = @transform_5, window_bounds = array<i64: 32, 128>}]} {
    %c0 = arith.constant 0 : index
    %c0_0 = arith.constant 0 : index
    %0 = vector.load %arg1[%c0, %c0_0] : memref<32x128xbf16, #tpu.memory_space<vmem>>, vector<32x128xbf16>
    %c0_1 = arith.constant 0 : index
    %c0_2 = arith.constant 0 : index
    %1 = vector.load %arg2[%c0_1, %c0_2] : memref<128x128xbf16, #tpu.memory_space<vmem>>, vector<128x128xbf16>
    %cst = arith.constant dense<0.000000e+00> : vector<32x128xf32>
    %2 = tpu.matmul %0, %1, %cst {dimension_numbers = #tpu.dot_dimension_numbers<[1], [0], [0], [1], [0, 0, 1, 1], [], []>} : vector<32x128xbf16>, vector<128x128xbf16>, vector<32x128xf32> -> vector<32x128xf32>
    %c0_3 = arith.constant 0 : index
    %c0_4 = arith.constant 0 : index
    %3 = vector.load %arg4[%c0_3, %c0_4] : memref<32x128xbf16, #tpu.memory_space<vmem>>, vector<32x128xbf16>
    %c0_5 = arith.constant 0 : index
    %c0_6 = arith.constant 0 : index
    %4 = vector.load %arg5[%c0_5, %c0_6] : memref<128x128xbf16, #tpu.memory_space<vmem>>, vector<128x128xbf16>
    %cst_7 = arith.constant dense<0.000000e+00> : vector<32x128xf32>
    %5 = tpu.matmul %3, %4, %cst_7 {dimension_numbers = #tpu.dot_dimension_numbers<[1], [0], [0], [1], [0, 0, 1, 1], [], []>} : vector<32x128xbf16>, vector<128x128xbf16>, vector<32x128xf32> -> vector<32x128xf32>
    %6 = arith.addf %2, %5 : vector<32x128xf32>
    %c0_8 = arith.constant 0 : index
    %c0_9 = arith.constant 0 : index
    %7 = vector.load %arg3[%c0_8, %c0_9] : memref<1x128xf32, #tpu.memory_space<vmem>>, vector<1x128xf32>
    %8 = vector.broadcast %7 : vector<1x128xf32> to vector<32x128xf32>
    %9 = arith.addf %6, %8 : vector<32x128xf32>
    %cst_10 = arith.constant 0.000000e+00 : f32
    %10 = vector.broadcast %cst_10 : f32 to vector<32x128xf32>
    %11 = arith.maximumf %9, %10 : vector<32x128xf32>
    %12 = arith.truncf %11 : vector<32x128xf32> to vector<32x128xbf16>
    %c0_11 = arith.constant 0 : index
    %c0_12 = arith.constant 0 : index
    %13 = vector.load %arg6[%c0_11, %c0_12] : memref<32x128xbf16, #tpu.memory_space<vmem>>, vector<32x128xbf16>
    tpu.vector_store %arg6[%c0_11, %c0_12], %12 {strides = array<i32>} : memref<32x128xbf16, #tpu.memory_space<vmem>>, vector<32x128xbf16>,
    return
  }
  func.func @transform_0(%arg0: i32) -> (i32, i32) {
    %c0_i32 = arith.constant 0 : i32
    %c0_i32_0 = arith.constant 0 : i32
    return %arg0, %c0_i32 : i32, i32
  }
  func.func @transform_1(%arg0: i32) -> (i32, i32) {
    %c0_i32 = arith.constant 0 : i32
    %c0_i32_0 = arith.constant 0 : i32
    %c0_i32_1 = arith.constant 0 : i32
    return %c0_i32, %c0_i32_0 : i32, i32
  }
  func.func @transform_2(%arg0: i32) -> (i32, i32) {
    %c0_i32 = arith.constant 0 : i32
    %c0_i32_0 = arith.constant 0 : i32
    %c0_i32_1 = arith.constant 0 : i32
    return %c0_i32, %c0_i32_0 : i32, i32
  }
  func.func @transform_3(%arg0: i32) -> (i32, i32) {
    %c0_i32 = arith.constant 0 : i32
    %c0_i32_0 = arith.constant 0 : i32
    return %arg0, %c0_i32 : i32, i32
  }
  func.func @transform_4(%arg0: i32) -> (i32, i32) {
    %c0_i32 = arith.constant 0 : i32
    %c0_i32_0 = arith.constant 0 : i32
    %c0_i32_1 = arith.constant 0 : i32
    return %c0_i32, %c0_i32_0 : i32, i32
  }
  func.func @transform_5(%arg0: i32) -> (i32, i32) {
    %c0_i32 = arith.constant 0 : i32
    %c0_i32_0 = arith.constant 0 : i32
    return %arg0, %c0_i32 : i32, i32
  }
}

module attributes {stable_mosaic.version = 11 : i64} {
  func.func @kernel(%arg0: i32, %arg1: memref<32x128xbf16, #tpu.memory_space<vmem>>, %arg2: memref<128x128xbf16, #tpu.memory_space<vmem>>, %arg3: memref<1x128xf32, #tpu.memory_space<vmem>>, %arg4: memref<32x128xbf16, #tpu.memory_space<vmem>>) attributes {dimension_semantics = [#tpu.dimension_semantics<parallel>], iteration_bounds = array<i64: 1>, scalar_prefetch = 0 : i64, scratch_operands = 0 : i64, tpu.core_type = #tpu.core_type<tc>, window_params = [{transform_indices = @transform_0, window_bounds = array<i64: 32, 128>}, {pipeline_mode = #tpu.pipeline_mode<synchronous>, transform_indices = @transform_1, window_bounds = array<i64: 128, 128>}, {pipeline_mode = #tpu.pipeline_mode<synchronous>, transform_indices = @transform_2, window_bounds = array<i64: 1, 128>}, {transform_indices = @transform_3, window_bounds = array<i64: 32, 128>}]} {
    %c0 = arith.constant 0 : index
    %c0_0 = arith.constant 0 : index
    %0 = vector.load %arg1[%c0, %c0_0] : memref<32x128xbf16, #tpu.memory_space<vmem>>, vector<32x128xbf16>
    %c0_1 = arith.constant 0 : index
    %c0_2 = arith.constant 0 : index
    %1 = vector.load %arg2[%c0_1, %c0_2] : memref<128x128xbf16, #tpu.memory_space<vmem>>, vector<128x128xbf16>
    %cst = arith.constant dense<0.000000e+00> : vector<32x128xf32>
    %2 = tpu.matmul %0, %1, %cst {dimension_numbers = #tpu.dot_dimension_numbers<[1], [0], [0], [1], [0, 0, 1, 1], [], []>} : vector<32x128xbf16>, vector<128x128xbf16>, vector<32x128xf32> -> vector<32x128xf32>
    %c0_3 = arith.constant 0 : index
    %c0_4 = arith.constant 0 : index
    %3 = vector.load %arg3[%c0_3, %c0_4] : memref<1x128xf32, #tpu.memory_space<vmem>>, vector<1x128xf32>
    %4 = vector.broadcast %3 : vector<1x128xf32> to vector<32x128xf32>
    %5 = arith.addf %2, %4 : vector<32x128xf32>
    %cst_5 = arith.constant 0.000000e+00 : f32
    %6 = vector.broadcast %cst_5 : f32 to vector<32x128xf32>
    %7 = arith.maximumf %5, %6 : vector<32x128xf32>
    %8 = arith.truncf %7 : vector<32x128xf32> to vector<32x128xbf16>
    %c0_6 = arith.constant 0 : index
    %c0_7 = arith.constant 0 : index
    %9 = vector.load %arg4[%c0_6, %c0_7] : memref<32x128xbf16, #tpu.memory_space<vmem>>, vector<32x128xbf16>
    tpu.vector_store %arg4[%c0_6, %c0_7], %8 {strides = array<i32>} : memref<32x128xbf16, #tpu.memory_space<vmem>>, vector<32x128xbf16>,
    return
  }
  func.func @transform_0(%arg0: i32) -> (i32, i32) {
    %c0_i32 = arith.constant 0 : i32
    %c0_i32_0 = arith.constant 0 : i32
    return %arg0, %c0_i32 : i32, i32
  }
  func.func @transform_1(%arg0: i32) -> (i32, i32) {
    %c0_i32 = arith.constant 0 : i32
    %c0_i32_0 = arith.constant 0 : i32
    %c0_i32_1 = arith.constant 0 : i32
    return %c0_i32, %c0_i32_0 : i32, i32
  }
  func.func @transform_2(%arg0: i32) -> (i32, i32) {
    %c0_i32 = arith.constant 0 : i32
    %c0_i32_0 = arith.constant 0 : i32
    %c0_i32_1 = arith.constant 0 : i32
    return %c0_i32, %c0_i32_0 : i32, i32
  }
  func.func @transform_3(%arg0: i32) -> (i32, i32) {
    %c0_i32 = arith.constant 0 : i32
    %c0_i32_0 = arith.constant 0 : i32
    return %arg0, %c0_i32 : i32, i32
  }
}

module attributes {stable_mosaic.version = 11 : i64} {
  func.func @kernel(%arg0: i32, %arg1: memref<8x1152xbf16, #tpu.memory_space<vmem>>, %arg2: memref<1152x128xbf16, #tpu.memory_space<vmem>>, %arg3: memref<1x128xf32, #tpu.memory_space<vmem>>, %arg4: memref<8x128xbf16, #tpu.memory_space<vmem>>) attributes {dimension_semantics = [#tpu.dimension_semantics<parallel>], iteration_bounds = array<i64: 1>, scalar_prefetch = 0 : i64, scratch_operands = 0 : i64, tpu.core_type = #tpu.core_type<tc>, window_params = [{transform_indices = @transform_0, window_bounds = array<i64: 8, 1152>}, {pipeline_mode = #tpu.pipeline_mode<synchronous>, transform_indices = @transform_1, window_bounds = array<i64: 1152, 128>}, {pipeline_mode = #tpu.pipeline_mode<synchronous>, transform_indices = @transform_2, window_bounds = array<i64: 1, 128>}, {transform_indices = @transform_3, window_bounds = array<i64: 8, 128>}]} {
    %c0 = arith.constant 0 : index
    %c0_0 = arith.constant 0 : index
    %0 = vector.load %arg1[%c0, %c0_0] : memref<8x1152xbf16, #tpu.memory_space<vmem>>, vector<8x1152xbf16>
    %c0_1 = arith.constant 0 : index
    %c0_2 = arith.constant 0 : index
    %1 = vector.load %arg2[%c0_1, %c0_2] : memref<1152x128xbf16, #tpu.memory_space<vmem>>, vector<1152x128xbf16>
    %cst = arith.constant dense<0.000000e+00> : vector<8x128xf32>
    %2 = tpu.matmul %0, %1, %cst {dimension_numbers = #tpu.dot_dimension_numbers<[1], [0], [0], [1], [0, 0, 1, 1], [], []>} : vector<8x1152xbf16>, vector<1152x128xbf16>, vector<8x128xf32> -> vector<8x128xf32>
    %c0_3 = arith.constant 0 : index
    %c0_4 = arith.constant 0 : index
    %3 = vector.load %arg3[%c0_3, %c0_4] : memref<1x128xf32, #tpu.memory_space<vmem>>, vector<1x128xf32>
    %4 = vector.broadcast %3 : vector<1x128xf32> to vector<8x128xf32>
    %5 = arith.addf %2, %4 : vector<8x128xf32>
    %cst_5 = arith.constant 0.000000e+00 : f32
    %6 = vector.broadcast %cst_5 : f32 to vector<8x128xf32>
    %7 = arith.maximumf %5, %6 : vector<8x128xf32>
    %8 = arith.truncf %7 : vector<8x128xf32> to vector<8x128xbf16>
    %c0_6 = arith.constant 0 : index
    %c0_7 = arith.constant 0 : index
    %9 = vector.load %arg4[%c0_6, %c0_7] : memref<8x128xbf16, #tpu.memory_space<vmem>>, vector<8x128xbf16>
    tpu.vector_store %arg4[%c0_6, %c0_7], %8 {strides = array<i32>} : memref<8x128xbf16, #tpu.memory_space<vmem>>, vector<8x128xbf16>,
    return
  }
  func.func @transform_0(%arg0: i32) -> (i32, i32) {
    %c0_i32 = arith.constant 0 : i32
    %c0_i32_0 = arith.constant 0 : i32
    return %arg0, %c0_i32 : i32, i32
  }
  func.func @transform_1(%arg0: i32) -> (i32, i32) {
    %c0_i32 = arith.constant 0 : i32
    %c0_i32_0 = arith.constant 0 : i32
    %c0_i32_1 = arith.constant 0 : i32
    return %c0_i32, %c0_i32_0 : i32, i32
  }
  func.func @transform_2(%arg0: i32) -> (i32, i32) {
    %c0_i32 = arith.constant 0 : i32
    %c0_i32_0 = arith.constant 0 : i32
    %c0_i32_1 = arith.constant 0 : i32
    return %c0_i32, %c0_i32_0 : i32, i32
  }
  func.func @transform_3(%arg0: i32) -> (i32, i32) {
    %c0_i32 = arith.constant 0 : i32
    %c0_i32_0 = arith.constant 0 : i32
    return %arg0, %c0_i32 : i32, i32
  }
}

module attributes {stable_mosaic.version = 11 : i64} {
  func.func @kernel(%arg0: i32, %arg1: memref<8x128xbf16, #tpu.memory_space<vmem>>, %arg2: memref<128x128xbf16, #tpu.memory_space<vmem>>, %arg3: memref<1x128xf32, #tpu.memory_space<vmem>>, %arg4: memref<8x128xbf16, #tpu.memory_space<vmem>>) attributes {dimension_semantics = [#tpu.dimension_semantics<parallel>], iteration_bounds = array<i64: 1>, scalar_prefetch = 0 : i64, scratch_operands = 0 : i64, tpu.core_type = #tpu.core_type<tc>, window_params = [{transform_indices = @transform_0, window_bounds = array<i64: 8, 128>}, {pipeline_mode = #tpu.pipeline_mode<synchronous>, transform_indices = @transform_1, window_bounds = array<i64: 128, 128>}, {pipeline_mode = #tpu.pipeline_mode<synchronous>, transform_indices = @transform_2, window_bounds = array<i64: 1, 128>}, {transform_indices = @transform_3, window_bounds = array<i64: 8, 128>}]} {
    %c0 = arith.constant 0 : index
    %c0_0 = arith.constant 0 : index
    %0 = vector.load %arg1[%c0, %c0_0] : memref<8x128xbf16, #tpu.memory_space<vmem>>, vector<8x128xbf16>
    %c0_1 = arith.constant 0 : index
    %c0_2 = arith.constant 0 : index
    %1 = vector.load %arg2[%c0_1, %c0_2] : memref<128x128xbf16, #tpu.memory_space<vmem>>, vector<128x128xbf16>
    %cst = arith.constant dense<0.000000e+00> : vector<8x128xf32>
    %2 = tpu.matmul %0, %1, %cst {dimension_numbers = #tpu.dot_dimension_numbers<[1], [0], [0], [1], [0, 0, 1, 1], [], []>} : vector<8x128xbf16>, vector<128x128xbf16>, vector<8x128xf32> -> vector<8x128xf32>
    %c0_3 = arith.constant 0 : index
    %c0_4 = arith.constant 0 : index
    %3 = vector.load %arg3[%c0_3, %c0_4] : memref<1x128xf32, #tpu.memory_space<vmem>>, vector<1x128xf32>
    %4 = vector.broadcast %3 : vector<1x128xf32> to vector<8x128xf32>
    %5 = arith.addf %2, %4 : vector<8x128xf32>
    %cst_5 = arith.constant 0.000000e+00 : f32
    %6 = vector.broadcast %cst_5 : f32 to vector<8x128xf32>
    %7 = arith.maximumf %5, %6 : vector<8x128xf32>
    %8 = arith.truncf %7 : vector<8x128xf32> to vector<8x128xbf16>
    %c0_6 = arith.constant 0 : index
    %c0_7 = arith.constant 0 : index
    %9 = vector.load %arg4[%c0_6, %c0_7] : memref<8x128xbf16, #tpu.memory_space<vmem>>, vector<8x128xbf16>
    tpu.vector_store %arg4[%c0_6, %c0_7], %8 {strides = array<i32>} : memref<8x128xbf16, #tpu.memory_space<vmem>>, vector<8x128xbf16>,
    return
  }
  func.func @transform_0(%arg0: i32) -> (i32, i32) {
    %c0_i32 = arith.constant 0 : i32
    %c0_i32_0 = arith.constant 0 : i32
    return %arg0, %c0_i32 : i32, i32
  }
  func.func @transform_1(%arg0: i32) -> (i32, i32) {
    %c0_i32 = arith.constant 0 : i32
    %c0_i32_0 = arith.constant 0 : i32
    %c0_i32_1 = arith.constant 0 : i32
    return %c0_i32, %c0_i32_0 : i32, i32
  }
  func.func @transform_2(%arg0: i32) -> (i32, i32) {
    %c0_i32 = arith.constant 0 : i32
    %c0_i32_0 = arith.constant 0 : i32
    %c0_i32_1 = arith.constant 0 : i32
    return %c0_i32, %c0_i32_0 : i32, i32
  }
  func.func @transform_3(%arg0: i32) -> (i32, i32) {
    %c0_i32 = arith.constant 0 : i32
    %c0_i32_0 = arith.constant 0 : i32
    return %arg0, %c0_i32 : i32, i32
  }
}

module attributes {stable_mosaic.version = 11 : i64} {
  func.func @kernel(%arg0: i32, %arg1: memref<8x128xbf16, #tpu.memory_space<vmem>>, %arg2: memref<128x128xbf16, #tpu.memory_space<vmem>>, %arg3: memref<1x128xf32, #tpu.memory_space<vmem>>, %arg4: memref<8x128xbf16, #tpu.memory_space<vmem>>, %arg5: memref<128x128xbf16, #tpu.memory_space<vmem>>, %arg6: memref<8x128xbf16, #tpu.memory_space<vmem>>) attributes {dimension_semantics = [#tpu.dimension_semantics<parallel>], iteration_bounds = array<i64: 1>, scalar_prefetch = 0 : i64, scratch_operands = 0 : i64, tpu.core_type = #tpu.core_type<tc>, window_params = [{transform_indices = @transform_0, window_bounds = array<i64: 8, 128>}, {pipeline_mode = #tpu.pipeline_mode<synchronous>, transform_indices = @transform_1, window_bounds = array<i64: 128, 128>}, {pipeline_mode = #tpu.pipeline_mode<synchronous>, transform_indices = @transform_2, window_bounds = array<i64: 1, 128>}, {transform_indices = @transform_3, window_bounds = array<i64: 8, 128>}, {pipeline_mode = #tpu.pipeline_mode<synchronous>, transform_indices = @transform_4, window_bounds = array<i64: 128, 128>}, {transform_indices = @transform_5, window_bounds = array<i64: 8, 128>}]} {
    %c0 = arith.constant 0 : index
    %c0_0 = arith.constant 0 : index
    %0 = vector.load %arg1[%c0, %c0_0] : memref<8x128xbf16, #tpu.memory_space<vmem>>, vector<8x128xbf16>
    %c0_1 = arith.constant 0 : index
    %c0_2 = arith.constant 0 : index
    %1 = vector.load %arg2[%c0_1, %c0_2] : memref<128x128xbf16, #tpu.memory_space<vmem>>, vector<128x128xbf16>
    %cst = arith.constant dense<0.000000e+00> : vector<8x128xf32>
    %2 = tpu.matmul %0, %1, %cst {dimension_numbers = #tpu.dot_dimension_numbers<[1], [0], [0], [1], [0, 0, 1, 1], [], []>} : vector<8x128xbf16>, vector<128x128xbf16>, vector<8x128xf32> -> vector<8x128xf32>
    %c0_3 = arith.constant 0 : index
    %c0_4 = arith.constant 0 : index
    %3 = vector.load %arg4[%c0_3, %c0_4] : memref<8x128xbf16, #tpu.memory_space<vmem>>, vector<8x128xbf16>
    %c0_5 = arith.constant 0 : index
    %c0_6 = arith.constant 0 : index
    %4 = vector.load %arg5[%c0_5, %c0_6] : memref<128x128xbf16, #tpu.memory_space<vmem>>, vector<128x128xbf16>
    %cst_7 = arith.constant dense<0.000000e+00> : vector<8x128xf32>
    %5 = tpu.matmul %3, %4, %cst_7 {dimension_numbers = #tpu.dot_dimension_numbers<[1], [0], [0], [1], [0, 0, 1, 1], [], []>} : vector<8x128xbf16>, vector<128x128xbf16>, vector<8x128xf32> -> vector<8x128xf32>
    %6 = arith.addf %2, %5 : vector<8x128xf32>
    %c0_8 = arith.constant 0 : index
    %c0_9 = arith.constant 0 : index
    %7 = vector.load %arg3[%c0_8, %c0_9] : memref<1x128xf32, #tpu.memory_space<vmem>>, vector<1x128xf32>
    %8 = vector.broadcast %7 : vector<1x128xf32> to vector<8x128xf32>
    %9 = arith.addf %6, %8 : vector<8x128xf32>
    %cst_10 = arith.constant 0.000000e+00 : f32
    %10 = vector.broadcast %cst_10 : f32 to vector<8x128xf32>
    %11 = arith.maximumf %9, %10 : vector<8x128xf32>
    %12 = arith.truncf %11 : vector<8x128xf32> to vector<8x128xbf16>
    %c0_11 = arith.constant 0 : index
    %c0_12 = arith.constant 0 : index
    %13 = vector.load %arg6[%c0_11, %c0_12] : memref<8x128xbf16, #tpu.memory_space<vmem>>, vector<8x128xbf16>
    tpu.vector_store %arg6[%c0_11, %c0_12], %12 {strides = array<i32>} : memref<8x128xbf16, #tpu.memory_space<vmem>>, vector<8x128xbf16>,
    return
  }
  func.func @transform_0(%arg0: i32) -> (i32, i32) {
    %c0_i32 = arith.constant 0 : i32
    %c0_i32_0 = arith.constant 0 : i32
    return %arg0, %c0_i32 : i32, i32
  }
  func.func @transform_1(%arg0: i32) -> (i32, i32) {
    %c0_i32 = arith.constant 0 : i32
    %c0_i32_0 = arith.constant 0 : i32
    %c0_i32_1 = arith.constant 0 : i32
    return %c0_i32, %c0_i32_0 : i32, i32
  }
  func.func @transform_2(%arg0: i32) -> (i32, i32) {
    %c0_i32 = arith.constant 0 : i32
    %c0_i32_0 = arith.constant 0 : i32
    %c0_i32_1 = arith.constant 0 : i32
    return %c0_i32, %c0_i32_0 : i32, i32
  }
  func.func @transform_3(%arg0: i32) -> (i32, i32) {
    %c0_i32 = arith.constant 0 : i32
    %c0_i32_0 = arith.constant 0 : i32
    return %arg0, %c0_i32 : i32, i32
  }
  func.func @transform_4(%arg0: i32) -> (i32, i32) {
    %c0_i32 = arith.constant 0 : i32
    %c0_i32_0 = arith.constant 0 : i32
    %c0_i32_1 = arith.constant 0 : i32
    return %c0_i32, %c0_i32_0 : i32, i32
  }
  func.func @transform_5(%arg0: i32) -> (i32, i32) {
    %c0_i32 = arith.constant 0 : i32
    %c0_i32_0 = arith.constant 0 : i32
    return %arg0, %c0_i32 : i32, i32
  }
}

module attributes {stable_mosaic.version = 11 : i64} {
  func.func @kernel(%arg0: i32, %arg1: memref<2x1152xbf16, #tpu.memory_space<vmem>>, %arg2: memref<1152x128xbf16, #tpu.memory_space<vmem>>, %arg3: memref<1x128xf32, #tpu.memory_space<vmem>>, %arg4: memref<2x128xbf16, #tpu.memory_space<vmem>>) attributes {dimension_semantics = [#tpu.dimension_semantics<parallel>], iteration_bounds = array<i64: 1>, scalar_prefetch = 0 : i64, scratch_operands = 0 : i64, tpu.core_type = #tpu.core_type<tc>, window_params = [{transform_indices = @transform_0, window_bounds = array<i64: 2, 1152>}, {pipeline_mode = #tpu.pipeline_mode<synchronous>, transform_indices = @transform_1, window_bounds = array<i64: 1152, 128>}, {pipeline_mode = #tpu.pipeline_mode<synchronous>, transform_indices = @transform_2, window_bounds = array<i64: 1, 128>}, {transform_indices = @transform_3, window_bounds = array<i64: 2, 128>}]} {
    %c0 = arith.constant 0 : index
    %c0_0 = arith.constant 0 : index
    %0 = vector.load %arg1[%c0, %c0_0] : memref<2x1152xbf16, #tpu.memory_space<vmem>>, vector<2x1152xbf16>
    %c0_1 = arith.constant 0 : index
    %c0_2 = arith.constant 0 : index
    %1 = vector.load %arg2[%c0_1, %c0_2] : memref<1152x128xbf16, #tpu.memory_space<vmem>>, vector<1152x128xbf16>
    %cst = arith.constant dense<0.000000e+00> : vector<2x128xf32>
    %2 = tpu.matmul %0, %1, %cst {dimension_numbers = #tpu.dot_dimension_numbers<[1], [0], [0], [1], [0, 0, 1, 1], [], []>} : vector<2x1152xbf16>, vector<1152x128xbf16>, vector<2x128xf32> -> vector<2x128xf32>
    %c0_3 = arith.constant 0 : index
    %c0_4 = arith.constant 0 : index
    %3 = vector.load %arg3[%c0_3, %c0_4] : memref<1x128xf32, #tpu.memory_space<vmem>>, vector<1x128xf32>
    %4 = vector.broadcast %3 : vector<1x128xf32> to vector<2x128xf32>
    %5 = arith.addf %2, %4 : vector<2x128xf32>
    %cst_5 = arith.constant 0.000000e+00 : f32
    %6 = vector.broadcast %cst_5 : f32 to vector<2x128xf32>
    %7 = arith.maximumf %5, %6 : vector<2x128xf32>
    %8 = arith.truncf %7 : vector<2x128xf32> to vector<2x128xbf16>
    %c0_6 = arith.constant 0 : index
    %c0_7 = arith.constant 0 : index
    %9 = vector.load %arg4[%c0_6, %c0_7] : memref<2x128xbf16, #tpu.memory_space<vmem>>, vector<2x128xbf16>
    tpu.vector_store %arg4[%c0_6, %c0_7], %8 {strides = array<i32>} : memref<2x128xbf16, #tpu.memory_space<vmem>>, vector<2x128xbf16>,
    return
  }
  func.func @transform_0(%arg0: i32) -> (i32, i32) {
    %c0_i32 = arith.constant 0 : i32
    %c0_i32_0 = arith.constant 0 : i32
    return %arg0, %c0_i32 : i32, i32
  }
  func.func @transform_1(%arg0: i32) -> (i32, i32) {
    %c0_i32 = arith.constant 0 : i32
    %c0_i32_0 = arith.constant 0 : i32
    %c0_i32_1 = arith.constant 0 : i32
    return %c0_i32, %c0_i32_0 : i32, i32
  }
  func.func @transform_2(%arg0: i32) -> (i32, i32) {
    %c0_i32 = arith.constant 0 : i32
    %c0_i32_0 = arith.constant 0 : i32
    %c0_i32_1 = arith.constant 0 : i32
    return %c0_i32, %c0_i32_0 : i32, i32
  }
  func.func @transform_3(%arg0: i32) -> (i32, i32) {
    %c0_i32 = arith.constant 0 : i32
    %c0_i32_0 = arith.constant 0 : i32
    return %arg0, %c0_i32 : i32, i32
  }
}

module attributes {stable_mosaic.version = 11 : i64} {
  func.func @kernel(%arg0: i32, %arg1: memref<2x128xbf16, #tpu.memory_space<vmem>>, %arg2: memref<128x128xbf16, #tpu.memory_space<vmem>>, %arg3: memref<1x128xf32, #tpu.memory_space<vmem>>, %arg4: memref<2x128xbf16, #tpu.memory_space<vmem>>, %arg5: memref<128x128xbf16, #tpu.memory_space<vmem>>, %arg6: memref<2x128xbf16, #tpu.memory_space<vmem>>) attributes {dimension_semantics = [#tpu.dimension_semantics<parallel>], iteration_bounds = array<i64: 1>, scalar_prefetch = 0 : i64, scratch_operands = 0 : i64, tpu.core_type = #tpu.core_type<tc>, window_params = [{transform_indices = @transform_0, window_bounds = array<i64: 2, 128>}, {pipeline_mode = #tpu.pipeline_mode<synchronous>, transform_indices = @transform_1, window_bounds = array<i64: 128, 128>}, {pipeline_mode = #tpu.pipeline_mode<synchronous>, transform_indices = @transform_2, window_bounds = array<i64: 1, 128>}, {transform_indices = @transform_3, window_bounds = array<i64: 2, 128>}, {pipeline_mode = #tpu.pipeline_mode<synchronous>, transform_indices = @transform_4, window_bounds = array<i64: 128, 128>}, {transform_indices = @transform_5, window_bounds = array<i64: 2, 128>}]} {
    %c0 = arith.constant 0 : index
    %c0_0 = arith.constant 0 : index
    %0 = vector.load %arg1[%c0, %c0_0] : memref<2x128xbf16, #tpu.memory_space<vmem>>, vector<2x128xbf16>
    %c0_1 = arith.constant 0 : index
    %c0_2 = arith.constant 0 : index
    %1 = vector.load %arg2[%c0_1, %c0_2] : memref<128x128xbf16, #tpu.memory_space<vmem>>, vector<128x128xbf16>
    %cst = arith.constant dense<0.000000e+00> : vector<2x128xf32>
    %2 = tpu.matmul %0, %1, %cst {dimension_numbers = #tpu.dot_dimension_numbers<[1], [0], [0], [1], [0, 0, 1, 1], [], []>} : vector<2x128xbf16>, vector<128x128xbf16>, vector<2x128xf32> -> vector<2x128xf32>
    %c0_3 = arith.constant 0 : index
    %c0_4 = arith.constant 0 : index
    %3 = vector.load %arg4[%c0_3, %c0_4] : memref<2x128xbf16, #tpu.memory_space<vmem>>, vector<2x128xbf16>
    %c0_5 = arith.constant 0 : index
    %c0_6 = arith.constant 0 : index
    %4 = vector.load %arg5[%c0_5, %c0_6] : memref<128x128xbf16, #tpu.memory_space<vmem>>, vector<128x128xbf16>
    %cst_7 = arith.constant dense<0.000000e+00> : vector<2x128xf32>
    %5 = tpu.matmul %3, %4, %cst_7 {dimension_numbers = #tpu.dot_dimension_numbers<[1], [0], [0], [1], [0, 0, 1, 1], [], []>} : vector<2x128xbf16>, vector<128x128xbf16>, vector<2x128xf32> -> vector<2x128xf32>
    %6 = arith.addf %2, %5 : vector<2x128xf32>
    %c0_8 = arith.constant 0 : index
    %c0_9 = arith.constant 0 : index
    %7 = vector.load %arg3[%c0_8, %c0_9] : memref<1x128xf32, #tpu.memory_space<vmem>>, vector<1x128xf32>
    %8 = vector.broadcast %7 : vector<1x128xf32> to vector<2x128xf32>
    %9 = arith.addf %6, %8 : vector<2x128xf32>
    %cst_10 = arith.constant 0.000000e+00 : f32
    %10 = vector.broadcast %cst_10 : f32 to vector<2x128xf32>
    %11 = arith.maximumf %9, %10 : vector<2x128xf32>
    %12 = arith.truncf %11 : vector<2x128xf32> to vector<2x128xbf16>
    %c0_11 = arith.constant 0 : index
    %c0_12 = arith.constant 0 : index
    %13 = vector.load %arg6[%c0_11, %c0_12] : memref<2x128xbf16, #tpu.memory_space<vmem>>, vector<2x128xbf16>
    tpu.vector_store %arg6[%c0_11, %c0_12], %12 {strides = array<i32>} : memref<2x128xbf16, #tpu.memory_space<vmem>>, vector<2x128xbf16>,
    return
  }
  func.func @transform_0(%arg0: i32) -> (i32, i32) {
    %c0_i32 = arith.constant 0 : i32
    %c0_i32_0 = arith.constant 0 : i32
    return %arg0, %c0_i32 : i32, i32
  }
  func.func @transform_1(%arg0: i32) -> (i32, i32) {
    %c0_i32 = arith.constant 0 : i32
    %c0_i32_0 = arith.constant 0 : i32
    %c0_i32_1 = arith.constant 0 : i32
    return %c0_i32, %c0_i32_0 : i32, i32
  }
  func.func @transform_2(%arg0: i32) -> (i32, i32) {
    %c0_i32 = arith.constant 0 : i32
    %c0_i32_0 = arith.constant 0 : i32
    %c0_i32_1 = arith.constant 0 : i32
    return %c0_i32, %c0_i32_0 : i32, i32
  }
  func.func @transform_3(%arg0: i32) -> (i32, i32) {
    %c0_i32 = arith.constant 0 : i32
    %c0_i32_0 = arith.constant 0 : i32
    return %arg0, %c0_i32 : i32, i32
  }
  func.func @transform_4(%arg0: i32) -> (i32, i32) {
    %c0_i32 = arith.constant 0 : i32
    %c0_i32_0 = arith.constant 0 : i32
    %c0_i32_1 = arith.constant 0 : i32
    return %c0_i32, %c0_i32_0 : i32, i32
  }
  func.func @transform_5(%arg0: i32) -> (i32, i32) {
    %c0_i32 = arith.constant 0 : i32
    %c0_i32_0 = arith.constant 0 : i32
    return %arg0, %c0_i32 : i32, i32
  }
}

</mosaic_0001>

<llo_original>
// kernel: regnet_forward.13
$region0: #{regnet_forward.13}
  #allocation0 [shape = 'u32[]', space=smem, size = 0x4, offset = 0x4, fixed_abs, tag = 'smem constant byte address 0x4 - core index']
  #allocation1 [shape = 'u32[72,128]{1,0:T(1,128)}', space=vmem, size = 0x9000, scoped, tag = 'internal scratch']
  %s0 = inlined_call_operand.vmem [shape: bf16[512,72], index: 0, kind: input, shape index: {}]
  %s1 = inlined_call_operand.vmem [shape: bf16[72,128], index: 1, kind: input, shape index: {}]
  %s2 = inlined_call_operand.vmem [shape: f32[1,128], index: 2, kind: input, shape index: {}]
  %s3 = inlined_call_operand.vmem [shape: bf16[512,128], index: 3, kind: output, shape index: {}]
  %s4 = sld [smem:[#allocation0]]
  $region45: #{regnet_forward.13} parent=0
    _
  %s6 = ssub.s32 1, %s4
  %s7 = scalar_select 0, %s6, %s4
  loop: start=0, step=1, limit=4
  $region2: #{regnet_forward.13} parent=0 // loop_pre_header
    _
  $region3: #{regnet_forward.13} parent=0 // loop_header
    %s9 = sphi 0, %s13
    %p10 = scmp.ge.s32.totalorder %s9, 4
    %s19 = sphi 0, %s21
    %s22 = sphi 0, %s19
    %s23 = sphi 0, %s22
    %s39 = sphi 0, %s23
    %s43 = sphi 0, %s43
    %s45 = sphi 0, %s43
    %s46 = sphi 0, %s45
    %s60 = sphi 0, %s46
    %s64 = sphi 0, %s64
    %s66 = sphi 0, %s64
    %s67 = sphi 0, %s66
    %s81 = sphi 0, %s67
    %s87 = sphi 0, %s89
    %s90 = sphi 0, %s87
    %s91 = sphi 0, %s90
    %s107 = sphi 0, %s91
  $region4: #{regnet_forward.13} parent=0 // loop_header_branch
    %12 = sbr.rel (%p10) target = $region8
  $region5: #{regnet_forward.13} parent=0 // loop_body
    %s14 = ssub.s32 %s9, 1
    %s15 = ssub.s32 %s9, 2
    %s16 = sadd.s32 %s9, 1
    %s17 = ssub.s32 %s9, %s16
    %p18 = scmp.eq.s32.totalorder %s17, 0
    %s20 = sadd.s32 %s19, 1
    %s21 = scalar_select %p18, %s19, %s20
    %p24 = pneg %p18
    %p25 = scmp.eq.s32.totalorder %s9, 1
    %p26 = por %p24, %p25
    %p27 = scmp.ne.s32.totalorder %s19, %s22
    %p28 = scmp.eq.s32.totalorder %s9, 0
    %p29 = por %p27, %p28
    %p30 = scmp.ne.s32.totalorder %s19, %s22
    %p31 = scmp.eq.s32.totalorder %s14, 1
    %p32 = por %p30, %p31
    %p33 = scmp.ne.s32.totalorder %s22, %s23
    %p34 = scmp.eq.s32.totalorder %s14, 0
    %p35 = por %p33, %p34
    %p36 = scmp.ne.s32.totalorder %s22, %s23
    %p37 = scmp.eq.s32.totalorder %s15, 1
    %p38 = por %p36, %p37
    %p40 = scmp.ne.s32.totalorder %s23, %s39
    %p41 = scmp.eq.s32.totalorder %s15, 0
    %p42 = por %p40, %p41
    %s44 = sadd.s32 %s43, 1
    %p47 = scmp.eq.s32.totalorder %s9, 1
    %p48 = scmp.ne.s32.totalorder %s43, %s45
    %p49 = scmp.eq.s32.totalorder %s9, 0
    %p50 = por %p48, %p49
    %p51 = scmp.ne.s32.totalorder %s43, %s45
    %p52 = scmp.eq.s32.totalorder %s14, 1
    %p53 = por %p51, %p52
    %p54 = scmp.ne.s32.totalorder %s45, %s46
    %p55 = scmp.eq.s32.totalorder %s14, 0
    %p56 = por %p54, %p55
    %p57 = scmp.ne.s32.totalorder %s45, %s46
    %p58 = scmp.eq.s32.totalorder %s15, 1
    %p59 = por %p57, %p58
    %p61 = scmp.ne.s32.totalorder %s46, %s60
    %p62 = scmp.eq.s32.totalorder %s15, 0
    %p63 = por %p61, %p62
    %s65 = sadd.s32 %s64, 1
    %p68 = scmp.eq.s32.totalorder %s9, 1
    %p69 = scmp.ne.s32.totalorder %s64, %s66
    %p70 = scmp.eq.s32.totalorder %s9, 0
    %p71 = por %p69, %p70
    %p72 = scmp.ne.s32.totalorder %s64, %s66
    %p73 = scmp.eq.s32.totalorder %s14, 1
    %p74 = por %p72, %p73
    %p75 = scmp.ne.s32.totalorder %s66, %s67
    %p76 = scmp.eq.s32.totalorder %s14, 0
    %p77 = por %p75, %p76
    %p78 = scmp.ne.s32.totalorder %s66, %s67
    %p79 = scmp.eq.s32.totalorder %s15, 1
    %p80 = por %p78, %p79
    %p82 = scmp.ne.s32.totalorder %s67, %s81
    %p83 = scmp.eq.s32.totalorder %s15, 0
    %p84 = por %p82, %p83
    %s85 = ssub.s32 %s9, %s16
    %p86 = scmp.eq.s32.totalorder %s85, 0
    %s88 = sadd.s32 %s87, 1
    %s89 = scalar_select %p86, %s87, %s88
    %p92 = pneg %p86
    %p93 = scmp.eq.s32.totalorder %s9, 1
    %p94 = por %p92, %p93
    %p95 = scmp.ne.s32.totalorder %s87, %s90
    %p96 = scmp.eq.s32.totalorder %s9, 0
    %p97 = por %p95, %p96
    %p98 = scmp.ne.s32.totalorder %s87, %s90
    %p99 = scmp.eq.s32.totalorder %s14, 1
    %p100 = por %p98, %p99
    %p101 = scmp.ne.s32.totalorder %s90, %s91
    %p102 = scmp.eq.s32.totalorder %s14, 0
    %p103 = por %p101, %p102
    %p104 = scmp.ne.s32.totalorder %s90, %s91
    %p105 = scmp.eq.s32.totalorder %s15, 1
    %p106 = por %p104, %p105
    %p108 = scmp.ne.s32.totalorder %s91, %s107
    %p109 = scmp.eq.s32.totalorder %s15, 0
    %p110 = por %p108, %p109
    %p111 = scmp.le.s32.totalorder 1, %s9
    %p112 = scmp.lt.s32.totalorder %s9, 3
    %p113 = pnand %p111, %p112
    %p114 = pneg %p113
    // Predicated region
    $region9: #{regnet_forward.13} parent=5 // pred_check
      _
    $region10: #{regnet_forward.13} parent=5 // pred_check_branch
      %116 = sbr.rel (%p113) target = $region12
    $region11: #{regnet_forward.13} parent=5 // pred_region
      %s117 = ssub.s32 %s9, 1
      // Predicated region
      $region13: #{regnet_forward.13} parent=11 // pred_check
        %p118 = pneg %p56
      $region14: #{regnet_forward.13} parent=11 // pred_check_branch
        %120 = sbr.rel (%p118) target = $region16
      $region15: #{regnet_forward.13} parent=11 // pred_region
        _
      $region16: #{regnet_forward.13} parent=11 // pred_fallthru
        _
      // Predicated region
      $region17: #{regnet_forward.13} parent=11 // pred_check
        %p121 = pneg %p77
      $region18: #{regnet_forward.13} parent=11 // pred_check_branch
        %123 = sbr.rel (%p121) target = $region20
      $region19: #{regnet_forward.13} parent=11 // pred_region
        _
      $region20: #{regnet_forward.13} parent=11 // pred_fallthru
        _
    $region12: #{regnet_forward.13} parent=5 // pred_fallthru
      _
    %p124 = scmp.lt.s32.totalorder %s9, 2
    // Predicated region
    $region21: #{regnet_forward.13} parent=5 // pred_check
      %p125 = pneg %p124
    $region22: #{regnet_forward.13} parent=5 // pred_check_branch
      %127 = sbr.rel (%p125) target = $region24
    $region23: #{regnet_forward.13} parent=5 // pred_region
      // Predicated region
      $region25: #{regnet_forward.13} parent=23 // pred_check
        %p128 = pneg %p29
      $region26: #{regnet_forward.13} parent=23 // pred_check_branch
        %130 = sbr.rel (%p128) target = $region28
      $region27: #{regnet_forward.13} parent=23 // pred_region
        %s131 = smul.u32 32, %s9
        %p132 = scmp.lt.s32.totalorder %s131, 63
        %s133 = scalar_select %p132, %s131, 63
        %s134 = smul.addr %s133, 4
        %s135 = scalar_lea.vmem %s0, %s134
        %s136 = smul.u32 32, %s9
      $region28: #{regnet_forward.13} parent=23 // pred_fallthru
        _
    $region24: #{regnet_forward.13} parent=5 // pred_fallthru
      _
    %p137 = scmp.le.s32.totalorder 1, %s9
    %p138 = scmp.lt.s32.totalorder %s9, 3
    %p139 = pnand %p137, %p138
    %p140 = pneg %p139
    // Predicated region
    $region29: #{regnet_forward.13} parent=5 // pred_check
      _
    $region30: #{regnet_forward.13} parent=5 // pred_check_branch
      %142 = sbr.rel (%p139) target = $region32
    $region31: #{regnet_forward.13} parent=5 // pred_region
      %s143 = ssub.s32 %s9, 1
      %s144 = smul.u32 32, %s14
      %p145 = scmp.lt.s32.totalorder %s144, 63
      %s146 = scalar_select %p145, %s144, 63
      %s147 = smul.addr %s146, 4
      %s148 = scalar_lea.vmem %s0, %s147
      %p149 = pneg %p35
      %p150 = pneg %p32
      %p151 = pneg %p56
      %p152 = pneg %p53
      %p153 = pneg %p77
      %p154 = pneg %p74
      %p155 = pneg %p103
      %p156 = pneg %p100
      %s157 = smul.u32 32, %s14
      %p158 = scmp.lt.s32.totalorder %s157, 63
      %s159 = scalar_select %p158, %s157, 63
      %s160 = smul.addr %s159, 4
      %s161 = scalar_lea.vmem %s3, %s160
      %s162 = smul.u32 32, %s14
      %p163 = scmp.lt.s32.totalorder %s162, 63
      %s164 = scalar_select %p163, %s162, 63
      %s165 = smul.addr %s164, 4
      %s166 = scalar_lea.vmem %s0, %s165
      %s167 = smul.u32 32, %s14
      %s168 = smul.u32 32, %s14
      %p169 = scmp.lt.s32.totalorder %s168, 63
      %s170 = scalar_select %p169, %s168, 63
      %s171 = smul.addr %s170, 4
      %s172 = scalar_lea.vmem %s3, %s171
      %s173 = smul.u32 32, %s14
      %v175 = vld [vmem:[%s166] sm:$0xf]
      %v176 = vld [vmem:[%s166 + $0x4] sm:$0xf]
      %v177 = vld [vmem:[%s166 + $0x8] sm:$0xf]
      %v178 = vld [vmem:[%s166 + $0xc] sm:$0xf]
      %v179 = vld [vmem:[%s166 + $0x10] sm:$0xf]
      %v180 = vld [vmem:[%s166 + $0x14] sm:$0xf]
      %v181 = vld [vmem:[%s166 + $0x18] sm:$0xf]
      %v182 = vld [vmem:[%s166 + $0x1c] sm:$0xf]
      %v183 = vld [vmem:[%s166 + $0x20] sm:$0xf]
      %v184 = vld [vmem:[%s166 + $0x24] sm:$0xf]
      %v185 = vld [vmem:[%s166 + $0x28] sm:$0xf]
      %v186 = vld [vmem:[%s166 + $0x2c] sm:$0xf]
      %v187 = vld [vmem:[%s166 + $0x30] sm:$0xf]
      %v188 = vld [vmem:[%s166 + $0x34] sm:$0xf]
      %v189 = vld [vmem:[%s166 + $0x38] sm:$0xf]
      %v190 = vld [vmem:[%s166 + $0x3c] sm:$0xf]
      %v191 = vld [vmem:[%s166 + $0x40] sm:$0xf]
      %v192 = vld [vmem:[%s166 + $0x44] sm:$0xf]
      %v193 = vld [vmem:[%s166 + $0x48] sm:$0xf]
      %v194 = vld [vmem:[%s166 + $0x4c] sm:$0xf]
      %v195 = vld [vmem:[%s166 + $0x50] sm:$0xf]
      %v196 = vld [vmem:[%s166 + $0x54] sm:$0xf]
      %v197 = vld [vmem:[%s166 + $0x58] sm:$0xf]
      %v198 = vld [vmem:[%s166 + $0x5c] sm:$0xf]
      %v199 = vld [vmem:[%s166 + $0x60] sm:$0xf]
      %v200 = vld [vmem:[%s166 + $0x64] sm:$0xf]
      %v201 = vld [vmem:[%s166 + $0x68] sm:$0xf]
      %v202 = vld [vmem:[%s166 + $0x6c] sm:$0xf]
      %v203 = vld [vmem:[%s166 + $0x70] sm:$0xf]
      %v204 = vld [vmem:[%s166 + $0x74] sm:$0xf]
      %v205 = vld [vmem:[%s166 + $0x78] sm:$0xf]
      %v206 = vld [vmem:[%s166 + $0x7c] sm:$0xf]
      %v207 = vld [vmem:[%s1] sm:$0xf]
      %v208 = vld [vmem:[%s1 + $0x4] sm:$0xf]
      %v209 = vld [vmem:[%s1 + $0x8] sm:$0xf]
      %v210 = vld [vmem:[%s1 + $0xc] sm:$0xf]
      %v211 = vld [vmem:[%s1 + $0x10] sm:$0xf]
      %v212 = vld [vmem:[%s1 + $0x14] sm:$0xf]
      %v213 = vld [vmem:[%s1 + $0x18] sm:$0xf]
      %v214 = vld [vmem:[%s1 + $0x1c] sm:$0xf]
      %v215 = vld [vmem:[%s1 + $0x20] sm:$0xf]
      %v216 = vld [vmem:[%s2] sm:$0x1]
      %v218 = vperm.slane %v216, 0
      %v252 = vunpack.c.l.b16 %v175
      %v253 = vunpack.c.l.b16 %v176
      %v254 = vunpack.c.l.b16 %v177
      %v255 = vunpack.c.l.b16 %v178
      %v256 = vunpack.c.l.b16 %v179
      %v257 = vunpack.c.l.b16 %v180
      %v258 = vunpack.c.l.b16 %v181
      %v259 = vunpack.c.l.b16 %v182
      %v260 = vunpack.c.l.b16 %v183
      %v261 = vunpack.c.l.b16 %v184
      %v262 = vunpack.c.l.b16 %v185
      %v263 = vunpack.c.l.b16 %v186
      %v264 = vunpack.c.l.b16 %v187
      %v265 = vunpack.c.l.b16 %v188
      %v266 = vunpack.c.l.b16 %v189
      %v267 = vunpack.c.l.b16 %v190
      %v268 = vunpack.c.l.b16 %v191
      %v269 = vunpack.c.l.b16 %v192
      %v270 = vunpack.c.l.b16 %v193
      %v271 = vunpack.c.l.b16 %v194
      %v272 = vunpack.c.l.b16 %v195
      %v273 = vunpack.c.l.b16 %v196
      %v274 = vunpack.c.l.b16 %v197
      %v275 = vunpack.c.l.b16 %v198
      %v276 = vunpack.c.l.b16 %v199
      %v277 = vunpack.c.l.b16 %v200
      %v278 = vunpack.c.l.b16 %v201
      %v279 = vunpack.c.l.b16 %v202
      %v280 = vunpack.c.l.b16 %v203
      %v281 = vunpack.c.l.b16 %v204
      %v282 = vunpack.c.l.b16 %v205
      %v283 = vunpack.c.l.b16 %v206
      %v284 = vpack.c.b16 %v253, %v252
      %v285 = vpack.c.b16 %v255, %v254
      %v286 = vpack.c.b16 %v257, %v256
      %v287 = vpack.c.b16 %v259, %v258
      %v288 = vpack.c.b16 %v261, %v260
      %v289 = vpack.c.b16 %v263, %v262
      %v290 = vpack.c.b16 %v265, %v264
      %v291 = vpack.c.b16 %v267, %v266
      %v292 = vpack.c.b16 %v269, %v268
      %v293 = vpack.c.b16 %v271, %v270
      %v294 = vpack.c.b16 %v273, %v272
      %v295 = vpack.c.b16 %v275, %v274
      %v296 = vpack.c.b16 %v277, %v276
      %v297 = vpack.c.b16 %v279, %v278
      %v298 = vpack.c.b16 %v281, %v280
      %v299 = vpack.c.b16 %v283, %v282
      %v309 = vunpack.c.l.b16 %v207
      %v310 = vunpack.c.l.b16 %v208
      %v311 = vunpack.c.l.b16 %v209
      %v312 = vunpack.c.l.b16 %v210
      %v313 = vunpack.c.l.b16 %v211
      %v314 = vunpack.c.l.b16 %v212
      %v315 = vunpack.c.l.b16 %v213
      %v316 = vunpack.c.l.b16 %v214
      %v317 = vunpack.c.l.b16 %v215
      %v318 = vpack.c.b16 %v310, %v309
      %v319 = vpack.c.b16 %v312, %v311
      %v320 = vpack.c.b16 %v314, %v313
      %v321 = vpack.c.b16 %v316, %v315
      %v322 = vpack.c.b16 %v317, %v317
      %vm327 = vcmask 588800
      %v329 = vsel %vm327, %v284, 0
      %v332 = vsel %vm327, %v285, 0
      %v335 = vsel %vm327, %v286, 0
      %v338 = vsel %vm327, %v287, 0
      %v341 = vsel %vm327, %v288, 0
      %v344 = vsel %vm327, %v289, 0
      %v347 = vsel %vm327, %v290, 0
      %v350 = vsel %vm327, %v291, 0
      %v353 = vsel %vm327, %v292, 0
      %v356 = vsel %vm327, %v293, 0
      %v359 = vsel %vm327, %v294, 0
      %v362 = vsel %vm327, %v295, 0
      %v365 = vsel %vm327, %v296, 0
      %v368 = vsel %vm327, %v297, 0
      %v371 = vsel %vm327, %v298, 0
      %v374 = vsel %vm327, %v299, 0
      %vm376 = vcmask 1043456
      %v378 = vsel %vm376, %v322, 0
      %380 = vmatpush.bf16.msra.mxu0 0
      %381 = vmatpush.bf16.msra.mxu0 0
      %382 = vmatpush.bf16.msra.mxu0 0
      %383 = vmatpush.bf16.msra.mxu0 %v378
      %384 = vmatpush.bf16.msra.mxu0 %v321
      %385 = vmatpush.bf16.msra.mxu0 %v320
      %386 = vmatpush.bf16.msra.mxu0 %v319
      %387 = vmatpush.bf16.msra.mxu0 %v318
      %388 = vmatmul.bf16.gmra.mxu0 %v329
      %v389 = vpop.f32.mrf.mxu0
      %v390 = vadd.f32 %v218, %v389
      %v391 = vpop.f32.mrf.mxu0
      %v392 = vadd.f32 %v218, %v391
      %393 = vmatmul.bf16.gmra.mxu0 %v332
      %v394 = vpop.f32.mrf.mxu0
      %v395 = vadd.f32 %v218, %v394
      %v396 = vpop.f32.mrf.mxu0
      %v397 = vadd.f32 %v218, %v396
      %398 = vmatmul.bf16.gmra.mxu0 %v335
      %v399 = vpop.f32.mrf.mxu0
      %v400 = vadd.f32 %v218, %v399
      %v401 = vpop.f32.mrf.mxu0
      %v402 = vadd.f32 %v218, %v401
      %403 = vmatmul.bf16.gmra.mxu0 %v338
      %v404 = vpop.f32.mrf.mxu0
      %v405 = vadd.f32 %v218, %v404
      %v406 = vpop.f32.mrf.mxu0
      %v407 = vadd.f32 %v218, %v406
      %408 = vmatmul.bf16.gmra.mxu0 %v341
      %v409 = vpop.f32.mrf.mxu0
      %v410 = vadd.f32 %v218, %v409
      %v411 = vpop.f32.mrf.mxu0
      %v412 = vadd.f32 %v218, %v411
      %413 = vmatmul.bf16.gmra.mxu0 %v344
      %v414 = vpop.f32.mrf.mxu0
      %v415 = vadd.f32 %v218, %v414
      %v416 = vpop.f32.mrf.mxu0
      %v417 = vadd.f32 %v218, %v416
      %418 = vmatmul.bf16.gmra.mxu0 %v347
      %v419 = vpop.f32.mrf.mxu0
      %v420 = vadd.f32 %v218, %v419
      %v421 = vpop.f32.mrf.mxu0
      %v422 = vadd.f32 %v218, %v421
      %423 = vmatmul.bf16.gmra.mxu0 %v350
      %v424 = vpop.f32.mrf.mxu0
      %v425 = vadd.f32 %v218, %v424
      %v426 = vpop.f32.mrf.mxu0
      %v427 = vadd.f32 %v218, %v426
      %428 = vmatmul.bf16.gmra.mxu0 %v353
      %v429 = vpop.f32.mrf.mxu0
      %v430 = vadd.f32 %v218, %v429
      %v431 = vpop.f32.mrf.mxu0
      %v432 = vadd.f32 %v218, %v431
      %433 = vmatmul.bf16.gmra.mxu0 %v356
      %v434 = vpop.f32.mrf.mxu0
      %v435 = vadd.f32 %v218, %v434
      %v436 = vpop.f32.mrf.mxu0
      %v437 = vadd.f32 %v218, %v436
      %438 = vmatmul.bf16.gmra.mxu0 %v359
      %v439 = vpop.f32.mrf.mxu0
      %v440 = vadd.f32 %v218, %v439
      %v441 = vpop.f32.mrf.mxu0
      %v442 = vadd.f32 %v218, %v441
      %443 = vmatmul.bf16.gmra.mxu0 %v362
      %v444 = vpop.f32.mrf.mxu0
      %v445 = vadd.f32 %v218, %v444
      %v446 = vpop.f32.mrf.mxu0
      %v447 = vadd.f32 %v218, %v446
      %448 = vmatmul.bf16.gmra.mxu0 %v365
      %v449 = vpop.f32.mrf.mxu0
      %v450 = vadd.f32 %v218, %v449
      %v451 = vpop.f32.mrf.mxu0
      %v452 = vadd.f32 %v218, %v451
      %453 = vmatmul.bf16.gmra.mxu0 %v368
      %v454 = vpop.f32.mrf.mxu0
      %v455 = vadd.f32 %v218, %v454
      %v456 = vpop.f32.mrf.mxu0
      %v457 = vadd.f32 %v218, %v456
      %458 = vmatmul.bf16.gmra.mxu0 %v371
      %v459 = vpop.f32.mrf.mxu0
      %v460 = vadd.f32 %v218, %v459
      %v461 = vpop.f32.mrf.mxu0
      %v462 = vadd.f32 %v218, %v461
      %463 = vmatmul.bf16.gmra.mxu0 %v374
      %v464 = vpop.f32.mrf.mxu0
      %v465 = vadd.f32 %v218, %v464
      %v466 = vpop.f32.mrf.mxu0
      %v467 = vadd.f32 %v218, %v466
      %468 = vdwg.mxu0
      %v469 = vmax.f32 %v390, 0.0
      %v470 = vmax.f32 %v392, 0.0
      %v471 = vmax.f32 %v395, 0.0
      %v472 = vmax.f32 %v397, 0.0
      %v473 = vmax.f32 %v400, 0.0
      %v474 = vmax.f32 %v402, 0.0
      %v475 = vmax.f32 %v405, 0.0
      %v476 = vmax.f32 %v407, 0.0
      %v477 = vmax.f32 %v410, 0.0
      %v478 = vmax.f32 %v412, 0.0
      %v479 = vmax.f32 %v415, 0.0
      %v480 = vmax.f32 %v417, 0.0
      %v481 = vmax.f32 %v420, 0.0
      %v482 = vmax.f32 %v422, 0.0
      %v483 = vmax.f32 %v425, 0.0
      %v484 = vmax.f32 %v427, 0.0
      %v485 = vmax.f32 %v430, 0.0
      %v486 = vmax.f32 %v432, 0.0
      %v487 = vmax.f32 %v435, 0.0
      %v488 = vmax.f32 %v437, 0.0
      %v489 = vmax.f32 %v440, 0.0
      %v490 = vmax.f32 %v442, 0.0
      %v491 = vmax.f32 %v445, 0.0
      %v492 = vmax.f32 %v447, 0.0
      %v493 = vmax.f32 %v450, 0.0
      %v494 = vmax.f32 %v452, 0.0
      %v495 = vmax.f32 %v455, 0.0
      %v496 = vmax.f32 %v457, 0.0
      %v497 = vmax.f32 %v460, 0.0
      %v498 = vmax.f32 %v462, 0.0
      %v499 = vmax.f32 %v465, 0.0
      %v500 = vmax.f32 %v467, 0.0
      %v501 = vpack.c.bf16 %v469, %v469
      %v502 = vpack.c.bf16 %v470, %v470
      %v503 = vpack.c.bf16 %v471, %v471
      %v504 = vpack.c.bf16 %v472, %v472
      %v505 = vpack.c.bf16 %v473, %v473
      %v506 = vpack.c.bf16 %v474, %v474
      %v507 = vpack.c.bf16 %v475, %v475
      %v508 = vpack.c.bf16 %v476, %v476
      %v509 = vpack.c.bf16 %v477, %v477
      %v510 = vpack.c.bf16 %v478, %v478
      %v511 = vpack.c.bf16 %v479, %v479
      %v512 = vpack.c.bf16 %v480, %v480
      %v513 = vpack.c.bf16 %v481, %v481
      %v514 = vpack.c.bf16 %v482, %v482
      %v515 = vpack.c.bf16 %v483, %v483
      %v516 = vpack.c.bf16 %v484, %v484
      %v517 = vpack.c.bf16 %v485, %v485
      %v518 = vpack.c.bf16 %v486, %v486
      %v519 = vpack.c.bf16 %v487, %v487
      %v520 = vpack.c.bf16 %v488, %v488
      %v521 = vpack.c.bf16 %v489, %v489
      %v522 = vpack.c.bf16 %v490, %v490
      %v523 = vpack.c.bf16 %v491, %v491
      %v524 = vpack.c.bf16 %v492, %v492
      %v525 = vpack.c.bf16 %v493, %v493
      %v526 = vpack.c.bf16 %v494, %v494
      %v527 = vpack.c.bf16 %v495, %v495
      %v528 = vpack.c.bf16 %v496, %v496
      %v529 = vpack.c.bf16 %v497, %v497
      %v530 = vpack.c.bf16 %v498, %v498
      %v531 = vpack.c.bf16 %v499, %v499
      %v532 = vpack.c.bf16 %v500, %v500
      %533 = vst [vmem:[%s172] sm:$0xf] %v501
      %534 = vst [vmem:[%s172 + $0x4] sm:$0xf] %v502
      %535 = vst [vmem:[%s172 + $0x8] sm:$0xf] %v503
      %536 = vst [vmem:[%s172 + $0xc] sm:$0xf] %v504
      %537 = vst [vmem:[%s172 + $0x10] sm:$0xf] %v505
      %538 = vst [vmem:[%s172 + $0x14] sm:$0xf] %v506
      %539 = vst [vmem:[%s172 + $0x18] sm:$0xf] %v507
      %540 = vst [vmem:[%s172 + $0x1c] sm:$0xf] %v508
      %541 = vst [vmem:[%s172 + $0x20] sm:$0xf] %v509
      %542 = vst [vmem:[%s172 + $0x24] sm:$0xf] %v510
      %543 = vst [vmem:[%s172 + $0x28] sm:$0xf] %v511
      %544 = vst [vmem:[%s172 + $0x2c] sm:$0xf] %v512
      %545 = vst [vmem:[%s172 + $0x30] sm:$0xf] %v513
      %546 = vst [vmem:[%s172 + $0x34] sm:$0xf] %v514
      %547 = vst [vmem:[%s172 + $0x38] sm:$0xf] %v515
      %548 = vst [vmem:[%s172 + $0x3c] sm:$0xf] %v516
      %549 = vst [vmem:[%s172 + $0x40] sm:$0xf] %v517
      %550 = vst [vmem:[%s172 + $0x44] sm:$0xf] %v518
      %551 = vst [vmem:[%s172 + $0x48] sm:$0xf] %v519
      %552 = vst [vmem:[%s172 + $0x4c] sm:$0xf] %v520
      %553 = vst [vmem:[%s172 + $0x50] sm:$0xf] %v521
      %554 = vst [vmem:[%s172 + $0x54] sm:$0xf] %v522
      %555 = vst [vmem:[%s172 + $0x58] sm:$0xf] %v523
      %556 = vst [vmem:[%s172 + $0x5c] sm:$0xf] %v524
      %557 = vst [vmem:[%s172 + $0x60] sm:$0xf] %v525
      %558 = vst [vmem:[%s172 + $0x64] sm:$0xf] %v526
      %559 = vst [vmem:[%s172 + $0x68] sm:$0xf] %v527
      %560 = vst [vmem:[%s172 + $0x6c] sm:$0xf] %v528
      %561 = vst [vmem:[%s172 + $0x70] sm:$0xf] %v529
      %562 = vst [vmem:[%s172 + $0x74] sm:$0xf] %v530
      %563 = vst [vmem:[%s172 + $0x78] sm:$0xf] %v531
      %564 = vst [vmem:[%s172 + $0x7c] sm:$0xf] %v532
      %s565 = smul.u32 32, %s14
      %p566 = scmp.lt.s32.totalorder %s565, 63
      %s567 = scalar_select %p566, %s565, 63
      %s568 = smul.addr %s567, 4
      %s569 = scalar_lea.vmem %s3, %s568
      // Predicated region
      $region33: #{regnet_forward.13} parent=31 // pred_check
        %p570 = pneg %p100
      $region34: #{regnet_forward.13} parent=31 // pred_check_branch
        %572 = sbr.rel (%p570) target = $region36
      $region35: #{regnet_forward.13} parent=31 // pred_region
        %s573 = smul.u32 32, %s14
      $region36: #{regnet_forward.13} parent=31 // pred_fallthru
        _
    $region32: #{regnet_forward.13} parent=5 // pred_fallthru
      _
    %p574 = scmp.le.s32.totalorder 2, %s9
    // Predicated region
    $region37: #{regnet_forward.13} parent=5 // pred_check
      %p575 = pneg %p574
    $region38: #{regnet_forward.13} parent=5 // pred_check_branch
      %577 = sbr.rel (%p575) target = $region40
    $region39: #{regnet_forward.13} parent=5 // pred_region
      %s578 = ssub.s32 %s9, 2
      // Predicated region
      $region41: #{regnet_forward.13} parent=39 // pred_check
        %p579 = pneg %p106
      $region42: #{regnet_forward.13} parent=39 // pred_check_branch
        %581 = sbr.rel (%p579) target = $region44
      $region43: #{regnet_forward.13} parent=39 // pred_region
        %s582 = smul.u32 32, %s15
        %p583 = scmp.lt.s32.totalorder %s582, 63
        %s584 = scalar_select %p583, %s582, 63
        %s585 = smul.addr %s584, 4
        %s586 = scalar_lea.vmem %s3, %s585
      $region44: #{regnet_forward.13} parent=39 // pred_fallthru
        _
    $region40: #{regnet_forward.13} parent=5 // pred_fallthru
      _
  $region6: #{regnet_forward.13} parent=0 // loop_footer
    %s13 = sadd.s32 1, %s9
  $region7: #{regnet_forward.13} parent=0 // loop_footer_branch
    %8 = sbr.rel target = $region3
  $region8: #{regnet_forward.13} parent=0 // loop_exit
    _

// kernel: regnet_forward.14
$region0: #{regnet_forward.14}
  #allocation0 [shape = 'u32[]', space=smem, size = 0x4, offset = 0x4, fixed_abs, tag = 'smem constant byte address 0x4 - core index']
  #allocation1 [shape = 'u32[72,128]{1,0:T(1,128)}', space=vmem, size = 0x9000, scoped, tag = 'internal scratch']
  %s0 = inlined_call_operand.vmem [shape: bf16[512,128], index: 0, kind: input, shape index: {}]
  %s1 = inlined_call_operand.vmem [shape: bf16[128,128], index: 1, kind: input, shape index: {}]
  %s2 = inlined_call_operand.vmem [shape: f32[1,128], index: 2, kind: input, shape index: {}]
  %s3 = inlined_call_operand.vmem [shape: bf16[512,128], index: 3, kind: output, shape index: {}]
  %s4 = sld [smem:[#allocation0]]
  $region45: #{regnet_forward.14} parent=0
    _
  %s6 = ssub.s32 1, %s4
  %s7 = scalar_select 0, %s6, %s4
  loop: start=0, step=1, limit=4
  $region2: #{regnet_forward.14} parent=0 // loop_pre_header
    _
  $region3: #{regnet_forward.14} parent=0 // loop_header
    %s9 = sphi 0, %s13
    %p10 = scmp.ge.s32.totalorder %s9, 4
    %s19 = sphi 0, %s21
    %s22 = sphi 0, %s19
    %s23 = sphi 0, %s22
    %s39 = sphi 0, %s23
    %s43 = sphi 0, %s43
    %s45 = sphi 0, %s43
    %s46 = sphi 0, %s45
    %s60 = sphi 0, %s46
    %s64 = sphi 0, %s64
    %s66 = sphi 0, %s64
    %s67 = sphi 0, %s66
    %s81 = sphi 0, %s67
    %s87 = sphi 0, %s89
    %s90 = sphi 0, %s87
    %s91 = sphi 0, %s90
    %s107 = sphi 0, %s91
  $region4: #{regnet_forward.14} parent=0 // loop_header_branch
    %12 = sbr.rel (%p10) target = $region8
  $region5: #{regnet_forward.14} parent=0 // loop_body
    %s14 = ssub.s32 %s9, 1
    %s15 = ssub.s32 %s9, 2
    %s16 = sadd.s32 %s9, 1
    %s17 = ssub.s32 %s9, %s16
    %p18 = scmp.eq.s32.totalorder %s17, 0
    %s20 = sadd.s32 %s19, 1
    %s21 = scalar_select %p18, %s19, %s20
    %p24 = pneg %p18
    %p25 = scmp.eq.s32.totalorder %s9, 1
    %p26 = por %p24, %p25
    %p27 = scmp.ne.s32.totalorder %s19, %s22
    %p28 = scmp.eq.s32.totalorder %s9, 0
    %p29 = por %p27, %p28
    %p30 = scmp.ne.s32.totalorder %s19, %s22
    %p31 = scmp.eq.s32.totalorder %s14, 1
    %p32 = por %p30, %p31
    %p33 = scmp.ne.s32.totalorder %s22, %s23
    %p34 = scmp.eq.s32.totalorder %s14, 0
    %p35 = por %p33, %p34
    %p36 = scmp.ne.s32.totalorder %s22, %s23
    %p37 = scmp.eq.s32.totalorder %s15, 1
    %p38 = por %p36, %p37
    %p40 = scmp.ne.s32.totalorder %s23, %s39
    %p41 = scmp.eq.s32.totalorder %s15, 0
    %p42 = por %p40, %p41
    %s44 = sadd.s32 %s43, 1
    %p47 = scmp.eq.s32.totalorder %s9, 1
    %p48 = scmp.ne.s32.totalorder %s43, %s45
    %p49 = scmp.eq.s32.totalorder %s9, 0
    %p50 = por %p48, %p49
    %p51 = scmp.ne.s32.totalorder %s43, %s45
    %p52 = scmp.eq.s32.totalorder %s14, 1
    %p53 = por %p51, %p52
    %p54 = scmp.ne.s32.totalorder %s45, %s46
    %p55 = scmp.eq.s32.totalorder %s14, 0
    %p56 = por %p54, %p55
    %p57 = scmp.ne.s32.totalorder %s45, %s46
    %p58 = scmp.eq.s32.totalorder %s15, 1
    %p59 = por %p57, %p58
    %p61 = scmp.ne.s32.totalorder %s46, %s60
    %p62 = scmp.eq.s32.totalorder %s15, 0
    %p63 = por %p61, %p62
    %s65 = sadd.s32 %s64, 1
    %p68 = scmp.eq.s32.totalorder %s9, 1
    %p69 = scmp.ne.s32.totalorder %s64, %s66
    %p70 = scmp.eq.s32.totalorder %s9, 0
    %p71 = por %p69, %p70
    %p72 = scmp.ne.s32.totalorder %s64, %s66
    %p73 = scmp.eq.s32.totalorder %s14, 1
    %p74 = por %p72, %p73
    %p75 = scmp.ne.s32.totalorder %s66, %s67
    %p76 = scmp.eq.s32.totalorder %s14, 0
    %p77 = por %p75, %p76
    %p78 = scmp.ne.s32.totalorder %s66, %s67
    %p79 = scmp.eq.s32.totalorder %s15, 1
    %p80 = por %p78, %p79
    %p82 = scmp.ne.s32.totalorder %s67, %s81
    %p83 = scmp.eq.s32.totalorder %s15, 0
    %p84 = por %p82, %p83
    %s85 = ssub.s32 %s9, %s16
    %p86 = scmp.eq.s32.totalorder %s85, 0
    %s88 = sadd.s32 %s87, 1
    %s89 = scalar_select %p86, %s87, %s88
    %p92 = pneg %p86
    %p93 = scmp.eq.s32.totalorder %s9, 1
    %p94 = por %p92, %p93
    %p95 = scmp.ne.s32.totalorder %s87, %s90
    %p96 = scmp.eq.s32.totalorder %s9, 0
    %p97 = por %p95, %p96
    %p98 = scmp.ne.s32.totalorder %s87, %s90
    %p99 = scmp.eq.s32.totalorder %s14, 1
    %p100 = por %p98, %p99
    %p101 = scmp.ne.s32.totalorder %s90, %s91
    %p102 = scmp.eq.s32.totalorder %s14, 0
    %p103 = por %p101, %p102
    %p104 = scmp.ne.s32.totalorder %s90, %s91
    %p105 = scmp.eq.s32.totalorder %s15, 1
    %p106 = por %p104, %p105
    %p108 = scmp.ne.s32.totalorder %s91, %s107
    %p109 = scmp.eq.s32.totalorder %s15, 0
    %p110 = por %p108, %p109
    %p111 = scmp.le.s32.totalorder 1, %s9
    %p112 = scmp.lt.s32.totalorder %s9, 3
    %p113 = pnand %p111, %p112
    %p114 = pneg %p113
    // Predicated region
    $region9: #{regnet_forward.14} parent=5 // pred_check
      _
    $region10: #{regnet_forward.14} parent=5 // pred_check_branch
      %116 = sbr.rel (%p113) target = $region12
    $region11: #{regnet_forward.14} parent=5 // pred_region
      %s117 = ssub.s32 %s9, 1
      // Predicated region
      $region13: #{regnet_forward.14} parent=11 // pred_check
        %p118 = pneg %p56
      $region14: #{regnet_forward.14} parent=11 // pred_check_branch
        %120 = sbr.rel (%p118) target = $region16
      $region15: #{regnet_forward.14} parent=11 // pred_region
        _
      $region16: #{regnet_forward.14} parent=11 // pred_fallthru
        _
      // Predicated region
      $region17: #{regnet_forward.14} parent=11 // pred_check
        %p121 = pneg %p77
      $region18: #{regnet_forward.14} parent=11 // pred_check_branch
        %123 = sbr.rel (%p121) target = $region20
      $region19: #{regnet_forward.14} parent=11 // pred_region
        _
      $region20: #{regnet_forward.14} parent=11 // pred_fallthru
        _
    $region12: #{regnet_forward.14} parent=5 // pred_fallthru
      _
    %p124 = scmp.lt.s32.totalorder %s9, 2
    // Predicated region
    $region21: #{regnet_forward.14} parent=5 // pred_check
      %p125 = pneg %p124
    $region22: #{regnet_forward.14} parent=5 // pred_check_branch
      %127 = sbr.rel (%p125) target = $region24
    $region23: #{regnet_forward.14} parent=5 // pred_region
      // Predicated region
      $region25: #{regnet_forward.14} parent=23 // pred_check
        %p128 = pneg %p29
      $region26: #{regnet_forward.14} parent=23 // pred_check_branch
        %130 = sbr.rel (%p128) target = $region28
      $region27: #{regnet_forward.14} parent=23 // pred_region
        %s131 = smul.u32 32, %s9
        %p132 = scmp.lt.s32.totalorder %s131, 63
        %s133 = scalar_select %p132, %s131, 63
        %s134 = smul.addr %s133, 4
        %s135 = scalar_lea.vmem %s0, %s134
        %s136 = smul.u32 32, %s9
      $region28: #{regnet_forward.14} parent=23 // pred_fallthru
        _
    $region24: #{regnet_forward.14} parent=5 // pred_fallthru
      _
    %p137 = scmp.le.s32.totalorder 1, %s9
    %p138 = scmp.lt.s32.totalorder %s9, 3
    %p139 = pnand %p137, %p138
    %p140 = pneg %p139
    // Predicated region
    $region29: #{regnet_forward.14} parent=5 // pred_check
      _
    $region30: #{regnet_forward.14} parent=5 // pred_check_branch
      %142 = sbr.rel (%p139) target = $region32
    $region31: #{regnet_forward.14} parent=5 // pred_region
      %s143 = ssub.s32 %s9, 1
      %s144 = smul.u32 32, %s14
      %p145 = scmp.lt.s32.totalorder %s144, 63
      %s146 = scalar_select %p145, %s144, 63
      %s147 = smul.addr %s146, 4
      %s148 = scalar_lea.vmem %s0, %s147
      %p149 = pneg %p35
      %p150 = pneg %p32
      %p151 = pneg %p56
      %p152 = pneg %p53
      %p153 = pneg %p77
      %p154 = pneg %p74
      %p155 = pneg %p103
      %p156 = pneg %p100
      %s157 = smul.u32 32, %s14
      %p158 = scmp.lt.s32.totalorder %s157, 63
      %s159 = scalar_select %p158, %s157, 63
      %s160 = smul.addr %s159, 4
      %s161 = scalar_lea.vmem %s3, %s160
      %s162 = smul.u32 32, %s14
      %p163 = scmp.lt.s32.totalorder %s162, 63
      %s164 = scalar_select %p163, %s162, 63
      %s165 = smul.addr %s164, 4
      %s166 = scalar_lea.vmem %s0, %s165
      %s167 = smul.u32 32, %s14
      %s168 = smul.u32 32, %s14
      %p169 = scmp.lt.s32.totalorder %s168, 63
      %s170 = scalar_select %p169, %s168, 63
      %s171 = smul.addr %s170, 4
      %s172 = scalar_lea.vmem %s3, %s171
      %s173 = smul.u32 32, %s14
      %v174 = vld [vmem:[%s166] sm:$0xf]
      %v175 = vld [vmem:[%s166 + $0x4] sm:$0xf]
      %v176 = vld [vmem:[%s166 + $0x8] sm:$0xf]
      %v177 = vld [vmem:[%s166 + $0xc] sm:$0xf]
      %v178 = vld [vmem:[%s166 + $0x10] sm:$0xf]
      %v179 = vld [vmem:[%s166 + $0x14] sm:$0xf]
      %v180 = vld [vmem:[%s166 + $0x18] sm:$0xf]
      %v181 = vld [vmem:[%s166 + $0x1c] sm:$0xf]
      %v182 = vld [vmem:[%s166 + $0x20] sm:$0xf]
      %v183 = vld [vmem:[%s166 + $0x24] sm:$0xf]
      %v184 = vld [vmem:[%s166 + $0x28] sm:$0xf]
      %v185 = vld [vmem:[%s166 + $0x2c] sm:$0xf]
      %v186 = vld [vmem:[%s166 + $0x30] sm:$0xf]
      %v187 = vld [vmem:[%s166 + $0x34] sm:$0xf]
      %v188 = vld [vmem:[%s166 + $0x38] sm:$0xf]
      %v189 = vld [vmem:[%s166 + $0x3c] sm:$0xf]
      %v190 = vld [vmem:[%s166 + $0x40] sm:$0xf]
      %v191 = vld [vmem:[%s166 + $0x44] sm:$0xf]
      %v192 = vld [vmem:[%s166 + $0x48] sm:$0xf]
      %v193 = vld [vmem:[%s166 + $0x4c] sm:$0xf]
      %v194 = vld [vmem:[%s166 + $0x50] sm:$0xf]
      %v195 = vld [vmem:[%s166 + $0x54] sm:$0xf]
      %v196 = vld [vmem:[%s166 + $0x58] sm:$0xf]
      %v197 = vld [vmem:[%s166 + $0x5c] sm:$0xf]
      %v198 = vld [vmem:[%s166 + $0x60] sm:$0xf]
      %v199 = vld [vmem:[%s166 + $0x64] sm:$0xf]
      %v200 = vld [vmem:[%s166 + $0x68] sm:$0xf]
      %v201 = vld [vmem:[%s166 + $0x6c] sm:$0xf]
      %v202 = vld [vmem:[%s166 + $0x70] sm:$0xf]
      %v203 = vld [vmem:[%s166 + $0x74] sm:$0xf]
      %v204 = vld [vmem:[%s166 + $0x78] sm:$0xf]
      %v205 = vld [vmem:[%s166 + $0x7c] sm:$0xf]
      %v206 = vld [vmem:[%s1] sm:$0xf]
      %v207 = vld [vmem:[%s1 + $0x4] sm:$0xf]
      %v208 = vld [vmem:[%s1 + $0x8] sm:$0xf]
      %v209 = vld [vmem:[%s1 + $0xc] sm:$0xf]
      %v210 = vld [vmem:[%s1 + $0x10] sm:$0xf]
      %v211 = vld [vmem:[%s1 + $0x14] sm:$0xf]
      %v212 = vld [vmem:[%s1 + $0x18] sm:$0xf]
      %v213 = vld [vmem:[%s1 + $0x1c] sm:$0xf]
      %v214 = vld [vmem:[%s1 + $0x20] sm:$0xf]
      %v215 = vld [vmem:[%s1 + $0x24] sm:$0xf]
      %v216 = vld [vmem:[%s1 + $0x28] sm:$0xf]
      %v217 = vld [vmem:[%s1 + $0x2c] sm:$0xf]
      %v218 = vld [vmem:[%s1 + $0x30] sm:$0xf]
      %v219 = vld [vmem:[%s1 + $0x34] sm:$0xf]
      %v220 = vld [vmem:[%s1 + $0x38] sm:$0xf]
      %v221 = vld [vmem:[%s1 + $0x3c] sm:$0xf]
      %v222 = vld [vmem:[%s2] sm:$0x1]
      %v224 = vperm.slane %v222, 0
      %v258 = vunpack.c.l.b16 %v174
      %v259 = vunpack.c.l.b16 %v175
      %v260 = vunpack.c.l.b16 %v176
      %v261 = vunpack.c.l.b16 %v177
      %v262 = vunpack.c.l.b16 %v178
      %v263 = vunpack.c.l.b16 %v179
      %v264 = vunpack.c.l.b16 %v180
      %v265 = vunpack.c.l.b16 %v181
      %v266 = vunpack.c.l.b16 %v182
      %v267 = vunpack.c.l.b16 %v183
      %v268 = vunpack.c.l.b16 %v184
      %v269 = vunpack.c.l.b16 %v185
      %v270 = vunpack.c.l.b16 %v186
      %v271 = vunpack.c.l.b16 %v187
      %v272 = vunpack.c.l.b16 %v188
      %v273 = vunpack.c.l.b16 %v189
      %v274 = vunpack.c.l.b16 %v190
      %v275 = vunpack.c.l.b16 %v191
      %v276 = vunpack.c.l.b16 %v192
      %v277 = vunpack.c.l.b16 %v193
      %v278 = vunpack.c.l.b16 %v194
      %v279 = vunpack.c.l.b16 %v195
      %v280 = vunpack.c.l.b16 %v196
      %v281 = vunpack.c.l.b16 %v197
      %v282 = vunpack.c.l.b16 %v198
      %v283 = vunpack.c.l.b16 %v199
      %v284 = vunpack.c.l.b16 %v200
      %v285 = vunpack.c.l.b16 %v201
      %v286 = vunpack.c.l.b16 %v202
      %v287 = vunpack.c.l.b16 %v203
      %v288 = vunpack.c.l.b16 %v204
      %v289 = vunpack.c.l.b16 %v205
      %v290 = vpack.c.b16 %v259, %v258
      %v291 = vpack.c.b16 %v261, %v260
      %v292 = vpack.c.b16 %v263, %v262
      %v293 = vpack.c.b16 %v265, %v264
      %v294 = vpack.c.b16 %v267, %v266
      %v295 = vpack.c.b16 %v269, %v268
      %v296 = vpack.c.b16 %v271, %v270
      %v297 = vpack.c.b16 %v273, %v272
      %v298 = vpack.c.b16 %v275, %v274
      %v299 = vpack.c.b16 %v277, %v276
      %v300 = vpack.c.b16 %v279, %v278
      %v301 = vpack.c.b16 %v281, %v280
      %v302 = vpack.c.b16 %v283, %v282
      %v303 = vpack.c.b16 %v285, %v284
      %v304 = vpack.c.b16 %v287, %v286
      %v305 = vpack.c.b16 %v289, %v288
      %v338 = vunpack.c.l.b16 %v206
      %v339 = vunpack.c.l.b16 %v207
      %v340 = vunpack.c.l.b16 %v208
      %v341 = vunpack.c.l.b16 %v209
      %v342 = vunpack.c.l.b16 %v210
      %v343 = vunpack.c.l.b16 %v211
      %v344 = vunpack.c.l.b16 %v212
      %v345 = vunpack.c.l.b16 %v213
      %v346 = vunpack.c.l.b16 %v214
      %v347 = vunpack.c.l.b16 %v215
      %v348 = vunpack.c.l.b16 %v216
      %v349 = vunpack.c.l.b16 %v217
      %v350 = vunpack.c.l.b16 %v218
      %v351 = vunpack.c.l.b16 %v219
      %v352 = vunpack.c.l.b16 %v220
      %v353 = vunpack.c.l.b16 %v221
      %v354 = vpack.c.b16 %v339, %v338
      %v355 = vpack.c.b16 %v341, %v340
      %v356 = vpack.c.b16 %v343, %v342
      %v357 = vpack.c.b16 %v345, %v344
      %v358 = vpack.c.b16 %v347, %v346
      %v359 = vpack.c.b16 %v349, %v348
      %v360 = vpack.c.b16 %v351, %v350
      %v361 = vpack.c.b16 %v353, %v352
      %370 = vmatpush.bf16.msra.mxu0 %v361
      %371 = vmatpush.bf16.msra.mxu0 %v360
      %372 = vmatpush.bf16.msra.mxu0 %v359
      %373 = vmatpush.bf16.msra.mxu0 %v358
      %374 = vmatpush.bf16.msra.mxu0 %v357
      %375 = vmatpush.bf16.msra.mxu0 %v356
      %376 = vmatpush.bf16.msra.mxu0 %v355
      %377 = vmatpush.bf16.msra.mxu0 %v354
      %378 = vmatmul.bf16.gmra.mxu0 %v290
      %v379 = vpop.f32.mrf.mxu0
      %v380 = vadd.f32 %v224, %v379
      %v381 = vpop.f32.mrf.mxu0
      %v382 = vadd.f32 %v224, %v381
      %383 = vmatmul.bf16.gmra.mxu0 %v291
      %v384 = vpop.f32.mrf.mxu0
      %v385 = vadd.f32 %v224, %v384
      %v386 = vpop.f32.mrf.mxu0
      %v387 = vadd.f32 %v224, %v386
      %388 = vmatmul.bf16.gmra.mxu0 %v292
      %v389 = vpop.f32.mrf.mxu0
      %v390 = vadd.f32 %v224, %v389
      %v391 = vpop.f32.mrf.mxu0
      %v392 = vadd.f32 %v224, %v391
      %393 = vmatmul.bf16.gmra.mxu0 %v293
      %v394 = vpop.f32.mrf.mxu0
      %v395 = vadd.f32 %v224, %v394
      %v396 = vpop.f32.mrf.mxu0
      %v397 = vadd.f32 %v224, %v396
      %398 = vmatmul.bf16.gmra.mxu0 %v294
      %v399 = vpop.f32.mrf.mxu0
      %v400 = vadd.f32 %v224, %v399
      %v401 = vpop.f32.mrf.mxu0
      %v402 = vadd.f32 %v224, %v401
      %403 = vmatmul.bf16.gmra.mxu0 %v295
      %v404 = vpop.f32.mrf.mxu0
      %v405 = vadd.f32 %v224, %v404
      %v406 = vpop.f32.mrf.mxu0
      %v407 = vadd.f32 %v224, %v406
      %408 = vmatmul.bf16.gmra.mxu0 %v296
      %v409 = vpop.f32.mrf.mxu0
      %v410 = vadd.f32 %v224, %v409
      %v411 = vpop.f32.mrf.mxu0
      %v412 = vadd.f32 %v224, %v411
      %413 = vmatmul.bf16.gmra.mxu0 %v297
      %v414 = vpop.f32.mrf.mxu0
      %v415 = vadd.f32 %v224, %v414
      %v416 = vpop.f32.mrf.mxu0
      %v417 = vadd.f32 %v224, %v416
      %418 = vmatmul.bf16.gmra.mxu0 %v298
      %v419 = vpop.f32.mrf.mxu0
      %v420 = vadd.f32 %v224, %v419
      %v421 = vpop.f32.mrf.mxu0
      %v422 = vadd.f32 %v224, %v421
      %423 = vmatmul.bf16.gmra.mxu0 %v299
      %v424 = vpop.f32.mrf.mxu0
      %v425 = vadd.f32 %v224, %v424
      %v426 = vpop.f32.mrf.mxu0
      %v427 = vadd.f32 %v224, %v426
      %428 = vmatmul.bf16.gmra.mxu0 %v300
      %v429 = vpop.f32.mrf.mxu0
      %v430 = vadd.f32 %v224, %v429
      %v431 = vpop.f32.mrf.mxu0
      %v432 = vadd.f32 %v224, %v431
      %433 = vmatmul.bf16.gmra.mxu0 %v301
      %v434 = vpop.f32.mrf.mxu0
      %v435 = vadd.f32 %v224, %v434
      %v436 = vpop.f32.mrf.mxu0
      %v437 = vadd.f32 %v224, %v436
      %438 = vmatmul.bf16.gmra.mxu0 %v302
      %v439 = vpop.f32.mrf.mxu0
      %v440 = vadd.f32 %v224, %v439
      %v441 = vpop.f32.mrf.mxu0
      %v442 = vadd.f32 %v224, %v441
      %443 = vmatmul.bf16.gmra.mxu0 %v303
      %v444 = vpop.f32.mrf.mxu0
      %v445 = vadd.f32 %v224, %v444
      %v446 = vpop.f32.mrf.mxu0
      %v447 = vadd.f32 %v224, %v446
      %448 = vmatmul.bf16.gmra.mxu0 %v304
      %v449 = vpop.f32.mrf.mxu0
      %v450 = vadd.f32 %v224, %v449
      %v451 = vpop.f32.mrf.mxu0
      %v452 = vadd.f32 %v224, %v451
      %453 = vmatmul.bf16.gmra.mxu0 %v305
      %v454 = vpop.f32.mrf.mxu0
      %v455 = vadd.f32 %v224, %v454
      %v456 = vpop.f32.mrf.mxu0
      %v457 = vadd.f32 %v224, %v456
      %458 = vdwg.mxu0
      %v459 = vmax.f32 %v380, 0.0
      %v460 = vmax.f32 %v382, 0.0
      %v461 = vmax.f32 %v385, 0.0
      %v462 = vmax.f32 %v387, 0.0
      %v463 = vmax.f32 %v390, 0.0
      %v464 = vmax.f32 %v392, 0.0
      %v465 = vmax.f32 %v395, 0.0
      %v466 = vmax.f32 %v397, 0.0
      %v467 = vmax.f32 %v400, 0.0
      %v468 = vmax.f32 %v402, 0.0
      %v469 = vmax.f32 %v405, 0.0
      %v470 = vmax.f32 %v407, 0.0
      %v471 = vmax.f32 %v410, 0.0
      %v472 = vmax.f32 %v412, 0.0
      %v473 = vmax.f32 %v415, 0.0
      %v474 = vmax.f32 %v417, 0.0
      %v475 = vmax.f32 %v420, 0.0
      %v476 = vmax.f32 %v422, 0.0
      %v477 = vmax.f32 %v425, 0.0
      %v478 = vmax.f32 %v427, 0.0
      %v479 = vmax.f32 %v430, 0.0
      %v480 = vmax.f32 %v432, 0.0
      %v481 = vmax.f32 %v435, 0.0
      %v482 = vmax.f32 %v437, 0.0
      %v483 = vmax.f32 %v440, 0.0
      %v484 = vmax.f32 %v442, 0.0
      %v485 = vmax.f32 %v445, 0.0
      %v486 = vmax.f32 %v447, 0.0
      %v487 = vmax.f32 %v450, 0.0
      %v488 = vmax.f32 %v452, 0.0
      %v489 = vmax.f32 %v455, 0.0
      %v490 = vmax.f32 %v457, 0.0
      %v491 = vpack.c.bf16 %v459, %v459
      %v492 = vpack.c.bf16 %v460, %v460
      %v493 = vpack.c.bf16 %v461, %v461
      %v494 = vpack.c.bf16 %v462, %v462
      %v495 = vpack.c.bf16 %v463, %v463
      %v496 = vpack.c.bf16 %v464, %v464
      %v497 = vpack.c.bf16 %v465, %v465
      %v498 = vpack.c.bf16 %v466, %v466
      %v499 = vpack.c.bf16 %v467, %v467
      %v500 = vpack.c.bf16 %v468, %v468
      %v501 = vpack.c.bf16 %v469, %v469
      %v502 = vpack.c.bf16 %v470, %v470
      %v503 = vpack.c.bf16 %v471, %v471
      %v504 = vpack.c.bf16 %v472, %v472
      %v505 = vpack.c.bf16 %v473, %v473
      %v506 = vpack.c.bf16 %v474, %v474
      %v507 = vpack.c.bf16 %v475, %v475
      %v508 = vpack.c.bf16 %v476, %v476
      %v509 = vpack.c.bf16 %v477, %v477
      %v510 = vpack.c.bf16 %v478, %v478
      %v511 = vpack.c.bf16 %v479, %v479
      %v512 = vpack.c.bf16 %v480, %v480
      %v513 = vpack.c.bf16 %v481, %v481
      %v514 = vpack.c.bf16 %v482, %v482
      %v515 = vpack.c.bf16 %v483, %v483
      %v516 = vpack.c.bf16 %v484, %v484
      %v517 = vpack.c.bf16 %v485, %v485
      %v518 = vpack.c.bf16 %v486, %v486
      %v519 = vpack.c.bf16 %v487, %v487
      %v520 = vpack.c.bf16 %v488, %v488
      %v521 = vpack.c.bf16 %v489, %v489
      %v522 = vpack.c.bf16 %v490, %v490
      %523 = vst [vmem:[%s172] sm:$0xf] %v491
      %524 = vst [vmem:[%s172 + $0x4] sm:$0xf] %v492
      %525 = vst [vmem:[%s172 + $0x8] sm:$0xf] %v493
      %526 = vst [vmem:[%s172 + $0xc] sm:$0xf] %v494
      %527 = vst [vmem:[%s172 + $0x10] sm:$0xf] %v495
      %528 = vst [vmem:[%s172 + $0x14] sm:$0xf] %v496
      %529 = vst [vmem:[%s172 + $0x18] sm:$0xf] %v497
      %530 = vst [vmem:[%s172 + $0x1c] sm:$0xf] %v498
      %531 = vst [vmem:[%s172 + $0x20] sm:$0xf] %v499
      %532 = vst [vmem:[%s172 + $0x24] sm:$0xf] %v500
      %533 = vst [vmem:[%s172 + $0x28] sm:$0xf] %v501
      %534 = vst [vmem:[%s172 + $0x2c] sm:$0xf] %v502
      %535 = vst [vmem:[%s172 + $0x30] sm:$0xf] %v503
      %536 = vst [vmem:[%s172 + $0x34] sm:$0xf] %v504
      %537 = vst [vmem:[%s172 + $0x38] sm:$0xf] %v505
      %538 = vst [vmem:[%s172 + $0x3c] sm:$0xf] %v506
      %539 = vst [vmem:[%s172 + $0x40] sm:$0xf] %v507
      %540 = vst [vmem:[%s172 + $0x44] sm:$0xf] %v508
      %541 = vst [vmem:[%s172 + $0x48] sm:$0xf] %v509
      %542 = vst [vmem:[%s172 + $0x4c] sm:$0xf] %v510
      %543 = vst [vmem:[%s172 + $0x50] sm:$0xf] %v511
      %544 = vst [vmem:[%s172 + $0x54] sm:$0xf] %v512
      %545 = vst [vmem:[%s172 + $0x58] sm:$0xf] %v513
      %546 = vst [vmem:[%s172 + $0x5c] sm:$0xf] %v514
      %547 = vst [vmem:[%s172 + $0x60] sm:$0xf] %v515
      %548 = vst [vmem:[%s172 + $0x64] sm:$0xf] %v516
      %549 = vst [vmem:[%s172 + $0x68] sm:$0xf] %v517
      %550 = vst [vmem:[%s172 + $0x6c] sm:$0xf] %v518
      %551 = vst [vmem:[%s172 + $0x70] sm:$0xf] %v519
      %552 = vst [vmem:[%s172 + $0x74] sm:$0xf] %v520
      %553 = vst [vmem:[%s172 + $0x78] sm:$0xf] %v521
      %554 = vst [vmem:[%s172 + $0x7c] sm:$0xf] %v522
      %s555 = smul.u32 32, %s14
      %p556 = scmp.lt.s32.totalorder %s555, 63
      %s557 = scalar_select %p556, %s555, 63
      %s558 = smul.addr %s557, 4
      %s559 = scalar_lea.vmem %s3, %s558
      // Predicated region
      $region33: #{regnet_forward.14} parent=31 // pred_check
        %p560 = pneg %p100
      $region34: #{regnet_forward.14} parent=31 // pred_check_branch
        %562 = sbr.rel (%p560) target = $region36
      $region35: #{regnet_forward.14} parent=31 // pred_region
        %s563 = smul.u32 32, %s14
      $region36: #{regnet_forward.14} parent=31 // pred_fallthru
        _
    $region32: #{regnet_forward.14} parent=5 // pred_fallthru
      _
    %p564 = scmp.le.s32.totalorder 2, %s9
    // Predicated region
    $region37: #{regnet_forward.14} parent=5 // pred_check
      %p565 = pneg %p564
    $region38: #{regnet_forward.14} parent=5 // pred_check_branch
      %567 = sbr.rel (%p565) target = $region40
    $region39: #{regnet_forward.14} parent=5 // pred_region
      %s568 = ssub.s32 %s9, 2
      // Predicated region
      $region41: #{regnet_forward.14} parent=39 // pred_check
        %p569 = pneg %p106
      $region42: #{regnet_forward.14} parent=39 // pred_check_branch
        %571 = sbr.rel (%p569) target = $region44
      $region43: #{regnet_forward.14} parent=39 // pred_region
        %s572 = smul.u32 32, %s15
        %p573 = scmp.lt.s32.totalorder %s572, 63
        %s574 = scalar_select %p573, %s572, 63
        %s575 = smul.addr %s574, 4
        %s576 = scalar_lea.vmem %s3, %s575
      $region44: #{regnet_forward.14} parent=39 // pred_fallthru
        _
    $region40: #{regnet_forward.14} parent=5 // pred_fallthru
      _
  $region6: #{regnet_forward.14} parent=0 // loop_footer
    %s13 = sadd.s32 1, %s9
  $region7: #{regnet_forward.14} parent=0 // loop_footer_branch
    %8 = sbr.rel target = $region3
  $region8: #{regnet_forward.14} parent=0 // loop_exit
    _

// kernel: regnet_forward.17
$region0: #{regnet_forward.17}
  #allocation0 [shape = 'u32[]', space=smem, size = 0x4, offset = 0x4, fixed_abs, tag = 'smem constant byte address 0x4 - core index']
  #allocation1 [shape = 'u32[72,128]{1,0:T(1,128)}', space=vmem, size = 0x9000, scoped, tag = 'internal scratch']
  %s0 = inlined_call_operand.vmem [shape: bf16[128,128], index: 0, kind: input, shape index: {}]
  %s1 = inlined_call_operand.vmem [shape: bf16[128,128], index: 1, kind: input, shape index: {}]
  %s2 = inlined_call_operand.vmem [shape: f32[1,128], index: 2, kind: input, shape index: {}]
  %s3 = inlined_call_operand.vmem [shape: bf16[128,128], index: 3, kind: output, shape index: {}]
  %s4 = sld [smem:[#allocation0]]
  $region22: #{regnet_forward.17} parent=0
    _
  %s6 = ssub.s32 1, %s4
  %s7 = scalar_select 0, %s6, %s4
  // Predicated region
  $region2: #{regnet_forward.17} parent=0 // pred_check
    _
  $region3: #{regnet_forward.17} parent=0 // pred_check_branch
    %9 = sbr.rel (0) target = $region5
  $region4: #{regnet_forward.17} parent=0 // pred_region
    _
  $region5: #{regnet_forward.17} parent=0 // pred_fallthru
    _
  // Predicated region
  $region6: #{regnet_forward.17} parent=0 // pred_check
    _
  $region7: #{regnet_forward.17} parent=0 // pred_check_branch
    %11 = sbr.rel (0) target = $region9
  $region8: #{regnet_forward.17} parent=0 // pred_region
    _
  $region9: #{regnet_forward.17} parent=0 // pred_fallthru
    _
  // Predicated region
  $region10: #{regnet_forward.17} parent=0 // pred_check
    _
  $region11: #{regnet_forward.17} parent=0 // pred_check_branch
    %13 = sbr.rel (0) target = $region13
  $region12: #{regnet_forward.17} parent=0 // pred_region
    _
  $region13: #{regnet_forward.17} parent=0 // pred_fallthru
    _
  %v14 = vld [vmem:[%s0] sm:$0xf]
  %v15 = vld [vmem:[%s0 + $0x4] sm:$0xf]
  %v16 = vld [vmem:[%s0 + $0x8] sm:$0xf]
  %v17 = vld [vmem:[%s0 + $0xc] sm:$0xf]
  %v18 = vld [vmem:[%s0 + $0x10] sm:$0xf]
  %v19 = vld [vmem:[%s0 + $0x14] sm:$0xf]
  %v20 = vld [vmem:[%s0 + $0x18] sm:$0xf]
  %v21 = vld [vmem:[%s0 + $0x1c] sm:$0xf]
  %v22 = vld [vmem:[%s0 + $0x20] sm:$0xf]
  %v23 = vld [vmem:[%s0 + $0x24] sm:$0xf]
  %v24 = vld [vmem:[%s0 + $0x28] sm:$0xf]
  %v25 = vld [vmem:[%s0 + $0x2c] sm:$0xf]
  %v26 = vld [vmem:[%s0 + $0x30] sm:$0xf]
  %v27 = vld [vmem:[%s0 + $0x34] sm:$0xf]
  %v28 = vld [vmem:[%s0 + $0x38] sm:$0xf]
  %v29 = vld [vmem:[%s0 + $0x3c] sm:$0xf]
  %v30 = vld [vmem:[%s1] sm:$0xf]
  %v31 = vld [vmem:[%s1 + $0x4] sm:$0xf]
  %v32 = vld [vmem:[%s1 + $0x8] sm:$0xf]
  %v33 = vld [vmem:[%s1 + $0xc] sm:$0xf]
  %v34 = vld [vmem:[%s1 + $0x10] sm:$0xf]
  %v35 = vld [vmem:[%s1 + $0x14] sm:$0xf]
  %v36 = vld [vmem:[%s1 + $0x18] sm:$0xf]
  %v37 = vld [vmem:[%s1 + $0x1c] sm:$0xf]
  %v38 = vld [vmem:[%s1 + $0x20] sm:$0xf]
  %v39 = vld [vmem:[%s1 + $0x24] sm:$0xf]
  %v40 = vld [vmem:[%s1 + $0x28] sm:$0xf]
  %v41 = vld [vmem:[%s1 + $0x2c] sm:$0xf]
  %v42 = vld [vmem:[%s1 + $0x30] sm:$0xf]
  %v43 = vld [vmem:[%s1 + $0x34] sm:$0xf]
  %v44 = vld [vmem:[%s1 + $0x38] sm:$0xf]
  %v45 = vld [vmem:[%s1 + $0x3c] sm:$0xf]
  %v46 = vld [vmem:[%s2] sm:$0x1]
  %v48 = vperm.slane %v46, 0
  %v66 = vunpack.c.l.b16 %v14
  %v67 = vunpack.c.l.b16 %v15
  %v68 = vunpack.c.l.b16 %v16
  %v69 = vunpack.c.l.b16 %v17
  %v70 = vunpack.c.l.b16 %v18
  %v71 = vunpack.c.l.b16 %v19
  %v72 = vunpack.c.l.b16 %v20
  %v73 = vunpack.c.l.b16 %v21
  %v74 = vunpack.c.l.b16 %v22
  %v75 = vunpack.c.l.b16 %v23
  %v76 = vunpack.c.l.b16 %v24
  %v77 = vunpack.c.l.b16 %v25
  %v78 = vunpack.c.l.b16 %v26
  %v79 = vunpack.c.l.b16 %v27
  %v80 = vunpack.c.l.b16 %v28
  %v81 = vunpack.c.l.b16 %v29
  %v82 = vpack.c.b16 %v67, %v66
  %v83 = vpack.c.b16 %v69, %v68
  %v84 = vpack.c.b16 %v71, %v70
  %v85 = vpack.c.b16 %v73, %v72
  %v86 = vpack.c.b16 %v75, %v74
  %v87 = vpack.c.b16 %v77, %v76
  %v88 = vpack.c.b16 %v79, %v78
  %v89 = vpack.c.b16 %v81, %v80
  %v114 = vunpack.c.l.b16 %v30
  %v115 = vunpack.c.l.b16 %v31
  %v116 = vunpack.c.l.b16 %v32
  %v117 = vunpack.c.l.b16 %v33
  %v118 = vunpack.c.l.b16 %v34
  %v119 = vunpack.c.l.b16 %v35
  %v120 = vunpack.c.l.b16 %v36
  %v121 = vunpack.c.l.b16 %v37
  %v122 = vunpack.c.l.b16 %v38
  %v123 = vunpack.c.l.b16 %v39
  %v124 = vunpack.c.l.b16 %v40
  %v125 = vunpack.c.l.b16 %v41
  %v126 = vunpack.c.l.b16 %v42
  %v127 = vunpack.c.l.b16 %v43
  %v128 = vunpack.c.l.b16 %v44
  %v129 = vunpack.c.l.b16 %v45
  %v130 = vpack.c.b16 %v115, %v114
  %v131 = vpack.c.b16 %v117, %v116
  %v132 = vpack.c.b16 %v119, %v118
  %v133 = vpack.c.b16 %v121, %v120
  %v134 = vpack.c.b16 %v123, %v122
  %v135 = vpack.c.b16 %v125, %v124
  %v136 = vpack.c.b16 %v127, %v126
  %v137 = vpack.c.b16 %v129, %v128
  %146 = vmatpush.bf16.msra.mxu0 %v137
  %147 = vmatpush.bf16.msra.mxu0 %v136
  %148 = vmatpush.bf16.msra.mxu0 %v135
  %149 = vmatpush.bf16.msra.mxu0 %v134
  %150 = vmatpush.bf16.msra.mxu0 %v133
  %151 = vmatpush.bf16.msra.mxu0 %v132
  %152 = vmatpush.bf16.msra.mxu0 %v131
  %153 = vmatpush.bf16.msra.mxu0 %v130
  %154 = vmatmul.bf16.gmra.mxu0 %v82
  %v155 = vpop.f32.mrf.mxu0
  %v156 = vadd.f32 %v48, %v155
  %v157 = vpop.f32.mrf.mxu0
  %v158 = vadd.f32 %v48, %v157
  %159 = vmatmul.bf16.gmra.mxu0 %v83
  %v160 = vpop.f32.mrf.mxu0
  %v161 = vadd.f32 %v48, %v160
  %v162 = vpop.f32.mrf.mxu0
  %v163 = vadd.f32 %v48, %v162
  %164 = vmatmul.bf16.gmra.mxu0 %v84
  %v165 = vpop.f32.mrf.mxu0
  %v166 = vadd.f32 %v48, %v165
  %v167 = vpop.f32.mrf.mxu0
  %v168 = vadd.f32 %v48, %v167
  %169 = vmatmul.bf16.gmra.mxu0 %v85
  %v170 = vpop.f32.mrf.mxu0
  %v171 = vadd.f32 %v48, %v170
  %v172 = vpop.f32.mrf.mxu0
  %v173 = vadd.f32 %v48, %v172
  %174 = vmatmul.bf16.gmra.mxu0 %v86
  %v175 = vpop.f32.mrf.mxu0
  %v176 = vadd.f32 %v48, %v175
  %v177 = vpop.f32.mrf.mxu0
  %v178 = vadd.f32 %v48, %v177
  %179 = vmatmul.bf16.gmra.mxu0 %v87
  %v180 = vpop.f32.mrf.mxu0
  %v181 = vadd.f32 %v48, %v180
  %v182 = vpop.f32.mrf.mxu0
  %v183 = vadd.f32 %v48, %v182
  %184 = vmatmul.bf16.gmra.mxu0 %v88
  %v185 = vpop.f32.mrf.mxu0
  %v186 = vadd.f32 %v48, %v185
  %v187 = vpop.f32.mrf.mxu0
  %v188 = vadd.f32 %v48, %v187
  %189 = vmatmul.bf16.gmra.mxu0 %v89
  %v190 = vpop.f32.mrf.mxu0
  %v191 = vadd.f32 %v48, %v190
  %v192 = vpop.f32.mrf.mxu0
  %v193 = vadd.f32 %v48, %v192
  %194 = vdwg.mxu0
  %v195 = vmax.f32 %v156, 0.0
  %v196 = vmax.f32 %v158, 0.0
  %v197 = vmax.f32 %v161, 0.0
  %v198 = vmax.f32 %v163, 0.0
  %v199 = vmax.f32 %v166, 0.0
  %v200 = vmax.f32 %v168, 0.0
  %v201 = vmax.f32 %v171, 0.0
  %v202 = vmax.f32 %v173, 0.0
  %v203 = vmax.f32 %v176, 0.0
  %v204 = vmax.f32 %v178, 0.0
  %v205 = vmax.f32 %v181, 0.0
  %v206 = vmax.f32 %v183, 0.0
  %v207 = vmax.f32 %v186, 0.0
  %v208 = vmax.f32 %v188, 0.0
  %v209 = vmax.f32 %v191, 0.0
  %v210 = vmax.f32 %v193, 0.0
  %v211 = vpack.c.bf16 %v195, %v195
  %v212 = vpack.c.bf16 %v196, %v196
  %v213 = vpack.c.bf16 %v197, %v197
  %v214 = vpack.c.bf16 %v198, %v198
  %v215 = vpack.c.bf16 %v199, %v199
  %v216 = vpack.c.bf16 %v200, %v200
  %v217 = vpack.c.bf16 %v201, %v201
  %v218 = vpack.c.bf16 %v202, %v202
  %v219 = vpack.c.bf16 %v203, %v203
  %v220 = vpack.c.bf16 %v204, %v204
  %v221 = vpack.c.bf16 %v205, %v205
  %v222 = vpack.c.bf16 %v206, %v206
  %v223 = vpack.c.bf16 %v207, %v207
  %v224 = vpack.c.bf16 %v208, %v208
  %v225 = vpack.c.bf16 %v209, %v209
  %v226 = vpack.c.bf16 %v210, %v210
  %227 = vst [vmem:[%s3] sm:$0xf] %v211
  %228 = vst [vmem:[%s3 + $0x4] sm:$0xf] %v212
  %229 = vst [vmem:[%s3 + $0x8] sm:$0xf] %v213
  %230 = vst [vmem:[%s3 + $0xc] sm:$0xf] %v214
  %231 = vst [vmem:[%s3 + $0x10] sm:$0xf] %v215
  %232 = vst [vmem:[%s3 + $0x14] sm:$0xf] %v216
  %233 = vst [vmem:[%s3 + $0x18] sm:$0xf] %v217
  %234 = vst [vmem:[%s3 + $0x1c] sm:$0xf] %v218
  %235 = vst [vmem:[%s3 + $0x20] sm:$0xf] %v219
  %236 = vst [vmem:[%s3 + $0x24] sm:$0xf] %v220
  %237 = vst [vmem:[%s3 + $0x28] sm:$0xf] %v221
  %238 = vst [vmem:[%s3 + $0x2c] sm:$0xf] %v222
  %239 = vst [vmem:[%s3 + $0x30] sm:$0xf] %v223
  %240 = vst [vmem:[%s3 + $0x34] sm:$0xf] %v224
  %241 = vst [vmem:[%s3 + $0x38] sm:$0xf] %v225
  %242 = vst [vmem:[%s3 + $0x3c] sm:$0xf] %v226
  // Predicated region
  $region14: #{regnet_forward.17} parent=0 // pred_check
    _
  $region15: #{regnet_forward.17} parent=0 // pred_check_branch
    %244 = sbr.rel (0) target = $region17
  $region16: #{regnet_forward.17} parent=0 // pred_region
    _
  $region17: #{regnet_forward.17} parent=0 // pred_fallthru
    _
  // Predicated region
  $region18: #{regnet_forward.17} parent=0 // pred_check
    _
  $region19: #{regnet_forward.17} parent=0 // pred_check_branch
    %246 = sbr.rel (0) target = $region21
  $region20: #{regnet_forward.17} parent=0 // pred_region
    _
  $region21: #{regnet_forward.17} parent=0 // pred_fallthru
    _

// kernel: regnet_forward.16
$region0: #{regnet_forward.16}
  #allocation0 [shape = 'u32[]', space=smem, size = 0x4, offset = 0x4, fixed_abs, tag = 'smem constant byte address 0x4 - core index']
  #allocation1 [shape = 'u32[72,128]{1,0:T(1,128)}', space=vmem, size = 0x9000, scoped, tag = 'internal scratch']
  %s0 = inlined_call_operand.vmem [shape: bf16[128,128], index: 0, kind: input, shape index: {}]
  %s1 = inlined_call_operand.vmem [shape: bf16[128,128], index: 1, kind: input, shape index: {}]
  %s2 = inlined_call_operand.vmem [shape: f32[1,128], index: 2, kind: input, shape index: {}]
  %s3 = inlined_call_operand.vmem [shape: bf16[128,128], index: 3, kind: input, shape index: {}]
  %s4 = inlined_call_operand.vmem [shape: bf16[128,128], index: 4, kind: input, shape index: {}]
  %s5 = inlined_call_operand.vmem [shape: bf16[128,128], index: 5, kind: output, shape index: {}]
  %s6 = sld [smem:[#allocation0]]
  $region30: #{regnet_forward.16} parent=0
    _
  %s8 = ssub.s32 1, %s6
  %s9 = scalar_select 0, %s8, %s6
  // Predicated region
  $region2: #{regnet_forward.16} parent=0 // pred_check
    _
  $region3: #{regnet_forward.16} parent=0 // pred_check_branch
    %11 = sbr.rel (0) target = $region5
  $region4: #{regnet_forward.16} parent=0 // pred_region
    _
  $region5: #{regnet_forward.16} parent=0 // pred_fallthru
    _
  // Predicated region
  $region6: #{regnet_forward.16} parent=0 // pred_check
    _
  $region7: #{regnet_forward.16} parent=0 // pred_check_branch
    %13 = sbr.rel (0) target = $region9
  $region8: #{regnet_forward.16} parent=0 // pred_region
    _
  $region9: #{regnet_forward.16} parent=0 // pred_fallthru
    _
  // Predicated region
  $region10: #{regnet_forward.16} parent=0 // pred_check
    _
  $region11: #{regnet_forward.16} parent=0 // pred_check_branch
    %15 = sbr.rel (0) target = $region13
  $region12: #{regnet_forward.16} parent=0 // pred_region
    _
  $region13: #{regnet_forward.16} parent=0 // pred_fallthru
    _
  // Predicated region
  $region14: #{regnet_forward.16} parent=0 // pred_check
    _
  $region15: #{regnet_forward.16} parent=0 // pred_check_branch
    %17 = sbr.rel (0) target = $region17
  $region16: #{regnet_forward.16} parent=0 // pred_region
    _
  $region17: #{regnet_forward.16} parent=0 // pred_fallthru
    _
  // Predicated region
  $region18: #{regnet_forward.16} parent=0 // pred_check
    _
  $region19: #{regnet_forward.16} parent=0 // pred_check_branch
    %19 = sbr.rel (0) target = $region21
  $region20: #{regnet_forward.16} parent=0 // pred_region
    _
  $region21: #{regnet_forward.16} parent=0 // pred_fallthru
    _
  %v20 = vld [vmem:[%s0] sm:$0xf]
  %v21 = vld [vmem:[%s0 + $0x4] sm:$0xf]
  %v22 = vld [vmem:[%s0 + $0x8] sm:$0xf]
  %v23 = vld [vmem:[%s0 + $0xc] sm:$0xf]
  %v24 = vld [vmem:[%s0 + $0x10] sm:$0xf]
  %v25 = vld [vmem:[%s0 + $0x14] sm:$0xf]
  %v26 = vld [vmem:[%s0 + $0x18] sm:$0xf]
  %v27 = vld [vmem:[%s0 + $0x1c] sm:$0xf]
  %v28 = vld [vmem:[%s0 + $0x20] sm:$0xf]
  %v29 = vld [vmem:[%s0 + $0x24] sm:$0xf]
  %v30 = vld [vmem:[%s0 + $0x28] sm:$0xf]
  %v31 = vld [vmem:[%s0 + $0x2c] sm:$0xf]
  %v32 = vld [vmem:[%s0 + $0x30] sm:$0xf]
  %v33 = vld [vmem:[%s0 + $0x34] sm:$0xf]
  %v34 = vld [vmem:[%s0 + $0x38] sm:$0xf]
  %v35 = vld [vmem:[%s0 + $0x3c] sm:$0xf]
  %v36 = vld [vmem:[%s1] sm:$0xf]
  %v37 = vld [vmem:[%s1 + $0x4] sm:$0xf]
  %v38 = vld [vmem:[%s1 + $0x8] sm:$0xf]
  %v39 = vld [vmem:[%s1 + $0xc] sm:$0xf]
  %v40 = vld [vmem:[%s1 + $0x10] sm:$0xf]
  %v41 = vld [vmem:[%s1 + $0x14] sm:$0xf]
  %v42 = vld [vmem:[%s1 + $0x18] sm:$0xf]
  %v43 = vld [vmem:[%s1 + $0x1c] sm:$0xf]
  %v44 = vld [vmem:[%s1 + $0x20] sm:$0xf]
  %v45 = vld [vmem:[%s1 + $0x24] sm:$0xf]
  %v46 = vld [vmem:[%s1 + $0x28] sm:$0xf]
  %v47 = vld [vmem:[%s1 + $0x2c] sm:$0xf]
  %v48 = vld [vmem:[%s1 + $0x30] sm:$0xf]
  %v49 = vld [vmem:[%s1 + $0x34] sm:$0xf]
  %v50 = vld [vmem:[%s1 + $0x38] sm:$0xf]
  %v51 = vld [vmem:[%s1 + $0x3c] sm:$0xf]
  %v52 = vld [vmem:[%s3] sm:$0xf]
  %v53 = vld [vmem:[%s3 + $0x4] sm:$0xf]
  %v54 = vld [vmem:[%s3 + $0x8] sm:$0xf]
  %v55 = vld [vmem:[%s3 + $0xc] sm:$0xf]
  %v56 = vld [vmem:[%s3 + $0x10] sm:$0xf]
  %v57 = vld [vmem:[%s3 + $0x14] sm:$0xf]
  %v58 = vld [vmem:[%s3 + $0x18] sm:$0xf]
  %v59 = vld [vmem:[%s3 + $0x1c] sm:$0xf]
  %v60 = vld [vmem:[%s3 + $0x20] sm:$0xf]
  %v61 = vld [vmem:[%s3 + $0x24] sm:$0xf]
  %v62 = vld [vmem:[%s3 + $0x28] sm:$0xf]
  %v63 = vld [vmem:[%s3 + $0x2c] sm:$0xf]
  %v64 = vld [vmem:[%s3 + $0x30] sm:$0xf]
  %v65 = vld [vmem:[%s3 + $0x34] sm:$0xf]
  %v66 = vld [vmem:[%s3 + $0x38] sm:$0xf]
  %v67 = vld [vmem:[%s3 + $0x3c] sm:$0xf]
  %v68 = vld [vmem:[%s4] sm:$0xf]
  %v69 = vld [vmem:[%s4 + $0x4] sm:$0xf]
  %v70 = vld [vmem:[%s4 + $0x8] sm:$0xf]
  %v71 = vld [vmem:[%s4 + $0xc] sm:$0xf]
  %v72 = vld [vmem:[%s4 + $0x10] sm:$0xf]
  %v73 = vld [vmem:[%s4 + $0x14] sm:$0xf]
  %v74 = vld [vmem:[%s4 + $0x18] sm:$0xf]
  %v75 = vld [vmem:[%s4 + $0x1c] sm:$0xf]
  %v76 = vld [vmem:[%s4 + $0x20] sm:$0xf]
  %v77 = vld [vmem:[%s4 + $0x24] sm:$0xf]
  %v78 = vld [vmem:[%s4 + $0x28] sm:$0xf]
  %v79 = vld [vmem:[%s4 + $0x2c] sm:$0xf]
  %v80 = vld [vmem:[%s4 + $0x30] sm:$0xf]
  %v81 = vld [vmem:[%s4 + $0x34] sm:$0xf]
  %v82 = vld [vmem:[%s4 + $0x38] sm:$0xf]
  %v83 = vld [vmem:[%s4 + $0x3c] sm:$0xf]
  %v100 = vunpack.c.l.b16 %v52
  %v101 = vunpack.c.l.b16 %v53
  %v102 = vunpack.c.l.b16 %v54
  %v103 = vunpack.c.l.b16 %v55
  %v104 = vunpack.c.l.b16 %v56
  %v105 = vunpack.c.l.b16 %v57
  %v106 = vunpack.c.l.b16 %v58
  %v107 = vunpack.c.l.b16 %v59
  %v108 = vunpack.c.l.b16 %v60
  %v109 = vunpack.c.l.b16 %v61
  %v110 = vunpack.c.l.b16 %v62
  %v111 = vunpack.c.l.b16 %v63
  %v112 = vunpack.c.l.b16 %v64
  %v113 = vunpack.c.l.b16 %v65
  %v114 = vunpack.c.l.b16 %v66
  %v115 = vunpack.c.l.b16 %v67
  %v116 = vpack.c.b16 %v101, %v100
  %v117 = vpack.c.b16 %v103, %v102
  %v118 = vpack.c.b16 %v105, %v104
  %v119 = vpack.c.b16 %v107, %v106
  %v120 = vpack.c.b16 %v109, %v108
  %v121 = vpack.c.b16 %v111, %v110
  %v122 = vpack.c.b16 %v113, %v112
  %v123 = vpack.c.b16 %v115, %v114
  %v148 = vunpack.c.l.b16 %v68
  %v149 = vunpack.c.l.b16 %v69
  %v150 = vunpack.c.l.b16 %v70
  %v151 = vunpack.c.l.b16 %v71
  %v152 = vunpack.c.l.b16 %v72
  %v153 = vunpack.c.l.b16 %v73
  %v154 = vunpack.c.l.b16 %v74
  %v155 = vunpack.c.l.b16 %v75
  %v156 = vunpack.c.l.b16 %v76
  %v157 = vunpack.c.l.b16 %v77
  %v158 = vunpack.c.l.b16 %v78
  %v159 = vunpack.c.l.b16 %v79
  %v160 = vunpack.c.l.b16 %v80
  %v161 = vunpack.c.l.b16 %v81
  %v162 = vunpack.c.l.b16 %v82
  %v163 = vunpack.c.l.b16 %v83
  %v164 = vpack.c.b16 %v149, %v148
  %v165 = vpack.c.b16 %v151, %v150
  %v166 = vpack.c.b16 %v153, %v152
  %v167 = vpack.c.b16 %v155, %v154
  %v168 = vpack.c.b16 %v157, %v156
  %v169 = vpack.c.b16 %v159, %v158
  %v170 = vpack.c.b16 %v161, %v160
  %v171 = vpack.c.b16 %v163, %v162
  %180 = vmatpush.bf16.msra.mxu0 %v171
  %181 = vmatpush.bf16.msra.mxu0 %v170
  %182 = vmatpush.bf16.msra.mxu0 %v169
  %183 = vmatpush.bf16.msra.mxu0 %v168
  %184 = vmatpush.bf16.msra.mxu0 %v167
  %185 = vmatpush.bf16.msra.mxu0 %v166
  %186 = vmatpush.bf16.msra.mxu0 %v165
  %187 = vmatpush.bf16.msra.mxu0 %v164
  %188 = vmatmul.bf16.gmra.mxu0 %v116
  %v189 = vpop.f32.mrf.mxu0
  %v190 = vadd.f32 0.0, %v189
  %v191 = vpop.f32.mrf.mxu0
  %v192 = vadd.f32 0.0, %v191
  %193 = vmatmul.bf16.gmra.mxu0 %v117
  %v194 = vpop.f32.mrf.mxu0
  %v195 = vadd.f32 0.0, %v194
  %v196 = vpop.f32.mrf.mxu0
  %v197 = vadd.f32 0.0, %v196
  %198 = vmatmul.bf16.gmra.mxu0 %v118
  %v199 = vpop.f32.mrf.mxu0
  %v200 = vadd.f32 0.0, %v199
  %v201 = vpop.f32.mrf.mxu0
  %v202 = vadd.f32 0.0, %v201
  %203 = vmatmul.bf16.gmra.mxu0 %v119
  %v204 = vpop.f32.mrf.mxu0
  %v205 = vadd.f32 0.0, %v204
  %v206 = vpop.f32.mrf.mxu0
  %v207 = vadd.f32 0.0, %v206
  %208 = vmatmul.bf16.gmra.mxu0 %v120
  %v209 = vpop.f32.mrf.mxu0
  %v210 = vadd.f32 0.0, %v209
  %v211 = vpop.f32.mrf.mxu0
  %v212 = vadd.f32 0.0, %v211
  %213 = vmatmul.bf16.gmra.mxu0 %v121
  %v214 = vpop.f32.mrf.mxu0
  %v215 = vadd.f32 0.0, %v214
  %v216 = vpop.f32.mrf.mxu0
  %v217 = vadd.f32 0.0, %v216
  %218 = vmatmul.bf16.gmra.mxu0 %v122
  %v219 = vpop.f32.mrf.mxu0
  %v220 = vadd.f32 0.0, %v219
  %v221 = vpop.f32.mrf.mxu0
  %v222 = vadd.f32 0.0, %v221
  %223 = vmatmul.bf16.gmra.mxu0 %v123
  %v224 = vpop.f32.mrf.mxu0
  %v225 = vadd.f32 0.0, %v224
  %v226 = vpop.f32.mrf.mxu0
  %v227 = vadd.f32 0.0, %v226
  %228 = vdwg.mxu0
  %v245 = vunpack.c.l.b16 %v20
  %v246 = vunpack.c.l.b16 %v21
  %v247 = vunpack.c.l.b16 %v22
  %v248 = vunpack.c.l.b16 %v23
  %v249 = vunpack.c.l.b16 %v24
  %v250 = vunpack.c.l.b16 %v25
  %v251 = vunpack.c.l.b16 %v26
  %v252 = vunpack.c.l.b16 %v27
  %v253 = vunpack.c.l.b16 %v28
  %v254 = vunpack.c.l.b16 %v29
  %v255 = vunpack.c.l.b16 %v30
  %v256 = vunpack.c.l.b16 %v31
  %v257 = vunpack.c.l.b16 %v32
  %v258 = vunpack.c.l.b16 %v33
  %v259 = vunpack.c.l.b16 %v34
  %v260 = vunpack.c.l.b16 %v35
  %v261 = vpack.c.b16 %v246, %v245
  %v262 = vpack.c.b16 %v248, %v247
  %v263 = vpack.c.b16 %v250, %v249
  %v264 = vpack.c.b16 %v252, %v251
  %v265 = vpack.c.b16 %v254, %v253
  %v266 = vpack.c.b16 %v256, %v255
  %v267 = vpack.c.b16 %v258, %v257
  %v268 = vpack.c.b16 %v260, %v259
  %v293 = vunpack.c.l.b16 %v36
  %v294 = vunpack.c.l.b16 %v37
  %v295 = vunpack.c.l.b16 %v38
  %v296 = vunpack.c.l.b16 %v39
  %v297 = vunpack.c.l.b16 %v40
  %v298 = vunpack.c.l.b16 %v41
  %v299 = vunpack.c.l.b16 %v42
  %v300 = vunpack.c.l.b16 %v43
  %v301 = vunpack.c.l.b16 %v44
  %v302 = vunpack.c.l.b16 %v45
  %v303 = vunpack.c.l.b16 %v46
  %v304 = vunpack.c.l.b16 %v47
  %v305 = vunpack.c.l.b16 %v48
  %v306 = vunpack.c.l.b16 %v49
  %v307 = vunpack.c.l.b16 %v50
  %v308 = vunpack.c.l.b16 %v51
  %v309 = vpack.c.b16 %v294, %v293
  %v310 = vpack.c.b16 %v296, %v295
  %v311 = vpack.c.b16 %v298, %v297
  %v312 = vpack.c.b16 %v300, %v299
  %v313 = vpack.c.b16 %v302, %v301
  %v314 = vpack.c.b16 %v304, %v303
  %v315 = vpack.c.b16 %v306, %v305
  %v316 = vpack.c.b16 %v308, %v307
  %325 = vmatpush.bf16.msra.mxu0 %v316
  %326 = vmatpush.bf16.msra.mxu0 %v315
  %327 = vmatpush.bf16.msra.mxu0 %v314
  %328 = vmatpush.bf16.msra.mxu0 %v313
  %329 = vmatpush.bf16.msra.mxu0 %v312
  %330 = vmatpush.bf16.msra.mxu0 %v311
  %331 = vmatpush.bf16.msra.mxu0 %v310
  %332 = vmatpush.bf16.msra.mxu0 %v309
  %333 = vmatmul.bf16.gmra.mxu0 %v261
  %v334 = vpop.f32.mrf.mxu0
  %v335 = vadd.f32 %v190, %v334
  %v336 = vpop.f32.mrf.mxu0
  %v337 = vadd.f32 %v192, %v336
  %338 = vmatmul.bf16.gmra.mxu0 %v262
  %v339 = vpop.f32.mrf.mxu0
  %v340 = vadd.f32 %v195, %v339
  %v341 = vpop.f32.mrf.mxu0
  %v342 = vadd.f32 %v197, %v341
  %343 = vmatmul.bf16.gmra.mxu0 %v263
  %v344 = vpop.f32.mrf.mxu0
  %v345 = vadd.f32 %v200, %v344
  %v346 = vpop.f32.mrf.mxu0
  %v347 = vadd.f32 %v202, %v346
  %348 = vmatmul.bf16.gmra.mxu0 %v264
  %v349 = vpop.f32.mrf.mxu0
  %v350 = vadd.f32 %v205, %v349
  %v351 = vpop.f32.mrf.mxu0
  %v352 = vadd.f32 %v207, %v351
  %353 = vmatmul.bf16.gmra.mxu0 %v265
  %v354 = vpop.f32.mrf.mxu0
  %v355 = vadd.f32 %v210, %v354
  %v356 = vpop.f32.mrf.mxu0
  %v357 = vadd.f32 %v212, %v356
  %358 = vmatmul.bf16.gmra.mxu0 %v266
  %v359 = vpop.f32.mrf.mxu0
  %v360 = vadd.f32 %v215, %v359
  %v361 = vpop.f32.mrf.mxu0
  %v362 = vadd.f32 %v217, %v361
  %363 = vmatmul.bf16.gmra.mxu0 %v267
  %v364 = vpop.f32.mrf.mxu0
  %v365 = vadd.f32 %v220, %v364
  %v366 = vpop.f32.mrf.mxu0
  %v367 = vadd.f32 %v222, %v366
  %368 = vmatmul.bf16.gmra.mxu0 %v268
  %v369 = vpop.f32.mrf.mxu0
  %v370 = vadd.f32 %v225, %v369
  %v371 = vpop.f32.mrf.mxu0
  %v372 = vadd.f32 %v227, %v371
  %373 = vdwg.mxu0
  %v374 = vld [vmem:[%s2] sm:$0x1]
  %v376 = vperm.slane %v374, 0
  %v378 = vadd.f32 %v335, %v376
  %v379 = vadd.f32 %v337, %v376
  %v380 = vadd.f32 %v340, %v376
  %v381 = vadd.f32 %v342, %v376
  %v382 = vadd.f32 %v345, %v376
  %v383 = vadd.f32 %v347, %v376
  %v384 = vadd.f32 %v350, %v376
  %v385 = vadd.f32 %v352, %v376
  %v386 = vadd.f32 %v355, %v376
  %v387 = vadd.f32 %v357, %v376
  %v388 = vadd.f32 %v360, %v376
  %v389 = vadd.f32 %v362, %v376
  %v390 = vadd.f32 %v365, %v376
  %v391 = vadd.f32 %v367, %v376
  %v392 = vadd.f32 %v370, %v376
  %v393 = vadd.f32 %v372, %v376
  %v394 = vmax.f32 %v378, 0.0
  %v395 = vmax.f32 %v379, 0.0
  %v396 = vmax.f32 %v380, 0.0
  %v397 = vmax.f32 %v381, 0.0
  %v398 = vmax.f32 %v382, 0.0
  %v399 = vmax.f32 %v383, 0.0
  %v400 = vmax.f32 %v384, 0.0
  %v401 = vmax.f32 %v385, 0.0
  %v402 = vmax.f32 %v386, 0.0
  %v403 = vmax.f32 %v387, 0.0
  %v404 = vmax.f32 %v388, 0.0
  %v405 = vmax.f32 %v389, 0.0
  %v406 = vmax.f32 %v390, 0.0
  %v407 = vmax.f32 %v391, 0.0
  %v408 = vmax.f32 %v392, 0.0
  %v409 = vmax.f32 %v393, 0.0
  %v410 = vpack.c.bf16 %v394, %v394
  %v411 = vpack.c.bf16 %v395, %v395
  %v412 = vpack.c.bf16 %v396, %v396
  %v413 = vpack.c.bf16 %v397, %v397
  %v414 = vpack.c.bf16 %v398, %v398
  %v415 = vpack.c.bf16 %v399, %v399
  %v416 = vpack.c.bf16 %v400, %v400
  %v417 = vpack.c.bf16 %v401, %v401
  %v418 = vpack.c.bf16 %v402, %v402
  %v419 = vpack.c.bf16 %v403, %v403
  %v420 = vpack.c.bf16 %v404, %v404
  %v421 = vpack.c.bf16 %v405, %v405
  %v422 = vpack.c.bf16 %v406, %v406
  %v423 = vpack.c.bf16 %v407, %v407
  %v424 = vpack.c.bf16 %v408, %v408
  %v425 = vpack.c.bf16 %v409, %v409
  %426 = vst [vmem:[%s5] sm:$0xf] %v410
  %427 = vst [vmem:[%s5 + $0x4] sm:$0xf] %v411
  %428 = vst [vmem:[%s5 + $0x8] sm:$0xf] %v412
  %429 = vst [vmem:[%s5 + $0xc] sm:$0xf] %v413
  %430 = vst [vmem:[%s5 + $0x10] sm:$0xf] %v414
  %431 = vst [vmem:[%s5 + $0x14] sm:$0xf] %v415
  %432 = vst [vmem:[%s5 + $0x18] sm:$0xf] %v416
  %433 = vst [vmem:[%s5 + $0x1c] sm:$0xf] %v417
  %434 = vst [vmem:[%s5 + $0x20] sm:$0xf] %v418
  %435 = vst [vmem:[%s5 + $0x24] sm:$0xf] %v419
  %436 = vst [vmem:[%s5 + $0x28] sm:$0xf] %v420
  %437 = vst [vmem:[%s5 + $0x2c] sm:$0xf] %v421
  %438 = vst [vmem:[%s5 + $0x30] sm:$0xf] %v422
  %439 = vst [vmem:[%s5 + $0x34] sm:$0xf] %v423
  %440 = vst [vmem:[%s5 + $0x38] sm:$0xf] %v424
  %441 = vst [vmem:[%s5 + $0x3c] sm:$0xf] %v425
  // Predicated region
  $region22: #{regnet_forward.16} parent=0 // pred_check
    _
  $region23: #{regnet_forward.16} parent=0 // pred_check_branch
    %443 = sbr.rel (0) target = $region25
  $region24: #{regnet_forward.16} parent=0 // pred_region
    _
  $region25: #{regnet_forward.16} parent=0 // pred_fallthru
    _
  // Predicated region
  $region26: #{regnet_forward.16} parent=0 // pred_check
    _
  $region27: #{regnet_forward.16} parent=0 // pred_check_branch
    %445 = sbr.rel (0) target = $region29
  $region28: #{regnet_forward.16} parent=0 // pred_region
    _
  $region29: #{regnet_forward.16} parent=0 // pred_fallthru
    _

// kernel: regnet_forward.15
$region0: #{regnet_forward.15}
  #allocation0 [shape = 'u32[]', space=smem, size = 0x4, offset = 0x4, fixed_abs, tag = 'smem constant byte address 0x4 - core index']
  #allocation1 [shape = 'u32[72,128]{1,0:T(1,128)}', space=vmem, size = 0x9000, scoped, tag = 'internal scratch']
  %s0 = inlined_call_operand.vmem [shape: bf16[128,1152], index: 0, kind: input, shape index: {}]
  %s1 = inlined_call_operand.vmem [shape: bf16[1152,128], index: 1, kind: input, shape index: {}]
  %s2 = inlined_call_operand.vmem [shape: f32[1,128], index: 2, kind: input, shape index: {}]
  %s3 = inlined_call_operand.vmem [shape: bf16[128,128], index: 3, kind: output, shape index: {}]
  %s4 = sld [smem:[#allocation0]]
  $region22: #{regnet_forward.15} parent=0
    _
  %s6 = ssub.s32 1, %s4
  %s7 = scalar_select 0, %s6, %s4
  // Predicated region
  $region2: #{regnet_forward.15} parent=0 // pred_check
    _
  $region3: #{regnet_forward.15} parent=0 // pred_check_branch
    %9 = sbr.rel (0) target = $region5
  $region4: #{regnet_forward.15} parent=0 // pred_region
    _
  $region5: #{regnet_forward.15} parent=0 // pred_fallthru
    _
  // Predicated region
  $region6: #{regnet_forward.15} parent=0 // pred_check
    _
  $region7: #{regnet_forward.15} parent=0 // pred_check_branch
    %11 = sbr.rel (0) target = $region9
  $region8: #{regnet_forward.15} parent=0 // pred_region
    _
  $region9: #{regnet_forward.15} parent=0 // pred_fallthru
    _
  // Predicated region
  $region10: #{regnet_forward.15} parent=0 // pred_check
    _
  $region11: #{regnet_forward.15} parent=0 // pred_check_branch
    %13 = sbr.rel (0) target = $region13
  $region12: #{regnet_forward.15} parent=0 // pred_region
    _
  $region13: #{regnet_forward.15} parent=0 // pred_fallthru
    _
  %v14 = vld [vmem:[%s0] sm:$0xff]
  %v15 = vld [vmem:[%s0 + $0x8] sm:$0xff]
  %v16 = vld [vmem:[%s0 + $0x10] sm:$0xff]
  %v17 = vld [vmem:[%s0 + $0x18] sm:$0xff]
  %v18 = vld [vmem:[%s0 + $0x20] sm:$0xf]
  %v19 = vld [vmem:[%s0 + $0x24] sm:$0xff]
  %v20 = vld [vmem:[%s0 + $0x2c] sm:$0xff]
  %v21 = vld [vmem:[%s0 + $0x34] sm:$0xff]
  %v22 = vld [vmem:[%s0 + $0x3c] sm:$0xff]
  %v23 = vld [vmem:[%s0 + $0x44] sm:$0xf]
  %v24 = vld [vmem:[%s0 + $0x48] sm:$0xff]
  %v25 = vld [vmem:[%s0 + $0x50] sm:$0xff]
  %v26 = vld [vmem:[%s0 + $0x58] sm:$0xff]
  %v27 = vld [vmem:[%s0 + $0x60] sm:$0xff]
  %v28 = vld [vmem:[%s0 + $0x68] sm:$0xf]
  %v29 = vld [vmem:[%s0 + $0x6c] sm:$0xff]
  %v30 = vld [vmem:[%s0 + $0x74] sm:$0xff]
  %v31 = vld [vmem:[%s0 + $0x7c] sm:$0xff]
  %v32 = vld [vmem:[%s0 + $0x84] sm:$0xff]
  %v33 = vld [vmem:[%s0 + $0x8c] sm:$0xf]
  %v34 = vld [vmem:[%s0 + $0x90] sm:$0xff]
  %v35 = vld [vmem:[%s0 + $0x98] sm:$0xff]
  %v36 = vld [vmem:[%s0 + $0xa0] sm:$0xff]
  %v37 = vld [vmem:[%s0 + $0xa8] sm:$0xff]
  %v38 = vld [vmem:[%s0 + $0xb0] sm:$0xf]
  %v39 = vld [vmem:[%s0 + $0xb4] sm:$0xff]
  %v40 = vld [vmem:[%s0 + $0xbc] sm:$0xff]
  %v41 = vld [vmem:[%s0 + $0xc4] sm:$0xff]
  %v42 = vld [vmem:[%s0 + $0xcc] sm:$0xff]
  %v43 = vld [vmem:[%s0 + $0xd4] sm:$0xf]
  %v44 = vld [vmem:[%s0 + $0xd8] sm:$0xff]
  %v45 = vld [vmem:[%s0 + $0xe0] sm:$0xff]
  %v46 = vld [vmem:[%s0 + $0xe8] sm:$0xff]
  %v47 = vld [vmem:[%s0 + $0xf0] sm:$0xff]
  %v48 = vld [vmem:[%s0 + $0xf8] sm:$0xf]
  %v49 = vld [vmem:[%s0 + $0xfc] sm:$0xff]
  %v50 = vld [vmem:[%s0 + $0x104] sm:$0xff]
  %v51 = vld [vmem:[%s0 + $0x10c] sm:$0xff]
  %v52 = vld [vmem:[%s0 + $0x114] sm:$0xff]
  %v53 = vld [vmem:[%s0 + $0x11c] sm:$0xf]
  %v54 = vld [vmem:[%s0 + $0x120] sm:$0xff]
  %v55 = vld [vmem:[%s0 + $0x128] sm:$0xff]
  %v56 = vld [vmem:[%s0 + $0x130] sm:$0xff]
  %v57 = vld [vmem:[%s0 + $0x138] sm:$0xff]
  %v58 = vld [vmem:[%s0 + $0x140] sm:$0xf]
  %v59 = vld [vmem:[%s0 + $0x144] sm:$0xff]
  %v60 = vld [vmem:[%s0 + $0x14c] sm:$0xff]
  %v61 = vld [vmem:[%s0 + $0x154] sm:$0xff]
  %v62 = vld [vmem:[%s0 + $0x15c] sm:$0xff]
  %v63 = vld [vmem:[%s0 + $0x164] sm:$0xf]
  %v64 = vld [vmem:[%s0 + $0x168] sm:$0xff]
  %v65 = vld [vmem:[%s0 + $0x170] sm:$0xff]
  %v66 = vld [vmem:[%s0 + $0x178] sm:$0xff]
  %v67 = vld [vmem:[%s0 + $0x180] sm:$0xff]
  %v68 = vld [vmem:[%s0 + $0x188] sm:$0xf]
  %v69 = vld [vmem:[%s0 + $0x18c] sm:$0xff]
  %v70 = vld [vmem:[%s0 + $0x194] sm:$0xff]
  %v71 = vld [vmem:[%s0 + $0x19c] sm:$0xff]
  %v72 = vld [vmem:[%s0 + $0x1a4] sm:$0xff]
  %v73 = vld [vmem:[%s0 + $0x1ac] sm:$0xf]
  %v74 = vld [vmem:[%s0 + $0x1b0] sm:$0xff]
  %v75 = vld [vmem:[%s0 + $0x1b8] sm:$0xff]
  %v76 = vld [vmem:[%s0 + $0x1c0] sm:$0xff]
  %v77 = vld [vmem:[%s0 + $0x1c8] sm:$0xff]
  %v78 = vld [vmem:[%s0 + $0x1d0] sm:$0xf]
  %v79 = vld [vmem:[%s0 + $0x1d4] sm:$0xff]
  %v80 = vld [vmem:[%s0 + $0x1dc] sm:$0xff]
  %v81 = vld [vmem:[%s0 + $0x1e4] sm:$0xff]
  %v82 = vld [vmem:[%s0 + $0x1ec] sm:$0xff]
  %v83 = vld [vmem:[%s0 + $0x1f4] sm:$0xf]
  %v84 = vld [vmem:[%s0 + $0x1f8] sm:$0xff]
  %v85 = vld [vmem:[%s0 + $0x200] sm:$0xff]
  %v86 = vld [vmem:[%s0 + $0x208] sm:$0xff]
  %v87 = vld [vmem:[%s0 + $0x210] sm:$0xff]
  %v88 = vld [vmem:[%s0 + $0x218] sm:$0xf]
  %v89 = vld [vmem:[%s0 + $0x21c] sm:$0xff]
  %v90 = vld [vmem:[%s0 + $0x224] sm:$0xff]
  %v91 = vld [vmem:[%s0 + $0x22c] sm:$0xff]
  %v92 = vld [vmem:[%s0 + $0x234] sm:$0xff]
  %v93 = vld [vmem:[%s0 + $0x23c] sm:$0xf]
  %v94 = vld [vmem:[%s1] sm:$0xf]
  %v95 = vld [vmem:[%s1 + $0x4] sm:$0xf]
  %v96 = vld [vmem:[%s1 + $0x8] sm:$0xf]
  %v97 = vld [vmem:[%s1 + $0xc] sm:$0xf]
  %v98 = vld [vmem:[%s1 + $0x10] sm:$0xf]
  %v99 = vld [vmem:[%s1 + $0x14] sm:$0xf]
  %v100 = vld [vmem:[%s1 + $0x18] sm:$0xf]
  %v101 = vld [vmem:[%s1 + $0x1c] sm:$0xf]
  %v102 = vld [vmem:[%s1 + $0x20] sm:$0xf]
  %v103 = vld [vmem:[%s1 + $0x24] sm:$0xf]
  %v104 = vld [vmem:[%s1 + $0x28] sm:$0xf]
  %v105 = vld [vmem:[%s1 + $0x2c] sm:$0xf]
  %v106 = vld [vmem:[%s1 + $0x30] sm:$0xf]
  %v107 = vld [vmem:[%s1 + $0x34] sm:$0xf]
  %v108 = vld [vmem:[%s1 + $0x38] sm:$0xf]
  %v109 = vld [vmem:[%s1 + $0x3c] sm:$0xf]
  %v110 = vld [vmem:[%s1 + $0x40] sm:$0xf]
  %v111 = vld [vmem:[%s1 + $0x44] sm:$0xf]
  %v112 = vld [vmem:[%s1 + $0x48] sm:$0xf]
  %v113 = vld [vmem:[%s1 + $0x4c] sm:$0xf]
  %v114 = vld [vmem:[%s1 + $0x50] sm:$0xf]
  %v115 = vld [vmem:[%s1 + $0x54] sm:$0xf]
  %v116 = vld [vmem:[%s1 + $0x58] sm:$0xf]
  %v117 = vld [vmem:[%s1 + $0x5c] sm:$0xf]
  %v118 = vld [vmem:[%s1 + $0x60] sm:$0xf]
  %v119 = vld [vmem:[%s1 + $0x64] sm:$0xf]
  %v120 = vld [vmem:[%s1 + $0x68] sm:$0xf]
  %v121 = vld [vmem:[%s1 + $0x6c] sm:$0xf]
  %v122 = vld [vmem:[%s1 + $0x70] sm:$0xf]
  %v123 = vld [vmem:[%s1 + $0x74] sm:$0xf]
  %v124 = vld [vmem:[%s1 + $0x78] sm:$0xf]
  %v125 = vld [vmem:[%s1 + $0x7c] sm:$0xf]
  %v126 = vld [vmem:[%s1 + $0x80] sm:$0xf]
  %v127 = vld [vmem:[%s1 + $0x84] sm:$0xf]
  %v128 = vld [vmem:[%s1 + $0x88] sm:$0xf]
  %v129 = vld [vmem:[%s1 + $0x8c] sm:$0xf]
  %v130 = vld [vmem:[%s1 + $0x90] sm:$0xf]
  %v131 = vld [vmem:[%s1 + $0x94] sm:$0xf]
  %v132 = vld [vmem:[%s1 + $0x98] sm:$0xf]
  %v133 = vld [vmem:[%s1 + $0x9c] sm:$0xf]
  %v134 = vld [vmem:[%s1 + $0xa0] sm:$0xf]
  %v135 = vld [vmem:[%s1 + $0xa4] sm:$0xf]
  %v136 = vld [vmem:[%s1 + $0xa8] sm:$0xf]
  %v137 = vld [vmem:[%s1 + $0xac] sm:$0xf]
  %v138 = vld [vmem:[%s1 + $0xb0] sm:$0xf]
  %v139 = vld [vmem:[%s1 + $0xb4] sm:$0xf]
  %v140 = vld [vmem:[%s1 + $0xb8] sm:$0xf]
  %v141 = vld [vmem:[%s1 + $0xbc] sm:$0xf]
  %v142 = vld [vmem:[%s1 + $0xc0] sm:$0xf]
  %v143 = vld [vmem:[%s1 + $0xc4] sm:$0xf]
  %v144 = vld [vmem:[%s1 + $0xc8] sm:$0xf]
  %v145 = vld [vmem:[%s1 + $0xcc] sm:$0xf]
  %v146 = vld [vmem:[%s1 + $0xd0] sm:$0xf]
  %v147 = vld [vmem:[%s1 + $0xd4] sm:$0xf]
  %v148 = vld [vmem:[%s1 + $0xd8] sm:$0xf]
  %v149 = vld [vmem:[%s1 + $0xdc] sm:$0xf]
  %v150 = vld [vmem:[%s1 + $0xe0] sm:$0xf]
  %v151 = vld [vmem:[%s1 + $0xe4] sm:$0xf]
  %v152 = vld [vmem:[%s1 + $0xe8] sm:$0xf]
  %v153 = vld [vmem:[%s1 + $0xec] sm:$0xf]
  %v154 = vld [vmem:[%s1 + $0xf0] sm:$0xf]
  %v155 = vld [vmem:[%s1 + $0xf4] sm:$0xf]
  %v156 = vld [vmem:[%s1 + $0xf8] sm:$0xf]
  %v157 = vld [vmem:[%s1 + $0xfc] sm:$0xf]
  %v158 = vld [vmem:[%s1 + $0x100] sm:$0xf]
  %v159 = vld [vmem:[%s1 + $0x104] sm:$0xf]
  %v160 = vld [vmem:[%s1 + $0x108] sm:$0xf]
  %v161 = vld [vmem:[%s1 + $0x10c] sm:$0xf]
  %v162 = vld [vmem:[%s1 + $0x110] sm:$0xf]
  %v163 = vld [vmem:[%s1 + $0x114] sm:$0xf]
  %v164 = vld [vmem:[%s1 + $0x118] sm:$0xf]
  %v165 = vld [vmem:[%s1 + $0x11c] sm:$0xf]
  %v166 = vld [vmem:[%s1 + $0x120] sm:$0xf]
  %v167 = vld [vmem:[%s1 + $0x124] sm:$0xf]
  %v168 = vld [vmem:[%s1 + $0x128] sm:$0xf]
  %v169 = vld [vmem:[%s1 + $0x12c] sm:$0xf]
  %v170 = vld [vmem:[%s1 + $0x130] sm:$0xf]
  %v171 = vld [vmem:[%s1 + $0x134] sm:$0xf]
  %v172 = vld [vmem:[%s1 + $0x138] sm:$0xf]
  %v173 = vld [vmem:[%s1 + $0x13c] sm:$0xf]
  %v174 = vld [vmem:[%s1 + $0x140] sm:$0xf]
  %v175 = vld [vmem:[%s1 + $0x144] sm:$0xf]
  %v176 = vld [vmem:[%s1 + $0x148] sm:$0xf]
  %v177 = vld [vmem:[%s1 + $0x14c] sm:$0xf]
  %v178 = vld [vmem:[%s1 + $0x150] sm:$0xf]
  %v179 = vld [vmem:[%s1 + $0x154] sm:$0xf]
  %v180 = vld [vmem:[%s1 + $0x158] sm:$0xf]
  %v181 = vld [vmem:[%s1 + $0x15c] sm:$0xf]
  %v182 = vld [vmem:[%s1 + $0x160] sm:$0xf]
  %v183 = vld [vmem:[%s1 + $0x164] sm:$0xf]
  %v184 = vld [vmem:[%s1 + $0x168] sm:$0xf]
  %v185 = vld [vmem:[%s1 + $0x16c] sm:$0xf]
  %v186 = vld [vmem:[%s1 + $0x170] sm:$0xf]
  %v187 = vld [vmem:[%s1 + $0x174] sm:$0xf]
  %v188 = vld [vmem:[%s1 + $0x178] sm:$0xf]
  %v189 = vld [vmem:[%s1 + $0x17c] sm:$0xf]
  %v190 = vld [vmem:[%s1 + $0x180] sm:$0xf]
  %v191 = vld [vmem:[%s1 + $0x184] sm:$0xf]
  %v192 = vld [vmem:[%s1 + $0x188] sm:$0xf]
  %v193 = vld [vmem:[%s1 + $0x18c] sm:$0xf]
  %v194 = vld [vmem:[%s1 + $0x190] sm:$0xf]
  %v195 = vld [vmem:[%s1 + $0x194] sm:$0xf]
  %v196 = vld [vmem:[%s1 + $0x198] sm:$0xf]
  %v197 = vld [vmem:[%s1 + $0x19c] sm:$0xf]
  %v198 = vld [vmem:[%s1 + $0x1a0] sm:$0xf]
  %v199 = vld [vmem:[%s1 + $0x1a4] sm:$0xf]
  %v200 = vld [vmem:[%s1 + $0x1a8] sm:$0xf]
  %v201 = vld [vmem:[%s1 + $0x1ac] sm:$0xf]
  %v202 = vld [vmem:[%s1 + $0x1b0] sm:$0xf]
  %v203 = vld [vmem:[%s1 + $0x1b4] sm:$0xf]
  %v204 = vld [vmem:[%s1 + $0x1b8] sm:$0xf]
  %v205 = vld [vmem:[%s1 + $0x1bc] sm:$0xf]
  %v206 = vld [vmem:[%s1 + $0x1c0] sm:$0xf]
  %v207 = vld [vmem:[%s1 + $0x1c4] sm:$0xf]
  %v208 = vld [vmem:[%s1 + $0x1c8] sm:$0xf]
  %v209 = vld [vmem:[%s1 + $0x1cc] sm:$0xf]
  %v210 = vld [vmem:[%s1 + $0x1d0] sm:$0xf]
  %v211 = vld [vmem:[%s1 + $0x1d4] sm:$0xf]
  %v212 = vld [vmem:[%s1 + $0x1d8] sm:$0xf]
  %v213 = vld [vmem:[%s1 + $0x1dc] sm:$0xf]
  %v214 = vld [vmem:[%s1 + $0x1e0] sm:$0xf]
  %v215 = vld [vmem:[%s1 + $0x1e4] sm:$0xf]
  %v216 = vld [vmem:[%s1 + $0x1e8] sm:$0xf]
  %v217 = vld [vmem:[%s1 + $0x1ec] sm:$0xf]
  %v218 = vld [vmem:[%s1 + $0x1f0] sm:$0xf]
  %v219 = vld [vmem:[%s1 + $0x1f4] sm:$0xf]
  %v220 = vld [vmem:[%s1 + $0x1f8] sm:$0xf]
  %v221 = vld [vmem:[%s1 + $0x1fc] sm:$0xf]
  %v222 = vld [vmem:[%s1 + $0x200] sm:$0xf]
  %v223 = vld [vmem:[%s1 + $0x204] sm:$0xf]
  %v224 = vld [vmem:[%s1 + $0x208] sm:$0xf]
  %v225 = vld [vmem:[%s1 + $0x20c] sm:$0xf]
  %v226 = vld [vmem:[%s1 + $0x210] sm:$0xf]
  %v227 = vld [vmem:[%s1 + $0x214] sm:$0xf]
  %v228 = vld [vmem:[%s1 + $0x218] sm:$0xf]
  %v229 = vld [vmem:[%s1 + $0x21c] sm:$0xf]
  %v230 = vld [vmem:[%s1 + $0x220] sm:$0xf]
  %v231 = vld [vmem:[%s1 + $0x224] sm:$0xf]
  %v232 = vld [vmem:[%s1 + $0x228] sm:$0xf]
  %v233 = vld [vmem:[%s1 + $0x22c] sm:$0xf]
  %v234 = vld [vmem:[%s1 + $0x230] sm:$0xf]
  %v235 = vld [vmem:[%s1 + $0x234] sm:$0xf]
  %v236 = vld [vmem:[%s1 + $0x238] sm:$0xf]
  %v237 = vld [vmem:[%s1 + $0x23c] sm:$0xf]
  %v238 = vld [vmem:[%s2] sm:$0x1]
  %v240 = vperm.slane %v238, 0
  %v322 = vunpack.c.l.b16 %v14
  %v323 = vunpack.c.h.b16 %v14
  %v324 = vunpack.c.l.b16 %v15
  %v325 = vunpack.c.h.b16 %v15
  %v326 = vunpack.c.l.b16 %v16
  %v327 = vunpack.c.h.b16 %v16
  %v328 = vunpack.c.l.b16 %v17
  %v329 = vunpack.c.h.b16 %v17
  %v330 = vunpack.c.l.b16 %v18
  %v331 = vunpack.c.l.b16 %v19
  %v332 = vunpack.c.h.b16 %v19
  %v333 = vunpack.c.l.b16 %v20
  %v334 = vunpack.c.h.b16 %v20
  %v335 = vunpack.c.l.b16 %v21
  %v336 = vunpack.c.h.b16 %v21
  %v337 = vunpack.c.l.b16 %v22
  %v338 = vunpack.c.h.b16 %v22
  %v339 = vunpack.c.l.b16 %v23
  %v340 = vunpack.c.l.b16 %v24
  %v341 = vunpack.c.h.b16 %v24
  %v342 = vunpack.c.l.b16 %v25
  %v343 = vunpack.c.h.b16 %v25
  %v344 = vunpack.c.l.b16 %v26
  %v345 = vunpack.c.h.b16 %v26
  %v346 = vunpack.c.l.b16 %v27
  %v347 = vunpack.c.h.b16 %v27
  %v348 = vunpack.c.l.b16 %v28
  %v349 = vunpack.c.l.b16 %v29
  %v350 = vunpack.c.h.b16 %v29
  %v351 = vunpack.c.l.b16 %v30
  %v352 = vunpack.c.h.b16 %v30
  %v353 = vunpack.c.l.b16 %v31
  %v354 = vunpack.c.h.b16 %v31
  %v355 = vunpack.c.l.b16 %v32
  %v356 = vunpack.c.h.b16 %v32
  %v357 = vunpack.c.l.b16 %v33
  %v358 = vunpack.c.l.b16 %v34
  %v359 = vunpack.c.h.b16 %v34
  %v360 = vunpack.c.l.b16 %v35
  %v361 = vunpack.c.h.b16 %v35
  %v362 = vunpack.c.l.b16 %v36
  %v363 = vunpack.c.h.b16 %v36
  %v364 = vunpack.c.l.b16 %v37
  %v365 = vunpack.c.h.b16 %v37
  %v366 = vunpack.c.l.b16 %v38
  %v367 = vunpack.c.l.b16 %v39
  %v368 = vunpack.c.h.b16 %v39
  %v369 = vunpack.c.l.b16 %v40
  %v370 = vunpack.c.h.b16 %v40
  %v371 = vunpack.c.l.b16 %v41
  %v372 = vunpack.c.h.b16 %v41
  %v373 = vunpack.c.l.b16 %v42
  %v374 = vunpack.c.h.b16 %v42
  %v375 = vunpack.c.l.b16 %v43
  %v376 = vunpack.c.l.b16 %v44
  %v377 = vunpack.c.h.b16 %v44
  %v378 = vunpack.c.l.b16 %v45
  %v379 = vunpack.c.h.b16 %v45
  %v380 = vunpack.c.l.b16 %v46
  %v381 = vunpack.c.h.b16 %v46
  %v382 = vunpack.c.l.b16 %v47
  %v383 = vunpack.c.h.b16 %v47
  %v384 = vunpack.c.l.b16 %v48
  %v385 = vunpack.c.l.b16 %v49
  %v386 = vunpack.c.h.b16 %v49
  %v387 = vunpack.c.l.b16 %v50
  %v388 = vunpack.c.h.b16 %v50
  %v389 = vunpack.c.l.b16 %v51
  %v390 = vunpack.c.h.b16 %v51
  %v391 = vunpack.c.l.b16 %v52
  %v392 = vunpack.c.h.b16 %v52
  %v393 = vunpack.c.l.b16 %v53
  %v394 = vunpack.c.l.b16 %v54
  %v395 = vunpack.c.h.b16 %v54
  %v396 = vunpack.c.l.b16 %v55
  %v397 = vunpack.c.h.b16 %v55
  %v398 = vunpack.c.l.b16 %v56
  %v399 = vunpack.c.h.b16 %v56
  %v400 = vunpack.c.l.b16 %v57
  %v401 = vunpack.c.h.b16 %v57
  %v402 = vunpack.c.l.b16 %v58
  %v403 = vunpack.c.l.b16 %v59
  %v404 = vunpack.c.h.b16 %v59
  %v405 = vunpack.c.l.b16 %v60
  %v406 = vunpack.c.h.b16 %v60
  %v407 = vunpack.c.l.b16 %v61
  %v408 = vunpack.c.h.b16 %v61
  %v409 = vunpack.c.l.b16 %v62
  %v410 = vunpack.c.h.b16 %v62
  %v411 = vunpack.c.l.b16 %v63
  %v412 = vunpack.c.l.b16 %v64
  %v413 = vunpack.c.h.b16 %v64
  %v414 = vunpack.c.l.b16 %v65
  %v415 = vunpack.c.h.b16 %v65
  %v416 = vunpack.c.l.b16 %v66
  %v417 = vunpack.c.h.b16 %v66
  %v418 = vunpack.c.l.b16 %v67
  %v419 = vunpack.c.h.b16 %v67
  %v420 = vunpack.c.l.b16 %v68
  %v421 = vunpack.c.l.b16 %v69
  %v422 = vunpack.c.h.b16 %v69
  %v423 = vunpack.c.l.b16 %v70
  %v424 = vunpack.c.h.b16 %v70
  %v425 = vunpack.c.l.b16 %v71
  %v426 = vunpack.c.h.b16 %v71
  %v427 = vunpack.c.l.b16 %v72
  %v428 = vunpack.c.h.b16 %v72
  %v429 = vunpack.c.l.b16 %v73
  %v430 = vunpack.c.l.b16 %v74
  %v431 = vunpack.c.h.b16 %v74
  %v432 = vunpack.c.l.b16 %v75
  %v433 = vunpack.c.h.b16 %v75
  %v434 = vunpack.c.l.b16 %v76
  %v435 = vunpack.c.h.b16 %v76
  %v436 = vunpack.c.l.b16 %v77
  %v437 = vunpack.c.h.b16 %v77
  %v438 = vunpack.c.l.b16 %v78
  %v439 = vunpack.c.l.b16 %v79
  %v440 = vunpack.c.h.b16 %v79
  %v441 = vunpack.c.l.b16 %v80
  %v442 = vunpack.c.h.b16 %v80
  %v443 = vunpack.c.l.b16 %v81
  %v444 = vunpack.c.h.b16 %v81
  %v445 = vunpack.c.l.b16 %v82
  %v446 = vunpack.c.h.b16 %v82
  %v447 = vunpack.c.l.b16 %v83
  %v448 = vunpack.c.l.b16 %v84
  %v449 = vunpack.c.h.b16 %v84
  %v450 = vunpack.c.l.b16 %v85
  %v451 = vunpack.c.h.b16 %v85
  %v452 = vunpack.c.l.b16 %v86
  %v453 = vunpack.c.h.b16 %v86
  %v454 = vunpack.c.l.b16 %v87
  %v455 = vunpack.c.h.b16 %v87
  %v456 = vunpack.c.l.b16 %v88
  %v457 = vunpack.c.l.b16 %v89
  %v458 = vunpack.c.h.b16 %v89
  %v459 = vunpack.c.l.b16 %v90
  %v460 = vunpack.c.h.b16 %v90
  %v461 = vunpack.c.l.b16 %v91
  %v462 = vunpack.c.h.b16 %v91
  %v463 = vunpack.c.l.b16 %v92
  %v464 = vunpack.c.h.b16 %v92
  %v465 = vunpack.c.l.b16 %v93
  %v466 = vpack.c.b16 %v331, %v322
  %v467 = vpack.c.b16 %v332, %v323
  %v468 = vpack.c.b16 %v333, %v324
  %v469 = vpack.c.b16 %v334, %v325
  %v470 = vpack.c.b16 %v335, %v326
  %v471 = vpack.c.b16 %v336, %v327
  %v472 = vpack.c.b16 %v337, %v328
  %v473 = vpack.c.b16 %v338, %v329
  %v474 = vpack.c.b16 %v339, %v330
  %v475 = vpack.c.b16 %v349, %v340
  %v476 = vpack.c.b16 %v350, %v341
  %v477 = vpack.c.b16 %v351, %v342
  %v478 = vpack.c.b16 %v352, %v343
  %v479 = vpack.c.b16 %v353, %v344
  %v480 = vpack.c.b16 %v354, %v345
  %v481 = vpack.c.b16 %v355, %v346
  %v482 = vpack.c.b16 %v356, %v347
  %v483 = vpack.c.b16 %v357, %v348
  %v484 = vpack.c.b16 %v367, %v358
  %v485 = vpack.c.b16 %v368, %v359
  %v486 = vpack.c.b16 %v369, %v360
  %v487 = vpack.c.b16 %v370, %v361
  %v488 = vpack.c.b16 %v371, %v362
  %v489 = vpack.c.b16 %v372, %v363
  %v490 = vpack.c.b16 %v373, %v364
  %v491 = vpack.c.b16 %v374, %v365
  %v492 = vpack.c.b16 %v375, %v366
  %v493 = vpack.c.b16 %v385, %v376
  %v494 = vpack.c.b16 %v386, %v377
  %v495 = vpack.c.b16 %v387, %v378
  %v496 = vpack.c.b16 %v388, %v379
  %v497 = vpack.c.b16 %v389, %v380
  %v498 = vpack.c.b16 %v390, %v381
  %v499 = vpack.c.b16 %v391, %v382
  %v500 = vpack.c.b16 %v392, %v383
  %v501 = vpack.c.b16 %v393, %v384
  %v502 = vpack.c.b16 %v403, %v394
  %v503 = vpack.c.b16 %v404, %v395
  %v504 = vpack.c.b16 %v405, %v396
  %v505 = vpack.c.b16 %v406, %v397
  %v506 = vpack.c.b16 %v407, %v398
  %v507 = vpack.c.b16 %v408, %v399
  %v508 = vpack.c.b16 %v409, %v400
  %v509 = vpack.c.b16 %v410, %v401
  %v510 = vpack.c.b16 %v411, %v402
  %v511 = vpack.c.b16 %v421, %v412
  %v512 = vpack.c.b16 %v422, %v413
  %v513 = vpack.c.b16 %v423, %v414
  %v514 = vpack.c.b16 %v424, %v415
  %v515 = vpack.c.b16 %v425, %v416
  %v516 = vpack.c.b16 %v426, %v417
  %v517 = vpack.c.b16 %v427, %v418
  %v518 = vpack.c.b16 %v428, %v419
  %v519 = vpack.c.b16 %v429, %v420
  %v520 = vpack.c.b16 %v439, %v430
  %v521 = vpack.c.b16 %v440, %v431
  %v522 = vpack.c.b16 %v441, %v432
  %v523 = vpack.c.b16 %v442, %v433
  %v524 = vpack.c.b16 %v443, %v434
  %v525 = vpack.c.b16 %v444, %v435
  %v526 = vpack.c.b16 %v445, %v436
  %v527 = vpack.c.b16 %v446, %v437
  %v528 = vpack.c.b16 %v447, %v438
  %v529 = vpack.c.b16 %v457, %v448
  %v530 = vpack.c.b16 %v458, %v449
  %v531 = vpack.c.b16 %v459, %v450
  %v532 = vpack.c.b16 %v460, %v451
  %v533 = vpack.c.b16 %v461, %v452
  %v534 = vpack.c.b16 %v462, %v453
  %v535 = vpack.c.b16 %v463, %v454
  %v536 = vpack.c.b16 %v464, %v455
  %v537 = vpack.c.b16 %v465, %v456
  %v754 = vunpack.c.l.b16 %v94
  %v755 = vunpack.c.l.b16 %v95
  %v756 = vunpack.c.l.b16 %v96
  %v757 = vunpack.c.l.b16 %v97
  %v758 = vunpack.c.l.b16 %v98
  %v759 = vunpack.c.l.b16 %v99
  %v760 = vunpack.c.l.b16 %v100
  %v761 = vunpack.c.l.b16 %v101
  %v762 = vunpack.c.l.b16 %v102
  %v763 = vunpack.c.l.b16 %v103
  %v764 = vunpack.c.l.b16 %v104
  %v765 = vunpack.c.l.b16 %v105
  %v766 = vunpack.c.l.b16 %v106
  %v767 = vunpack.c.l.b16 %v107
  %v768 = vunpack.c.l.b16 %v108
  %v769 = vunpack.c.l.b16 %v109
  %v770 = vunpack.c.l.b16 %v110
  %v771 = vunpack.c.l.b16 %v111
  %v772 = vunpack.c.l.b16 %v112
  %v773 = vunpack.c.l.b16 %v113
  %v774 = vunpack.c.l.b16 %v114
  %v775 = vunpack.c.l.b16 %v115
  %v776 = vunpack.c.l.b16 %v116
  %v777 = vunpack.c.l.b16 %v117
  %v778 = vunpack.c.l.b16 %v118
  %v779 = vunpack.c.l.b16 %v119
  %v780 = vunpack.c.l.b16 %v120
  %v781 = vunpack.c.l.b16 %v121
  %v782 = vunpack.c.l.b16 %v122
  %v783 = vunpack.c.l.b16 %v123
  %v784 = vunpack.c.l.b16 %v124
  %v785 = vunpack.c.l.b16 %v125
  %v786 = vunpack.c.l.b16 %v126
  %v787 = vunpack.c.l.b16 %v127
  %v788 = vunpack.c.l.b16 %v128
  %v789 = vunpack.c.l.b16 %v129
  %v790 = vunpack.c.l.b16 %v130
  %v791 = vunpack.c.l.b16 %v131
  %v792 = vunpack.c.l.b16 %v132
  %v793 = vunpack.c.l.b16 %v133
  %v794 = vunpack.c.l.b16 %v134
  %v795 = vunpack.c.l.b16 %v135
  %v796 = vunpack.c.l.b16 %v136
  %v797 = vunpack.c.l.b16 %v137
  %v798 = vunpack.c.l.b16 %v138
  %v799 = vunpack.c.l.b16 %v139
  %v800 = vunpack.c.l.b16 %v140
  %v801 = vunpack.c.l.b16 %v141
  %v802 = vunpack.c.l.b16 %v142
  %v803 = vunpack.c.l.b16 %v143
  %v804 = vunpack.c.l.b16 %v144
  %v805 = vunpack.c.l.b16 %v145
  %v806 = vunpack.c.l.b16 %v146
  %v807 = vunpack.c.l.b16 %v147
  %v808 = vunpack.c.l.b16 %v148
  %v809 = vunpack.c.l.b16 %v149
  %v810 = vunpack.c.l.b16 %v150
  %v811 = vunpack.c.l.b16 %v151
  %v812 = vunpack.c.l.b16 %v152
  %v813 = vunpack.c.l.b16 %v153
  %v814 = vunpack.c.l.b16 %v154
  %v815 = vunpack.c.l.b16 %v155
  %v816 = vunpack.c.l.b16 %v156
  %v817 = vunpack.c.l.b16 %v157
  %v818 = vunpack.c.l.b16 %v158
  %v819 = vunpack.c.l.b16 %v159
  %v820 = vunpack.c.l.b16 %v160
  %v821 = vunpack.c.l.b16 %v161
  %v822 = vunpack.c.l.b16 %v162
  %v823 = vunpack.c.l.b16 %v163
  %v824 = vunpack.c.l.b16 %v164
  %v825 = vunpack.c.l.b16 %v165
  %v826 = vunpack.c.l.b16 %v166
  %v827 = vunpack.c.l.b16 %v167
  %v828 = vunpack.c.l.b16 %v168
  %v829 = vunpack.c.l.b16 %v169
  %v830 = vunpack.c.l.b16 %v170
  %v831 = vunpack.c.l.b16 %v171
  %v832 = vunpack.c.l.b16 %v172
  %v833 = vunpack.c.l.b16 %v173
  %v834 = vunpack.c.l.b16 %v174
  %v835 = vunpack.c.l.b16 %v175
  %v836 = vunpack.c.l.b16 %v176
  %v837 = vunpack.c.l.b16 %v177
  %v838 = vunpack.c.l.b16 %v178
  %v839 = vunpack.c.l.b16 %v179
  %v840 = vunpack.c.l.b16 %v180
  %v841 = vunpack.c.l.b16 %v181
  %v842 = vunpack.c.l.b16 %v182
  %v843 = vunpack.c.l.b16 %v183
  %v844 = vunpack.c.l.b16 %v184
  %v845 = vunpack.c.l.b16 %v185
  %v846 = vunpack.c.l.b16 %v186
  %v847 = vunpack.c.l.b16 %v187
  %v848 = vunpack.c.l.b16 %v188
  %v849 = vunpack.c.l.b16 %v189
  %v850 = vunpack.c.l.b16 %v190
  %v851 = vunpack.c.l.b16 %v191
  %v852 = vunpack.c.l.b16 %v192
  %v853 = vunpack.c.l.b16 %v193
  %v854 = vunpack.c.l.b16 %v194
  %v855 = vunpack.c.l.b16 %v195
  %v856 = vunpack.c.l.b16 %v196
  %v857 = vunpack.c.l.b16 %v197
  %v858 = vunpack.c.l.b16 %v198
  %v859 = vunpack.c.l.b16 %v199
  %v860 = vunpack.c.l.b16 %v200
  %v861 = vunpack.c.l.b16 %v201
  %v862 = vunpack.c.l.b16 %v202
  %v863 = vunpack.c.l.b16 %v203
  %v864 = vunpack.c.l.b16 %v204
  %v865 = vunpack.c.l.b16 %v205
  %v866 = vunpack.c.l.b16 %v206
  %v867 = vunpack.c.l.b16 %v207
  %v868 = vunpack.c.l.b16 %v208
  %v869 = vunpack.c.l.b16 %v209
  %v870 = vunpack.c.l.b16 %v210
  %v871 = vunpack.c.l.b16 %v211
  %v872 = vunpack.c.l.b16 %v212
  %v873 = vunpack.c.l.b16 %v213
  %v874 = vunpack.c.l.b16 %v214
  %v875 = vunpack.c.l.b16 %v215
  %v876 = vunpack.c.l.b16 %v216
  %v877 = vunpack.c.l.b16 %v217
  %v878 = vunpack.c.l.b16 %v218
  %v879 = vunpack.c.l.b16 %v219
  %v880 = vunpack.c.l.b16 %v220
  %v881 = vunpack.c.l.b16 %v221
  %v882 = vunpack.c.l.b16 %v222
  %v883 = vunpack.c.l.b16 %v223
  %v884 = vunpack.c.l.b16 %v224
  %v885 = vunpack.c.l.b16 %v225
  %v886 = vunpack.c.l.b16 %v226
  %v887 = vunpack.c.l.b16 %v227
  %v888 = vunpack.c.l.b16 %v228
  %v889 = vunpack.c.l.b16 %v229
  %v890 = vunpack.c.l.b16 %v230
  %v891 = vunpack.c.l.b16 %v231
  %v892 = vunpack.c.l.b16 %v232
  %v893 = vunpack.c.l.b16 %v233
  %v894 = vunpack.c.l.b16 %v234
  %v895 = vunpack.c.l.b16 %v235
  %v896 = vunpack.c.l.b16 %v236
  %v897 = vunpack.c.l.b16 %v237
  %v898 = vpack.c.b16 %v755, %v754
  %v899 = vpack.c.b16 %v757, %v756
  %v900 = vpack.c.b16 %v759, %v758
  %v901 = vpack.c.b16 %v761, %v760
  %v902 = vpack.c.b16 %v763, %v762
  %v903 = vpack.c.b16 %v765, %v764
  %v904 = vpack.c.b16 %v767, %v766
  %v905 = vpack.c.b16 %v769, %v768
  %v906 = vpack.c.b16 %v771, %v770
  %v907 = vpack.c.b16 %v773, %v772
  %v908 = vpack.c.b16 %v775, %v774
  %v909 = vpack.c.b16 %v777, %v776
  %v910 = vpack.c.b16 %v779, %v778
  %v911 = vpack.c.b16 %v781, %v780
  %v912 = vpack.c.b16 %v783, %v782
  %v913 = vpack.c.b16 %v785, %v784
  %v914 = vpack.c.b16 %v787, %v786
  %v915 = vpack.c.b16 %v789, %v788
  %v916 = vpack.c.b16 %v791, %v790
  %v917 = vpack.c.b16 %v793, %v792
  %v918 = vpack.c.b16 %v795, %v794
  %v919 = vpack.c.b16 %v797, %v796
  %v920 = vpack.c.b16 %v799, %v798
  %v921 = vpack.c.b16 %v801, %v800
  %v922 = vpack.c.b16 %v803, %v802
  %v923 = vpack.c.b16 %v805, %v804
  %v924 = vpack.c.b16 %v807, %v806
  %v925 = vpack.c.b16 %v809, %v808
  %v926 = vpack.c.b16 %v811, %v810
  %v927 = vpack.c.b16 %v813, %v812
  %v928 = vpack.c.b16 %v815, %v814
  %v929 = vpack.c.b16 %v817, %v816
  %v930 = vpack.c.b16 %v819, %v818
  %v931 = vpack.c.b16 %v821, %v820
  %v932 = vpack.c.b16 %v823, %v822
  %v933 = vpack.c.b16 %v825, %v824
  %v934 = vpack.c.b16 %v827, %v826
  %v935 = vpack.c.b16 %v829, %v828
  %v936 = vpack.c.b16 %v831, %v830
  %v937 = vpack.c.b16 %v833, %v832
  %v938 = vpack.c.b16 %v835, %v834
  %v939 = vpack.c.b16 %v837, %v836
  %v940 = vpack.c.b16 %v839, %v838
  %v941 = vpack.c.b16 %v841, %v840
  %v942 = vpack.c.b16 %v843, %v842
  %v943 = vpack.c.b16 %v845, %v844
  %v944 = vpack.c.b16 %v847, %v846
  %v945 = vpack.c.b16 %v849, %v848
  %v946 = vpack.c.b16 %v851, %v850
  %v947 = vpack.c.b16 %v853, %v852
  %v948 = vpack.c.b16 %v855, %v854
  %v949 = vpack.c.b16 %v857, %v856
  %v950 = vpack.c.b16 %v859, %v858
  %v951 = vpack.c.b16 %v861, %v860
  %v952 = vpack.c.b16 %v863, %v862
  %v953 = vpack.c.b16 %v865, %v864
  %v954 = vpack.c.b16 %v867, %v866
  %v955 = vpack.c.b16 %v869, %v868
  %v956 = vpack.c.b16 %v871, %v870
  %v957 = vpack.c.b16 %v873, %v872
  %v958 = vpack.c.b16 %v875, %v874
  %v959 = vpack.c.b16 %v877, %v876
  %v960 = vpack.c.b16 %v879, %v878
  %v961 = vpack.c.b16 %v881, %v880
  %v962 = vpack.c.b16 %v883, %v882
  %v963 = vpack.c.b16 %v885, %v884
  %v964 = vpack.c.b16 %v887, %v886
  %v965 = vpack.c.b16 %v889, %v888
  %v966 = vpack.c.b16 %v891, %v890
  %v967 = vpack.c.b16 %v893, %v892
  %v968 = vpack.c.b16 %v895, %v894
  %v969 = vpack.c.b16 %v897, %v896
  %1042 = vmatpush.bf16.msra.mxu0 %v905
  %1043 = vmatpush.bf16.msra.mxu0 %v904
  %1044 = vmatpush.bf16.msra.mxu0 %v903
  %1045 = vmatpush.bf16.msra.mxu0 %v902
  %1046 = vmatpush.bf16.msra.mxu0 %v901
  %1047 = vmatpush.bf16.msra.mxu0 %v900
  %1048 = vmatpush.bf16.msra.mxu0 %v899
  %1049 = vmatpush.bf16.msra.mxu0 %v898
  %1050 = vmatmul.bf16.gmra.mxu0 %v466
  %v1051 = vpop.f32.mrf.mxu0
  %v1052 = vadd.f32 %v240, %v1051
  %v1053 = vpop.f32.mrf.mxu0
  %v1054 = vadd.f32 %v240, %v1053
  %1055 = vmatmul.bf16.gmra.mxu0 %v475
  %v1056 = vpop.f32.mrf.mxu0
  %v1057 = vadd.f32 %v240, %v1056
  %v1058 = vpop.f32.mrf.mxu0
  %v1059 = vadd.f32 %v240, %v1058
  %1060 = vmatmul.bf16.gmra.mxu0 %v484
  %v1061 = vpop.f32.mrf.mxu0
  %v1062 = vadd.f32 %v240, %v1061
  %v1063 = vpop.f32.mrf.mxu0
  %v1064 = vadd.f32 %v240, %v1063
  %1065 = vmatmul.bf16.gmra.mxu0 %v493
  %v1066 = vpop.f32.mrf.mxu0
  %v1067 = vadd.f32 %v240, %v1066
  %v1068 = vpop.f32.mrf.mxu0
  %v1069 = vadd.f32 %v240, %v1068
  %1070 = vmatmul.bf16.gmra.mxu0 %v502
  %v1071 = vpop.f32.mrf.mxu0
  %v1072 = vadd.f32 %v240, %v1071
  %v1073 = vpop.f32.mrf.mxu0
  %v1074 = vadd.f32 %v240, %v1073
  %1075 = vmatmul.bf16.gmra.mxu0 %v511
  %v1076 = vpop.f32.mrf.mxu0
  %v1077 = vadd.f32 %v240, %v1076
  %v1078 = vpop.f32.mrf.mxu0
  %v1079 = vadd.f32 %v240, %v1078
  %1080 = vmatmul.bf16.gmra.mxu0 %v520
  %v1081 = vpop.f32.mrf.mxu0
  %v1082 = vadd.f32 %v240, %v1081
  %v1083 = vpop.f32.mrf.mxu0
  %v1084 = vadd.f32 %v240, %v1083
  %1085 = vmatmul.bf16.gmra.mxu0 %v529
  %v1086 = vpop.f32.mrf.mxu0
  %v1087 = vadd.f32 %v240, %v1086
  %v1088 = vpop.f32.mrf.mxu0
  %v1089 = vadd.f32 %v240, %v1088
  %1090 = vdwg.mxu0
  %1091 = vmatpush.bf16.msra.mxu0 %v913
  %1092 = vmatpush.bf16.msra.mxu0 %v912
  %1093 = vmatpush.bf16.msra.mxu0 %v911
  %1094 = vmatpush.bf16.msra.mxu0 %v910
  %1095 = vmatpush.bf16.msra.mxu0 %v909
  %1096 = vmatpush.bf16.msra.mxu0 %v908
  %1097 = vmatpush.bf16.msra.mxu0 %v907
  %1098 = vmatpush.bf16.msra.mxu0 %v906
  %1099 = vmatmul.bf16.gmra.mxu0 %v467
  %v1100 = vpop.f32.mrf.mxu0
  %v1101 = vadd.f32 %v1052, %v1100
  %v1102 = vpop.f32.mrf.mxu0
  %v1103 = vadd.f32 %v1054, %v1102
  %1104 = vmatmul.bf16.gmra.mxu0 %v476
  %v1105 = vpop.f32.mrf.mxu0
  %v1106 = vadd.f32 %v1057, %v1105
  %v1107 = vpop.f32.mrf.mxu0
  %v1108 = vadd.f32 %v1059, %v1107
  %1109 = vmatmul.bf16.gmra.mxu0 %v485
  %v1110 = vpop.f32.mrf.mxu0
  %v1111 = vadd.f32 %v1062, %v1110
  %v1112 = vpop.f32.mrf.mxu0
  %v1113 = vadd.f32 %v1064, %v1112
  %1114 = vmatmul.bf16.gmra.mxu0 %v494
  %v1115 = vpop.f32.mrf.mxu0
  %v1116 = vadd.f32 %v1067, %v1115
  %v1117 = vpop.f32.mrf.mxu0
  %v1118 = vadd.f32 %v1069, %v1117
  %1119 = vmatmul.bf16.gmra.mxu0 %v503
  %v1120 = vpop.f32.mrf.mxu0
  %v1121 = vadd.f32 %v1072, %v1120
  %v1122 = vpop.f32.mrf.mxu0
  %v1123 = vadd.f32 %v1074, %v1122
  %1124 = vmatmul.bf16.gmra.mxu0 %v512
  %v1125 = vpop.f32.mrf.mxu0
  %v1126 = vadd.f32 %v1077, %v1125
  %v1127 = vpop.f32.mrf.mxu0
  %v1128 = vadd.f32 %v1079, %v1127
  %1129 = vmatmul.bf16.gmra.mxu0 %v521
  %v1130 = vpop.f32.mrf.mxu0
  %v1131 = vadd.f32 %v1082, %v1130
  %v1132 = vpop.f32.mrf.mxu0
  %v1133 = vadd.f32 %v1084, %v1132
  %1134 = vmatmul.bf16.gmra.mxu0 %v530
  %v1135 = vpop.f32.mrf.mxu0
  %v1136 = vadd.f32 %v1087, %v1135
  %v1137 = vpop.f32.mrf.mxu0
  %v1138 = vadd.f32 %v1089, %v1137
  %1139 = vdwg.mxu0
  %1140 = vmatpush.bf16.msra.mxu0 %v921
  %1141 = vmatpush.bf16.msra.mxu0 %v920
  %1142 = vmatpush.bf16.msra.mxu0 %v919
  %1143 = vmatpush.bf16.msra.mxu0 %v918
  %1144 = vmatpush.bf16.msra.mxu0 %v917
  %1145 = vmatpush.bf16.msra.mxu0 %v916
  %1146 = vmatpush.bf16.msra.mxu0 %v915
  %1147 = vmatpush.bf16.msra.mxu0 %v914
  %1148 = vmatmul.bf16.gmra.mxu0 %v468
  %v1149 = vpop.f32.mrf.mxu0
  %v1150 = vadd.f32 %v1101, %v1149
  %v1151 = vpop.f32.mrf.mxu0
  %v1152 = vadd.f32 %v1103, %v1151
  %1153 = vmatmul.bf16.gmra.mxu0 %v477
  %v1154 = vpop.f32.mrf.mxu0
  %v1155 = vadd.f32 %v1106, %v1154
  %v1156 = vpop.f32.mrf.mxu0
  %v1157 = vadd.f32 %v1108, %v1156
  %1158 = vmatmul.bf16.gmra.mxu0 %v486
  %v1159 = vpop.f32.mrf.mxu0
  %v1160 = vadd.f32 %v1111, %v1159
  %v1161 = vpop.f32.mrf.mxu0
  %v1162 = vadd.f32 %v1113, %v1161
  %1163 = vmatmul.bf16.gmra.mxu0 %v495
  %v1164 = vpop.f32.mrf.mxu0
  %v1165 = vadd.f32 %v1116, %v1164
  %v1166 = vpop.f32.mrf.mxu0
  %v1167 = vadd.f32 %v1118, %v1166
  %1168 = vmatmul.bf16.gmra.mxu0 %v504
  %v1169 = vpop.f32.mrf.mxu0
  %v1170 = vadd.f32 %v1121, %v1169
  %v1171 = vpop.f32.mrf.mxu0
  %v1172 = vadd.f32 %v1123, %v1171
  %1173 = vmatmul.bf16.gmra.mxu0 %v513
  %v1174 = vpop.f32.mrf.mxu0
  %v1175 = vadd.f32 %v1126, %v1174
  %v1176 = vpop.f32.mrf.mxu0
  %v1177 = vadd.f32 %v1128, %v1176
  %1178 = vmatmul.bf16.gmra.mxu0 %v522
  %v1179 = vpop.f32.mrf.mxu0
  %v1180 = vadd.f32 %v1131, %v1179
  %v1181 = vpop.f32.mrf.mxu0
  %v1182 = vadd.f32 %v1133, %v1181
  %1183 = vmatmul.bf16.gmra.mxu0 %v531
  %v1184 = vpop.f32.mrf.mxu0
  %v1185 = vadd.f32 %v1136, %v1184
  %v1186 = vpop.f32.mrf.mxu0
  %v1187 = vadd.f32 %v1138, %v1186
  %1188 = vdwg.mxu0
  %1189 = vmatpush.bf16.msra.mxu0 %v929
  %1190 = vmatpush.bf16.msra.mxu0 %v928
  %1191 = vmatpush.bf16.msra.mxu0 %v927
  %1192 = vmatpush.bf16.msra.mxu0 %v926
  %1193 = vmatpush.bf16.msra.mxu0 %v925
  %1194 = vmatpush.bf16.msra.mxu0 %v924
  %1195 = vmatpush.bf16.msra.mxu0 %v923
  %1196 = vmatpush.bf16.msra.mxu0 %v922
  %1197 = vmatmul.bf16.gmra.mxu0 %v469
  %v1198 = vpop.f32.mrf.mxu0
  %v1199 = vadd.f32 %v1150, %v1198
  %v1200 = vpop.f32.mrf.mxu0
  %v1201 = vadd.f32 %v1152, %v1200
  %1202 = vmatmul.bf16.gmra.mxu0 %v478
  %v1203 = vpop.f32.mrf.mxu0
  %v1204 = vadd.f32 %v1155, %v1203
  %v1205 = vpop.f32.mrf.mxu0
  %v1206 = vadd.f32 %v1157, %v1205
  %1207 = vmatmul.bf16.gmra.mxu0 %v487
  %v1208 = vpop.f32.mrf.mxu0
  %v1209 = vadd.f32 %v1160, %v1208
  %v1210 = vpop.f32.mrf.mxu0
  %v1211 = vadd.f32 %v1162, %v1210
  %1212 = vmatmul.bf16.gmra.mxu0 %v496
  %v1213 = vpop.f32.mrf.mxu0
  %v1214 = vadd.f32 %v1165, %v1213
  %v1215 = vpop.f32.mrf.mxu0
  %v1216 = vadd.f32 %v1167, %v1215
  %1217 = vmatmul.bf16.gmra.mxu0 %v505
  %v1218 = vpop.f32.mrf.mxu0
  %v1219 = vadd.f32 %v1170, %v1218
  %v1220 = vpop.f32.mrf.mxu0
  %v1221 = vadd.f32 %v1172, %v1220
  %1222 = vmatmul.bf16.gmra.mxu0 %v514
  %v1223 = vpop.f32.mrf.mxu0
  %v1224 = vadd.f32 %v1175, %v1223
  %v1225 = vpop.f32.mrf.mxu0
  %v1226 = vadd.f32 %v1177, %v1225
  %1227 = vmatmul.bf16.gmra.mxu0 %v523
  %v1228 = vpop.f32.mrf.mxu0
  %v1229 = vadd.f32 %v1180, %v1228
  %v1230 = vpop.f32.mrf.mxu0
  %v1231 = vadd.f32 %v1182, %v1230
  %1232 = vmatmul.bf16.gmra.mxu0 %v532
  %v1233 = vpop.f32.mrf.mxu0
  %v1234 = vadd.f32 %v1185, %v1233
  %v1235 = vpop.f32.mrf.mxu0
  %v1236 = vadd.f32 %v1187, %v1235
  %1237 = vdwg.mxu0
  %1238 = vmatpush.bf16.msra.mxu0 %v937
  %1239 = vmatpush.bf16.msra.mxu0 %v936
  %1240 = vmatpush.bf16.msra.mxu0 %v935
  %1241 = vmatpush.bf16.msra.mxu0 %v934
  %1242 = vmatpush.bf16.msra.mxu0 %v933
  %1243 = vmatpush.bf16.msra.mxu0 %v932
  %1244 = vmatpush.bf16.msra.mxu0 %v931
  %1245 = vmatpush.bf16.msra.mxu0 %v930
  %1246 = vmatmul.bf16.gmra.mxu0 %v470
  %v1247 = vpop.f32.mrf.mxu0
  %v1248 = vadd.f32 %v1199, %v1247
  %v1249 = vpop.f32.mrf.mxu0
  %v1250 = vadd.f32 %v1201, %v1249
  %1251 = vmatmul.bf16.gmra.mxu0 %v479
  %v1252 = vpop.f32.mrf.mxu0
  %v1253 = vadd.f32 %v1204, %v1252
  %v1254 = vpop.f32.mrf.mxu0
  %v1255 = vadd.f32 %v1206, %v1254
  %1256 = vmatmul.bf16.gmra.mxu0 %v488
  %v1257 = vpop.f32.mrf.mxu0
  %v1258 = vadd.f32 %v1209, %v1257
  %v1259 = vpop.f32.mrf.mxu0
  %v1260 = vadd.f32 %v1211, %v1259
  %1261 = vmatmul.bf16.gmra.mxu0 %v497
  %v1262 = vpop.f32.mrf.mxu0
  %v1263 = vadd.f32 %v1214, %v1262
  %v1264 = vpop.f32.mrf.mxu0
  %v1265 = vadd.f32 %v1216, %v1264
  %1266 = vmatmul.bf16.gmra.mxu0 %v506
  %v1267 = vpop.f32.mrf.mxu0
  %v1268 = vadd.f32 %v1219, %v1267
  %v1269 = vpop.f32.mrf.mxu0
  %v1270 = vadd.f32 %v1221, %v1269
  %1271 = vmatmul.bf16.gmra.mxu0 %v515
  %v1272 = vpop.f32.mrf.mxu0
  %v1273 = vadd.f32 %v1224, %v1272
  %v1274 = vpop.f32.mrf.mxu0
  %v1275 = vadd.f32 %v1226, %v1274
  %1276 = vmatmul.bf16.gmra.mxu0 %v524
  %v1277 = vpop.f32.mrf.mxu0
  %v1278 = vadd.f32 %v1229, %v1277
  %v1279 = vpop.f32.mrf.mxu0
  %v1280 = vadd.f32 %v1231, %v1279
  %1281 = vmatmul.bf16.gmra.mxu0 %v533
  %v1282 = vpop.f32.mrf.mxu0
  %v1283 = vadd.f32 %v1234, %v1282
  %v1284 = vpop.f32.mrf.mxu0
  %v1285 = vadd.f32 %v1236, %v1284
  %1286 = vdwg.mxu0
  %1287 = vmatpush.bf16.msra.mxu0 %v945
  %1288 = vmatpush.bf16.msra.mxu0 %v944
  %1289 = vmatpush.bf16.msra.mxu0 %v943
  %1290 = vmatpush.bf16.msra.mxu0 %v942
  %1291 = vmatpush.bf16.msra.mxu0 %v941
  %1292 = vmatpush.bf16.msra.mxu0 %v940
  %1293 = vmatpush.bf16.msra.mxu0 %v939
  %1294 = vmatpush.bf16.msra.mxu0 %v938
  %1295 = vmatmul.bf16.gmra.mxu0 %v471
  %v1296 = vpop.f32.mrf.mxu0
  %v1297 = vadd.f32 %v1248, %v1296
  %v1298 = vpop.f32.mrf.mxu0
  %v1299 = vadd.f32 %v1250, %v1298
  %1300 = vmatmul.bf16.gmra.mxu0 %v480
  %v1301 = vpop.f32.mrf.mxu0
  %v1302 = vadd.f32 %v1253, %v1301
  %v1303 = vpop.f32.mrf.mxu0
  %v1304 = vadd.f32 %v1255, %v1303
  %1305 = vmatmul.bf16.gmra.mxu0 %v489
  %v1306 = vpop.f32.mrf.mxu0
  %v1307 = vadd.f32 %v1258, %v1306
  %v1308 = vpop.f32.mrf.mxu0
  %v1309 = vadd.f32 %v1260, %v1308
  %1310 = vmatmul.bf16.gmra.mxu0 %v498
  %v1311 = vpop.f32.mrf.mxu0
  %v1312 = vadd.f32 %v1263, %v1311
  %v1313 = vpop.f32.mrf.mxu0
  %v1314 = vadd.f32 %v1265, %v1313
  %1315 = vmatmul.bf16.gmra.mxu0 %v507
  %v1316 = vpop.f32.mrf.mxu0
  %v1317 = vadd.f32 %v1268, %v1316
  %v1318 = vpop.f32.mrf.mxu0
  %v1319 = vadd.f32 %v1270, %v1318
  %1320 = vmatmul.bf16.gmra.mxu0 %v516
  %v1321 = vpop.f32.mrf.mxu0
  %v1322 = vadd.f32 %v1273, %v1321
  %v1323 = vpop.f32.mrf.mxu0
  %v1324 = vadd.f32 %v1275, %v1323
  %1325 = vmatmul.bf16.gmra.mxu0 %v525
  %v1326 = vpop.f32.mrf.mxu0
  %v1327 = vadd.f32 %v1278, %v1326
  %v1328 = vpop.f32.mrf.mxu0
  %v1329 = vadd.f32 %v1280, %v1328
  %1330 = vmatmul.bf16.gmra.mxu0 %v534
  %v1331 = vpop.f32.mrf.mxu0
  %v1332 = vadd.f32 %v1283, %v1331
  %v1333 = vpop.f32.mrf.mxu0
  %v1334 = vadd.f32 %v1285, %v1333
  %1335 = vdwg.mxu0
  %1336 = vmatpush.bf16.msra.mxu0 %v953
  %1337 = vmatpush.bf16.msra.mxu0 %v952
  %1338 = vmatpush.bf16.msra.mxu0 %v951
  %1339 = vmatpush.bf16.msra.mxu0 %v950
  %1340 = vmatpush.bf16.msra.mxu0 %v949
  %1341 = vmatpush.bf16.msra.mxu0 %v948
  %1342 = vmatpush.bf16.msra.mxu0 %v947
  %1343 = vmatpush.bf16.msra.mxu0 %v946
  %1344 = vmatmul.bf16.gmra.mxu0 %v472
  %v1345 = vpop.f32.mrf.mxu0
  %v1346 = vadd.f32 %v1297, %v1345
  %v1347 = vpop.f32.mrf.mxu0
  %v1348 = vadd.f32 %v1299, %v1347
  %1349 = vmatmul.bf16.gmra.mxu0 %v481
  %v1350 = vpop.f32.mrf.mxu0
  %v1351 = vadd.f32 %v1302, %v1350
  %v1352 = vpop.f32.mrf.mxu0
  %v1353 = vadd.f32 %v1304, %v1352
  %1354 = vmatmul.bf16.gmra.mxu0 %v490
  %v1355 = vpop.f32.mrf.mxu0
  %v1356 = vadd.f32 %v1307, %v1355
  %v1357 = vpop.f32.mrf.mxu0
  %v1358 = vadd.f32 %v1309, %v1357
  %1359 = vmatmul.bf16.gmra.mxu0 %v499
  %v1360 = vpop.f32.mrf.mxu0
  %v1361 = vadd.f32 %v1312, %v1360
  %v1362 = vpop.f32.mrf.mxu0
  %v1363 = vadd.f32 %v1314, %v1362
  %1364 = vmatmul.bf16.gmra.mxu0 %v508
  %v1365 = vpop.f32.mrf.mxu0
  %v1366 = vadd.f32 %v1317, %v1365
  %v1367 = vpop.f32.mrf.mxu0
  %v1368 = vadd.f32 %v1319, %v1367
  %1369 = vmatmul.bf16.gmra.mxu0 %v517
  %v1370 = vpop.f32.mrf.mxu0
  %v1371 = vadd.f32 %v1322, %v1370
  %v1372 = vpop.f32.mrf.mxu0
  %v1373 = vadd.f32 %v1324, %v1372
  %1374 = vmatmul.bf16.gmra.mxu0 %v526
  %v1375 = vpop.f32.mrf.mxu0
  %v1376 = vadd.f32 %v1327, %v1375
  %v1377 = vpop.f32.mrf.mxu0
  %v1378 = vadd.f32 %v1329, %v1377
  %1379 = vmatmul.bf16.gmra.mxu0 %v535
  %v1380 = vpop.f32.mrf.mxu0
  %v1381 = vadd.f32 %v1332, %v1380
  %v1382 = vpop.f32.mrf.mxu0
  %v1383 = vadd.f32 %v1334, %v1382
  %1384 = vdwg.mxu0
  %1385 = vmatpush.bf16.msra.mxu0 %v961
  %1386 = vmatpush.bf16.msra.mxu0 %v960
  %1387 = vmatpush.bf16.msra.mxu0 %v959
  %1388 = vmatpush.bf16.msra.mxu0 %v958
  %1389 = vmatpush.bf16.msra.mxu0 %v957
  %1390 = vmatpush.bf16.msra.mxu0 %v956
  %1391 = vmatpush.bf16.msra.mxu0 %v955
  %1392 = vmatpush.bf16.msra.mxu0 %v954
  %1393 = vmatmul.bf16.gmra.mxu0 %v473
  %v1394 = vpop.f32.mrf.mxu0
  %v1395 = vadd.f32 %v1346, %v1394
  %v1396 = vpop.f32.mrf.mxu0
  %v1397 = vadd.f32 %v1348, %v1396
  %1398 = vmatmul.bf16.gmra.mxu0 %v482
  %v1399 = vpop.f32.mrf.mxu0
  %v1400 = vadd.f32 %v1351, %v1399
  %v1401 = vpop.f32.mrf.mxu0
  %v1402 = vadd.f32 %v1353, %v1401
  %1403 = vmatmul.bf16.gmra.mxu0 %v491
  %v1404 = vpop.f32.mrf.mxu0
  %v1405 = vadd.f32 %v1356, %v1404
  %v1406 = vpop.f32.mrf.mxu0
  %v1407 = vadd.f32 %v1358, %v1406
  %1408 = vmatmul.bf16.gmra.mxu0 %v500
  %v1409 = vpop.f32.mrf.mxu0
  %v1410 = vadd.f32 %v1361, %v1409
  %v1411 = vpop.f32.mrf.mxu0
  %v1412 = vadd.f32 %v1363, %v1411
  %1413 = vmatmul.bf16.gmra.mxu0 %v509
  %v1414 = vpop.f32.mrf.mxu0
  %v1415 = vadd.f32 %v1366, %v1414
  %v1416 = vpop.f32.mrf.mxu0
  %v1417 = vadd.f32 %v1368, %v1416
  %1418 = vmatmul.bf16.gmra.mxu0 %v518
  %v1419 = vpop.f32.mrf.mxu0
  %v1420 = vadd.f32 %v1371, %v1419
  %v1421 = vpop.f32.mrf.mxu0
  %v1422 = vadd.f32 %v1373, %v1421
  %1423 = vmatmul.bf16.gmra.mxu0 %v527
  %v1424 = vpop.f32.mrf.mxu0
  %v1425 = vadd.f32 %v1376, %v1424
  %v1426 = vpop.f32.mrf.mxu0
  %v1427 = vadd.f32 %v1378, %v1426
  %1428 = vmatmul.bf16.gmra.mxu0 %v536
  %v1429 = vpop.f32.mrf.mxu0
  %v1430 = vadd.f32 %v1381, %v1429
  %v1431 = vpop.f32.mrf.mxu0
  %v1432 = vadd.f32 %v1383, %v1431
  %1433 = vdwg.mxu0
  %1434 = vmatpush.bf16.msra.mxu0 %v969
  %1435 = vmatpush.bf16.msra.mxu0 %v968
  %1436 = vmatpush.bf16.msra.mxu0 %v967
  %1437 = vmatpush.bf16.msra.mxu0 %v966
  %1438 = vmatpush.bf16.msra.mxu0 %v965
  %1439 = vmatpush.bf16.msra.mxu0 %v964
  %1440 = vmatpush.bf16.msra.mxu0 %v963
  %1441 = vmatpush.bf16.msra.mxu0 %v962
  %1442 = vmatmul.bf16.gmra.mxu0 %v474
  %v1443 = vpop.f32.mrf.mxu0
  %v1444 = vadd.f32 %v1395, %v1443
  %v1445 = vpop.f32.mrf.mxu0
  %v1446 = vadd.f32 %v1397, %v1445
  %1447 = vmatmul.bf16.gmra.mxu0 %v483
  %v1448 = vpop.f32.mrf.mxu0
  %v1449 = vadd.f32 %v1400, %v1448
  %v1450 = vpop.f32.mrf.mxu0
  %v1451 = vadd.f32 %v1402, %v1450
  %1452 = vmatmul.bf16.gmra.mxu0 %v492
  %v1453 = vpop.f32.mrf.mxu0
  %v1454 = vadd.f32 %v1405, %v1453
  %v1455 = vpop.f32.mrf.mxu0
  %v1456 = vadd.f32 %v1407, %v1455
  %1457 = vmatmul.bf16.gmra.mxu0 %v501
  %v1458 = vpop.f32.mrf.mxu0
  %v1459 = vadd.f32 %v1410, %v1458
  %v1460 = vpop.f32.mrf.mxu0
  %v1461 = vadd.f32 %v1412, %v1460
  %1462 = vmatmul.bf16.gmra.mxu0 %v510
  %v1463 = vpop.f32.mrf.mxu0
  %v1464 = vadd.f32 %v1415, %v1463
  %v1465 = vpop.f32.mrf.mxu0
  %v1466 = vadd.f32 %v1417, %v1465
  %1467 = vmatmul.bf16.gmra.mxu0 %v519
  %v1468 = vpop.f32.mrf.mxu0
  %v1469 = vadd.f32 %v1420, %v1468
  %v1470 = vpop.f32.mrf.mxu0
  %v1471 = vadd.f32 %v1422, %v1470
  %1472 = vmatmul.bf16.gmra.mxu0 %v528
  %v1473 = vpop.f32.mrf.mxu0
  %v1474 = vadd.f32 %v1425, %v1473
  %v1475 = vpop.f32.mrf.mxu0
  %v1476 = vadd.f32 %v1427, %v1475
  %1477 = vmatmul.bf16.gmra.mxu0 %v537
  %v1478 = vpop.f32.mrf.mxu0
  %v1479 = vadd.f32 %v1430, %v1478
  %v1480 = vpop.f32.mrf.mxu0
  %v1481 = vadd.f32 %v1432, %v1480
  %1482 = vdwg.mxu0
  %v1483 = vmax.f32 %v1444, 0.0
  %v1484 = vmax.f32 %v1446, 0.0
  %v1485 = vmax.f32 %v1449, 0.0
  %v1486 = vmax.f32 %v1451, 0.0
  %v1487 = vmax.f32 %v1454, 0.0
  %v1488 = vmax.f32 %v1456, 0.0
  %v1489 = vmax.f32 %v1459, 0.0
  %v1490 = vmax.f32 %v1461, 0.0
  %v1491 = vmax.f32 %v1464, 0.0
  %v1492 = vmax.f32 %v1466, 0.0
  %v1493 = vmax.f32 %v1469, 0.0
  %v1494 = vmax.f32 %v1471, 0.0
  %v1495 = vmax.f32 %v1474, 0.0
  %v1496 = vmax.f32 %v1476, 0.0
  %v1497 = vmax.f32 %v1479, 0.0
  %v1498 = vmax.f32 %v1481, 0.0
  %v1499 = vpack.c.bf16 %v1483, %v1483
  %v1500 = vpack.c.bf16 %v1484, %v1484
  %v1501 = vpack.c.bf16 %v1485, %v1485
  %v1502 = vpack.c.bf16 %v1486, %v1486
  %v1503 = vpack.c.bf16 %v1487, %v1487
  %v1504 = vpack.c.bf16 %v1488, %v1488
  %v1505 = vpack.c.bf16 %v1489, %v1489
  %v1506 = vpack.c.bf16 %v1490, %v1490
  %v1507 = vpack.c.bf16 %v1491, %v1491
  %v1508 = vpack.c.bf16 %v1492, %v1492
  %v1509 = vpack.c.bf16 %v1493, %v1493
  %v1510 = vpack.c.bf16 %v1494, %v1494
  %v1511 = vpack.c.bf16 %v1495, %v1495
  %v1512 = vpack.c.bf16 %v1496, %v1496
  %v1513 = vpack.c.bf16 %v1497, %v1497
  %v1514 = vpack.c.bf16 %v1498, %v1498
  %1515 = vst [vmem:[%s3] sm:$0xf] %v1499
  %1516 = vst [vmem:[%s3 + $0x4] sm:$0xf] %v1500
  %1517 = vst [vmem:[%s3 + $0x8] sm:$0xf] %v1501
  %1518 = vst [vmem:[%s3 + $0xc] sm:$0xf] %v1502
  %1519 = vst [vmem:[%s3 + $0x10] sm:$0xf] %v1503
  %1520 = vst [vmem:[%s3 + $0x14] sm:$0xf] %v1504
  %1521 = vst [vmem:[%s3 + $0x18] sm:$0xf] %v1505
  %1522 = vst [vmem:[%s3 + $0x1c] sm:$0xf] %v1506
  %1523 = vst [vmem:[%s3 + $0x20] sm:$0xf] %v1507
  %1524 = vst [vmem:[%s3 + $0x24] sm:$0xf] %v1508
  %1525 = vst [vmem:[%s3 + $0x28] sm:$0xf] %v1509
  %1526 = vst [vmem:[%s3 + $0x2c] sm:$0xf] %v1510
  %1527 = vst [vmem:[%s3 + $0x30] sm:$0xf] %v1511
  %1528 = vst [vmem:[%s3 + $0x34] sm:$0xf] %v1512
  %1529 = vst [vmem:[%s3 + $0x38] sm:$0xf] %v1513
  %1530 = vst [vmem:[%s3 + $0x3c] sm:$0xf] %v1514
  // Predicated region
  $region14: #{regnet_forward.15} parent=0 // pred_check
    _
  $region15: #{regnet_forward.15} parent=0 // pred_check_branch
    %1532 = sbr.rel (0) target = $region17
  $region16: #{regnet_forward.15} parent=0 // pred_region
    _
  $region17: #{regnet_forward.15} parent=0 // pred_fallthru
    _
  // Predicated region
  $region18: #{regnet_forward.15} parent=0 // pred_check
    _
  $region19: #{regnet_forward.15} parent=0 // pred_check_branch
    %1534 = sbr.rel (0) target = $region21
  $region20: #{regnet_forward.15} parent=0 // pred_region
    _
  $region21: #{regnet_forward.15} parent=0 // pred_fallthru
    _

// kernel: regnet_forward.19
$region0: #{regnet_forward.19}
  #allocation0 [shape = 'u32[]', space=smem, size = 0x4, offset = 0x4, fixed_abs, tag = 'smem constant byte address 0x4 - core index']
  #allocation1 [shape = 'u32[72,128]{1,0:T(1,128)}', space=vmem, size = 0x9000, scoped, tag = 'internal scratch']
  %s0 = inlined_call_operand.vmem [shape: bf16[32,128], index: 0, kind: input, shape index: {}]
  %s1 = inlined_call_operand.vmem [shape: bf16[128,128], index: 1, kind: input, shape index: {}]
  %s2 = inlined_call_operand.vmem [shape: f32[1,128], index: 2, kind: input, shape index: {}]
  %s3 = inlined_call_operand.vmem [shape: bf16[32,128], index: 3, kind: input, shape index: {}]
  %s4 = inlined_call_operand.vmem [shape: bf16[128,128], index: 4, kind: input, shape index: {}]
  %s5 = inlined_call_operand.vmem [shape: bf16[32,128], index: 5, kind: output, shape index: {}]
  %s6 = sld [smem:[#allocation0]]
  $region30: #{regnet_forward.19} parent=0
    _
  %s8 = ssub.s32 1, %s6
  %s9 = scalar_select 0, %s8, %s6
  // Predicated region
  $region2: #{regnet_forward.19} parent=0 // pred_check
    _
  $region3: #{regnet_forward.19} parent=0 // pred_check_branch
    %11 = sbr.rel (0) target = $region5
  $region4: #{regnet_forward.19} parent=0 // pred_region
    _
  $region5: #{regnet_forward.19} parent=0 // pred_fallthru
    _
  // Predicated region
  $region6: #{regnet_forward.19} parent=0 // pred_check
    _
  $region7: #{regnet_forward.19} parent=0 // pred_check_branch
    %13 = sbr.rel (0) target = $region9
  $region8: #{regnet_forward.19} parent=0 // pred_region
    _
  $region9: #{regnet_forward.19} parent=0 // pred_fallthru
    _
  // Predicated region
  $region10: #{regnet_forward.19} parent=0 // pred_check
    _
  $region11: #{regnet_forward.19} parent=0 // pred_check_branch
    %15 = sbr.rel (0) target = $region13
  $region12: #{regnet_forward.19} parent=0 // pred_region
    _
  $region13: #{regnet_forward.19} parent=0 // pred_fallthru
    _
  // Predicated region
  $region14: #{regnet_forward.19} parent=0 // pred_check
    _
  $region15: #{regnet_forward.19} parent=0 // pred_check_branch
    %17 = sbr.rel (0) target = $region17
  $region16: #{regnet_forward.19} parent=0 // pred_region
    _
  $region17: #{regnet_forward.19} parent=0 // pred_fallthru
    _
  // Predicated region
  $region18: #{regnet_forward.19} parent=0 // pred_check
    _
  $region19: #{regnet_forward.19} parent=0 // pred_check_branch
    %19 = sbr.rel (0) target = $region21
  $region20: #{regnet_forward.19} parent=0 // pred_region
    _
  $region21: #{regnet_forward.19} parent=0 // pred_fallthru
    _
  %v20 = vld [vmem:[%s0] sm:$0xf]
  %v21 = vld [vmem:[%s0 + $0x4] sm:$0xf]
  %v22 = vld [vmem:[%s0 + $0x8] sm:$0xf]
  %v23 = vld [vmem:[%s0 + $0xc] sm:$0xf]
  %v24 = vld [vmem:[%s1] sm:$0xf]
  %v25 = vld [vmem:[%s1 + $0x4] sm:$0xf]
  %v26 = vld [vmem:[%s1 + $0x8] sm:$0xf]
  %v27 = vld [vmem:[%s1 + $0xc] sm:$0xf]
  %v28 = vld [vmem:[%s1 + $0x10] sm:$0xf]
  %v29 = vld [vmem:[%s1 + $0x14] sm:$0xf]
  %v30 = vld [vmem:[%s1 + $0x18] sm:$0xf]
  %v31 = vld [vmem:[%s1 + $0x1c] sm:$0xf]
  %v32 = vld [vmem:[%s1 + $0x20] sm:$0xf]
  %v33 = vld [vmem:[%s1 + $0x24] sm:$0xf]
  %v34 = vld [vmem:[%s1 + $0x28] sm:$0xf]
  %v35 = vld [vmem:[%s1 + $0x2c] sm:$0xf]
  %v36 = vld [vmem:[%s1 + $0x30] sm:$0xf]
  %v37 = vld [vmem:[%s1 + $0x34] sm:$0xf]
  %v38 = vld [vmem:[%s1 + $0x38] sm:$0xf]
  %v39 = vld [vmem:[%s1 + $0x3c] sm:$0xf]
  %v40 = vld [vmem:[%s3] sm:$0xf]
  %v41 = vld [vmem:[%s3 + $0x4] sm:$0xf]
  %v42 = vld [vmem:[%s3 + $0x8] sm:$0xf]
  %v43 = vld [vmem:[%s3 + $0xc] sm:$0xf]
  %v44 = vld [vmem:[%s4] sm:$0xf]
  %v45 = vld [vmem:[%s4 + $0x4] sm:$0xf]
  %v46 = vld [vmem:[%s4 + $0x8] sm:$0xf]
  %v47 = vld [vmem:[%s4 + $0xc] sm:$0xf]
  %v48 = vld [vmem:[%s4 + $0x10] sm:$0xf]
  %v49 = vld [vmem:[%s4 + $0x14] sm:$0xf]
  %v50 = vld [vmem:[%s4 + $0x18] sm:$0xf]
  %v51 = vld [vmem:[%s4 + $0x1c] sm:$0xf]
  %v52 = vld [vmem:[%s4 + $0x20] sm:$0xf]
  %v53 = vld [vmem:[%s4 + $0x24] sm:$0xf]
  %v54 = vld [vmem:[%s4 + $0x28] sm:$0xf]
  %v55 = vld [vmem:[%s4 + $0x2c] sm:$0xf]
  %v56 = vld [vmem:[%s4 + $0x30] sm:$0xf]
  %v57 = vld [vmem:[%s4 + $0x34] sm:$0xf]
  %v58 = vld [vmem:[%s4 + $0x38] sm:$0xf]
  %v59 = vld [vmem:[%s4 + $0x3c] sm:$0xf]
  %v64 = vunpack.c.l.b16 %v40
  %v65 = vunpack.c.l.b16 %v41
  %v66 = vunpack.c.l.b16 %v42
  %v67 = vunpack.c.l.b16 %v43
  %v68 = vpack.c.b16 %v65, %v64
  %v69 = vpack.c.b16 %v67, %v66
  %v88 = vunpack.c.l.b16 %v44
  %v89 = vunpack.c.l.b16 %v45
  %v90 = vunpack.c.l.b16 %v46
  %v91 = vunpack.c.l.b16 %v47
  %v92 = vunpack.c.l.b16 %v48
  %v93 = vunpack.c.l.b16 %v49
  %v94 = vunpack.c.l.b16 %v50
  %v95 = vunpack.c.l.b16 %v51
  %v96 = vunpack.c.l.b16 %v52
  %v97 = vunpack.c.l.b16 %v53
  %v98 = vunpack.c.l.b16 %v54
  %v99 = vunpack.c.l.b16 %v55
  %v100 = vunpack.c.l.b16 %v56
  %v101 = vunpack.c.l.b16 %v57
  %v102 = vunpack.c.l.b16 %v58
  %v103 = vunpack.c.l.b16 %v59
  %v104 = vpack.c.b16 %v89, %v88
  %v105 = vpack.c.b16 %v91, %v90
  %v106 = vpack.c.b16 %v93, %v92
  %v107 = vpack.c.b16 %v95, %v94
  %v108 = vpack.c.b16 %v97, %v96
  %v109 = vpack.c.b16 %v99, %v98
  %v110 = vpack.c.b16 %v101, %v100
  %v111 = vpack.c.b16 %v103, %v102
  %120 = vmatpush.bf16.msra.mxu0 %v111
  %121 = vmatpush.bf16.msra.mxu0 %v110
  %122 = vmatpush.bf16.msra.mxu0 %v109
  %123 = vmatpush.bf16.msra.mxu0 %v108
  %124 = vmatpush.bf16.msra.mxu0 %v107
  %125 = vmatpush.bf16.msra.mxu0 %v106
  %126 = vmatpush.bf16.msra.mxu0 %v105
  %127 = vmatpush.bf16.msra.mxu0 %v104
  %128 = vmatmul.bf16.gmra.mxu0 %v68
  %v129 = vpop.f32.mrf.mxu0
  %v130 = vadd.f32 0.0, %v129
  %v131 = vpop.f32.mrf.mxu0
  %v132 = vadd.f32 0.0, %v131
  %133 = vmatmul.bf16.gmra.mxu0 %v69
  %v134 = vpop.f32.mrf.mxu0
  %v135 = vadd.f32 0.0, %v134
  %v136 = vpop.f32.mrf.mxu0
  %v137 = vadd.f32 0.0, %v136
  %138 = vdwg.mxu0
  %v143 = vunpack.c.l.b16 %v20
  %v144 = vunpack.c.l.b16 %v21
  %v145 = vunpack.c.l.b16 %v22
  %v146 = vunpack.c.l.b16 %v23
  %v147 = vpack.c.b16 %v144, %v143
  %v148 = vpack.c.b16 %v146, %v145
  %v167 = vunpack.c.l.b16 %v24
  %v168 = vunpack.c.l.b16 %v25
  %v169 = vunpack.c.l.b16 %v26
  %v170 = vunpack.c.l.b16 %v27
  %v171 = vunpack.c.l.b16 %v28
  %v172 = vunpack.c.l.b16 %v29
  %v173 = vunpack.c.l.b16 %v30
  %v174 = vunpack.c.l.b16 %v31
  %v175 = vunpack.c.l.b16 %v32
  %v176 = vunpack.c.l.b16 %v33
  %v177 = vunpack.c.l.b16 %v34
  %v178 = vunpack.c.l.b16 %v35
  %v179 = vunpack.c.l.b16 %v36
  %v180 = vunpack.c.l.b16 %v37
  %v181 = vunpack.c.l.b16 %v38
  %v182 = vunpack.c.l.b16 %v39
  %v183 = vpack.c.b16 %v168, %v167
  %v184 = vpack.c.b16 %v170, %v169
  %v185 = vpack.c.b16 %v172, %v171
  %v186 = vpack.c.b16 %v174, %v173
  %v187 = vpack.c.b16 %v176, %v175
  %v188 = vpack.c.b16 %v178, %v177
  %v189 = vpack.c.b16 %v180, %v179
  %v190 = vpack.c.b16 %v182, %v181
  %199 = vmatpush.bf16.msra.mxu0 %v190
  %200 = vmatpush.bf16.msra.mxu0 %v189
  %201 = vmatpush.bf16.msra.mxu0 %v188
  %202 = vmatpush.bf16.msra.mxu0 %v187
  %203 = vmatpush.bf16.msra.mxu0 %v186
  %204 = vmatpush.bf16.msra.mxu0 %v185
  %205 = vmatpush.bf16.msra.mxu0 %v184
  %206 = vmatpush.bf16.msra.mxu0 %v183
  %207 = vmatmul.bf16.gmra.mxu0 %v147
  %v208 = vpop.f32.mrf.mxu0
  %v209 = vadd.f32 %v130, %v208
  %v210 = vpop.f32.mrf.mxu0
  %v211 = vadd.f32 %v132, %v210
  %212 = vmatmul.bf16.gmra.mxu0 %v148
  %v213 = vpop.f32.mrf.mxu0
  %v214 = vadd.f32 %v135, %v213
  %v215 = vpop.f32.mrf.mxu0
  %v216 = vadd.f32 %v137, %v215
  %217 = vdwg.mxu0
  %v218 = vld [vmem:[%s2] sm:$0x1]
  %v220 = vperm.slane %v218, 0
  %v222 = vadd.f32 %v209, %v220
  %v223 = vadd.f32 %v211, %v220
  %v224 = vadd.f32 %v214, %v220
  %v225 = vadd.f32 %v216, %v220
  %v226 = vmax.f32 %v222, 0.0
  %v227 = vmax.f32 %v223, 0.0
  %v228 = vmax.f32 %v224, 0.0
  %v229 = vmax.f32 %v225, 0.0
  %v230 = vpack.c.bf16 %v226, %v226
  %v231 = vpack.c.bf16 %v227, %v227
  %v232 = vpack.c.bf16 %v228, %v228
  %v233 = vpack.c.bf16 %v229, %v229
  %234 = vst [vmem:[%s5] sm:$0xf] %v230
  %235 = vst [vmem:[%s5 + $0x4] sm:$0xf] %v231
  %236 = vst [vmem:[%s5 + $0x8] sm:$0xf] %v232
  %237 = vst [vmem:[%s5 + $0xc] sm:$0xf] %v233
  // Predicated region
  $region22: #{regnet_forward.19} parent=0 // pred_check
    _
  $region23: #{regnet_forward.19} parent=0 // pred_check_branch
    %239 = sbr.rel (0) target = $region25
  $region24: #{regnet_forward.19} parent=0 // pred_region
    _
  $region25: #{regnet_forward.19} parent=0 // pred_fallthru
    _
  // Predicated region
  $region26: #{regnet_forward.19} parent=0 // pred_check
    _
  $region27: #{regnet_forward.19} parent=0 // pred_check_branch
    %241 = sbr.rel (0) target = $region29
  $region28: #{regnet_forward.19} parent=0 // pred_region
    _
  $region29: #{regnet_forward.19} parent=0 // pred_fallthru
    _

// kernel: regnet_forward.20
$region0: #{regnet_forward.20}
  #allocation0 [shape = 'u32[]', space=smem, size = 0x4, offset = 0x4, fixed_abs, tag = 'smem constant byte address 0x4 - core index']
  #allocation1 [shape = 'u32[72,128]{1,0:T(1,128)}', space=vmem, size = 0x9000, scoped, tag = 'internal scratch']
  %s0 = inlined_call_operand.vmem [shape: bf16[32,128], index: 0, kind: input, shape index: {}]
  %s1 = inlined_call_operand.vmem [shape: bf16[128,128], index: 1, kind: input, shape index: {}]
  %s2 = inlined_call_operand.vmem [shape: f32[1,128], index: 2, kind: input, shape index: {}]
  %s3 = inlined_call_operand.vmem [shape: bf16[32,128], index: 3, kind: output, shape index: {}]
  %s4 = sld [smem:[#allocation0]]
  $region22: #{regnet_forward.20} parent=0
    _
  %s6 = ssub.s32 1, %s4
  %s7 = scalar_select 0, %s6, %s4
  // Predicated region
  $region2: #{regnet_forward.20} parent=0 // pred_check
    _
  $region3: #{regnet_forward.20} parent=0 // pred_check_branch
    %9 = sbr.rel (0) target = $region5
  $region4: #{regnet_forward.20} parent=0 // pred_region
    _
  $region5: #{regnet_forward.20} parent=0 // pred_fallthru
    _
  // Predicated region
  $region6: #{regnet_forward.20} parent=0 // pred_check
    _
  $region7: #{regnet_forward.20} parent=0 // pred_check_branch
    %11 = sbr.rel (0) target = $region9
  $region8: #{regnet_forward.20} parent=0 // pred_region
    _
  $region9: #{regnet_forward.20} parent=0 // pred_fallthru
    _
  // Predicated region
  $region10: #{regnet_forward.20} parent=0 // pred_check
    _
  $region11: #{regnet_forward.20} parent=0 // pred_check_branch
    %13 = sbr.rel (0) target = $region13
  $region12: #{regnet_forward.20} parent=0 // pred_region
    _
  $region13: #{regnet_forward.20} parent=0 // pred_fallthru
    _
  %v14 = vld [vmem:[%s0] sm:$0xf]
  %v15 = vld [vmem:[%s0 + $0x4] sm:$0xf]
  %v16 = vld [vmem:[%s0 + $0x8] sm:$0xf]
  %v17 = vld [vmem:[%s0 + $0xc] sm:$0xf]
  %v18 = vld [vmem:[%s1] sm:$0xf]
  %v19 = vld [vmem:[%s1 + $0x4] sm:$0xf]
  %v20 = vld [vmem:[%s1 + $0x8] sm:$0xf]
  %v21 = vld [vmem:[%s1 + $0xc] sm:$0xf]
  %v22 = vld [vmem:[%s1 + $0x10] sm:$0xf]
  %v23 = vld [vmem:[%s1 + $0x14] sm:$0xf]
  %v24 = vld [vmem:[%s1 + $0x18] sm:$0xf]
  %v25 = vld [vmem:[%s1 + $0x1c] sm:$0xf]
  %v26 = vld [vmem:[%s1 + $0x20] sm:$0xf]
  %v27 = vld [vmem:[%s1 + $0x24] sm:$0xf]
  %v28 = vld [vmem:[%s1 + $0x28] sm:$0xf]
  %v29 = vld [vmem:[%s1 + $0x2c] sm:$0xf]
  %v30 = vld [vmem:[%s1 + $0x30] sm:$0xf]
  %v31 = vld [vmem:[%s1 + $0x34] sm:$0xf]
  %v32 = vld [vmem:[%s1 + $0x38] sm:$0xf]
  %v33 = vld [vmem:[%s1 + $0x3c] sm:$0xf]
  %v34 = vld [vmem:[%s2] sm:$0x1]
  %v36 = vperm.slane %v34, 0
  %v42 = vunpack.c.l.b16 %v14
  %v43 = vunpack.c.l.b16 %v15
  %v44 = vunpack.c.l.b16 %v16
  %v45 = vunpack.c.l.b16 %v17
  %v46 = vpack.c.b16 %v43, %v42
  %v47 = vpack.c.b16 %v45, %v44
  %v66 = vunpack.c.l.b16 %v18
  %v67 = vunpack.c.l.b16 %v19
  %v68 = vunpack.c.l.b16 %v20
  %v69 = vunpack.c.l.b16 %v21
  %v70 = vunpack.c.l.b16 %v22
  %v71 = vunpack.c.l.b16 %v23
  %v72 = vunpack.c.l.b16 %v24
  %v73 = vunpack.c.l.b16 %v25
  %v74 = vunpack.c.l.b16 %v26
  %v75 = vunpack.c.l.b16 %v27
  %v76 = vunpack.c.l.b16 %v28
  %v77 = vunpack.c.l.b16 %v29
  %v78 = vunpack.c.l.b16 %v30
  %v79 = vunpack.c.l.b16 %v31
  %v80 = vunpack.c.l.b16 %v32
  %v81 = vunpack.c.l.b16 %v33
  %v82 = vpack.c.b16 %v67, %v66
  %v83 = vpack.c.b16 %v69, %v68
  %v84 = vpack.c.b16 %v71, %v70
  %v85 = vpack.c.b16 %v73, %v72
  %v86 = vpack.c.b16 %v75, %v74
  %v87 = vpack.c.b16 %v77, %v76
  %v88 = vpack.c.b16 %v79, %v78
  %v89 = vpack.c.b16 %v81, %v80
  %98 = vmatpush.bf16.msra.mxu0 %v89
  %99 = vmatpush.bf16.msra.mxu0 %v88
  %100 = vmatpush.bf16.msra.mxu0 %v87
  %101 = vmatpush.bf16.msra.mxu0 %v86
  %102 = vmatpush.bf16.msra.mxu0 %v85
  %103 = vmatpush.bf16.msra.mxu0 %v84
  %104 = vmatpush.bf16.msra.mxu0 %v83
  %105 = vmatpush.bf16.msra.mxu0 %v82
  %106 = vmatmul.bf16.gmra.mxu0 %v46
  %v107 = vpop.f32.mrf.mxu0
  %v108 = vadd.f32 %v36, %v107
  %v109 = vpop.f32.mrf.mxu0
  %v110 = vadd.f32 %v36, %v109
  %111 = vmatmul.bf16.gmra.mxu0 %v47
  %v112 = vpop.f32.mrf.mxu0
  %v113 = vadd.f32 %v36, %v112
  %v114 = vpop.f32.mrf.mxu0
  %v115 = vadd.f32 %v36, %v114
  %116 = vdwg.mxu0
  %v117 = vmax.f32 %v108, 0.0
  %v118 = vmax.f32 %v110, 0.0
  %v119 = vmax.f32 %v113, 0.0
  %v120 = vmax.f32 %v115, 0.0
  %v121 = vpack.c.bf16 %v117, %v117
  %v122 = vpack.c.bf16 %v118, %v118
  %v123 = vpack.c.bf16 %v119, %v119
  %v124 = vpack.c.bf16 %v120, %v120
  %125 = vst [vmem:[%s3] sm:$0xf] %v121
  %126 = vst [vmem:[%s3 + $0x4] sm:$0xf] %v122
  %127 = vst [vmem:[%s3 + $0x8] sm:$0xf] %v123
  %128 = vst [vmem:[%s3 + $0xc] sm:$0xf] %v124
  // Predicated region
  $region14: #{regnet_forward.20} parent=0 // pred_check
    _
  $region15: #{regnet_forward.20} parent=0 // pred_check_branch
    %130 = sbr.rel (0) target = $region17
  $region16: #{regnet_forward.20} parent=0 // pred_region
    _
  $region17: #{regnet_forward.20} parent=0 // pred_fallthru
    _
  // Predicated region
  $region18: #{regnet_forward.20} parent=0 // pred_check
    _
  $region19: #{regnet_forward.20} parent=0 // pred_check_branch
    %132 = sbr.rel (0) target = $region21
  $region20: #{regnet_forward.20} parent=0 // pred_region
    _
  $region21: #{regnet_forward.20} parent=0 // pred_fallthru
    _

// kernel: regnet_forward.18
$region0: #{regnet_forward.18}
  #allocation0 [shape = 'u32[]', space=smem, size = 0x4, offset = 0x4, fixed_abs, tag = 'smem constant byte address 0x4 - core index']
  #allocation1 [shape = 'u32[72,128]{1,0:T(1,128)}', space=vmem, size = 0x9000, scoped, tag = 'internal scratch']
  %s0 = inlined_call_operand.vmem [shape: bf16[32,1152], index: 0, kind: input, shape index: {}]
  %s1 = inlined_call_operand.vmem [shape: bf16[1152,128], index: 1, kind: input, shape index: {}]
  %s2 = inlined_call_operand.vmem [shape: f32[1,128], index: 2, kind: input, shape index: {}]
  %s3 = inlined_call_operand.vmem [shape: bf16[32,128], index: 3, kind: output, shape index: {}]
  %s4 = sld [smem:[#allocation0]]
  $region22: #{regnet_forward.18} parent=0
    _
  %s6 = ssub.s32 1, %s4
  %s7 = scalar_select 0, %s6, %s4
  // Predicated region
  $region2: #{regnet_forward.18} parent=0 // pred_check
    _
  $region3: #{regnet_forward.18} parent=0 // pred_check_branch
    %9 = sbr.rel (0) target = $region5
  $region4: #{regnet_forward.18} parent=0 // pred_region
    _
  $region5: #{regnet_forward.18} parent=0 // pred_fallthru
    _
  // Predicated region
  $region6: #{regnet_forward.18} parent=0 // pred_check
    _
  $region7: #{regnet_forward.18} parent=0 // pred_check_branch
    %11 = sbr.rel (0) target = $region9
  $region8: #{regnet_forward.18} parent=0 // pred_region
    _
  $region9: #{regnet_forward.18} parent=0 // pred_fallthru
    _
  // Predicated region
  $region10: #{regnet_forward.18} parent=0 // pred_check
    _
  $region11: #{regnet_forward.18} parent=0 // pred_check_branch
    %13 = sbr.rel (0) target = $region13
  $region12: #{regnet_forward.18} parent=0 // pred_region
    _
  $region13: #{regnet_forward.18} parent=0 // pred_fallthru
    _
  %v14 = vld [vmem:[%s0] sm:$0xff]
  %v15 = vld [vmem:[%s0 + $0x8] sm:$0xff]
  %v16 = vld [vmem:[%s0 + $0x10] sm:$0xff]
  %v17 = vld [vmem:[%s0 + $0x18] sm:$0xff]
  %v18 = vld [vmem:[%s0 + $0x20] sm:$0xf]
  %v19 = vld [vmem:[%s0 + $0x24] sm:$0xff]
  %v20 = vld [vmem:[%s0 + $0x2c] sm:$0xff]
  %v21 = vld [vmem:[%s0 + $0x34] sm:$0xff]
  %v22 = vld [vmem:[%s0 + $0x3c] sm:$0xff]
  %v23 = vld [vmem:[%s0 + $0x44] sm:$0xf]
  %v24 = vld [vmem:[%s0 + $0x48] sm:$0xff]
  %v25 = vld [vmem:[%s0 + $0x50] sm:$0xff]
  %v26 = vld [vmem:[%s0 + $0x58] sm:$0xff]
  %v27 = vld [vmem:[%s0 + $0x60] sm:$0xff]
  %v28 = vld [vmem:[%s0 + $0x68] sm:$0xf]
  %v29 = vld [vmem:[%s0 + $0x6c] sm:$0xff]
  %v30 = vld [vmem:[%s0 + $0x74] sm:$0xff]
  %v31 = vld [vmem:[%s0 + $0x7c] sm:$0xff]
  %v32 = vld [vmem:[%s0 + $0x84] sm:$0xff]
  %v33 = vld [vmem:[%s0 + $0x8c] sm:$0xf]
  %v34 = vld [vmem:[%s1] sm:$0xf]
  %v35 = vld [vmem:[%s1 + $0x4] sm:$0xf]
  %v36 = vld [vmem:[%s1 + $0x8] sm:$0xf]
  %v37 = vld [vmem:[%s1 + $0xc] sm:$0xf]
  %v38 = vld [vmem:[%s1 + $0x10] sm:$0xf]
  %v39 = vld [vmem:[%s1 + $0x14] sm:$0xf]
  %v40 = vld [vmem:[%s1 + $0x18] sm:$0xf]
  %v41 = vld [vmem:[%s1 + $0x1c] sm:$0xf]
  %v42 = vld [vmem:[%s1 + $0x20] sm:$0xf]
  %v43 = vld [vmem:[%s1 + $0x24] sm:$0xf]
  %v44 = vld [vmem:[%s1 + $0x28] sm:$0xf]
  %v45 = vld [vmem:[%s1 + $0x2c] sm:$0xf]
  %v46 = vld [vmem:[%s1 + $0x30] sm:$0xf]
  %v47 = vld [vmem:[%s1 + $0x34] sm:$0xf]
  %v48 = vld [vmem:[%s1 + $0x38] sm:$0xf]
  %v49 = vld [vmem:[%s1 + $0x3c] sm:$0xf]
  %v50 = vld [vmem:[%s1 + $0x40] sm:$0xf]
  %v51 = vld [vmem:[%s1 + $0x44] sm:$0xf]
  %v52 = vld [vmem:[%s1 + $0x48] sm:$0xf]
  %v53 = vld [vmem:[%s1 + $0x4c] sm:$0xf]
  %v54 = vld [vmem:[%s1 + $0x50] sm:$0xf]
  %v55 = vld [vmem:[%s1 + $0x54] sm:$0xf]
  %v56 = vld [vmem:[%s1 + $0x58] sm:$0xf]
  %v57 = vld [vmem:[%s1 + $0x5c] sm:$0xf]
  %v58 = vld [vmem:[%s1 + $0x60] sm:$0xf]
  %v59 = vld [vmem:[%s1 + $0x64] sm:$0xf]
  %v60 = vld [vmem:[%s1 + $0x68] sm:$0xf]
  %v61 = vld [vmem:[%s1 + $0x6c] sm:$0xf]
  %v62 = vld [vmem:[%s1 + $0x70] sm:$0xf]
  %v63 = vld [vmem:[%s1 + $0x74] sm:$0xf]
  %v64 = vld [vmem:[%s1 + $0x78] sm:$0xf]
  %v65 = vld [vmem:[%s1 + $0x7c] sm:$0xf]
  %v66 = vld [vmem:[%s1 + $0x80] sm:$0xf]
  %v67 = vld [vmem:[%s1 + $0x84] sm:$0xf]
  %v68 = vld [vmem:[%s1 + $0x88] sm:$0xf]
  %v69 = vld [vmem:[%s1 + $0x8c] sm:$0xf]
  %v70 = vld [vmem:[%s1 + $0x90] sm:$0xf]
  %v71 = vld [vmem:[%s1 + $0x94] sm:$0xf]
  %v72 = vld [vmem:[%s1 + $0x98] sm:$0xf]
  %v73 = vld [vmem:[%s1 + $0x9c] sm:$0xf]
  %v74 = vld [vmem:[%s1 + $0xa0] sm:$0xf]
  %v75 = vld [vmem:[%s1 + $0xa4] sm:$0xf]
  %v76 = vld [vmem:[%s1 + $0xa8] sm:$0xf]
  %v77 = vld [vmem:[%s1 + $0xac] sm:$0xf]
  %v78 = vld [vmem:[%s1 + $0xb0] sm:$0xf]
  %v79 = vld [vmem:[%s1 + $0xb4] sm:$0xf]
  %v80 = vld [vmem:[%s1 + $0xb8] sm:$0xf]
  %v81 = vld [vmem:[%s1 + $0xbc] sm:$0xf]
  %v82 = vld [vmem:[%s1 + $0xc0] sm:$0xf]
  %v83 = vld [vmem:[%s1 + $0xc4] sm:$0xf]
  %v84 = vld [vmem:[%s1 + $0xc8] sm:$0xf]
  %v85 = vld [vmem:[%s1 + $0xcc] sm:$0xf]
  %v86 = vld [vmem:[%s1 + $0xd0] sm:$0xf]
  %v87 = vld [vmem:[%s1 + $0xd4] sm:$0xf]
  %v88 = vld [vmem:[%s1 + $0xd8] sm:$0xf]
  %v89 = vld [vmem:[%s1 + $0xdc] sm:$0xf]
  %v90 = vld [vmem:[%s1 + $0xe0] sm:$0xf]
  %v91 = vld [vmem:[%s1 + $0xe4] sm:$0xf]
  %v92 = vld [vmem:[%s1 + $0xe8] sm:$0xf]
  %v93 = vld [vmem:[%s1 + $0xec] sm:$0xf]
  %v94 = vld [vmem:[%s1 + $0xf0] sm:$0xf]
  %v95 = vld [vmem:[%s1 + $0xf4] sm:$0xf]
  %v96 = vld [vmem:[%s1 + $0xf8] sm:$0xf]
  %v97 = vld [vmem:[%s1 + $0xfc] sm:$0xf]
  %v98 = vld [vmem:[%s1 + $0x100] sm:$0xf]
  %v99 = vld [vmem:[%s1 + $0x104] sm:$0xf]
  %v100 = vld [vmem:[%s1 + $0x108] sm:$0xf]
  %v101 = vld [vmem:[%s1 + $0x10c] sm:$0xf]
  %v102 = vld [vmem:[%s1 + $0x110] sm:$0xf]
  %v103 = vld [vmem:[%s1 + $0x114] sm:$0xf]
  %v104 = vld [vmem:[%s1 + $0x118] sm:$0xf]
  %v105 = vld [vmem:[%s1 + $0x11c] sm:$0xf]
  %v106 = vld [vmem:[%s1 + $0x120] sm:$0xf]
  %v107 = vld [vmem:[%s1 + $0x124] sm:$0xf]
  %v108 = vld [vmem:[%s1 + $0x128] sm:$0xf]
  %v109 = vld [vmem:[%s1 + $0x12c] sm:$0xf]
  %v110 = vld [vmem:[%s1 + $0x130] sm:$0xf]
  %v111 = vld [vmem:[%s1 + $0x134] sm:$0xf]
  %v112 = vld [vmem:[%s1 + $0x138] sm:$0xf]
  %v113 = vld [vmem:[%s1 + $0x13c] sm:$0xf]
  %v114 = vld [vmem:[%s1 + $0x140] sm:$0xf]
  %v115 = vld [vmem:[%s1 + $0x144] sm:$0xf]
  %v116 = vld [vmem:[%s1 + $0x148] sm:$0xf]
  %v117 = vld [vmem:[%s1 + $0x14c] sm:$0xf]
  %v118 = vld [vmem:[%s1 + $0x150] sm:$0xf]
  %v119 = vld [vmem:[%s1 + $0x154] sm:$0xf]
  %v120 = vld [vmem:[%s1 + $0x158] sm:$0xf]
  %v121 = vld [vmem:[%s1 + $0x15c] sm:$0xf]
  %v122 = vld [vmem:[%s1 + $0x160] sm:$0xf]
  %v123 = vld [vmem:[%s1 + $0x164] sm:$0xf]
  %v124 = vld [vmem:[%s1 + $0x168] sm:$0xf]
  %v125 = vld [vmem:[%s1 + $0x16c] sm:$0xf]
  %v126 = vld [vmem:[%s1 + $0x170] sm:$0xf]
  %v127 = vld [vmem:[%s1 + $0x174] sm:$0xf]
  %v128 = vld [vmem:[%s1 + $0x178] sm:$0xf]
  %v129 = vld [vmem:[%s1 + $0x17c] sm:$0xf]
  %v130 = vld [vmem:[%s1 + $0x180] sm:$0xf]
  %v131 = vld [vmem:[%s1 + $0x184] sm:$0xf]
  %v132 = vld [vmem:[%s1 + $0x188] sm:$0xf]
  %v133 = vld [vmem:[%s1 + $0x18c] sm:$0xf]
  %v134 = vld [vmem:[%s1 + $0x190] sm:$0xf]
  %v135 = vld [vmem:[%s1 + $0x194] sm:$0xf]
  %v136 = vld [vmem:[%s1 + $0x198] sm:$0xf]
  %v137 = vld [vmem:[%s1 + $0x19c] sm:$0xf]
  %v138 = vld [vmem:[%s1 + $0x1a0] sm:$0xf]
  %v139 = vld [vmem:[%s1 + $0x1a4] sm:$0xf]
  %v140 = vld [vmem:[%s1 + $0x1a8] sm:$0xf]
  %v141 = vld [vmem:[%s1 + $0x1ac] sm:$0xf]
  %v142 = vld [vmem:[%s1 + $0x1b0] sm:$0xf]
  %v143 = vld [vmem:[%s1 + $0x1b4] sm:$0xf]
  %v144 = vld [vmem:[%s1 + $0x1b8] sm:$0xf]
  %v145 = vld [vmem:[%s1 + $0x1bc] sm:$0xf]
  %v146 = vld [vmem:[%s1 + $0x1c0] sm:$0xf]
  %v147 = vld [vmem:[%s1 + $0x1c4] sm:$0xf]
  %v148 = vld [vmem:[%s1 + $0x1c8] sm:$0xf]
  %v149 = vld [vmem:[%s1 + $0x1cc] sm:$0xf]
  %v150 = vld [vmem:[%s1 + $0x1d0] sm:$0xf]
  %v151 = vld [vmem:[%s1 + $0x1d4] sm:$0xf]
  %v152 = vld [vmem:[%s1 + $0x1d8] sm:$0xf]
  %v153 = vld [vmem:[%s1 + $0x1dc] sm:$0xf]
  %v154 = vld [vmem:[%s1 + $0x1e0] sm:$0xf]
  %v155 = vld [vmem:[%s1 + $0x1e4] sm:$0xf]
  %v156 = vld [vmem:[%s1 + $0x1e8] sm:$0xf]
  %v157 = vld [vmem:[%s1 + $0x1ec] sm:$0xf]
  %v158 = vld [vmem:[%s1 + $0x1f0] sm:$0xf]
  %v159 = vld [vmem:[%s1 + $0x1f4] sm:$0xf]
  %v160 = vld [vmem:[%s1 + $0x1f8] sm:$0xf]
  %v161 = vld [vmem:[%s1 + $0x1fc] sm:$0xf]
  %v162 = vld [vmem:[%s1 + $0x200] sm:$0xf]
  %v163 = vld [vmem:[%s1 + $0x204] sm:$0xf]
  %v164 = vld [vmem:[%s1 + $0x208] sm:$0xf]
  %v165 = vld [vmem:[%s1 + $0x20c] sm:$0xf]
  %v166 = vld [vmem:[%s1 + $0x210] sm:$0xf]
  %v167 = vld [vmem:[%s1 + $0x214] sm:$0xf]
  %v168 = vld [vmem:[%s1 + $0x218] sm:$0xf]
  %v169 = vld [vmem:[%s1 + $0x21c] sm:$0xf]
  %v170 = vld [vmem:[%s1 + $0x220] sm:$0xf]
  %v171 = vld [vmem:[%s1 + $0x224] sm:$0xf]
  %v172 = vld [vmem:[%s1 + $0x228] sm:$0xf]
  %v173 = vld [vmem:[%s1 + $0x22c] sm:$0xf]
  %v174 = vld [vmem:[%s1 + $0x230] sm:$0xf]
  %v175 = vld [vmem:[%s1 + $0x234] sm:$0xf]
  %v176 = vld [vmem:[%s1 + $0x238] sm:$0xf]
  %v177 = vld [vmem:[%s1 + $0x23c] sm:$0xf]
  %v178 = vld [vmem:[%s2] sm:$0x1]
  %v180 = vperm.slane %v178, 0
  %v202 = vunpack.c.l.b16 %v14
  %v203 = vunpack.c.h.b16 %v14
  %v204 = vunpack.c.l.b16 %v15
  %v205 = vunpack.c.h.b16 %v15
  %v206 = vunpack.c.l.b16 %v16
  %v207 = vunpack.c.h.b16 %v16
  %v208 = vunpack.c.l.b16 %v17
  %v209 = vunpack.c.h.b16 %v17
  %v210 = vunpack.c.l.b16 %v18
  %v211 = vunpack.c.l.b16 %v19
  %v212 = vunpack.c.h.b16 %v19
  %v213 = vunpack.c.l.b16 %v20
  %v214 = vunpack.c.h.b16 %v20
  %v215 = vunpack.c.l.b16 %v21
  %v216 = vunpack.c.h.b16 %v21
  %v217 = vunpack.c.l.b16 %v22
  %v218 = vunpack.c.h.b16 %v22
  %v219 = vunpack.c.l.b16 %v23
  %v220 = vunpack.c.l.b16 %v24
  %v221 = vunpack.c.h.b16 %v24
  %v222 = vunpack.c.l.b16 %v25
  %v223 = vunpack.c.h.b16 %v25
  %v224 = vunpack.c.l.b16 %v26
  %v225 = vunpack.c.h.b16 %v26
  %v226 = vunpack.c.l.b16 %v27
  %v227 = vunpack.c.h.b16 %v27
  %v228 = vunpack.c.l.b16 %v28
  %v229 = vunpack.c.l.b16 %v29
  %v230 = vunpack.c.h.b16 %v29
  %v231 = vunpack.c.l.b16 %v30
  %v232 = vunpack.c.h.b16 %v30
  %v233 = vunpack.c.l.b16 %v31
  %v234 = vunpack.c.h.b16 %v31
  %v235 = vunpack.c.l.b16 %v32
  %v236 = vunpack.c.h.b16 %v32
  %v237 = vunpack.c.l.b16 %v33
  %v238 = vpack.c.b16 %v211, %v202
  %v239 = vpack.c.b16 %v212, %v203
  %v240 = vpack.c.b16 %v213, %v204
  %v241 = vpack.c.b16 %v214, %v205
  %v242 = vpack.c.b16 %v215, %v206
  %v243 = vpack.c.b16 %v216, %v207
  %v244 = vpack.c.b16 %v217, %v208
  %v245 = vpack.c.b16 %v218, %v209
  %v246 = vpack.c.b16 %v219, %v210
  %v247 = vpack.c.b16 %v229, %v220
  %v248 = vpack.c.b16 %v230, %v221
  %v249 = vpack.c.b16 %v231, %v222
  %v250 = vpack.c.b16 %v232, %v223
  %v251 = vpack.c.b16 %v233, %v224
  %v252 = vpack.c.b16 %v234, %v225
  %v253 = vpack.c.b16 %v235, %v226
  %v254 = vpack.c.b16 %v236, %v227
  %v255 = vpack.c.b16 %v237, %v228
  %v418 = vunpack.c.l.b16 %v34
  %v419 = vunpack.c.l.b16 %v35
  %v420 = vunpack.c.l.b16 %v36
  %v421 = vunpack.c.l.b16 %v37
  %v422 = vunpack.c.l.b16 %v38
  %v423 = vunpack.c.l.b16 %v39
  %v424 = vunpack.c.l.b16 %v40
  %v425 = vunpack.c.l.b16 %v41
  %v426 = vunpack.c.l.b16 %v42
  %v427 = vunpack.c.l.b16 %v43
  %v428 = vunpack.c.l.b16 %v44
  %v429 = vunpack.c.l.b16 %v45
  %v430 = vunpack.c.l.b16 %v46
  %v431 = vunpack.c.l.b16 %v47
  %v432 = vunpack.c.l.b16 %v48
  %v433 = vunpack.c.l.b16 %v49
  %v434 = vunpack.c.l.b16 %v50
  %v435 = vunpack.c.l.b16 %v51
  %v436 = vunpack.c.l.b16 %v52
  %v437 = vunpack.c.l.b16 %v53
  %v438 = vunpack.c.l.b16 %v54
  %v439 = vunpack.c.l.b16 %v55
  %v440 = vunpack.c.l.b16 %v56
  %v441 = vunpack.c.l.b16 %v57
  %v442 = vunpack.c.l.b16 %v58
  %v443 = vunpack.c.l.b16 %v59
  %v444 = vunpack.c.l.b16 %v60
  %v445 = vunpack.c.l.b16 %v61
  %v446 = vunpack.c.l.b16 %v62
  %v447 = vunpack.c.l.b16 %v63
  %v448 = vunpack.c.l.b16 %v64
  %v449 = vunpack.c.l.b16 %v65
  %v450 = vunpack.c.l.b16 %v66
  %v451 = vunpack.c.l.b16 %v67
  %v452 = vunpack.c.l.b16 %v68
  %v453 = vunpack.c.l.b16 %v69
  %v454 = vunpack.c.l.b16 %v70
  %v455 = vunpack.c.l.b16 %v71
  %v456 = vunpack.c.l.b16 %v72
  %v457 = vunpack.c.l.b16 %v73
  %v458 = vunpack.c.l.b16 %v74
  %v459 = vunpack.c.l.b16 %v75
  %v460 = vunpack.c.l.b16 %v76
  %v461 = vunpack.c.l.b16 %v77
  %v462 = vunpack.c.l.b16 %v78
  %v463 = vunpack.c.l.b16 %v79
  %v464 = vunpack.c.l.b16 %v80
  %v465 = vunpack.c.l.b16 %v81
  %v466 = vunpack.c.l.b16 %v82
  %v467 = vunpack.c.l.b16 %v83
  %v468 = vunpack.c.l.b16 %v84
  %v469 = vunpack.c.l.b16 %v85
  %v470 = vunpack.c.l.b16 %v86
  %v471 = vunpack.c.l.b16 %v87
  %v472 = vunpack.c.l.b16 %v88
  %v473 = vunpack.c.l.b16 %v89
  %v474 = vunpack.c.l.b16 %v90
  %v475 = vunpack.c.l.b16 %v91
  %v476 = vunpack.c.l.b16 %v92
  %v477 = vunpack.c.l.b16 %v93
  %v478 = vunpack.c.l.b16 %v94
  %v479 = vunpack.c.l.b16 %v95
  %v480 = vunpack.c.l.b16 %v96
  %v481 = vunpack.c.l.b16 %v97
  %v482 = vunpack.c.l.b16 %v98
  %v483 = vunpack.c.l.b16 %v99
  %v484 = vunpack.c.l.b16 %v100
  %v485 = vunpack.c.l.b16 %v101
  %v486 = vunpack.c.l.b16 %v102
  %v487 = vunpack.c.l.b16 %v103
  %v488 = vunpack.c.l.b16 %v104
  %v489 = vunpack.c.l.b16 %v105
  %v490 = vunpack.c.l.b16 %v106
  %v491 = vunpack.c.l.b16 %v107
  %v492 = vunpack.c.l.b16 %v108
  %v493 = vunpack.c.l.b16 %v109
  %v494 = vunpack.c.l.b16 %v110
  %v495 = vunpack.c.l.b16 %v111
  %v496 = vunpack.c.l.b16 %v112
  %v497 = vunpack.c.l.b16 %v113
  %v498 = vunpack.c.l.b16 %v114
  %v499 = vunpack.c.l.b16 %v115
  %v500 = vunpack.c.l.b16 %v116
  %v501 = vunpack.c.l.b16 %v117
  %v502 = vunpack.c.l.b16 %v118
  %v503 = vunpack.c.l.b16 %v119
  %v504 = vunpack.c.l.b16 %v120
  %v505 = vunpack.c.l.b16 %v121
  %v506 = vunpack.c.l.b16 %v122
  %v507 = vunpack.c.l.b16 %v123
  %v508 = vunpack.c.l.b16 %v124
  %v509 = vunpack.c.l.b16 %v125
  %v510 = vunpack.c.l.b16 %v126
  %v511 = vunpack.c.l.b16 %v127
  %v512 = vunpack.c.l.b16 %v128
  %v513 = vunpack.c.l.b16 %v129
  %v514 = vunpack.c.l.b16 %v130
  %v515 = vunpack.c.l.b16 %v131
  %v516 = vunpack.c.l.b16 %v132
  %v517 = vunpack.c.l.b16 %v133
  %v518 = vunpack.c.l.b16 %v134
  %v519 = vunpack.c.l.b16 %v135
  %v520 = vunpack.c.l.b16 %v136
  %v521 = vunpack.c.l.b16 %v137
  %v522 = vunpack.c.l.b16 %v138
  %v523 = vunpack.c.l.b16 %v139
  %v524 = vunpack.c.l.b16 %v140
  %v525 = vunpack.c.l.b16 %v141
  %v526 = vunpack.c.l.b16 %v142
  %v527 = vunpack.c.l.b16 %v143
  %v528 = vunpack.c.l.b16 %v144
  %v529 = vunpack.c.l.b16 %v145
  %v530 = vunpack.c.l.b16 %v146
  %v531 = vunpack.c.l.b16 %v147
  %v532 = vunpack.c.l.b16 %v148
  %v533 = vunpack.c.l.b16 %v149
  %v534 = vunpack.c.l.b16 %v150
  %v535 = vunpack.c.l.b16 %v151
  %v536 = vunpack.c.l.b16 %v152
  %v537 = vunpack.c.l.b16 %v153
  %v538 = vunpack.c.l.b16 %v154
  %v539 = vunpack.c.l.b16 %v155
  %v540 = vunpack.c.l.b16 %v156
  %v541 = vunpack.c.l.b16 %v157
  %v542 = vunpack.c.l.b16 %v158
  %v543 = vunpack.c.l.b16 %v159
  %v544 = vunpack.c.l.b16 %v160
  %v545 = vunpack.c.l.b16 %v161
  %v546 = vunpack.c.l.b16 %v162
  %v547 = vunpack.c.l.b16 %v163
  %v548 = vunpack.c.l.b16 %v164
  %v549 = vunpack.c.l.b16 %v165
  %v550 = vunpack.c.l.b16 %v166
  %v551 = vunpack.c.l.b16 %v167
  %v552 = vunpack.c.l.b16 %v168
  %v553 = vunpack.c.l.b16 %v169
  %v554 = vunpack.c.l.b16 %v170
  %v555 = vunpack.c.l.b16 %v171
  %v556 = vunpack.c.l.b16 %v172
  %v557 = vunpack.c.l.b16 %v173
  %v558 = vunpack.c.l.b16 %v174
  %v559 = vunpack.c.l.b16 %v175
  %v560 = vunpack.c.l.b16 %v176
  %v561 = vunpack.c.l.b16 %v177
  %v562 = vpack.c.b16 %v419, %v418
  %v563 = vpack.c.b16 %v421, %v420
  %v564 = vpack.c.b16 %v423, %v422
  %v565 = vpack.c.b16 %v425, %v424
  %v566 = vpack.c.b16 %v427, %v426
  %v567 = vpack.c.b16 %v429, %v428
  %v568 = vpack.c.b16 %v431, %v430
  %v569 = vpack.c.b16 %v433, %v432
  %v570 = vpack.c.b16 %v435, %v434
  %v571 = vpack.c.b16 %v437, %v436
  %v572 = vpack.c.b16 %v439, %v438
  %v573 = vpack.c.b16 %v441, %v440
  %v574 = vpack.c.b16 %v443, %v442
  %v575 = vpack.c.b16 %v445, %v444
  %v576 = vpack.c.b16 %v447, %v446
  %v577 = vpack.c.b16 %v449, %v448
  %v578 = vpack.c.b16 %v451, %v450
  %v579 = vpack.c.b16 %v453, %v452
  %v580 = vpack.c.b16 %v455, %v454
  %v581 = vpack.c.b16 %v457, %v456
  %v582 = vpack.c.b16 %v459, %v458
  %v583 = vpack.c.b16 %v461, %v460
  %v584 = vpack.c.b16 %v463, %v462
  %v585 = vpack.c.b16 %v465, %v464
  %v586 = vpack.c.b16 %v467, %v466
  %v587 = vpack.c.b16 %v469, %v468
  %v588 = vpack.c.b16 %v471, %v470
  %v589 = vpack.c.b16 %v473, %v472
  %v590 = vpack.c.b16 %v475, %v474
  %v591 = vpack.c.b16 %v477, %v476
  %v592 = vpack.c.b16 %v479, %v478
  %v593 = vpack.c.b16 %v481, %v480
  %v594 = vpack.c.b16 %v483, %v482
  %v595 = vpack.c.b16 %v485, %v484
  %v596 = vpack.c.b16 %v487, %v486
  %v597 = vpack.c.b16 %v489, %v488
  %v598 = vpack.c.b16 %v491, %v490
  %v599 = vpack.c.b16 %v493, %v492
  %v600 = vpack.c.b16 %v495, %v494
  %v601 = vpack.c.b16 %v497, %v496
  %v602 = vpack.c.b16 %v499, %v498
  %v603 = vpack.c.b16 %v501, %v500
  %v604 = vpack.c.b16 %v503, %v502
  %v605 = vpack.c.b16 %v505, %v504
  %v606 = vpack.c.b16 %v507, %v506
  %v607 = vpack.c.b16 %v509, %v508
  %v608 = vpack.c.b16 %v511, %v510
  %v609 = vpack.c.b16 %v513, %v512
  %v610 = vpack.c.b16 %v515, %v514
  %v611 = vpack.c.b16 %v517, %v516
  %v612 = vpack.c.b16 %v519, %v518
  %v613 = vpack.c.b16 %v521, %v520
  %v614 = vpack.c.b16 %v523, %v522
  %v615 = vpack.c.b16 %v525, %v524
  %v616 = vpack.c.b16 %v527, %v526
  %v617 = vpack.c.b16 %v529, %v528
  %v618 = vpack.c.b16 %v531, %v530
  %v619 = vpack.c.b16 %v533, %v532
  %v620 = vpack.c.b16 %v535, %v534
  %v621 = vpack.c.b16 %v537, %v536
  %v622 = vpack.c.b16 %v539, %v538
  %v623 = vpack.c.b16 %v541, %v540
  %v624 = vpack.c.b16 %v543, %v542
  %v625 = vpack.c.b16 %v545, %v544
  %v626 = vpack.c.b16 %v547, %v546
  %v627 = vpack.c.b16 %v549, %v548
  %v628 = vpack.c.b16 %v551, %v550
  %v629 = vpack.c.b16 %v553, %v552
  %v630 = vpack.c.b16 %v555, %v554
  %v631 = vpack.c.b16 %v557, %v556
  %v632 = vpack.c.b16 %v559, %v558
  %v633 = vpack.c.b16 %v561, %v560
  %706 = vmatpush.bf16.msra.mxu0 %v569
  %707 = vmatpush.bf16.msra.mxu0 %v568
  %708 = vmatpush.bf16.msra.mxu0 %v567
  %709 = vmatpush.bf16.msra.mxu0 %v566
  %710 = vmatpush.bf16.msra.mxu0 %v565
  %711 = vmatpush.bf16.msra.mxu0 %v564
  %712 = vmatpush.bf16.msra.mxu0 %v563
  %713 = vmatpush.bf16.msra.mxu0 %v562
  %714 = vmatmul.bf16.gmra.mxu0 %v238
  %v715 = vpop.f32.mrf.mxu0
  %v716 = vadd.f32 %v180, %v715
  %v717 = vpop.f32.mrf.mxu0
  %v718 = vadd.f32 %v180, %v717
  %719 = vmatmul.bf16.gmra.mxu0 %v247
  %v720 = vpop.f32.mrf.mxu0
  %v721 = vadd.f32 %v180, %v720
  %v722 = vpop.f32.mrf.mxu0
  %v723 = vadd.f32 %v180, %v722
  %724 = vdwg.mxu0
  %725 = vmatpush.bf16.msra.mxu0 %v577
  %726 = vmatpush.bf16.msra.mxu0 %v576
  %727 = vmatpush.bf16.msra.mxu0 %v575
  %728 = vmatpush.bf16.msra.mxu0 %v574
  %729 = vmatpush.bf16.msra.mxu0 %v573
  %730 = vmatpush.bf16.msra.mxu0 %v572
  %731 = vmatpush.bf16.msra.mxu0 %v571
  %732 = vmatpush.bf16.msra.mxu0 %v570
  %733 = vmatmul.bf16.gmra.mxu0 %v239
  %v734 = vpop.f32.mrf.mxu0
  %v735 = vadd.f32 %v716, %v734
  %v736 = vpop.f32.mrf.mxu0
  %v737 = vadd.f32 %v718, %v736
  %738 = vmatmul.bf16.gmra.mxu0 %v248
  %v739 = vpop.f32.mrf.mxu0
  %v740 = vadd.f32 %v721, %v739
  %v741 = vpop.f32.mrf.mxu0
  %v742 = vadd.f32 %v723, %v741
  %743 = vdwg.mxu0
  %744 = vmatpush.bf16.msra.mxu0 %v585
  %745 = vmatpush.bf16.msra.mxu0 %v584
  %746 = vmatpush.bf16.msra.mxu0 %v583
  %747 = vmatpush.bf16.msra.mxu0 %v582
  %748 = vmatpush.bf16.msra.mxu0 %v581
  %749 = vmatpush.bf16.msra.mxu0 %v580
  %750 = vmatpush.bf16.msra.mxu0 %v579
  %751 = vmatpush.bf16.msra.mxu0 %v578
  %752 = vmatmul.bf16.gmra.mxu0 %v240
  %v753 = vpop.f32.mrf.mxu0
  %v754 = vadd.f32 %v735, %v753
  %v755 = vpop.f32.mrf.mxu0
  %v756 = vadd.f32 %v737, %v755
  %757 = vmatmul.bf16.gmra.mxu0 %v249
  %v758 = vpop.f32.mrf.mxu0
  %v759 = vadd.f32 %v740, %v758
  %v760 = vpop.f32.mrf.mxu0
  %v761 = vadd.f32 %v742, %v760
  %762 = vdwg.mxu0
  %763 = vmatpush.bf16.msra.mxu0 %v593
  %764 = vmatpush.bf16.msra.mxu0 %v592
  %765 = vmatpush.bf16.msra.mxu0 %v591
  %766 = vmatpush.bf16.msra.mxu0 %v590
  %767 = vmatpush.bf16.msra.mxu0 %v589
  %768 = vmatpush.bf16.msra.mxu0 %v588
  %769 = vmatpush.bf16.msra.mxu0 %v587
  %770 = vmatpush.bf16.msra.mxu0 %v586
  %771 = vmatmul.bf16.gmra.mxu0 %v241
  %v772 = vpop.f32.mrf.mxu0
  %v773 = vadd.f32 %v754, %v772
  %v774 = vpop.f32.mrf.mxu0
  %v775 = vadd.f32 %v756, %v774
  %776 = vmatmul.bf16.gmra.mxu0 %v250
  %v777 = vpop.f32.mrf.mxu0
  %v778 = vadd.f32 %v759, %v777
  %v779 = vpop.f32.mrf.mxu0
  %v780 = vadd.f32 %v761, %v779
  %781 = vdwg.mxu0
  %782 = vmatpush.bf16.msra.mxu0 %v601
  %783 = vmatpush.bf16.msra.mxu0 %v600
  %784 = vmatpush.bf16.msra.mxu0 %v599
  %785 = vmatpush.bf16.msra.mxu0 %v598
  %786 = vmatpush.bf16.msra.mxu0 %v597
  %787 = vmatpush.bf16.msra.mxu0 %v596
  %788 = vmatpush.bf16.msra.mxu0 %v595
  %789 = vmatpush.bf16.msra.mxu0 %v594
  %790 = vmatmul.bf16.gmra.mxu0 %v242
  %v791 = vpop.f32.mrf.mxu0
  %v792 = vadd.f32 %v773, %v791
  %v793 = vpop.f32.mrf.mxu0
  %v794 = vadd.f32 %v775, %v793
  %795 = vmatmul.bf16.gmra.mxu0 %v251
  %v796 = vpop.f32.mrf.mxu0
  %v797 = vadd.f32 %v778, %v796
  %v798 = vpop.f32.mrf.mxu0
  %v799 = vadd.f32 %v780, %v798
  %800 = vdwg.mxu0
  %801 = vmatpush.bf16.msra.mxu0 %v609
  %802 = vmatpush.bf16.msra.mxu0 %v608
  %803 = vmatpush.bf16.msra.mxu0 %v607
  %804 = vmatpush.bf16.msra.mxu0 %v606
  %805 = vmatpush.bf16.msra.mxu0 %v605
  %806 = vmatpush.bf16.msra.mxu0 %v604
  %807 = vmatpush.bf16.msra.mxu0 %v603
  %808 = vmatpush.bf16.msra.mxu0 %v602
  %809 = vmatmul.bf16.gmra.mxu0 %v243
  %v810 = vpop.f32.mrf.mxu0
  %v811 = vadd.f32 %v792, %v810
  %v812 = vpop.f32.mrf.mxu0
  %v813 = vadd.f32 %v794, %v812
  %814 = vmatmul.bf16.gmra.mxu0 %v252
  %v815 = vpop.f32.mrf.mxu0
  %v816 = vadd.f32 %v797, %v815
  %v817 = vpop.f32.mrf.mxu0
  %v818 = vadd.f32 %v799, %v817
  %819 = vdwg.mxu0
  %820 = vmatpush.bf16.msra.mxu0 %v617
  %821 = vmatpush.bf16.msra.mxu0 %v616
  %822 = vmatpush.bf16.msra.mxu0 %v615
  %823 = vmatpush.bf16.msra.mxu0 %v614
  %824 = vmatpush.bf16.msra.mxu0 %v613
  %825 = vmatpush.bf16.msra.mxu0 %v612
  %826 = vmatpush.bf16.msra.mxu0 %v611
  %827 = vmatpush.bf16.msra.mxu0 %v610
  %828 = vmatmul.bf16.gmra.mxu0 %v244
  %v829 = vpop.f32.mrf.mxu0
  %v830 = vadd.f32 %v811, %v829
  %v831 = vpop.f32.mrf.mxu0
  %v832 = vadd.f32 %v813, %v831
  %833 = vmatmul.bf16.gmra.mxu0 %v253
  %v834 = vpop.f32.mrf.mxu0
  %v835 = vadd.f32 %v816, %v834
  %v836 = vpop.f32.mrf.mxu0
  %v837 = vadd.f32 %v818, %v836
  %838 = vdwg.mxu0
  %839 = vmatpush.bf16.msra.mxu0 %v625
  %840 = vmatpush.bf16.msra.mxu0 %v624
  %841 = vmatpush.bf16.msra.mxu0 %v623
  %842 = vmatpush.bf16.msra.mxu0 %v622
  %843 = vmatpush.bf16.msra.mxu0 %v621
  %844 = vmatpush.bf16.msra.mxu0 %v620
  %845 = vmatpush.bf16.msra.mxu0 %v619
  %846 = vmatpush.bf16.msra.mxu0 %v618
  %847 = vmatmul.bf16.gmra.mxu0 %v245
  %v848 = vpop.f32.mrf.mxu0
  %v849 = vadd.f32 %v830, %v848
  %v850 = vpop.f32.mrf.mxu0
  %v851 = vadd.f32 %v832, %v850
  %852 = vmatmul.bf16.gmra.mxu0 %v254
  %v853 = vpop.f32.mrf.mxu0
  %v854 = vadd.f32 %v835, %v853
  %v855 = vpop.f32.mrf.mxu0
  %v856 = vadd.f32 %v837, %v855
  %857 = vdwg.mxu0
  %858 = vmatpush.bf16.msra.mxu0 %v633
  %859 = vmatpush.bf16.msra.mxu0 %v632
  %860 = vmatpush.bf16.msra.mxu0 %v631
  %861 = vmatpush.bf16.msra.mxu0 %v630
  %862 = vmatpush.bf16.msra.mxu0 %v629
  %863 = vmatpush.bf16.msra.mxu0 %v628
  %864 = vmatpush.bf16.msra.mxu0 %v627
  %865 = vmatpush.bf16.msra.mxu0 %v626
  %866 = vmatmul.bf16.gmra.mxu0 %v246
  %v867 = vpop.f32.mrf.mxu0
  %v868 = vadd.f32 %v849, %v867
  %v869 = vpop.f32.mrf.mxu0
  %v870 = vadd.f32 %v851, %v869
  %871 = vmatmul.bf16.gmra.mxu0 %v255
  %v872 = vpop.f32.mrf.mxu0
  %v873 = vadd.f32 %v854, %v872
  %v874 = vpop.f32.mrf.mxu0
  %v875 = vadd.f32 %v856, %v874
  %876 = vdwg.mxu0
  %v877 = vmax.f32 %v868, 0.0
  %v878 = vmax.f32 %v870, 0.0
  %v879 = vmax.f32 %v873, 0.0
  %v880 = vmax.f32 %v875, 0.0
  %v881 = vpack.c.bf16 %v877, %v877
  %v882 = vpack.c.bf16 %v878, %v878
  %v883 = vpack.c.bf16 %v879, %v879
  %v884 = vpack.c.bf16 %v880, %v880
  %885 = vst [vmem:[%s3] sm:$0xf] %v881
  %886 = vst [vmem:[%s3 + $0x4] sm:$0xf] %v882
  %887 = vst [vmem:[%s3 + $0x8] sm:$0xf] %v883
  %888 = vst [vmem:[%s3 + $0xc] sm:$0xf] %v884
  // Predicated region
  $region14: #{regnet_forward.18} parent=0 // pred_check
    _
  $region15: #{regnet_forward.18} parent=0 // pred_check_branch
    %890 = sbr.rel (0) target = $region17
  $region16: #{regnet_forward.18} parent=0 // pred_region
    _
  $region17: #{regnet_forward.18} parent=0 // pred_fallthru
    _
  // Predicated region
  $region18: #{regnet_forward.18} parent=0 // pred_check
    _
  $region19: #{regnet_forward.18} parent=0 // pred_check_branch
    %892 = sbr.rel (0) target = $region21
  $region20: #{regnet_forward.18} parent=0 // pred_region
    _
  $region21: #{regnet_forward.18} parent=0 // pred_fallthru
    _

// kernel: regnet_forward.23
$region0: #{regnet_forward.23}
  #allocation0 [shape = 'u32[]', space=smem, size = 0x4, offset = 0x4, fixed_abs, tag = 'smem constant byte address 0x4 - core index']
  #allocation1 [shape = 'u32[72,128]{1,0:T(1,128)}', space=vmem, size = 0x9000, scoped, tag = 'internal scratch']
  %s0 = inlined_call_operand.vmem [shape: bf16[8,128], index: 0, kind: input, shape index: {}]
  %s1 = inlined_call_operand.vmem [shape: bf16[128,128], index: 1, kind: input, shape index: {}]
  %s2 = inlined_call_operand.vmem [shape: f32[1,128], index: 2, kind: input, shape index: {}]
  %s3 = inlined_call_operand.vmem [shape: bf16[8,128], index: 3, kind: output, shape index: {}]
  %s4 = sld [smem:[#allocation0]]
  $region22: #{regnet_forward.23} parent=0
    _
  %s6 = ssub.s32 1, %s4
  %s7 = scalar_select 0, %s6, %s4
  // Predicated region
  $region2: #{regnet_forward.23} parent=0 // pred_check
    _
  $region3: #{regnet_forward.23} parent=0 // pred_check_branch
    %9 = sbr.rel (0) target = $region5
  $region4: #{regnet_forward.23} parent=0 // pred_region
    _
  $region5: #{regnet_forward.23} parent=0 // pred_fallthru
    _
  // Predicated region
  $region6: #{regnet_forward.23} parent=0 // pred_check
    _
  $region7: #{regnet_forward.23} parent=0 // pred_check_branch
    %11 = sbr.rel (0) target = $region9
  $region8: #{regnet_forward.23} parent=0 // pred_region
    _
  $region9: #{regnet_forward.23} parent=0 // pred_fallthru
    _
  // Predicated region
  $region10: #{regnet_forward.23} parent=0 // pred_check
    _
  $region11: #{regnet_forward.23} parent=0 // pred_check_branch
    %13 = sbr.rel (0) target = $region13
  $region12: #{regnet_forward.23} parent=0 // pred_region
    _
  $region13: #{regnet_forward.23} parent=0 // pred_fallthru
    _
  %v14 = vld [vmem:[%s0] sm:$0xf]
  %v15 = vld [vmem:[%s1] sm:$0xf]
  %v16 = vld [vmem:[%s1 + $0x4] sm:$0xf]
  %v17 = vld [vmem:[%s1 + $0x8] sm:$0xf]
  %v18 = vld [vmem:[%s1 + $0xc] sm:$0xf]
  %v19 = vld [vmem:[%s1 + $0x10] sm:$0xf]
  %v20 = vld [vmem:[%s1 + $0x14] sm:$0xf]
  %v21 = vld [vmem:[%s1 + $0x18] sm:$0xf]
  %v22 = vld [vmem:[%s1 + $0x1c] sm:$0xf]
  %v23 = vld [vmem:[%s1 + $0x20] sm:$0xf]
  %v24 = vld [vmem:[%s1 + $0x24] sm:$0xf]
  %v25 = vld [vmem:[%s1 + $0x28] sm:$0xf]
  %v26 = vld [vmem:[%s1 + $0x2c] sm:$0xf]
  %v27 = vld [vmem:[%s1 + $0x30] sm:$0xf]
  %v28 = vld [vmem:[%s1 + $0x34] sm:$0xf]
  %v29 = vld [vmem:[%s1 + $0x38] sm:$0xf]
  %v30 = vld [vmem:[%s1 + $0x3c] sm:$0xf]
  %v31 = vld [vmem:[%s2] sm:$0x1]
  %v33 = vperm.slane %v31, 0
  %v51 = vunpack.c.l.b16 %v15
  %v52 = vunpack.c.l.b16 %v16
  %v53 = vunpack.c.l.b16 %v17
  %v54 = vunpack.c.l.b16 %v18
  %v55 = vunpack.c.l.b16 %v19
  %v56 = vunpack.c.l.b16 %v20
  %v57 = vunpack.c.l.b16 %v21
  %v58 = vunpack.c.l.b16 %v22
  %v59 = vunpack.c.l.b16 %v23
  %v60 = vunpack.c.l.b16 %v24
  %v61 = vunpack.c.l.b16 %v25
  %v62 = vunpack.c.l.b16 %v26
  %v63 = vunpack.c.l.b16 %v27
  %v64 = vunpack.c.l.b16 %v28
  %v65 = vunpack.c.l.b16 %v29
  %v66 = vunpack.c.l.b16 %v30
  %v67 = vpack.c.b16 %v52, %v51
  %v68 = vpack.c.b16 %v54, %v53
  %v69 = vpack.c.b16 %v56, %v55
  %v70 = vpack.c.b16 %v58, %v57
  %v71 = vpack.c.b16 %v60, %v59
  %v72 = vpack.c.b16 %v62, %v61
  %v73 = vpack.c.b16 %v64, %v63
  %v74 = vpack.c.b16 %v66, %v65
  %83 = vmatpush.bf16.msra.mxu0 %v74
  %84 = vmatpush.bf16.msra.mxu0 %v73
  %85 = vmatpush.bf16.msra.mxu0 %v72
  %86 = vmatpush.bf16.msra.mxu0 %v71
  %87 = vmatpush.bf16.msra.mxu0 %v70
  %88 = vmatpush.bf16.msra.mxu0 %v69
  %89 = vmatpush.bf16.msra.mxu0 %v68
  %90 = vmatpush.bf16.msra.mxu0 %v67
  %91 = vmatmul.bf16.gmra.mxu0 %v14
  %v92 = vpop.f32.mrf.mxu0
  %v93 = vadd.f32 %v33, %v92
  %v94 = vpop.f32.mrf.mxu0
  %95 = vdwg.mxu0
  %v96 = vmax.f32 %v93, 0.0
  %v97 = vpack.c.bf16 %v96, %v96
  %98 = vst [vmem:[%s3] sm:$0xf] %v97
  // Predicated region
  $region14: #{regnet_forward.23} parent=0 // pred_check
    _
  $region15: #{regnet_forward.23} parent=0 // pred_check_branch
    %100 = sbr.rel (0) target = $region17
  $region16: #{regnet_forward.23} parent=0 // pred_region
    _
  $region17: #{regnet_forward.23} parent=0 // pred_fallthru
    _
  // Predicated region
  $region18: #{regnet_forward.23} parent=0 // pred_check
    _
  $region19: #{regnet_forward.23} parent=0 // pred_check_branch
    %102 = sbr.rel (0) target = $region21
  $region20: #{regnet_forward.23} parent=0 // pred_region
    _
  $region21: #{regnet_forward.23} parent=0 // pred_fallthru
    _

// kernel: regnet_forward.22
$region0: #{regnet_forward.22}
  #allocation0 [shape = 'u32[]', space=smem, size = 0x4, offset = 0x4, fixed_abs, tag = 'smem constant byte address 0x4 - core index']
  #allocation1 [shape = 'u32[72,128]{1,0:T(1,128)}', space=vmem, size = 0x9000, scoped, tag = 'internal scratch']
  %s0 = inlined_call_operand.vmem [shape: bf16[8,128], index: 0, kind: input, shape index: {}]
  %s1 = inlined_call_operand.vmem [shape: bf16[128,128], index: 1, kind: input, shape index: {}]
  %s2 = inlined_call_operand.vmem [shape: f32[1,128], index: 2, kind: input, shape index: {}]
  %s3 = inlined_call_operand.vmem [shape: bf16[8,128], index: 3, kind: input, shape index: {}]
  %s4 = inlined_call_operand.vmem [shape: bf16[128,128], index: 4, kind: input, shape index: {}]
  %s5 = inlined_call_operand.vmem [shape: bf16[8,128], index: 5, kind: output, shape index: {}]
  %s6 = sld [smem:[#allocation0]]
  $region30: #{regnet_forward.22} parent=0
    _
  %s8 = ssub.s32 1, %s6
  %s9 = scalar_select 0, %s8, %s6
  // Predicated region
  $region2: #{regnet_forward.22} parent=0 // pred_check
    _
  $region3: #{regnet_forward.22} parent=0 // pred_check_branch
    %11 = sbr.rel (0) target = $region5
  $region4: #{regnet_forward.22} parent=0 // pred_region
    _
  $region5: #{regnet_forward.22} parent=0 // pred_fallthru
    _
  // Predicated region
  $region6: #{regnet_forward.22} parent=0 // pred_check
    _
  $region7: #{regnet_forward.22} parent=0 // pred_check_branch
    %13 = sbr.rel (0) target = $region9
  $region8: #{regnet_forward.22} parent=0 // pred_region
    _
  $region9: #{regnet_forward.22} parent=0 // pred_fallthru
    _
  // Predicated region
  $region10: #{regnet_forward.22} parent=0 // pred_check
    _
  $region11: #{regnet_forward.22} parent=0 // pred_check_branch
    %15 = sbr.rel (0) target = $region13
  $region12: #{regnet_forward.22} parent=0 // pred_region
    _
  $region13: #{regnet_forward.22} parent=0 // pred_fallthru
    _
  // Predicated region
  $region14: #{regnet_forward.22} parent=0 // pred_check
    _
  $region15: #{regnet_forward.22} parent=0 // pred_check_branch
    %17 = sbr.rel (0) target = $region17
  $region16: #{regnet_forward.22} parent=0 // pred_region
    _
  $region17: #{regnet_forward.22} parent=0 // pred_fallthru
    _
  // Predicated region
  $region18: #{regnet_forward.22} parent=0 // pred_check
    _
  $region19: #{regnet_forward.22} parent=0 // pred_check_branch
    %19 = sbr.rel (0) target = $region21
  $region20: #{regnet_forward.22} parent=0 // pred_region
    _
  $region21: #{regnet_forward.22} parent=0 // pred_fallthru
    _
  %v20 = vld [vmem:[%s0] sm:$0xf]
  %v21 = vld [vmem:[%s1] sm:$0xf]
  %v22 = vld [vmem:[%s1 + $0x4] sm:$0xf]
  %v23 = vld [vmem:[%s1 + $0x8] sm:$0xf]
  %v24 = vld [vmem:[%s1 + $0xc] sm:$0xf]
  %v25 = vld [vmem:[%s1 + $0x10] sm:$0xf]
  %v26 = vld [vmem:[%s1 + $0x14] sm:$0xf]
  %v27 = vld [vmem:[%s1 + $0x18] sm:$0xf]
  %v28 = vld [vmem:[%s1 + $0x1c] sm:$0xf]
  %v29 = vld [vmem:[%s1 + $0x20] sm:$0xf]
  %v30 = vld [vmem:[%s1 + $0x24] sm:$0xf]
  %v31 = vld [vmem:[%s1 + $0x28] sm:$0xf]
  %v32 = vld [vmem:[%s1 + $0x2c] sm:$0xf]
  %v33 = vld [vmem:[%s1 + $0x30] sm:$0xf]
  %v34 = vld [vmem:[%s1 + $0x34] sm:$0xf]
  %v35 = vld [vmem:[%s1 + $0x38] sm:$0xf]
  %v36 = vld [vmem:[%s1 + $0x3c] sm:$0xf]
  %v37 = vld [vmem:[%s3] sm:$0xf]
  %v38 = vld [vmem:[%s4] sm:$0xf]
  %v39 = vld [vmem:[%s4 + $0x4] sm:$0xf]
  %v40 = vld [vmem:[%s4 + $0x8] sm:$0xf]
  %v41 = vld [vmem:[%s4 + $0xc] sm:$0xf]
  %v42 = vld [vmem:[%s4 + $0x10] sm:$0xf]
  %v43 = vld [vmem:[%s4 + $0x14] sm:$0xf]
  %v44 = vld [vmem:[%s4 + $0x18] sm:$0xf]
  %v45 = vld [vmem:[%s4 + $0x1c] sm:$0xf]
  %v46 = vld [vmem:[%s4 + $0x20] sm:$0xf]
  %v47 = vld [vmem:[%s4 + $0x24] sm:$0xf]
  %v48 = vld [vmem:[%s4 + $0x28] sm:$0xf]
  %v49 = vld [vmem:[%s4 + $0x2c] sm:$0xf]
  %v50 = vld [vmem:[%s4 + $0x30] sm:$0xf]
  %v51 = vld [vmem:[%s4 + $0x34] sm:$0xf]
  %v52 = vld [vmem:[%s4 + $0x38] sm:$0xf]
  %v53 = vld [vmem:[%s4 + $0x3c] sm:$0xf]
  %v70 = vunpack.c.l.b16 %v38
  %v71 = vunpack.c.l.b16 %v39
  %v72 = vunpack.c.l.b16 %v40
  %v73 = vunpack.c.l.b16 %v41
  %v74 = vunpack.c.l.b16 %v42
  %v75 = vunpack.c.l.b16 %v43
  %v76 = vunpack.c.l.b16 %v44
  %v77 = vunpack.c.l.b16 %v45
  %v78 = vunpack.c.l.b16 %v46
  %v79 = vunpack.c.l.b16 %v47
  %v80 = vunpack.c.l.b16 %v48
  %v81 = vunpack.c.l.b16 %v49
  %v82 = vunpack.c.l.b16 %v50
  %v83 = vunpack.c.l.b16 %v51
  %v84 = vunpack.c.l.b16 %v52
  %v85 = vunpack.c.l.b16 %v53
  %v86 = vpack.c.b16 %v71, %v70
  %v87 = vpack.c.b16 %v73, %v72
  %v88 = vpack.c.b16 %v75, %v74
  %v89 = vpack.c.b16 %v77, %v76
  %v90 = vpack.c.b16 %v79, %v78
  %v91 = vpack.c.b16 %v81, %v80
  %v92 = vpack.c.b16 %v83, %v82
  %v93 = vpack.c.b16 %v85, %v84
  %102 = vmatpush.bf16.msra.mxu0 %v93
  %103 = vmatpush.bf16.msra.mxu0 %v92
  %104 = vmatpush.bf16.msra.mxu0 %v91
  %105 = vmatpush.bf16.msra.mxu0 %v90
  %106 = vmatpush.bf16.msra.mxu0 %v89
  %107 = vmatpush.bf16.msra.mxu0 %v88
  %108 = vmatpush.bf16.msra.mxu0 %v87
  %109 = vmatpush.bf16.msra.mxu0 %v86
  %110 = vmatmul.bf16.gmra.mxu0 %v37
  %v111 = vpop.f32.mrf.mxu0
  %v112 = vadd.f32 0.0, %v111
  %v113 = vpop.f32.mrf.mxu0
  %114 = vdwg.mxu0
  %v131 = vunpack.c.l.b16 %v21
  %v132 = vunpack.c.l.b16 %v22
  %v133 = vunpack.c.l.b16 %v23
  %v134 = vunpack.c.l.b16 %v24
  %v135 = vunpack.c.l.b16 %v25
  %v136 = vunpack.c.l.b16 %v26
  %v137 = vunpack.c.l.b16 %v27
  %v138 = vunpack.c.l.b16 %v28
  %v139 = vunpack.c.l.b16 %v29
  %v140 = vunpack.c.l.b16 %v30
  %v141 = vunpack.c.l.b16 %v31
  %v142 = vunpack.c.l.b16 %v32
  %v143 = vunpack.c.l.b16 %v33
  %v144 = vunpack.c.l.b16 %v34
  %v145 = vunpack.c.l.b16 %v35
  %v146 = vunpack.c.l.b16 %v36
  %v147 = vpack.c.b16 %v132, %v131
  %v148 = vpack.c.b16 %v134, %v133
  %v149 = vpack.c.b16 %v136, %v135
  %v150 = vpack.c.b16 %v138, %v137
  %v151 = vpack.c.b16 %v140, %v139
  %v152 = vpack.c.b16 %v142, %v141
  %v153 = vpack.c.b16 %v144, %v143
  %v154 = vpack.c.b16 %v146, %v145
  %163 = vmatpush.bf16.msra.mxu0 %v154
  %164 = vmatpush.bf16.msra.mxu0 %v153
  %165 = vmatpush.bf16.msra.mxu0 %v152
  %166 = vmatpush.bf16.msra.mxu0 %v151
  %167 = vmatpush.bf16.msra.mxu0 %v150
  %168 = vmatpush.bf16.msra.mxu0 %v149
  %169 = vmatpush.bf16.msra.mxu0 %v148
  %170 = vmatpush.bf16.msra.mxu0 %v147
  %171 = vmatmul.bf16.gmra.mxu0 %v20
  %v172 = vpop.f32.mrf.mxu0
  %v173 = vadd.f32 %v112, %v172
  %v174 = vpop.f32.mrf.mxu0
  %175 = vdwg.mxu0
  %v176 = vld [vmem:[%s2] sm:$0x1]
  %v178 = vperm.slane %v176, 0
  %v180 = vadd.f32 %v173, %v178
  %v181 = vmax.f32 %v180, 0.0
  %v182 = vpack.c.bf16 %v181, %v181
  %183 = vst [vmem:[%s5] sm:$0xf] %v182
  // Predicated region
  $region22: #{regnet_forward.22} parent=0 // pred_check
    _
  $region23: #{regnet_forward.22} parent=0 // pred_check_branch
    %185 = sbr.rel (0) target = $region25
  $region24: #{regnet_forward.22} parent=0 // pred_region
    _
  $region25: #{regnet_forward.22} parent=0 // pred_fallthru
    _
  // Predicated region
  $region26: #{regnet_forward.22} parent=0 // pred_check
    _
  $region27: #{regnet_forward.22} parent=0 // pred_check_branch
    %187 = sbr.rel (0) target = $region29
  $region28: #{regnet_forward.22} parent=0 // pred_region
    _
  $region29: #{regnet_forward.22} parent=0 // pred_fallthru
    _

// kernel: regnet_forward.21
$region0: #{regnet_forward.21}
  #allocation0 [shape = 'u32[]', space=smem, size = 0x4, offset = 0x4, fixed_abs, tag = 'smem constant byte address 0x4 - core index']
  #allocation1 [shape = 'u32[72,128]{1,0:T(1,128)}', space=vmem, size = 0x9000, scoped, tag = 'internal scratch']
  %s0 = inlined_call_operand.vmem [shape: bf16[8,1152], index: 0, kind: input, shape index: {}]
  %s1 = inlined_call_operand.vmem [shape: bf16[1152,128], index: 1, kind: input, shape index: {}]
  %s2 = inlined_call_operand.vmem [shape: f32[1,128], index: 2, kind: input, shape index: {}]
  %s3 = inlined_call_operand.vmem [shape: bf16[8,128], index: 3, kind: output, shape index: {}]
  %s4 = sld [smem:[#allocation0]]
  $region22: #{regnet_forward.21} parent=0
    _
  %s6 = ssub.s32 1, %s4
  %s7 = scalar_select 0, %s6, %s4
  // Predicated region
  $region2: #{regnet_forward.21} parent=0 // pred_check
    _
  $region3: #{regnet_forward.21} parent=0 // pred_check_branch
    %9 = sbr.rel (0) target = $region5
  $region4: #{regnet_forward.21} parent=0 // pred_region
    _
  $region5: #{regnet_forward.21} parent=0 // pred_fallthru
    _
  // Predicated region
  $region6: #{regnet_forward.21} parent=0 // pred_check
    _
  $region7: #{regnet_forward.21} parent=0 // pred_check_branch
    %11 = sbr.rel (0) target = $region9
  $region8: #{regnet_forward.21} parent=0 // pred_region
    _
  $region9: #{regnet_forward.21} parent=0 // pred_fallthru
    _
  // Predicated region
  $region10: #{regnet_forward.21} parent=0 // pred_check
    _
  $region11: #{regnet_forward.21} parent=0 // pred_check_branch
    %13 = sbr.rel (0) target = $region13
  $region12: #{regnet_forward.21} parent=0 // pred_region
    _
  $region13: #{regnet_forward.21} parent=0 // pred_fallthru
    _
  %v14 = vld [vmem:[%s0] sm:$0xff]
  %v15 = vld [vmem:[%s0 + $0x8] sm:$0xff]
  %v16 = vld [vmem:[%s0 + $0x10] sm:$0xff]
  %v17 = vld [vmem:[%s0 + $0x18] sm:$0xff]
  %v18 = vld [vmem:[%s0 + $0x20] sm:$0xf]
  %v19 = vld [vmem:[%s1] sm:$0xf]
  %v20 = vld [vmem:[%s1 + $0x4] sm:$0xf]
  %v21 = vld [vmem:[%s1 + $0x8] sm:$0xf]
  %v22 = vld [vmem:[%s1 + $0xc] sm:$0xf]
  %v23 = vld [vmem:[%s1 + $0x10] sm:$0xf]
  %v24 = vld [vmem:[%s1 + $0x14] sm:$0xf]
  %v25 = vld [vmem:[%s1 + $0x18] sm:$0xf]
  %v26 = vld [vmem:[%s1 + $0x1c] sm:$0xf]
  %v27 = vld [vmem:[%s1 + $0x20] sm:$0xf]
  %v28 = vld [vmem:[%s1 + $0x24] sm:$0xf]
  %v29 = vld [vmem:[%s1 + $0x28] sm:$0xf]
  %v30 = vld [vmem:[%s1 + $0x2c] sm:$0xf]
  %v31 = vld [vmem:[%s1 + $0x30] sm:$0xf]
  %v32 = vld [vmem:[%s1 + $0x34] sm:$0xf]
  %v33 = vld [vmem:[%s1 + $0x38] sm:$0xf]
  %v34 = vld [vmem:[%s1 + $0x3c] sm:$0xf]
  %v35 = vld [vmem:[%s1 + $0x40] sm:$0xf]
  %v36 = vld [vmem:[%s1 + $0x44] sm:$0xf]
  %v37 = vld [vmem:[%s1 + $0x48] sm:$0xf]
  %v38 = vld [vmem:[%s1 + $0x4c] sm:$0xf]
  %v39 = vld [vmem:[%s1 + $0x50] sm:$0xf]
  %v40 = vld [vmem:[%s1 + $0x54] sm:$0xf]
  %v41 = vld [vmem:[%s1 + $0x58] sm:$0xf]
  %v42 = vld [vmem:[%s1 + $0x5c] sm:$0xf]
  %v43 = vld [vmem:[%s1 + $0x60] sm:$0xf]
  %v44 = vld [vmem:[%s1 + $0x64] sm:$0xf]
  %v45 = vld [vmem:[%s1 + $0x68] sm:$0xf]
  %v46 = vld [vmem:[%s1 + $0x6c] sm:$0xf]
  %v47 = vld [vmem:[%s1 + $0x70] sm:$0xf]
  %v48 = vld [vmem:[%s1 + $0x74] sm:$0xf]
  %v49 = vld [vmem:[%s1 + $0x78] sm:$0xf]
  %v50 = vld [vmem:[%s1 + $0x7c] sm:$0xf]
  %v51 = vld [vmem:[%s1 + $0x80] sm:$0xf]
  %v52 = vld [vmem:[%s1 + $0x84] sm:$0xf]
  %v53 = vld [vmem:[%s1 + $0x88] sm:$0xf]
  %v54 = vld [vmem:[%s1 + $0x8c] sm:$0xf]
  %v55 = vld [vmem:[%s1 + $0x90] sm:$0xf]
  %v56 = vld [vmem:[%s1 + $0x94] sm:$0xf]
  %v57 = vld [vmem:[%s1 + $0x98] sm:$0xf]
  %v58 = vld [vmem:[%s1 + $0x9c] sm:$0xf]
  %v59 = vld [vmem:[%s1 + $0xa0] sm:$0xf]
  %v60 = vld [vmem:[%s1 + $0xa4] sm:$0xf]
  %v61 = vld [vmem:[%s1 + $0xa8] sm:$0xf]
  %v62 = vld [vmem:[%s1 + $0xac] sm:$0xf]
  %v63 = vld [vmem:[%s1 + $0xb0] sm:$0xf]
  %v64 = vld [vmem:[%s1 + $0xb4] sm:$0xf]
  %v65 = vld [vmem:[%s1 + $0xb8] sm:$0xf]
  %v66 = vld [vmem:[%s1 + $0xbc] sm:$0xf]
  %v67 = vld [vmem:[%s1 + $0xc0] sm:$0xf]
  %v68 = vld [vmem:[%s1 + $0xc4] sm:$0xf]
  %v69 = vld [vmem:[%s1 + $0xc8] sm:$0xf]
  %v70 = vld [vmem:[%s1 + $0xcc] sm:$0xf]
  %v71 = vld [vmem:[%s1 + $0xd0] sm:$0xf]
  %v72 = vld [vmem:[%s1 + $0xd4] sm:$0xf]
  %v73 = vld [vmem:[%s1 + $0xd8] sm:$0xf]
  %v74 = vld [vmem:[%s1 + $0xdc] sm:$0xf]
  %v75 = vld [vmem:[%s1 + $0xe0] sm:$0xf]
  %v76 = vld [vmem:[%s1 + $0xe4] sm:$0xf]
  %v77 = vld [vmem:[%s1 + $0xe8] sm:$0xf]
  %v78 = vld [vmem:[%s1 + $0xec] sm:$0xf]
  %v79 = vld [vmem:[%s1 + $0xf0] sm:$0xf]
  %v80 = vld [vmem:[%s1 + $0xf4] sm:$0xf]
  %v81 = vld [vmem:[%s1 + $0xf8] sm:$0xf]
  %v82 = vld [vmem:[%s1 + $0xfc] sm:$0xf]
  %v83 = vld [vmem:[%s1 + $0x100] sm:$0xf]
  %v84 = vld [vmem:[%s1 + $0x104] sm:$0xf]
  %v85 = vld [vmem:[%s1 + $0x108] sm:$0xf]
  %v86 = vld [vmem:[%s1 + $0x10c] sm:$0xf]
  %v87 = vld [vmem:[%s1 + $0x110] sm:$0xf]
  %v88 = vld [vmem:[%s1 + $0x114] sm:$0xf]
  %v89 = vld [vmem:[%s1 + $0x118] sm:$0xf]
  %v90 = vld [vmem:[%s1 + $0x11c] sm:$0xf]
  %v91 = vld [vmem:[%s1 + $0x120] sm:$0xf]
  %v92 = vld [vmem:[%s1 + $0x124] sm:$0xf]
  %v93 = vld [vmem:[%s1 + $0x128] sm:$0xf]
  %v94 = vld [vmem:[%s1 + $0x12c] sm:$0xf]
  %v95 = vld [vmem:[%s1 + $0x130] sm:$0xf]
  %v96 = vld [vmem:[%s1 + $0x134] sm:$0xf]
  %v97 = vld [vmem:[%s1 + $0x138] sm:$0xf]
  %v98 = vld [vmem:[%s1 + $0x13c] sm:$0xf]
  %v99 = vld [vmem:[%s1 + $0x140] sm:$0xf]
  %v100 = vld [vmem:[%s1 + $0x144] sm:$0xf]
  %v101 = vld [vmem:[%s1 + $0x148] sm:$0xf]
  %v102 = vld [vmem:[%s1 + $0x14c] sm:$0xf]
  %v103 = vld [vmem:[%s1 + $0x150] sm:$0xf]
  %v104 = vld [vmem:[%s1 + $0x154] sm:$0xf]
  %v105 = vld [vmem:[%s1 + $0x158] sm:$0xf]
  %v106 = vld [vmem:[%s1 + $0x15c] sm:$0xf]
  %v107 = vld [vmem:[%s1 + $0x160] sm:$0xf]
  %v108 = vld [vmem:[%s1 + $0x164] sm:$0xf]
  %v109 = vld [vmem:[%s1 + $0x168] sm:$0xf]
  %v110 = vld [vmem:[%s1 + $0x16c] sm:$0xf]
  %v111 = vld [vmem:[%s1 + $0x170] sm:$0xf]
  %v112 = vld [vmem:[%s1 + $0x174] sm:$0xf]
  %v113 = vld [vmem:[%s1 + $0x178] sm:$0xf]
  %v114 = vld [vmem:[%s1 + $0x17c] sm:$0xf]
  %v115 = vld [vmem:[%s1 + $0x180] sm:$0xf]
  %v116 = vld [vmem:[%s1 + $0x184] sm:$0xf]
  %v117 = vld [vmem:[%s1 + $0x188] sm:$0xf]
  %v118 = vld [vmem:[%s1 + $0x18c] sm:$0xf]
  %v119 = vld [vmem:[%s1 + $0x190] sm:$0xf]
  %v120 = vld [vmem:[%s1 + $0x194] sm:$0xf]
  %v121 = vld [vmem:[%s1 + $0x198] sm:$0xf]
  %v122 = vld [vmem:[%s1 + $0x19c] sm:$0xf]
  %v123 = vld [vmem:[%s1 + $0x1a0] sm:$0xf]
  %v124 = vld [vmem:[%s1 + $0x1a4] sm:$0xf]
  %v125 = vld [vmem:[%s1 + $0x1a8] sm:$0xf]
  %v126 = vld [vmem:[%s1 + $0x1ac] sm:$0xf]
  %v127 = vld [vmem:[%s1 + $0x1b0] sm:$0xf]
  %v128 = vld [vmem:[%s1 + $0x1b4] sm:$0xf]
  %v129 = vld [vmem:[%s1 + $0x1b8] sm:$0xf]
  %v130 = vld [vmem:[%s1 + $0x1bc] sm:$0xf]
  %v131 = vld [vmem:[%s1 + $0x1c0] sm:$0xf]
  %v132 = vld [vmem:[%s1 + $0x1c4] sm:$0xf]
  %v133 = vld [vmem:[%s1 + $0x1c8] sm:$0xf]
  %v134 = vld [vmem:[%s1 + $0x1cc] sm:$0xf]
  %v135 = vld [vmem:[%s1 + $0x1d0] sm:$0xf]
  %v136 = vld [vmem:[%s1 + $0x1d4] sm:$0xf]
  %v137 = vld [vmem:[%s1 + $0x1d8] sm:$0xf]
  %v138 = vld [vmem:[%s1 + $0x1dc] sm:$0xf]
  %v139 = vld [vmem:[%s1 + $0x1e0] sm:$0xf]
  %v140 = vld [vmem:[%s1 + $0x1e4] sm:$0xf]
  %v141 = vld [vmem:[%s1 + $0x1e8] sm:$0xf]
  %v142 = vld [vmem:[%s1 + $0x1ec] sm:$0xf]
  %v143 = vld [vmem:[%s1 + $0x1f0] sm:$0xf]
  %v144 = vld [vmem:[%s1 + $0x1f4] sm:$0xf]
  %v145 = vld [vmem:[%s1 + $0x1f8] sm:$0xf]
  %v146 = vld [vmem:[%s1 + $0x1fc] sm:$0xf]
  %v147 = vld [vmem:[%s1 + $0x200] sm:$0xf]
  %v148 = vld [vmem:[%s1 + $0x204] sm:$0xf]
  %v149 = vld [vmem:[%s1 + $0x208] sm:$0xf]
  %v150 = vld [vmem:[%s1 + $0x20c] sm:$0xf]
  %v151 = vld [vmem:[%s1 + $0x210] sm:$0xf]
  %v152 = vld [vmem:[%s1 + $0x214] sm:$0xf]
  %v153 = vld [vmem:[%s1 + $0x218] sm:$0xf]
  %v154 = vld [vmem:[%s1 + $0x21c] sm:$0xf]
  %v155 = vld [vmem:[%s1 + $0x220] sm:$0xf]
  %v156 = vld [vmem:[%s1 + $0x224] sm:$0xf]
  %v157 = vld [vmem:[%s1 + $0x228] sm:$0xf]
  %v158 = vld [vmem:[%s1 + $0x22c] sm:$0xf]
  %v159 = vld [vmem:[%s1 + $0x230] sm:$0xf]
  %v160 = vld [vmem:[%s1 + $0x234] sm:$0xf]
  %v161 = vld [vmem:[%s1 + $0x238] sm:$0xf]
  %v162 = vld [vmem:[%s1 + $0x23c] sm:$0xf]
  %v163 = vld [vmem:[%s2] sm:$0x1]
  %v165 = vperm.slane %v163, 0
  %v172 = vunpack.c.l.b16 %v14
  %v173 = vunpack.c.h.b16 %v14
  %v174 = vunpack.c.l.b16 %v15
  %v175 = vunpack.c.h.b16 %v15
  %v176 = vunpack.c.l.b16 %v16
  %v177 = vunpack.c.h.b16 %v16
  %v178 = vunpack.c.l.b16 %v17
  %v179 = vunpack.c.h.b16 %v17
  %v180 = vunpack.c.l.b16 %v18
  %v181 = vpack.c.b16 %v172, %v172
  %v182 = vpack.c.b16 %v173, %v173
  %v183 = vpack.c.b16 %v174, %v174
  %v184 = vpack.c.b16 %v175, %v175
  %v185 = vpack.c.b16 %v176, %v176
  %v186 = vpack.c.b16 %v177, %v177
  %v187 = vpack.c.b16 %v178, %v178
  %v188 = vpack.c.b16 %v179, %v179
  %v189 = vpack.c.b16 %v180, %v180
  %v343 = vunpack.c.l.b16 %v19
  %v344 = vunpack.c.l.b16 %v20
  %v345 = vunpack.c.l.b16 %v21
  %v346 = vunpack.c.l.b16 %v22
  %v347 = vunpack.c.l.b16 %v23
  %v348 = vunpack.c.l.b16 %v24
  %v349 = vunpack.c.l.b16 %v25
  %v350 = vunpack.c.l.b16 %v26
  %v351 = vunpack.c.l.b16 %v27
  %v352 = vunpack.c.l.b16 %v28
  %v353 = vunpack.c.l.b16 %v29
  %v354 = vunpack.c.l.b16 %v30
  %v355 = vunpack.c.l.b16 %v31
  %v356 = vunpack.c.l.b16 %v32
  %v357 = vunpack.c.l.b16 %v33
  %v358 = vunpack.c.l.b16 %v34
  %v359 = vunpack.c.l.b16 %v35
  %v360 = vunpack.c.l.b16 %v36
  %v361 = vunpack.c.l.b16 %v37
  %v362 = vunpack.c.l.b16 %v38
  %v363 = vunpack.c.l.b16 %v39
  %v364 = vunpack.c.l.b16 %v40
  %v365 = vunpack.c.l.b16 %v41
  %v366 = vunpack.c.l.b16 %v42
  %v367 = vunpack.c.l.b16 %v43
  %v368 = vunpack.c.l.b16 %v44
  %v369 = vunpack.c.l.b16 %v45
  %v370 = vunpack.c.l.b16 %v46
  %v371 = vunpack.c.l.b16 %v47
  %v372 = vunpack.c.l.b16 %v48
  %v373 = vunpack.c.l.b16 %v49
  %v374 = vunpack.c.l.b16 %v50
  %v375 = vunpack.c.l.b16 %v51
  %v376 = vunpack.c.l.b16 %v52
  %v377 = vunpack.c.l.b16 %v53
  %v378 = vunpack.c.l.b16 %v54
  %v379 = vunpack.c.l.b16 %v55
  %v380 = vunpack.c.l.b16 %v56
  %v381 = vunpack.c.l.b16 %v57
  %v382 = vunpack.c.l.b16 %v58
  %v383 = vunpack.c.l.b16 %v59
  %v384 = vunpack.c.l.b16 %v60
  %v385 = vunpack.c.l.b16 %v61
  %v386 = vunpack.c.l.b16 %v62
  %v387 = vunpack.c.l.b16 %v63
  %v388 = vunpack.c.l.b16 %v64
  %v389 = vunpack.c.l.b16 %v65
  %v390 = vunpack.c.l.b16 %v66
  %v391 = vunpack.c.l.b16 %v67
  %v392 = vunpack.c.l.b16 %v68
  %v393 = vunpack.c.l.b16 %v69
  %v394 = vunpack.c.l.b16 %v70
  %v395 = vunpack.c.l.b16 %v71
  %v396 = vunpack.c.l.b16 %v72
  %v397 = vunpack.c.l.b16 %v73
  %v398 = vunpack.c.l.b16 %v74
  %v399 = vunpack.c.l.b16 %v75
  %v400 = vunpack.c.l.b16 %v76
  %v401 = vunpack.c.l.b16 %v77
  %v402 = vunpack.c.l.b16 %v78
  %v403 = vunpack.c.l.b16 %v79
  %v404 = vunpack.c.l.b16 %v80
  %v405 = vunpack.c.l.b16 %v81
  %v406 = vunpack.c.l.b16 %v82
  %v407 = vunpack.c.l.b16 %v83
  %v408 = vunpack.c.l.b16 %v84
  %v409 = vunpack.c.l.b16 %v85
  %v410 = vunpack.c.l.b16 %v86
  %v411 = vunpack.c.l.b16 %v87
  %v412 = vunpack.c.l.b16 %v88
  %v413 = vunpack.c.l.b16 %v89
  %v414 = vunpack.c.l.b16 %v90
  %v415 = vunpack.c.l.b16 %v91
  %v416 = vunpack.c.l.b16 %v92
  %v417 = vunpack.c.l.b16 %v93
  %v418 = vunpack.c.l.b16 %v94
  %v419 = vunpack.c.l.b16 %v95
  %v420 = vunpack.c.l.b16 %v96
  %v421 = vunpack.c.l.b16 %v97
  %v422 = vunpack.c.l.b16 %v98
  %v423 = vunpack.c.l.b16 %v99
  %v424 = vunpack.c.l.b16 %v100
  %v425 = vunpack.c.l.b16 %v101
  %v426 = vunpack.c.l.b16 %v102
  %v427 = vunpack.c.l.b16 %v103
  %v428 = vunpack.c.l.b16 %v104
  %v429 = vunpack.c.l.b16 %v105
  %v430 = vunpack.c.l.b16 %v106
  %v431 = vunpack.c.l.b16 %v107
  %v432 = vunpack.c.l.b16 %v108
  %v433 = vunpack.c.l.b16 %v109
  %v434 = vunpack.c.l.b16 %v110
  %v435 = vunpack.c.l.b16 %v111
  %v436 = vunpack.c.l.b16 %v112
  %v437 = vunpack.c.l.b16 %v113
  %v438 = vunpack.c.l.b16 %v114
  %v439 = vunpack.c.l.b16 %v115
  %v440 = vunpack.c.l.b16 %v116
  %v441 = vunpack.c.l.b16 %v117
  %v442 = vunpack.c.l.b16 %v118
  %v443 = vunpack.c.l.b16 %v119
  %v444 = vunpack.c.l.b16 %v120
  %v445 = vunpack.c.l.b16 %v121
  %v446 = vunpack.c.l.b16 %v122
  %v447 = vunpack.c.l.b16 %v123
  %v448 = vunpack.c.l.b16 %v124
  %v449 = vunpack.c.l.b16 %v125
  %v450 = vunpack.c.l.b16 %v126
  %v451 = vunpack.c.l.b16 %v127
  %v452 = vunpack.c.l.b16 %v128
  %v453 = vunpack.c.l.b16 %v129
  %v454 = vunpack.c.l.b16 %v130
  %v455 = vunpack.c.l.b16 %v131
  %v456 = vunpack.c.l.b16 %v132
  %v457 = vunpack.c.l.b16 %v133
  %v458 = vunpack.c.l.b16 %v134
  %v459 = vunpack.c.l.b16 %v135
  %v460 = vunpack.c.l.b16 %v136
  %v461 = vunpack.c.l.b16 %v137
  %v462 = vunpack.c.l.b16 %v138
  %v463 = vunpack.c.l.b16 %v139
  %v464 = vunpack.c.l.b16 %v140
  %v465 = vunpack.c.l.b16 %v141
  %v466 = vunpack.c.l.b16 %v142
  %v467 = vunpack.c.l.b16 %v143
  %v468 = vunpack.c.l.b16 %v144
  %v469 = vunpack.c.l.b16 %v145
  %v470 = vunpack.c.l.b16 %v146
  %v471 = vunpack.c.l.b16 %v147
  %v472 = vunpack.c.l.b16 %v148
  %v473 = vunpack.c.l.b16 %v149
  %v474 = vunpack.c.l.b16 %v150
  %v475 = vunpack.c.l.b16 %v151
  %v476 = vunpack.c.l.b16 %v152
  %v477 = vunpack.c.l.b16 %v153
  %v478 = vunpack.c.l.b16 %v154
  %v479 = vunpack.c.l.b16 %v155
  %v480 = vunpack.c.l.b16 %v156
  %v481 = vunpack.c.l.b16 %v157
  %v482 = vunpack.c.l.b16 %v158
  %v483 = vunpack.c.l.b16 %v159
  %v484 = vunpack.c.l.b16 %v160
  %v485 = vunpack.c.l.b16 %v161
  %v486 = vunpack.c.l.b16 %v162
  %v487 = vpack.c.b16 %v344, %v343
  %v488 = vpack.c.b16 %v346, %v345
  %v489 = vpack.c.b16 %v348, %v347
  %v490 = vpack.c.b16 %v350, %v349
  %v491 = vpack.c.b16 %v352, %v351
  %v492 = vpack.c.b16 %v354, %v353
  %v493 = vpack.c.b16 %v356, %v355
  %v494 = vpack.c.b16 %v358, %v357
  %v495 = vpack.c.b16 %v360, %v359
  %v496 = vpack.c.b16 %v362, %v361
  %v497 = vpack.c.b16 %v364, %v363
  %v498 = vpack.c.b16 %v366, %v365
  %v499 = vpack.c.b16 %v368, %v367
  %v500 = vpack.c.b16 %v370, %v369
  %v501 = vpack.c.b16 %v372, %v371
  %v502 = vpack.c.b16 %v374, %v373
  %v503 = vpack.c.b16 %v376, %v375
  %v504 = vpack.c.b16 %v378, %v377
  %v505 = vpack.c.b16 %v380, %v379
  %v506 = vpack.c.b16 %v382, %v381
  %v507 = vpack.c.b16 %v384, %v383
  %v508 = vpack.c.b16 %v386, %v385
  %v509 = vpack.c.b16 %v388, %v387
  %v510 = vpack.c.b16 %v390, %v389
  %v511 = vpack.c.b16 %v392, %v391
  %v512 = vpack.c.b16 %v394, %v393
  %v513 = vpack.c.b16 %v396, %v395
  %v514 = vpack.c.b16 %v398, %v397
  %v515 = vpack.c.b16 %v400, %v399
  %v516 = vpack.c.b16 %v402, %v401
  %v517 = vpack.c.b16 %v404, %v403
  %v518 = vpack.c.b16 %v406, %v405
  %v519 = vpack.c.b16 %v408, %v407
  %v520 = vpack.c.b16 %v410, %v409
  %v521 = vpack.c.b16 %v412, %v411
  %v522 = vpack.c.b16 %v414, %v413
  %v523 = vpack.c.b16 %v416, %v415
  %v524 = vpack.c.b16 %v418, %v417
  %v525 = vpack.c.b16 %v420, %v419
  %v526 = vpack.c.b16 %v422, %v421
  %v527 = vpack.c.b16 %v424, %v423
  %v528 = vpack.c.b16 %v426, %v425
  %v529 = vpack.c.b16 %v428, %v427
  %v530 = vpack.c.b16 %v430, %v429
  %v531 = vpack.c.b16 %v432, %v431
  %v532 = vpack.c.b16 %v434, %v433
  %v533 = vpack.c.b16 %v436, %v435
  %v534 = vpack.c.b16 %v438, %v437
  %v535 = vpack.c.b16 %v440, %v439
  %v536 = vpack.c.b16 %v442, %v441
  %v537 = vpack.c.b16 %v444, %v443
  %v538 = vpack.c.b16 %v446, %v445
  %v539 = vpack.c.b16 %v448, %v447
  %v540 = vpack.c.b16 %v450, %v449
  %v541 = vpack.c.b16 %v452, %v451
  %v542 = vpack.c.b16 %v454, %v453
  %v543 = vpack.c.b16 %v456, %v455
  %v544 = vpack.c.b16 %v458, %v457
  %v545 = vpack.c.b16 %v460, %v459
  %v546 = vpack.c.b16 %v462, %v461
  %v547 = vpack.c.b16 %v464, %v463
  %v548 = vpack.c.b16 %v466, %v465
  %v549 = vpack.c.b16 %v468, %v467
  %v550 = vpack.c.b16 %v470, %v469
  %v551 = vpack.c.b16 %v472, %v471
  %v552 = vpack.c.b16 %v474, %v473
  %v553 = vpack.c.b16 %v476, %v475
  %v554 = vpack.c.b16 %v478, %v477
  %v555 = vpack.c.b16 %v480, %v479
  %v556 = vpack.c.b16 %v482, %v481
  %v557 = vpack.c.b16 %v484, %v483
  %v558 = vpack.c.b16 %v486, %v485
  %631 = vmatpush.bf16.msra.mxu0 %v494
  %632 = vmatpush.bf16.msra.mxu0 %v493
  %633 = vmatpush.bf16.msra.mxu0 %v492
  %634 = vmatpush.bf16.msra.mxu0 %v491
  %635 = vmatpush.bf16.msra.mxu0 %v490
  %636 = vmatpush.bf16.msra.mxu0 %v489
  %637 = vmatpush.bf16.msra.mxu0 %v488
  %638 = vmatpush.bf16.msra.mxu0 %v487
  %639 = vmatmul.bf16.gmra.mxu0 %v181
  %v640 = vpop.f32.mrf.mxu0
  %v641 = vadd.f32 %v165, %v640
  %v642 = vpop.f32.mrf.mxu0
  %643 = vdwg.mxu0
  %644 = vmatpush.bf16.msra.mxu0 %v502
  %645 = vmatpush.bf16.msra.mxu0 %v501
  %646 = vmatpush.bf16.msra.mxu0 %v500
  %647 = vmatpush.bf16.msra.mxu0 %v499
  %648 = vmatpush.bf16.msra.mxu0 %v498
  %649 = vmatpush.bf16.msra.mxu0 %v497
  %650 = vmatpush.bf16.msra.mxu0 %v496
  %651 = vmatpush.bf16.msra.mxu0 %v495
  %652 = vmatmul.bf16.gmra.mxu0 %v182
  %v653 = vpop.f32.mrf.mxu0
  %v654 = vadd.f32 %v641, %v653
  %v655 = vpop.f32.mrf.mxu0
  %656 = vdwg.mxu0
  %657 = vmatpush.bf16.msra.mxu0 %v510
  %658 = vmatpush.bf16.msra.mxu0 %v509
  %659 = vmatpush.bf16.msra.mxu0 %v508
  %660 = vmatpush.bf16.msra.mxu0 %v507
  %661 = vmatpush.bf16.msra.mxu0 %v506
  %662 = vmatpush.bf16.msra.mxu0 %v505
  %663 = vmatpush.bf16.msra.mxu0 %v504
  %664 = vmatpush.bf16.msra.mxu0 %v503
  %665 = vmatmul.bf16.gmra.mxu0 %v183
  %v666 = vpop.f32.mrf.mxu0
  %v667 = vadd.f32 %v654, %v666
  %v668 = vpop.f32.mrf.mxu0
  %669 = vdwg.mxu0
  %670 = vmatpush.bf16.msra.mxu0 %v518
  %671 = vmatpush.bf16.msra.mxu0 %v517
  %672 = vmatpush.bf16.msra.mxu0 %v516
  %673 = vmatpush.bf16.msra.mxu0 %v515
  %674 = vmatpush.bf16.msra.mxu0 %v514
  %675 = vmatpush.bf16.msra.mxu0 %v513
  %676 = vmatpush.bf16.msra.mxu0 %v512
  %677 = vmatpush.bf16.msra.mxu0 %v511
  %678 = vmatmul.bf16.gmra.mxu0 %v184
  %v679 = vpop.f32.mrf.mxu0
  %v680 = vadd.f32 %v667, %v679
  %v681 = vpop.f32.mrf.mxu0
  %682 = vdwg.mxu0
  %683 = vmatpush.bf16.msra.mxu0 %v526
  %684 = vmatpush.bf16.msra.mxu0 %v525
  %685 = vmatpush.bf16.msra.mxu0 %v524
  %686 = vmatpush.bf16.msra.mxu0 %v523
  %687 = vmatpush.bf16.msra.mxu0 %v522
  %688 = vmatpush.bf16.msra.mxu0 %v521
  %689 = vmatpush.bf16.msra.mxu0 %v520
  %690 = vmatpush.bf16.msra.mxu0 %v519
  %691 = vmatmul.bf16.gmra.mxu0 %v185
  %v692 = vpop.f32.mrf.mxu0
  %v693 = vadd.f32 %v680, %v692
  %v694 = vpop.f32.mrf.mxu0
  %695 = vdwg.mxu0
  %696 = vmatpush.bf16.msra.mxu0 %v534
  %697 = vmatpush.bf16.msra.mxu0 %v533
  %698 = vmatpush.bf16.msra.mxu0 %v532
  %699 = vmatpush.bf16.msra.mxu0 %v531
  %700 = vmatpush.bf16.msra.mxu0 %v530
  %701 = vmatpush.bf16.msra.mxu0 %v529
  %702 = vmatpush.bf16.msra.mxu0 %v528
  %703 = vmatpush.bf16.msra.mxu0 %v527
  %704 = vmatmul.bf16.gmra.mxu0 %v186
  %v705 = vpop.f32.mrf.mxu0
  %v706 = vadd.f32 %v693, %v705
  %v707 = vpop.f32.mrf.mxu0
  %708 = vdwg.mxu0
  %709 = vmatpush.bf16.msra.mxu0 %v542
  %710 = vmatpush.bf16.msra.mxu0 %v541
  %711 = vmatpush.bf16.msra.mxu0 %v540
  %712 = vmatpush.bf16.msra.mxu0 %v539
  %713 = vmatpush.bf16.msra.mxu0 %v538
  %714 = vmatpush.bf16.msra.mxu0 %v537
  %715 = vmatpush.bf16.msra.mxu0 %v536
  %716 = vmatpush.bf16.msra.mxu0 %v535
  %717 = vmatmul.bf16.gmra.mxu0 %v187
  %v718 = vpop.f32.mrf.mxu0
  %v719 = vadd.f32 %v706, %v718
  %v720 = vpop.f32.mrf.mxu0
  %721 = vdwg.mxu0
  %722 = vmatpush.bf16.msra.mxu0 %v550
  %723 = vmatpush.bf16.msra.mxu0 %v549
  %724 = vmatpush.bf16.msra.mxu0 %v548
  %725 = vmatpush.bf16.msra.mxu0 %v547
  %726 = vmatpush.bf16.msra.mxu0 %v546
  %727 = vmatpush.bf16.msra.mxu0 %v545
  %728 = vmatpush.bf16.msra.mxu0 %v544
  %729 = vmatpush.bf16.msra.mxu0 %v543
  %730 = vmatmul.bf16.gmra.mxu0 %v188
  %v731 = vpop.f32.mrf.mxu0
  %v732 = vadd.f32 %v719, %v731
  %v733 = vpop.f32.mrf.mxu0
  %734 = vdwg.mxu0
  %735 = vmatpush.bf16.msra.mxu0 %v558
  %736 = vmatpush.bf16.msra.mxu0 %v557
  %737 = vmatpush.bf16.msra.mxu0 %v556
  %738 = vmatpush.bf16.msra.mxu0 %v555
  %739 = vmatpush.bf16.msra.mxu0 %v554
  %740 = vmatpush.bf16.msra.mxu0 %v553
  %741 = vmatpush.bf16.msra.mxu0 %v552
  %742 = vmatpush.bf16.msra.mxu0 %v551
  %743 = vmatmul.bf16.gmra.mxu0 %v189
  %v744 = vpop.f32.mrf.mxu0
  %v745 = vadd.f32 %v732, %v744
  %v746 = vpop.f32.mrf.mxu0
  %747 = vdwg.mxu0
  %v748 = vmax.f32 %v745, 0.0
  %v749 = vpack.c.bf16 %v748, %v748
  %750 = vst [vmem:[%s3] sm:$0xf] %v749
  // Predicated region
  $region14: #{regnet_forward.21} parent=0 // pred_check
    _
  $region15: #{regnet_forward.21} parent=0 // pred_check_branch
    %752 = sbr.rel (0) target = $region17
  $region16: #{regnet_forward.21} parent=0 // pred_region
    _
  $region17: #{regnet_forward.21} parent=0 // pred_fallthru
    _
  // Predicated region
  $region18: #{regnet_forward.21} parent=0 // pred_check
    _
  $region19: #{regnet_forward.21} parent=0 // pred_check_branch
    %754 = sbr.rel (0) target = $region21
  $region20: #{regnet_forward.21} parent=0 // pred_region
    _
  $region21: #{regnet_forward.21} parent=0 // pred_fallthru
    _

// kernel: regnet_forward.24
$region0: #{regnet_forward.24}
  #allocation0 [shape = 'u32[]', space=smem, size = 0x4, offset = 0x4, fixed_abs, tag = 'smem constant byte address 0x4 - core index']
  #allocation1 [shape = 'u32[72,128]{1,0:T(1,128)}', space=vmem, size = 0x9000, scoped, tag = 'internal scratch']
  %s0 = inlined_call_operand.vmem [shape: bf16[2,1152], index: 0, kind: input, shape index: {}]
  %s1 = inlined_call_operand.vmem [shape: bf16[1152,128], index: 1, kind: input, shape index: {}]
  %s2 = inlined_call_operand.vmem [shape: f32[1,128], index: 2, kind: input, shape index: {}]
  %s3 = inlined_call_operand.vmem [shape: bf16[2,128], index: 3, kind: output, shape index: {}]
  %s4 = sld [smem:[#allocation0]]
  $region22: #{regnet_forward.24} parent=0
    _
  %s6 = ssub.s32 1, %s4
  %s7 = scalar_select 0, %s6, %s4
  // Predicated region
  $region2: #{regnet_forward.24} parent=0 // pred_check
    _
  $region3: #{regnet_forward.24} parent=0 // pred_check_branch
    %9 = sbr.rel (0) target = $region5
  $region4: #{regnet_forward.24} parent=0 // pred_region
    _
  $region5: #{regnet_forward.24} parent=0 // pred_fallthru
    _
  // Predicated region
  $region6: #{regnet_forward.24} parent=0 // pred_check
    _
  $region7: #{regnet_forward.24} parent=0 // pred_check_branch
    %11 = sbr.rel (0) target = $region9
  $region8: #{regnet_forward.24} parent=0 // pred_region
    _
  $region9: #{regnet_forward.24} parent=0 // pred_fallthru
    _
  // Predicated region
  $region10: #{regnet_forward.24} parent=0 // pred_check
    _
  $region11: #{regnet_forward.24} parent=0 // pred_check_branch
    %13 = sbr.rel (0) target = $region13
  $region12: #{regnet_forward.24} parent=0 // pred_region
    _
  $region13: #{regnet_forward.24} parent=0 // pred_fallthru
    _
  %v14 = vld [vmem:[%s0] sm:$0xff]
  %v15 = vld [vmem:[%s0 + $0x8] sm:$0x1]
  %v16 = vld [vmem:[%s1] sm:$0xf]
  %v17 = vld [vmem:[%s1 + $0x4] sm:$0xf]
  %v18 = vld [vmem:[%s1 + $0x8] sm:$0xf]
  %v19 = vld [vmem:[%s1 + $0xc] sm:$0xf]
  %v20 = vld [vmem:[%s1 + $0x10] sm:$0xf]
  %v21 = vld [vmem:[%s1 + $0x14] sm:$0xf]
  %v22 = vld [vmem:[%s1 + $0x18] sm:$0xf]
  %v23 = vld [vmem:[%s1 + $0x1c] sm:$0xf]
  %v24 = vld [vmem:[%s1 + $0x20] sm:$0xf]
  %v25 = vld [vmem:[%s1 + $0x24] sm:$0xf]
  %v26 = vld [vmem:[%s1 + $0x28] sm:$0xf]
  %v27 = vld [vmem:[%s1 + $0x2c] sm:$0xf]
  %v28 = vld [vmem:[%s1 + $0x30] sm:$0xf]
  %v29 = vld [vmem:[%s1 + $0x34] sm:$0xf]
  %v30 = vld [vmem:[%s1 + $0x38] sm:$0xf]
  %v31 = vld [vmem:[%s1 + $0x3c] sm:$0xf]
  %v32 = vld [vmem:[%s1 + $0x40] sm:$0xf]
  %v33 = vld [vmem:[%s1 + $0x44] sm:$0xf]
  %v34 = vld [vmem:[%s1 + $0x48] sm:$0xf]
  %v35 = vld [vmem:[%s1 + $0x4c] sm:$0xf]
  %v36 = vld [vmem:[%s1 + $0x50] sm:$0xf]
  %v37 = vld [vmem:[%s1 + $0x54] sm:$0xf]
  %v38 = vld [vmem:[%s1 + $0x58] sm:$0xf]
  %v39 = vld [vmem:[%s1 + $0x5c] sm:$0xf]
  %v40 = vld [vmem:[%s1 + $0x60] sm:$0xf]
  %v41 = vld [vmem:[%s1 + $0x64] sm:$0xf]
  %v42 = vld [vmem:[%s1 + $0x68] sm:$0xf]
  %v43 = vld [vmem:[%s1 + $0x6c] sm:$0xf]
  %v44 = vld [vmem:[%s1 + $0x70] sm:$0xf]
  %v45 = vld [vmem:[%s1 + $0x74] sm:$0xf]
  %v46 = vld [vmem:[%s1 + $0x78] sm:$0xf]
  %v47 = vld [vmem:[%s1 + $0x7c] sm:$0xf]
  %v48 = vld [vmem:[%s1 + $0x80] sm:$0xf]
  %v49 = vld [vmem:[%s1 + $0x84] sm:$0xf]
  %v50 = vld [vmem:[%s1 + $0x88] sm:$0xf]
  %v51 = vld [vmem:[%s1 + $0x8c] sm:$0xf]
  %v52 = vld [vmem:[%s1 + $0x90] sm:$0xf]
  %v53 = vld [vmem:[%s1 + $0x94] sm:$0xf]
  %v54 = vld [vmem:[%s1 + $0x98] sm:$0xf]
  %v55 = vld [vmem:[%s1 + $0x9c] sm:$0xf]
  %v56 = vld [vmem:[%s1 + $0xa0] sm:$0xf]
  %v57 = vld [vmem:[%s1 + $0xa4] sm:$0xf]
  %v58 = vld [vmem:[%s1 + $0xa8] sm:$0xf]
  %v59 = vld [vmem:[%s1 + $0xac] sm:$0xf]
  %v60 = vld [vmem:[%s1 + $0xb0] sm:$0xf]
  %v61 = vld [vmem:[%s1 + $0xb4] sm:$0xf]
  %v62 = vld [vmem:[%s1 + $0xb8] sm:$0xf]
  %v63 = vld [vmem:[%s1 + $0xbc] sm:$0xf]
  %v64 = vld [vmem:[%s1 + $0xc0] sm:$0xf]
  %v65 = vld [vmem:[%s1 + $0xc4] sm:$0xf]
  %v66 = vld [vmem:[%s1 + $0xc8] sm:$0xf]
  %v67 = vld [vmem:[%s1 + $0xcc] sm:$0xf]
  %v68 = vld [vmem:[%s1 + $0xd0] sm:$0xf]
  %v69 = vld [vmem:[%s1 + $0xd4] sm:$0xf]
  %v70 = vld [vmem:[%s1 + $0xd8] sm:$0xf]
  %v71 = vld [vmem:[%s1 + $0xdc] sm:$0xf]
  %v72 = vld [vmem:[%s1 + $0xe0] sm:$0xf]
  %v73 = vld [vmem:[%s1 + $0xe4] sm:$0xf]
  %v74 = vld [vmem:[%s1 + $0xe8] sm:$0xf]
  %v75 = vld [vmem:[%s1 + $0xec] sm:$0xf]
  %v76 = vld [vmem:[%s1 + $0xf0] sm:$0xf]
  %v77 = vld [vmem:[%s1 + $0xf4] sm:$0xf]
  %v78 = vld [vmem:[%s1 + $0xf8] sm:$0xf]
  %v79 = vld [vmem:[%s1 + $0xfc] sm:$0xf]
  %v80 = vld [vmem:[%s1 + $0x100] sm:$0xf]
  %v81 = vld [vmem:[%s1 + $0x104] sm:$0xf]
  %v82 = vld [vmem:[%s1 + $0x108] sm:$0xf]
  %v83 = vld [vmem:[%s1 + $0x10c] sm:$0xf]
  %v84 = vld [vmem:[%s1 + $0x110] sm:$0xf]
  %v85 = vld [vmem:[%s1 + $0x114] sm:$0xf]
  %v86 = vld [vmem:[%s1 + $0x118] sm:$0xf]
  %v87 = vld [vmem:[%s1 + $0x11c] sm:$0xf]
  %v88 = vld [vmem:[%s1 + $0x120] sm:$0xf]
  %v89 = vld [vmem:[%s1 + $0x124] sm:$0xf]
  %v90 = vld [vmem:[%s1 + $0x128] sm:$0xf]
  %v91 = vld [vmem:[%s1 + $0x12c] sm:$0xf]
  %v92 = vld [vmem:[%s1 + $0x130] sm:$0xf]
  %v93 = vld [vmem:[%s1 + $0x134] sm:$0xf]
  %v94 = vld [vmem:[%s1 + $0x138] sm:$0xf]
  %v95 = vld [vmem:[%s1 + $0x13c] sm:$0xf]
  %v96 = vld [vmem:[%s1 + $0x140] sm:$0xf]
  %v97 = vld [vmem:[%s1 + $0x144] sm:$0xf]
  %v98 = vld [vmem:[%s1 + $0x148] sm:$0xf]
  %v99 = vld [vmem:[%s1 + $0x14c] sm:$0xf]
  %v100 = vld [vmem:[%s1 + $0x150] sm:$0xf]
  %v101 = vld [vmem:[%s1 + $0x154] sm:$0xf]
  %v102 = vld [vmem:[%s1 + $0x158] sm:$0xf]
  %v103 = vld [vmem:[%s1 + $0x15c] sm:$0xf]
  %v104 = vld [vmem:[%s1 + $0x160] sm:$0xf]
  %v105 = vld [vmem:[%s1 + $0x164] sm:$0xf]
  %v106 = vld [vmem:[%s1 + $0x168] sm:$0xf]
  %v107 = vld [vmem:[%s1 + $0x16c] sm:$0xf]
  %v108 = vld [vmem:[%s1 + $0x170] sm:$0xf]
  %v109 = vld [vmem:[%s1 + $0x174] sm:$0xf]
  %v110 = vld [vmem:[%s1 + $0x178] sm:$0xf]
  %v111 = vld [vmem:[%s1 + $0x17c] sm:$0xf]
  %v112 = vld [vmem:[%s1 + $0x180] sm:$0xf]
  %v113 = vld [vmem:[%s1 + $0x184] sm:$0xf]
  %v114 = vld [vmem:[%s1 + $0x188] sm:$0xf]
  %v115 = vld [vmem:[%s1 + $0x18c] sm:$0xf]
  %v116 = vld [vmem:[%s1 + $0x190] sm:$0xf]
  %v117 = vld [vmem:[%s1 + $0x194] sm:$0xf]
  %v118 = vld [vmem:[%s1 + $0x198] sm:$0xf]
  %v119 = vld [vmem:[%s1 + $0x19c] sm:$0xf]
  %v120 = vld [vmem:[%s1 + $0x1a0] sm:$0xf]
  %v121 = vld [vmem:[%s1 + $0x1a4] sm:$0xf]
  %v122 = vld [vmem:[%s1 + $0x1a8] sm:$0xf]
  %v123 = vld [vmem:[%s1 + $0x1ac] sm:$0xf]
  %v124 = vld [vmem:[%s1 + $0x1b0] sm:$0xf]
  %v125 = vld [vmem:[%s1 + $0x1b4] sm:$0xf]
  %v126 = vld [vmem:[%s1 + $0x1b8] sm:$0xf]
  %v127 = vld [vmem:[%s1 + $0x1bc] sm:$0xf]
  %v128 = vld [vmem:[%s1 + $0x1c0] sm:$0xf]
  %v129 = vld [vmem:[%s1 + $0x1c4] sm:$0xf]
  %v130 = vld [vmem:[%s1 + $0x1c8] sm:$0xf]
  %v131 = vld [vmem:[%s1 + $0x1cc] sm:$0xf]
  %v132 = vld [vmem:[%s1 + $0x1d0] sm:$0xf]
  %v133 = vld [vmem:[%s1 + $0x1d4] sm:$0xf]
  %v134 = vld [vmem:[%s1 + $0x1d8] sm:$0xf]
  %v135 = vld [vmem:[%s1 + $0x1dc] sm:$0xf]
  %v136 = vld [vmem:[%s1 + $0x1e0] sm:$0xf]
  %v137 = vld [vmem:[%s1 + $0x1e4] sm:$0xf]
  %v138 = vld [vmem:[%s1 + $0x1e8] sm:$0xf]
  %v139 = vld [vmem:[%s1 + $0x1ec] sm:$0xf]
  %v140 = vld [vmem:[%s1 + $0x1f0] sm:$0xf]
  %v141 = vld [vmem:[%s1 + $0x1f4] sm:$0xf]
  %v142 = vld [vmem:[%s1 + $0x1f8] sm:$0xf]
  %v143 = vld [vmem:[%s1 + $0x1fc] sm:$0xf]
  %v144 = vld [vmem:[%s1 + $0x200] sm:$0xf]
  %v145 = vld [vmem:[%s1 + $0x204] sm:$0xf]
  %v146 = vld [vmem:[%s1 + $0x208] sm:$0xf]
  %v147 = vld [vmem:[%s1 + $0x20c] sm:$0xf]
  %v148 = vld [vmem:[%s1 + $0x210] sm:$0xf]
  %v149 = vld [vmem:[%s1 + $0x214] sm:$0xf]
  %v150 = vld [vmem:[%s1 + $0x218] sm:$0xf]
  %v151 = vld [vmem:[%s1 + $0x21c] sm:$0xf]
  %v152 = vld [vmem:[%s1 + $0x220] sm:$0xf]
  %v153 = vld [vmem:[%s1 + $0x224] sm:$0xf]
  %v154 = vld [vmem:[%s1 + $0x228] sm:$0xf]
  %v155 = vld [vmem:[%s1 + $0x22c] sm:$0xf]
  %v156 = vld [vmem:[%s1 + $0x230] sm:$0xf]
  %v157 = vld [vmem:[%s1 + $0x234] sm:$0xf]
  %v158 = vld [vmem:[%s1 + $0x238] sm:$0xf]
  %v159 = vld [vmem:[%s1 + $0x23c] sm:$0xf]
  %v160 = vld [vmem:[%s2] sm:$0x1]
  %v162 = vperm.slane %v160, 0
  %165 = vst [vmem:[#allocation1] ss:$9 sm:$0xff] %v14
  %v166 = vld [vmem:[#allocation1] sm:$0xff]
  %v167 = vld [vmem:[#allocation1 + $0x9] sm:$0xff]
  %v168 = vld [vmem:[#allocation1 + $0x12] sm:$0xff]
  %v169 = vld [vmem:[#allocation1 + $0x1b] sm:$0xff]
  %v170 = vld [vmem:[#allocation1 + $0x24] sm:$0xff]
  %v171 = vld [vmem:[#allocation1 + $0x2d] sm:$0xff]
  %v172 = vld [vmem:[#allocation1 + $0x36] sm:$0xff]
  %v173 = vld [vmem:[#allocation1 + $0x3f] sm:$0xff]
  %175 = vst [vmem:[#allocation1] ss:$9 sm:$0xff] %v15
  %v176 = vld [vmem:[#allocation1] sm:$0xff]
  %v330 = vunpack.c.l.b16 %v16
  %v331 = vunpack.c.l.b16 %v17
  %v332 = vunpack.c.l.b16 %v18
  %v333 = vunpack.c.l.b16 %v19
  %v334 = vunpack.c.l.b16 %v20
  %v335 = vunpack.c.l.b16 %v21
  %v336 = vunpack.c.l.b16 %v22
  %v337 = vunpack.c.l.b16 %v23
  %v338 = vunpack.c.l.b16 %v24
  %v339 = vunpack.c.l.b16 %v25
  %v340 = vunpack.c.l.b16 %v26
  %v341 = vunpack.c.l.b16 %v27
  %v342 = vunpack.c.l.b16 %v28
  %v343 = vunpack.c.l.b16 %v29
  %v344 = vunpack.c.l.b16 %v30
  %v345 = vunpack.c.l.b16 %v31
  %v346 = vunpack.c.l.b16 %v32
  %v347 = vunpack.c.l.b16 %v33
  %v348 = vunpack.c.l.b16 %v34
  %v349 = vunpack.c.l.b16 %v35
  %v350 = vunpack.c.l.b16 %v36
  %v351 = vunpack.c.l.b16 %v37
  %v352 = vunpack.c.l.b16 %v38
  %v353 = vunpack.c.l.b16 %v39
  %v354 = vunpack.c.l.b16 %v40
  %v355 = vunpack.c.l.b16 %v41
  %v356 = vunpack.c.l.b16 %v42
  %v357 = vunpack.c.l.b16 %v43
  %v358 = vunpack.c.l.b16 %v44
  %v359 = vunpack.c.l.b16 %v45
  %v360 = vunpack.c.l.b16 %v46
  %v361 = vunpack.c.l.b16 %v47
  %v362 = vunpack.c.l.b16 %v48
  %v363 = vunpack.c.l.b16 %v49
  %v364 = vunpack.c.l.b16 %v50
  %v365 = vunpack.c.l.b16 %v51
  %v366 = vunpack.c.l.b16 %v52
  %v367 = vunpack.c.l.b16 %v53
  %v368 = vunpack.c.l.b16 %v54
  %v369 = vunpack.c.l.b16 %v55
  %v370 = vunpack.c.l.b16 %v56
  %v371 = vunpack.c.l.b16 %v57
  %v372 = vunpack.c.l.b16 %v58
  %v373 = vunpack.c.l.b16 %v59
  %v374 = vunpack.c.l.b16 %v60
  %v375 = vunpack.c.l.b16 %v61
  %v376 = vunpack.c.l.b16 %v62
  %v377 = vunpack.c.l.b16 %v63
  %v378 = vunpack.c.l.b16 %v64
  %v379 = vunpack.c.l.b16 %v65
  %v380 = vunpack.c.l.b16 %v66
  %v381 = vunpack.c.l.b16 %v67
  %v382 = vunpack.c.l.b16 %v68
  %v383 = vunpack.c.l.b16 %v69
  %v384 = vunpack.c.l.b16 %v70
  %v385 = vunpack.c.l.b16 %v71
  %v386 = vunpack.c.l.b16 %v72
  %v387 = vunpack.c.l.b16 %v73
  %v388 = vunpack.c.l.b16 %v74
  %v389 = vunpack.c.l.b16 %v75
  %v390 = vunpack.c.l.b16 %v76
  %v391 = vunpack.c.l.b16 %v77
  %v392 = vunpack.c.l.b16 %v78
  %v393 = vunpack.c.l.b16 %v79
  %v394 = vunpack.c.l.b16 %v80
  %v395 = vunpack.c.l.b16 %v81
  %v396 = vunpack.c.l.b16 %v82
  %v397 = vunpack.c.l.b16 %v83
  %v398 = vunpack.c.l.b16 %v84
  %v399 = vunpack.c.l.b16 %v85
  %v400 = vunpack.c.l.b16 %v86
  %v401 = vunpack.c.l.b16 %v87
  %v402 = vunpack.c.l.b16 %v88
  %v403 = vunpack.c.l.b16 %v89
  %v404 = vunpack.c.l.b16 %v90
  %v405 = vunpack.c.l.b16 %v91
  %v406 = vunpack.c.l.b16 %v92
  %v407 = vunpack.c.l.b16 %v93
  %v408 = vunpack.c.l.b16 %v94
  %v409 = vunpack.c.l.b16 %v95
  %v410 = vunpack.c.l.b16 %v96
  %v411 = vunpack.c.l.b16 %v97
  %v412 = vunpack.c.l.b16 %v98
  %v413 = vunpack.c.l.b16 %v99
  %v414 = vunpack.c.l.b16 %v100
  %v415 = vunpack.c.l.b16 %v101
  %v416 = vunpack.c.l.b16 %v102
  %v417 = vunpack.c.l.b16 %v103
  %v418 = vunpack.c.l.b16 %v104
  %v419 = vunpack.c.l.b16 %v105
  %v420 = vunpack.c.l.b16 %v106
  %v421 = vunpack.c.l.b16 %v107
  %v422 = vunpack.c.l.b16 %v108
  %v423 = vunpack.c.l.b16 %v109
  %v424 = vunpack.c.l.b16 %v110
  %v425 = vunpack.c.l.b16 %v111
  %v426 = vunpack.c.l.b16 %v112
  %v427 = vunpack.c.l.b16 %v113
  %v428 = vunpack.c.l.b16 %v114
  %v429 = vunpack.c.l.b16 %v115
  %v430 = vunpack.c.l.b16 %v116
  %v431 = vunpack.c.l.b16 %v117
  %v432 = vunpack.c.l.b16 %v118
  %v433 = vunpack.c.l.b16 %v119
  %v434 = vunpack.c.l.b16 %v120
  %v435 = vunpack.c.l.b16 %v121
  %v436 = vunpack.c.l.b16 %v122
  %v437 = vunpack.c.l.b16 %v123
  %v438 = vunpack.c.l.b16 %v124
  %v439 = vunpack.c.l.b16 %v125
  %v440 = vunpack.c.l.b16 %v126
  %v441 = vunpack.c.l.b16 %v127
  %v442 = vunpack.c.l.b16 %v128
  %v443 = vunpack.c.l.b16 %v129
  %v444 = vunpack.c.l.b16 %v130
  %v445 = vunpack.c.l.b16 %v131
  %v446 = vunpack.c.l.b16 %v132
  %v447 = vunpack.c.l.b16 %v133
  %v448 = vunpack.c.l.b16 %v134
  %v449 = vunpack.c.l.b16 %v135
  %v450 = vunpack.c.l.b16 %v136
  %v451 = vunpack.c.l.b16 %v137
  %v452 = vunpack.c.l.b16 %v138
  %v453 = vunpack.c.l.b16 %v139
  %v454 = vunpack.c.l.b16 %v140
  %v455 = vunpack.c.l.b16 %v141
  %v456 = vunpack.c.l.b16 %v142
  %v457 = vunpack.c.l.b16 %v143
  %v458 = vunpack.c.l.b16 %v144
  %v459 = vunpack.c.l.b16 %v145
  %v460 = vunpack.c.l.b16 %v146
  %v461 = vunpack.c.l.b16 %v147
  %v462 = vunpack.c.l.b16 %v148
  %v463 = vunpack.c.l.b16 %v149
  %v464 = vunpack.c.l.b16 %v150
  %v465 = vunpack.c.l.b16 %v151
  %v466 = vunpack.c.l.b16 %v152
  %v467 = vunpack.c.l.b16 %v153
  %v468 = vunpack.c.l.b16 %v154
  %v469 = vunpack.c.l.b16 %v155
  %v470 = vunpack.c.l.b16 %v156
  %v471 = vunpack.c.l.b16 %v157
  %v472 = vunpack.c.l.b16 %v158
  %v473 = vunpack.c.l.b16 %v159
  %v474 = vpack.c.b16 %v331, %v330
  %v475 = vpack.c.b16 %v333, %v332
  %v476 = vpack.c.b16 %v335, %v334
  %v477 = vpack.c.b16 %v337, %v336
  %v478 = vpack.c.b16 %v339, %v338
  %v479 = vpack.c.b16 %v341, %v340
  %v480 = vpack.c.b16 %v343, %v342
  %v481 = vpack.c.b16 %v345, %v344
  %v482 = vpack.c.b16 %v347, %v346
  %v483 = vpack.c.b16 %v349, %v348
  %v484 = vpack.c.b16 %v351, %v350
  %v485 = vpack.c.b16 %v353, %v352
  %v486 = vpack.c.b16 %v355, %v354
  %v487 = vpack.c.b16 %v357, %v356
  %v488 = vpack.c.b16 %v359, %v358
  %v489 = vpack.c.b16 %v361, %v360
  %v490 = vpack.c.b16 %v363, %v362
  %v491 = vpack.c.b16 %v365, %v364
  %v492 = vpack.c.b16 %v367, %v366
  %v493 = vpack.c.b16 %v369, %v368
  %v494 = vpack.c.b16 %v371, %v370
  %v495 = vpack.c.b16 %v373, %v372
  %v496 = vpack.c.b16 %v375, %v374
  %v497 = vpack.c.b16 %v377, %v376
  %v498 = vpack.c.b16 %v379, %v378
  %v499 = vpack.c.b16 %v381, %v380
  %v500 = vpack.c.b16 %v383, %v382
  %v501 = vpack.c.b16 %v385, %v384
  %v502 = vpack.c.b16 %v387, %v386
  %v503 = vpack.c.b16 %v389, %v388
  %v504 = vpack.c.b16 %v391, %v390
  %v505 = vpack.c.b16 %v393, %v392
  %v506 = vpack.c.b16 %v395, %v394
  %v507 = vpack.c.b16 %v397, %v396
  %v508 = vpack.c.b16 %v399, %v398
  %v509 = vpack.c.b16 %v401, %v400
  %v510 = vpack.c.b16 %v403, %v402
  %v511 = vpack.c.b16 %v405, %v404
  %v512 = vpack.c.b16 %v407, %v406
  %v513 = vpack.c.b16 %v409, %v408
  %v514 = vpack.c.b16 %v411, %v410
  %v515 = vpack.c.b16 %v413, %v412
  %v516 = vpack.c.b16 %v415, %v414
  %v517 = vpack.c.b16 %v417, %v416
  %v518 = vpack.c.b16 %v419, %v418
  %v519 = vpack.c.b16 %v421, %v420
  %v520 = vpack.c.b16 %v423, %v422
  %v521 = vpack.c.b16 %v425, %v424
  %v522 = vpack.c.b16 %v427, %v426
  %v523 = vpack.c.b16 %v429, %v428
  %v524 = vpack.c.b16 %v431, %v430
  %v525 = vpack.c.b16 %v433, %v432
  %v526 = vpack.c.b16 %v435, %v434
  %v527 = vpack.c.b16 %v437, %v436
  %v528 = vpack.c.b16 %v439, %v438
  %v529 = vpack.c.b16 %v441, %v440
  %v530 = vpack.c.b16 %v443, %v442
  %v531 = vpack.c.b16 %v445, %v444
  %v532 = vpack.c.b16 %v447, %v446
  %v533 = vpack.c.b16 %v449, %v448
  %v534 = vpack.c.b16 %v451, %v450
  %v535 = vpack.c.b16 %v453, %v452
  %v536 = vpack.c.b16 %v455, %v454
  %v537 = vpack.c.b16 %v457, %v456
  %v538 = vpack.c.b16 %v459, %v458
  %v539 = vpack.c.b16 %v461, %v460
  %v540 = vpack.c.b16 %v463, %v462
  %v541 = vpack.c.b16 %v465, %v464
  %v542 = vpack.c.b16 %v467, %v466
  %v543 = vpack.c.b16 %v469, %v468
  %v544 = vpack.c.b16 %v471, %v470
  %v545 = vpack.c.b16 %v473, %v472
  %618 = vmatpush.bf16.msra.mxu0 %v481
  %619 = vmatpush.bf16.msra.mxu0 %v480
  %620 = vmatpush.bf16.msra.mxu0 %v479
  %621 = vmatpush.bf16.msra.mxu0 %v478
  %622 = vmatpush.bf16.msra.mxu0 %v477
  %623 = vmatpush.bf16.msra.mxu0 %v476
  %624 = vmatpush.bf16.msra.mxu0 %v475
  %625 = vmatpush.bf16.msra.mxu0 %v474
  %626 = vmatmul.bf16.gmra.mxu0 %v166
  %v627 = vpop.f32.mrf.mxu0
  %v628 = vadd.f32 %v162, %v627
  %v629 = vpop.f32.mrf.mxu0
  %630 = vdwg.mxu0
  %631 = vmatpush.bf16.msra.mxu0 %v489
  %632 = vmatpush.bf16.msra.mxu0 %v488
  %633 = vmatpush.bf16.msra.mxu0 %v487
  %634 = vmatpush.bf16.msra.mxu0 %v486
  %635 = vmatpush.bf16.msra.mxu0 %v485
  %636 = vmatpush.bf16.msra.mxu0 %v484
  %637 = vmatpush.bf16.msra.mxu0 %v483
  %638 = vmatpush.bf16.msra.mxu0 %v482
  %639 = vmatmul.bf16.gmra.mxu0 %v167
  %v640 = vpop.f32.mrf.mxu0
  %v641 = vadd.f32 %v628, %v640
  %v642 = vpop.f32.mrf.mxu0
  %643 = vdwg.mxu0
  %644 = vmatpush.bf16.msra.mxu0 %v497
  %645 = vmatpush.bf16.msra.mxu0 %v496
  %646 = vmatpush.bf16.msra.mxu0 %v495
  %647 = vmatpush.bf16.msra.mxu0 %v494
  %648 = vmatpush.bf16.msra.mxu0 %v493
  %649 = vmatpush.bf16.msra.mxu0 %v492
  %650 = vmatpush.bf16.msra.mxu0 %v491
  %651 = vmatpush.bf16.msra.mxu0 %v490
  %652 = vmatmul.bf16.gmra.mxu0 %v168
  %v653 = vpop.f32.mrf.mxu0
  %v654 = vadd.f32 %v641, %v653
  %v655 = vpop.f32.mrf.mxu0
  %656 = vdwg.mxu0
  %657 = vmatpush.bf16.msra.mxu0 %v505
  %658 = vmatpush.bf16.msra.mxu0 %v504
  %659 = vmatpush.bf16.msra.mxu0 %v503
  %660 = vmatpush.bf16.msra.mxu0 %v502
  %661 = vmatpush.bf16.msra.mxu0 %v501
  %662 = vmatpush.bf16.msra.mxu0 %v500
  %663 = vmatpush.bf16.msra.mxu0 %v499
  %664 = vmatpush.bf16.msra.mxu0 %v498
  %665 = vmatmul.bf16.gmra.mxu0 %v169
  %v666 = vpop.f32.mrf.mxu0
  %v667 = vadd.f32 %v654, %v666
  %v668 = vpop.f32.mrf.mxu0
  %669 = vdwg.mxu0
  %670 = vmatpush.bf16.msra.mxu0 %v513
  %671 = vmatpush.bf16.msra.mxu0 %v512
  %672 = vmatpush.bf16.msra.mxu0 %v511
  %673 = vmatpush.bf16.msra.mxu0 %v510
  %674 = vmatpush.bf16.msra.mxu0 %v509
  %675 = vmatpush.bf16.msra.mxu0 %v508
  %676 = vmatpush.bf16.msra.mxu0 %v507
  %677 = vmatpush.bf16.msra.mxu0 %v506
  %678 = vmatmul.bf16.gmra.mxu0 %v170
  %v679 = vpop.f32.mrf.mxu0
  %v680 = vadd.f32 %v667, %v679
  %v681 = vpop.f32.mrf.mxu0
  %682 = vdwg.mxu0
  %683 = vmatpush.bf16.msra.mxu0 %v521
  %684 = vmatpush.bf16.msra.mxu0 %v520
  %685 = vmatpush.bf16.msra.mxu0 %v519
  %686 = vmatpush.bf16.msra.mxu0 %v518
  %687 = vmatpush.bf16.msra.mxu0 %v517
  %688 = vmatpush.bf16.msra.mxu0 %v516
  %689 = vmatpush.bf16.msra.mxu0 %v515
  %690 = vmatpush.bf16.msra.mxu0 %v514
  %691 = vmatmul.bf16.gmra.mxu0 %v171
  %v692 = vpop.f32.mrf.mxu0
  %v693 = vadd.f32 %v680, %v692
  %v694 = vpop.f32.mrf.mxu0
  %695 = vdwg.mxu0
  %696 = vmatpush.bf16.msra.mxu0 %v529
  %697 = vmatpush.bf16.msra.mxu0 %v528
  %698 = vmatpush.bf16.msra.mxu0 %v527
  %699 = vmatpush.bf16.msra.mxu0 %v526
  %700 = vmatpush.bf16.msra.mxu0 %v525
  %701 = vmatpush.bf16.msra.mxu0 %v524
  %702 = vmatpush.bf16.msra.mxu0 %v523
  %703 = vmatpush.bf16.msra.mxu0 %v522
  %704 = vmatmul.bf16.gmra.mxu0 %v172
  %v705 = vpop.f32.mrf.mxu0
  %v706 = vadd.f32 %v693, %v705
  %v707 = vpop.f32.mrf.mxu0
  %708 = vdwg.mxu0
  %709 = vmatpush.bf16.msra.mxu0 %v537
  %710 = vmatpush.bf16.msra.mxu0 %v536
  %711 = vmatpush.bf16.msra.mxu0 %v535
  %712 = vmatpush.bf16.msra.mxu0 %v534
  %713 = vmatpush.bf16.msra.mxu0 %v533
  %714 = vmatpush.bf16.msra.mxu0 %v532
  %715 = vmatpush.bf16.msra.mxu0 %v531
  %716 = vmatpush.bf16.msra.mxu0 %v530
  %717 = vmatmul.bf16.gmra.mxu0 %v173
  %v718 = vpop.f32.mrf.mxu0
  %v719 = vadd.f32 %v706, %v718
  %v720 = vpop.f32.mrf.mxu0
  %721 = vdwg.mxu0
  %722 = vmatpush.bf16.msra.mxu0 %v545
  %723 = vmatpush.bf16.msra.mxu0 %v544
  %724 = vmatpush.bf16.msra.mxu0 %v543
  %725 = vmatpush.bf16.msra.mxu0 %v542
  %726 = vmatpush.bf16.msra.mxu0 %v541
  %727 = vmatpush.bf16.msra.mxu0 %v540
  %728 = vmatpush.bf16.msra.mxu0 %v539
  %729 = vmatpush.bf16.msra.mxu0 %v538
  %730 = vmatmul.bf16.gmra.mxu0 %v176
  %v731 = vpop.f32.mrf.mxu0
  %v732 = vadd.f32 %v719, %v731
  %v733 = vpop.f32.mrf.mxu0
  %734 = vdwg.mxu0
  %v735 = vmax.f32 %v732, 0.0
  %v736 = vpack.c.bf16 %v735, %v735
  %737 = vst [vmem:[%s3] sm:$0x1] %v736
  // Predicated region
  $region14: #{regnet_forward.24} parent=0 // pred_check
    _
  $region15: #{regnet_forward.24} parent=0 // pred_check_branch
    %739 = sbr.rel (0) target = $region17
  $region16: #{regnet_forward.24} parent=0 // pred_region
    _
  $region17: #{regnet_forward.24} parent=0 // pred_fallthru
    _
  // Predicated region
  $region18: #{regnet_forward.24} parent=0 // pred_check
    _
  $region19: #{regnet_forward.24} parent=0 // pred_check_branch
    %741 = sbr.rel (0) target = $region21
  $region20: #{regnet_forward.24} parent=0 // pred_region
    _
  $region21: #{regnet_forward.24} parent=0 // pred_fallthru
    _

// kernel: regnet_forward.25
$region0: #{regnet_forward.25}
  #allocation0 [shape = 'u32[]', space=smem, size = 0x4, offset = 0x4, fixed_abs, tag = 'smem constant byte address 0x4 - core index']
  #allocation1 [shape = 'u32[72,128]{1,0:T(1,128)}', space=vmem, size = 0x9000, scoped, tag = 'internal scratch']
  %s0 = inlined_call_operand.vmem [shape: bf16[2,128], index: 0, kind: input, shape index: {}]
  %s1 = inlined_call_operand.vmem [shape: bf16[128,128], index: 1, kind: input, shape index: {}]
  %s2 = inlined_call_operand.vmem [shape: f32[1,128], index: 2, kind: input, shape index: {}]
  %s3 = inlined_call_operand.vmem [shape: bf16[2,128], index: 3, kind: input, shape index: {}]
  %s4 = inlined_call_operand.vmem [shape: bf16[128,128], index: 4, kind: input, shape index: {}]
  %s5 = inlined_call_operand.vmem [shape: bf16[2,128], index: 5, kind: output, shape index: {}]
  %s6 = sld [smem:[#allocation0]]
  $region30: #{regnet_forward.25} parent=0
    _
  %s8 = ssub.s32 1, %s6
  %s9 = scalar_select 0, %s8, %s6
  // Predicated region
  $region2: #{regnet_forward.25} parent=0 // pred_check
    _
  $region3: #{regnet_forward.25} parent=0 // pred_check_branch
    %11 = sbr.rel (0) target = $region5
  $region4: #{regnet_forward.25} parent=0 // pred_region
    _
  $region5: #{regnet_forward.25} parent=0 // pred_fallthru
    _
  // Predicated region
  $region6: #{regnet_forward.25} parent=0 // pred_check
    _
  $region7: #{regnet_forward.25} parent=0 // pred_check_branch
    %13 = sbr.rel (0) target = $region9
  $region8: #{regnet_forward.25} parent=0 // pred_region
    _
  $region9: #{regnet_forward.25} parent=0 // pred_fallthru
    _
  // Predicated region
  $region10: #{regnet_forward.25} parent=0 // pred_check
    _
  $region11: #{regnet_forward.25} parent=0 // pred_check_branch
    %15 = sbr.rel (0) target = $region13
  $region12: #{regnet_forward.25} parent=0 // pred_region
    _
  $region13: #{regnet_forward.25} parent=0 // pred_fallthru
    _
  // Predicated region
  $region14: #{regnet_forward.25} parent=0 // pred_check
    _
  $region15: #{regnet_forward.25} parent=0 // pred_check_branch
    %17 = sbr.rel (0) target = $region17
  $region16: #{regnet_forward.25} parent=0 // pred_region
    _
  $region17: #{regnet_forward.25} parent=0 // pred_fallthru
    _
  // Predicated region
  $region18: #{regnet_forward.25} parent=0 // pred_check
    _
  $region19: #{regnet_forward.25} parent=0 // pred_check_branch
    %19 = sbr.rel (0) target = $region21
  $region20: #{regnet_forward.25} parent=0 // pred_region
    _
  $region21: #{regnet_forward.25} parent=0 // pred_fallthru
    _
  %v20 = vld [vmem:[%s0] sm:$0x1]
  %v21 = vld [vmem:[%s1] sm:$0xf]
  %v22 = vld [vmem:[%s1 + $0x4] sm:$0xf]
  %v23 = vld [vmem:[%s1 + $0x8] sm:$0xf]
  %v24 = vld [vmem:[%s1 + $0xc] sm:$0xf]
  %v25 = vld [vmem:[%s1 + $0x10] sm:$0xf]
  %v26 = vld [vmem:[%s1 + $0x14] sm:$0xf]
  %v27 = vld [vmem:[%s1 + $0x18] sm:$0xf]
  %v28 = vld [vmem:[%s1 + $0x1c] sm:$0xf]
  %v29 = vld [vmem:[%s1 + $0x20] sm:$0xf]
  %v30 = vld [vmem:[%s1 + $0x24] sm:$0xf]
  %v31 = vld [vmem:[%s1 + $0x28] sm:$0xf]
  %v32 = vld [vmem:[%s1 + $0x2c] sm:$0xf]
  %v33 = vld [vmem:[%s1 + $0x30] sm:$0xf]
  %v34 = vld [vmem:[%s1 + $0x34] sm:$0xf]
  %v35 = vld [vmem:[%s1 + $0x38] sm:$0xf]
  %v36 = vld [vmem:[%s1 + $0x3c] sm:$0xf]
  %v37 = vld [vmem:[%s3] sm:$0x1]
  %v38 = vld [vmem:[%s4] sm:$0xf]
  %v39 = vld [vmem:[%s4 + $0x4] sm:$0xf]
  %v40 = vld [vmem:[%s4 + $0x8] sm:$0xf]
  %v41 = vld [vmem:[%s4 + $0xc] sm:$0xf]
  %v42 = vld [vmem:[%s4 + $0x10] sm:$0xf]
  %v43 = vld [vmem:[%s4 + $0x14] sm:$0xf]
  %v44 = vld [vmem:[%s4 + $0x18] sm:$0xf]
  %v45 = vld [vmem:[%s4 + $0x1c] sm:$0xf]
  %v46 = vld [vmem:[%s4 + $0x20] sm:$0xf]
  %v47 = vld [vmem:[%s4 + $0x24] sm:$0xf]
  %v48 = vld [vmem:[%s4 + $0x28] sm:$0xf]
  %v49 = vld [vmem:[%s4 + $0x2c] sm:$0xf]
  %v50 = vld [vmem:[%s4 + $0x30] sm:$0xf]
  %v51 = vld [vmem:[%s4 + $0x34] sm:$0xf]
  %v52 = vld [vmem:[%s4 + $0x38] sm:$0xf]
  %v53 = vld [vmem:[%s4 + $0x3c] sm:$0xf]
  %v70 = vunpack.c.l.b16 %v38
  %v71 = vunpack.c.l.b16 %v39
  %v72 = vunpack.c.l.b16 %v40
  %v73 = vunpack.c.l.b16 %v41
  %v74 = vunpack.c.l.b16 %v42
  %v75 = vunpack.c.l.b16 %v43
  %v76 = vunpack.c.l.b16 %v44
  %v77 = vunpack.c.l.b16 %v45
  %v78 = vunpack.c.l.b16 %v46
  %v79 = vunpack.c.l.b16 %v47
  %v80 = vunpack.c.l.b16 %v48
  %v81 = vunpack.c.l.b16 %v49
  %v82 = vunpack.c.l.b16 %v50
  %v83 = vunpack.c.l.b16 %v51
  %v84 = vunpack.c.l.b16 %v52
  %v85 = vunpack.c.l.b16 %v53
  %v86 = vpack.c.b16 %v71, %v70
  %v87 = vpack.c.b16 %v73, %v72
  %v88 = vpack.c.b16 %v75, %v74
  %v89 = vpack.c.b16 %v77, %v76
  %v90 = vpack.c.b16 %v79, %v78
  %v91 = vpack.c.b16 %v81, %v80
  %v92 = vpack.c.b16 %v83, %v82
  %v93 = vpack.c.b16 %v85, %v84
  %102 = vmatpush.bf16.msra.mxu0 %v93
  %103 = vmatpush.bf16.msra.mxu0 %v92
  %104 = vmatpush.bf16.msra.mxu0 %v91
  %105 = vmatpush.bf16.msra.mxu0 %v90
  %106 = vmatpush.bf16.msra.mxu0 %v89
  %107 = vmatpush.bf16.msra.mxu0 %v88
  %108 = vmatpush.bf16.msra.mxu0 %v87
  %109 = vmatpush.bf16.msra.mxu0 %v86
  %110 = vmatmul.bf16.gmra.mxu0 %v37
  %v111 = vpop.f32.mrf.mxu0
  %v112 = vadd.f32 0.0, %v111
  %v113 = vpop.f32.mrf.mxu0
  %114 = vdwg.mxu0
  %v131 = vunpack.c.l.b16 %v21
  %v132 = vunpack.c.l.b16 %v22
  %v133 = vunpack.c.l.b16 %v23
  %v134 = vunpack.c.l.b16 %v24
  %v135 = vunpack.c.l.b16 %v25
  %v136 = vunpack.c.l.b16 %v26
  %v137 = vunpack.c.l.b16 %v27
  %v138 = vunpack.c.l.b16 %v28
  %v139 = vunpack.c.l.b16 %v29
  %v140 = vunpack.c.l.b16 %v30
  %v141 = vunpack.c.l.b16 %v31
  %v142 = vunpack.c.l.b16 %v32
  %v143 = vunpack.c.l.b16 %v33
  %v144 = vunpack.c.l.b16 %v34
  %v145 = vunpack.c.l.b16 %v35
  %v146 = vunpack.c.l.b16 %v36
  %v147 = vpack.c.b16 %v132, %v131
  %v148 = vpack.c.b16 %v134, %v133
  %v149 = vpack.c.b16 %v136, %v135
  %v150 = vpack.c.b16 %v138, %v137
  %v151 = vpack.c.b16 %v140, %v139
  %v152 = vpack.c.b16 %v142, %v141
  %v153 = vpack.c.b16 %v144, %v143
  %v154 = vpack.c.b16 %v146, %v145
  %163 = vmatpush.bf16.msra.mxu0 %v154
  %164 = vmatpush.bf16.msra.mxu0 %v153
  %165 = vmatpush.bf16.msra.mxu0 %v152
  %166 = vmatpush.bf16.msra.mxu0 %v151
  %167 = vmatpush.bf16.msra.mxu0 %v150
  %168 = vmatpush.bf16.msra.mxu0 %v149
  %169 = vmatpush.bf16.msra.mxu0 %v148
  %170 = vmatpush.bf16.msra.mxu0 %v147
  %171 = vmatmul.bf16.gmra.mxu0 %v20
  %v172 = vpop.f32.mrf.mxu0
  %v173 = vadd.f32 %v112, %v172
  %v174 = vpop.f32.mrf.mxu0
  %175 = vdwg.mxu0
  %v176 = vld [vmem:[%s2] sm:$0x1]
  %v178 = vperm.slane %v176, 0
  %v180 = vadd.f32 %v173, %v178
  %v181 = vmax.f32 %v180, 0.0
  %v182 = vpack.c.bf16 %v181, %v181
  %183 = vst [vmem:[%s5] sm:$0x1] %v182
  // Predicated region
  $region22: #{regnet_forward.25} parent=0 // pred_check
    _
  $region23: #{regnet_forward.25} parent=0 // pred_check_branch
    %185 = sbr.rel (0) target = $region25
  $region24: #{regnet_forward.25} parent=0 // pred_region
    _
  $region25: #{regnet_forward.25} parent=0 // pred_fallthru
    _
  // Predicated region
  $region26: #{regnet_forward.25} parent=0 // pred_check
    _
  $region27: #{regnet_forward.25} parent=0 // pred_check_branch
    %187 = sbr.rel (0) target = $region29
  $region28: #{regnet_forward.25} parent=0 // pred_region
    _
  $region29: #{regnet_forward.25} parent=0 // pred_fallthru
    _

</llo_original>
